<compile_context>
chip_gen: v7x
topology: tpu7x:2x2x1
jax: 0.10.0
libtpu: 0.0.40
codegen_flags: <defaults>
</compile_context>

<pallas_src>
import functools

import jax
import jax.numpy as jnp
from jax import lax
from jax.experimental import pallas as pl
from jax.experimental.pallas import tpu as pltpu


def _layernorm(x, gamma, beta, eps=1e-5):
    mean = jnp.mean(x, axis=-1, keepdims=True)
    var = jnp.mean((x - mean) ** 2, axis=-1, keepdims=True)
    return (x - mean) * lax.rsqrt(var + eps) * gamma + beta


# ----------------------------- Pallas kernel --------------------------------

def _encoder_kernel(head_num, head_size,
                    seqlen_ref,                               # scalar prefetch (SMEM), (B,)
                    emb_ref, g_emb_ref, b_emb_ref,            # raw embeddings + embed-LN params
                    wqkv_ref, bqkv_ref,                       # fused QKV (scale pre-folded)
                    wo_ref, bo_ref, g1_ref, be1_ref,
                    w1_ref, b1_ref, w2_ref, b2_ref, g2_ref, be2_ref,
                    out_ref,
                    h_sc):                                    # VMEM scratch (B*S, D) f32 carry
    l = pl.program_id(0)
    n_layer = pl.num_programs(0)
    B, S, D = out_ref.shape
    H, E = head_num, head_size
    N = B * S

    # Embedding LayerNorm fused into layer 0.
    @pl.when(l == 0)
    def _():
        h_sc[...] = _layernorm(emb_ref[...].reshape(N, D),
                               g_emb_ref[...], b_emb_ref[...])

    h = h_sc[...]                                             # (N, D) f32 running state
    hb = h.astype(jnp.bfloat16)

    # ---------------- self attention (fused QKV projection) -----------------
    # One (N, D) x (D, 3D) matmul; q-scale is folded into Wq/bq at prep time.
    qkv = (jnp.dot(hb, wqkv_ref[0], preferred_element_type=jnp.float32)
           + bqkv_ref[0]).astype(jnp.bfloat16)                # (N, 3D) bf16

    ctx_rows = []
    for b in range(B):                                        # static Python loop (small B)
        rows = qkv[b * S:(b + 1) * S]                         # (S, 3D) bf16, sublane-aligned
        # Lane-aligned per-head slices stacked on a leading axis -> batched MXU einsums.
        qh = jnp.stack([rows[:, i * E:(i + 1) * E] for i in range(H)], 0)           # (H,S,E)
        kh = jnp.stack([rows[:, D + i * E:D + (i + 1) * E] for i in range(H)], 0)
        vh = jnp.stack([rows[:, 2 * D + i * E:2 * D + (i + 1) * E] for i in range(H)], 0)

        scores = jnp.einsum('hqe,hke->hqk', qh, kh,
                            preferred_element_type=jnp.float32)                     # (H,S,S) f32
        key_pos = lax.broadcasted_iota(jnp.int32, (1, 1, S), 2)
        scores = jnp.where(key_pos < seqlen_ref[b], scores, -1e9)                   # key mask (f32)
        scores = scores - jnp.max(scores, axis=-1, keepdims=True)
        p = jnp.exp(scores)
        denom = jnp.sum(p, axis=-1, keepdims=True)                                  # (H,S,1)

        ctx = jnp.einsum('hqk,hke->hqe', p.astype(jnp.bfloat16), vh,
                         preferred_element_type=jnp.float32)                        # (H,S,E) f32
        # Deferred softmax normalization: scale the (H,S,E) context, not (H,S,S).
        ctx = ctx * pl.reciprocal(denom, approx=True)
        ctx_rows.append(jnp.concatenate([ctx[i] for i in range(H)], axis=-1))       # (S, D)
    ctx_all = jnp.concatenate(ctx_rows, 0)                                          # (N, D) f32

    attn = jnp.dot(ctx_all.astype(jnp.bfloat16), wo_ref[0],
                   preferred_element_type=jnp.float32) + bo_ref[0]

    # post-layernorm residual 1
    h1 = _layernorm(h + attn, g1_ref[0], be1_ref[0])

    # ---------------- FFN with gelu (FT 'gelu' == tanh approximation) -------
    ff = jnp.dot(h1.astype(jnp.bfloat16), w1_ref[0],
                 preferred_element_type=jnp.float32) + b1_ref[0]
    ff = jax.nn.gelu(ff, approximate=True)
    ff = jnp.dot(ff.astype(jnp.bfloat16), w2_ref[0],
                 preferred_element_type=jnp.float32) + b2_ref[0]

    # post-layernorm residual 2
    h2 = _layernorm(h1 + ff, g2_ref[0], be2_ref[0])
    h_sc[...] = h2

    @pl.when(l == n_layer - 1)
    def _():
        # is_remove_padding rebuild: zero out padded output rows.
        pos = lax.broadcasted_iota(jnp.int32, (S, 1), 0)
        for b in range(B):
            out_ref[b] = jnp.where(pos < seqlen_ref[b], h2[b * S:(b + 1) * S], 0.0)

    # TODO(synk): for BART-large on v7x (D=1024, I=4096, S=1024) add flash-style
    # query/KV tiling of the (H,S,S) scores, K-tiling of the FFN over I, and
    # optionally int8 FFN weights (v6e) / pl.Buffered(3) on w1/w2 (v6e, 128 MiB
    # VMEM) / input_output_aliases for the embedding block; at these demo sizes
    # full blocks fit comfortably.


# ------------------------------ Pallas wrapper -------------------------------

def _vmem_limit_bytes():
    # Leave headroom for compiler-internal scratch rather than claiming all of
    # v7x's 64 MiB; allow ~100 MiB on v5e/v6e (128 MiB physical).
    try:
        cap = int(pltpu.get_tpu_info().vmem_capacity_bytes)
    except Exception:
        cap = 64 * 1024 * 1024
    return max(32 * 1024 * 1024, min(cap - 16 * 1024 * 1024, 100 * 1024 * 1024))


def make_encoder(B, S, D, I, L, head_num, head_size):
    kernel = functools.partial(_encoder_kernel, head_num, head_size)

    # Layer-indexed weight blocks: vary along the single (L,) grid axis, so each
    # layer's weights are DMA'd exactly once and layer l+1 prefetch overlaps
    # layer l compute.
    wQKV = pl.BlockSpec((1, D, 3 * D), lambda l, sl: (l, 0, 0))
    vQKV = pl.BlockSpec((1, 1, 3 * D), lambda l, sl: (l, 0, 0))
    wDD = pl.BlockSpec((1, D, D), lambda l, sl: (l, 0, 0))
    wDI = pl.BlockSpec((1, D, I), lambda l, sl: (l, 0, 0))
    wID = pl.BlockSpec((1, I, D), lambda l, sl: (l, 0, 0))
    vD = pl.BlockSpec((1, 1, D), lambda l, sl: (l, 0, 0))
    vI = pl.BlockSpec((1, 1, I), lambda l, sl: (l, 0, 0))
    # Activation blocks: constant block index -> fetched/written once for the whole grid.
    emb_in = pl.BlockSpec((B, S, D), lambda l, sl: (0, 0, 0))
    embD = pl.BlockSpec((1, D), lambda l, sl: (0, 0))
    h_out = pl.BlockSpec((B, S, D), lambda l, sl: (0, 0, 0))

    in_specs = [
        emb_in, embD, embD,                   # raw embeddings, embed-LN gamma/beta
        wQKV, vQKV,                           # fused Wqkv, bqkv
        wDD, vD, vD, vD,                      # Wo, bo, LN1 gamma/beta
        wDI, vI, wID, vD, vD, vD,             # W1, b1, W2, b2, LN2 gamma/beta
    ]

    return pl.pallas_call(
        kernel,
        out_shape=jax.ShapeDtypeStruct((B, S, D), jnp.float32),
        grid_spec=pltpu.PrefetchScalarGridSpec(
            num_scalar_prefetch=1,            # seq_len (B,) int32 in SMEM
            grid=(L,),
            in_specs=in_specs,
            out_specs=h_out,
            scratch_shapes=[pltpu.VMEM((B * S, D), jnp.float32)],
        ),
        compiler_params=pltpu.CompilerParams(
            dimension_semantics=("arbitrary",),     # layer axis carries state
            vmem_limit_bytes=_vmem_limit_bytes(),
        ),
    )


# ------------------------------ Parameter init ------------------------------

def init_params(key, vocab, max_pos, D, I, num_layer):
    def norm(k, shape, scale=0.02):
        return (scale * jax.random.normal(k, shape)).astype(jnp.float32)

    keys = jax.random.split(key, 3 + num_layer)
    params = {
        "word_emb": norm(keys[0], (vocab, D)),
        "pos_emb": norm(keys[1], (max_pos, D)),
        "ln_emb_g": jnp.ones((1, D), jnp.float32),
        "ln_emb_b": jnp.zeros((1, D), jnp.float32),
        "layers": [],
    }
    for l in range(num_layer):
        lk = jax.random.split(keys[3 + l], 6)
        params["layers"].append({
            "wq": norm(lk[0], (D, D)), "bq": jnp.zeros((1, D), jnp.float32),
            "wk": norm(lk[1], (D, D)), "bk": jnp.zeros((1, D), jnp.float32),
            "wv": norm(lk[2], (D, D)), "bv": jnp.zeros((1, D), jnp.float32),
            "wo": norm(lk[3], (D, D)), "bo": jnp.zeros((1, D), jnp.float32),
            "ln1_g": jnp.ones((1, D), jnp.float32), "ln1_b": jnp.zeros((1, D), jnp.float32),
            "w1": norm(lk[4], (D, I)), "b1": jnp.zeros((1, I), jnp.float32),
            "w2": norm(lk[5], (I, D)), "b2": jnp.zeros((1, D), jnp.float32),
            "ln2_g": jnp.ones((1, D), jnp.float32), "ln2_b": jnp.zeros((1, D), jnp.float32),
        })
    return params


def prepare_encoder_params(params, head_size):
    """One-time prep (hoisted out of forward): stack per-layer weights along L,
    fuse Wq|Wk|Wv into one (L, D, 3D) block, fold 1/sqrt(head_size) into Wq/bq,
    and cast matmul weights to bf16 (halves HBM->VMEM weight DMA)."""
    layers = params["layers"]
    scale = 1.0 / (float(head_size) ** 0.5)

    def stack(name):
        return jnp.stack([p[name] for p in layers], 0)

    wqkv = jnp.concatenate([stack("wq") * scale, stack("wk"), stack("wv")],
                           axis=-1).astype(jnp.bfloat16)                    # (L, D, 3D)
    bqkv = jnp.concatenate([stack("bq") * scale, stack("bk"), stack("bv")],
                           axis=-1).astype(jnp.float32)                     # (L, 1, 3D)

    return {
        "word_emb": params["word_emb"].astype(jnp.float32),
        "pos_emb": params["pos_emb"].astype(jnp.float32),
        "ln_emb_g": params["ln_emb_g"].astype(jnp.float32),
        "ln_emb_b": params["ln_emb_b"].astype(jnp.float32),
        "wqkv": wqkv, "bqkv": bqkv,
        "wo": stack("wo").astype(jnp.bfloat16), "bo": stack("bo").astype(jnp.float32),
        "g1": stack("ln1_g").astype(jnp.float32), "be1": stack("ln1_b").astype(jnp.float32),
        "w1": stack("w1").astype(jnp.bfloat16), "b1": stack("b1").astype(jnp.float32),
        "w2": stack("w2").astype(jnp.bfloat16), "b2": stack("b2").astype(jnp.float32),
        "g2": stack("ln2_g").astype(jnp.float32), "be2": stack("ln2_b").astype(jnp.float32),
    }


# ------------------------------ Encoder forward ------------------------------

def ft_bart_encoder_forward(prepped, input_ids, seq_len, head_num, head_size):
    B, S = input_ids.shape
    D = prepped["word_emb"].shape[1]
    I = prepped["w1"].shape[2]
    L = prepped["w1"].shape[0]

    # Glue: embedding gather + absolute learned position embedding
    # (position_embedding_type=1). Embed-LN is fused into layer 0 of the kernel.
    h = (prepped["word_emb"][input_ids] + prepped["pos_emb"][:S][None, :, :]
         ).astype(jnp.float32)

    encoder = make_encoder(B, S, D, I, L, head_num, head_size)
    return encoder(seq_len, h,
                   prepped["ln_emb_g"], prepped["ln_emb_b"],
                   prepped["wqkv"], prepped["bqkv"],
                   prepped["wo"], prepped["bo"], prepped["g1"], prepped["be1"],
                   prepped["w1"], prepped["b1"], prepped["w2"], prepped["b2"],
                   prepped["g2"], prepped["be2"])
    # TODO(synk): sparse / tensor_para / pipeline_para / mbart / relative-bucket
    # paths of the FT op are single-device no-ops for this config.


if __name__ == "__main__":
    # Small but lane-dense config: head_num=2, head_size=128 -> d_model=256,
    # inter_size=512, 2 layers, seq=128 (all dims multiples of (8,128) tiles).
    B, S = 2, 128
    head_num, head_size = 2, 128
    d_model = head_num * head_size
    inter_size = 2 * d_model
    num_layer = 2
    vocab, max_pos = 512, 256

    key = jax.random.PRNGKey(0)
    kp, ki = jax.random.split(key)
    params = init_params(kp, vocab, max_pos, d_model, inter_size, num_layer)
    prepped = prepare_encoder_params(params, head_size)     # one-time weight prep

    input_ids = jax.random.randint(ki, (B, S), 0, vocab, dtype=jnp.int32)
    seq_len = jnp.array([S, 93], dtype=jnp.int32)            # second sequence is padded

    out = ft_bart_encoder_forward(prepped, input_ids, seq_len, head_num, head_size)
    out = jax.block_until_ready(out)
    assert out.shape == (B, S, d_model) and out.dtype == jnp.float32
    assert bool(jnp.all(jnp.isfinite(out)))
    # padded rows of the second sequence must be zero (remove-padding rebuild)
    assert bool(jnp.all(out[1, 93:] == 0.0))
    print("KERNEL_OK")
</pallas_src>

<mosaic_0001>
module attributes {stable_mosaic.version = 11 : i64} {
  func.func @_encoder_kernel(%arg0: i32, %arg1: memref<2xi32, #tpu.memory_space<smem>>, %arg2: memref<2x128x256xf32, #tpu.memory_space<vmem>>, %arg3: memref<1x256xf32, #tpu.memory_space<vmem>>, %arg4: memref<1x256xf32, #tpu.memory_space<vmem>>, %arg5: memref<1x256x768xbf16, #tpu.memory_space<vmem>>, %arg6: memref<1x1x768xf32, #tpu.memory_space<vmem>>, %arg7: memref<1x256x256xbf16, #tpu.memory_space<vmem>>, %arg8: memref<1x1x256xf32, #tpu.memory_space<vmem>>, %arg9: memref<1x1x256xf32, #tpu.memory_space<vmem>>, %arg10: memref<1x1x256xf32, #tpu.memory_space<vmem>>, %arg11: memref<1x256x512xbf16, #tpu.memory_space<vmem>>, %arg12: memref<1x1x512xf32, #tpu.memory_space<vmem>>, %arg13: memref<1x512x256xbf16, #tpu.memory_space<vmem>>, %arg14: memref<1x1x256xf32, #tpu.memory_space<vmem>>, %arg15: memref<1x1x256xf32, #tpu.memory_space<vmem>>, %arg16: memref<1x1x256xf32, #tpu.memory_space<vmem>>, %arg17: memref<2x128x256xf32, #tpu.memory_space<vmem>>, %arg18: memref<256x256xf32, #tpu.memory_space<vmem>>) attributes {dimension_semantics = [#tpu.dimension_semantics<arbitrary>], iteration_bounds = array<i64: 2>, scalar_prefetch = 1 : i64, scratch_operands = 1 : i64, tpu.core_type = #tpu.core_type<tc>, window_params = [{pipeline_mode = #tpu.pipeline_mode<synchronous>, transform_indices = @transform_0, window_bounds = array<i64: 2, 128, 256>}, {pipeline_mode = #tpu.pipeline_mode<synchronous>, transform_indices = @transform_1, window_bounds = array<i64: 1, 256>}, {pipeline_mode = #tpu.pipeline_mode<synchronous>, transform_indices = @transform_2, window_bounds = array<i64: 1, 256>}, {transform_indices = @transform_3, window_bounds = array<i64: 1, 256, 768>}, {transform_indices = @transform_4, window_bounds = array<i64: 1, 1, 768>}, {transform_indices = @transform_5, window_bounds = array<i64: 1, 256, 256>}, {transform_indices = @transform_6, window_bounds = array<i64: 1, 1, 256>}, {transform_indices = @transform_7, window_bounds = array<i64: 1, 1, 256>}, {transform_indices = @transform_8, window_bounds = array<i64: 1, 1, 256>}, {transform_indices = @transform_9, window_bounds = array<i64: 1, 256, 512>}, {transform_indices = @transform_10, window_bounds = array<i64: 1, 1, 512>}, {transform_indices = @transform_11, window_bounds = array<i64: 1, 512, 256>}, {transform_indices = @transform_12, window_bounds = array<i64: 1, 1, 256>}, {transform_indices = @transform_13, window_bounds = array<i64: 1, 1, 256>}, {transform_indices = @transform_14, window_bounds = array<i64: 1, 1, 256>}, {pipeline_mode = #tpu.pipeline_mode<synchronous>, transform_indices = @transform_15, window_bounds = array<i64: 2, 128, 256>}]} {
    %c0_i32 = arith.constant 0 : i32
    %0 = arith.cmpi eq, %arg0, %c0_i32 : i32
    %1 = arith.extui %0 : i1 to i32
    %c0_i32_0 = arith.constant 0 : i32
    %2 = arith.cmpi ne, %1, %c0_i32_0 : i32
    scf.if %2 {
      %c0_69 = arith.constant 0 : index
      %c0_70 = arith.constant 0 : index
      %c0_71 = arith.constant 0 : index
      %193 = vector.load %arg2[%c0_69, %c0_70, %c0_71] : memref<2x128x256xf32, #tpu.memory_space<vmem>>, vector<2x128x256xf32>
      %194 = vector.shape_cast %193 : vector<2x128x256xf32> to vector<256x256xf32>
      %c0_72 = arith.constant 0 : index
      %c0_73 = arith.constant 0 : index
      %195 = vector.load %arg3[%c0_72, %c0_73] : memref<1x256xf32, #tpu.memory_space<vmem>>, vector<1x256xf32>
      %c0_74 = arith.constant 0 : index
      %c0_75 = arith.constant 0 : index
      %196 = vector.load %arg4[%c0_74, %c0_75] : memref<1x256xf32, #tpu.memory_space<vmem>>, vector<1x256xf32>
      %cst_76 = arith.constant dense<0.000000e+00> : vector<256xf32>
      %197 = vector.multi_reduction <add>, %194, %cst_76 [1] : vector<256x256xf32> to vector<256xf32>
      %198 = vector.shape_cast %197 : vector<256xf32> to vector<256x1xf32>
      %cst_77 = arith.constant 2.560000e+02 : f32
      %199 = vector.broadcast %cst_77 : f32 to vector<256x1xf32>
      %200 = arith.divf %198, %199 : vector<256x1xf32>
      %201 = vector.broadcast %200 : vector<256x1xf32> to vector<256x256xf32>
      %202 = arith.subf %194, %201 : vector<256x256xf32>
      %203 = arith.mulf %202, %202 : vector<256x256xf32>
      %cst_78 = arith.constant dense<0.000000e+00> : vector<256xf32>
      %204 = vector.multi_reduction <add>, %203, %cst_78 [1] : vector<256x256xf32> to vector<256xf32>
      %205 = vector.shape_cast %204 : vector<256xf32> to vector<256x1xf32>
      %cst_79 = arith.constant 2.560000e+02 : f32
      %206 = vector.broadcast %cst_79 : f32 to vector<256x1xf32>
      %207 = arith.divf %205, %206 : vector<256x1xf32>
      %208 = vector.broadcast %200 : vector<256x1xf32> to vector<256x256xf32>
      %209 = arith.subf %194, %208 : vector<256x256xf32>
      %cst_80 = arith.constant 9.99999974E-6 : f32
      %210 = vector.broadcast %cst_80 : f32 to vector<256x1xf32>
      %211 = arith.addf %207, %210 : vector<256x1xf32>
      %212 = math.rsqrt %211 : vector<256x1xf32>
      %213 = vector.broadcast %212 : vector<256x1xf32> to vector<256x256xf32>
      %214 = arith.mulf %209, %213 : vector<256x256xf32>
      %215 = vector.broadcast %195 : vector<1x256xf32> to vector<256x256xf32>
      %216 = arith.mulf %214, %215 : vector<256x256xf32>
      %217 = vector.broadcast %196 : vector<1x256xf32> to vector<256x256xf32>
      %218 = arith.addf %216, %217 : vector<256x256xf32>
      %c0_81 = arith.constant 0 : index
      %c0_82 = arith.constant 0 : index
      %219 = vector.load %arg18[%c0_81, %c0_82] : memref<256x256xf32, #tpu.memory_space<vmem>>, vector<256x256xf32>
      tpu.vector_store %arg18[%c0_81, %c0_82], %218 {strides = array<i32>} : memref<256x256xf32, #tpu.memory_space<vmem>>, vector<256x256xf32>,
    } else {
    }
    %c0 = arith.constant 0 : index
    %c0_1 = arith.constant 0 : index
    %3 = vector.load %arg18[%c0, %c0_1] : memref<256x256xf32, #tpu.memory_space<vmem>>, vector<256x256xf32>
    %4 = arith.truncf %3 : vector<256x256xf32> to vector<256x256xbf16>
    %c0_2 = arith.constant 0 : index
    %c0_3 = arith.constant 0 : index
    %c0_4 = arith.constant 0 : index
    %5 = vector.load %arg5[%c0_2, %c0_3, %c0_4] : memref<1x256x768xbf16, #tpu.memory_space<vmem>>, vector<1x256x768xbf16>
    %6 = vector.shape_cast %5 : vector<1x256x768xbf16> to vector<256x768xbf16>
    %cst = arith.constant dense<0.000000e+00> : vector<256x768xf32>
    %7 = tpu.matmul %4, %6, %cst {dimension_numbers = #tpu.dot_dimension_numbers<[1], [0], [0], [1], [0, 0, 1, 1], [], []>} : vector<256x256xbf16>, vector<256x768xbf16>, vector<256x768xf32> -> vector<256x768xf32>
    %c0_5 = arith.constant 0 : index
    %c0_6 = arith.constant 0 : index
    %c0_7 = arith.constant 0 : index
    %8 = vector.load %arg6[%c0_5, %c0_6, %c0_7] : memref<1x1x768xf32, #tpu.memory_space<vmem>>, vector<1x1x768xf32>
    %9 = vector.shape_cast %8 : vector<1x1x768xf32> to vector<1x768xf32>
    %10 = vector.broadcast %9 : vector<1x768xf32> to vector<256x768xf32>
    %11 = arith.addf %7, %10 : vector<256x768xf32>
    %12 = arith.truncf %11 : vector<256x768xf32> to vector<256x768xbf16>
    %13 = vector.extract_strided_slice %12 {offsets = [0, 0], sizes = [128, 768], strides = [1, 1]} : vector<256x768xbf16> to vector<128x768xbf16>
    %14 = vector.extract_strided_slice %13 {offsets = [0, 0], sizes = [128, 128], strides = [1, 1]} : vector<128x768xbf16> to vector<128x128xbf16>
    %15 = vector.extract_strided_slice %13 {offsets = [0, 128], sizes = [128, 128], strides = [1, 1]} : vector<128x768xbf16> to vector<128x128xbf16>
    %16 = vector.shape_cast %14 : vector<128x128xbf16> to vector<1x128x128xbf16>
    %17 = vector.shape_cast %15 : vector<128x128xbf16> to vector<1x128x128xbf16>
    %18 = tpu.concatenate %16, %17 in 0 : vector<1x128x128xbf16>, vector<1x128x128xbf16> -> vector<2x128x128xbf16>
    %19 = vector.extract_strided_slice %13 {offsets = [0, 256], sizes = [128, 128], strides = [1, 1]} : vector<128x768xbf16> to vector<128x128xbf16>
    %20 = vector.extract_strided_slice %13 {offsets = [0, 384], sizes = [128, 128], strides = [1, 1]} : vector<128x768xbf16> to vector<128x128xbf16>
    %21 = vector.shape_cast %19 : vector<128x128xbf16> to vector<1x128x128xbf16>
    %22 = vector.shape_cast %20 : vector<128x128xbf16> to vector<1x128x128xbf16>
    %23 = tpu.concatenate %21, %22 in 0 : vector<1x128x128xbf16>, vector<1x128x128xbf16> -> vector<2x128x128xbf16>
    %24 = vector.extract_strided_slice %13 {offsets = [0, 512], sizes = [128, 128], strides = [1, 1]} : vector<128x768xbf16> to vector<128x128xbf16>
    %25 = vector.extract_strided_slice %13 {offsets = [0, 640], sizes = [128, 128], strides = [1, 1]} : vector<128x768xbf16> to vector<128x128xbf16>
    %26 = vector.shape_cast %24 : vector<128x128xbf16> to vector<1x128x128xbf16>
    %27 = vector.shape_cast %25 : vector<128x128xbf16> to vector<1x128x128xbf16>
    %28 = tpu.concatenate %26, %27 in 0 : vector<1x128x128xbf16>, vector<1x128x128xbf16> -> vector<2x128x128xbf16>
    "tpu.trace_start"() <{level = 10 : i32, message = "hqe,hke->hqk"}> : () -> ()
    %cst_8 = arith.constant dense<0.000000e+00> : vector<2x128x128xf32>
    %29 = tpu.matmul %18, %23, %cst_8 {dimension_numbers = #tpu.dot_dimension_numbers<[2], [2], [1], [1], [0, 0, 0, 1, 1, 1], [0], [0]>} : vector<2x128x128xbf16>, vector<2x128x128xbf16>, vector<2x128x128xf32> -> vector<2x128x128xf32>
    "tpu.trace_stop"() : () -> ()
    %30 = tpu.iota {dimensions = array<i32: 2>} : vector<1x1x128xi32>
    %c0_9 = arith.constant 0 : index
    %31 = memref.load %arg1[%c0_9] : memref<2xi32, #tpu.memory_space<smem>>
    %32 = vector.broadcast %31 : i32 to vector<1x1x128xi32>
    %33 = arith.cmpi slt, %30, %32 : vector<1x1x128xi32>
    %cst_10 = arith.constant -1.000000e+09 : f32
    %34 = vector.shape_cast %33 : vector<1x1x128xi1> to vector<1x1x128xi1>
    %35 = vector.broadcast %34 : vector<1x1x128xi1> to vector<2x128x128xi1>
    %36 = vector.broadcast %cst_10 : f32 to vector<2x128x128xf32>
    %37 = arith.select %35, %29, %36 : vector<2x128x128xi1>, vector<2x128x128xf32>
    %cst_11 = arith.constant dense<0xFF800000> : vector<2x128xf32>
    %38 = vector.multi_reduction <maximumf>, %37, %cst_11 [2] : vector<2x128x128xf32> to vector<2x128xf32>
    %39 = vector.shape_cast %38 : vector<2x128xf32> to vector<2x128x1xf32>
    %40 = vector.broadcast %39 : vector<2x128x1xf32> to vector<2x128x128xf32>
    %41 = arith.subf %37, %40 : vector<2x128x128xf32>
    %42 = math.exp %41 : vector<2x128x128xf32>
    %cst_12 = arith.constant dense<0.000000e+00> : vector<2x128xf32>
    %43 = vector.multi_reduction <add>, %42, %cst_12 [2] : vector<2x128x128xf32> to vector<2x128xf32>
    %44 = vector.shape_cast %43 : vector<2x128xf32> to vector<2x128x1xf32>
    %45 = arith.truncf %42 : vector<2x128x128xf32> to vector<2x128x128xbf16>
    "tpu.trace_start"() <{level = 10 : i32, message = "hqk,hke->hqe"}> : () -> ()
    %cst_13 = arith.constant dense<0.000000e+00> : vector<2x128x128xf32>
    %46 = tpu.matmul %45, %28, %cst_13 {dimension_numbers = #tpu.dot_dimension_numbers<[2], [1], [1], [2], [0, 0, 0, 1, 1, 2], [0], [0]>} : vector<2x128x128xbf16>, vector<2x128x128xbf16>, vector<2x128x128xf32> -> vector<2x128x128xf32>
    "tpu.trace_stop"() : () -> ()
    %47 = tpu.reciprocal %44 {approx = true} : vector<2x128x1xf32> -> vector<2x128x1xf32>
    %48 = vector.broadcast %47 : vector<2x128x1xf32> to vector<2x128x128xf32>
    %49 = arith.mulf %46, %48 : vector<2x128x128xf32>
    %50 = vector.extract_strided_slice %49 {offsets = [0, 0, 0], sizes = [1, 128, 128], strides = [1, 1, 1]} : vector<2x128x128xf32> to vector<1x128x128xf32>
    %51 = vector.shape_cast %50 : vector<1x128x128xf32> to vector<128x128xf32>
    %52 = vector.extract_strided_slice %49 {offsets = [1, 0, 0], sizes = [1, 128, 128], strides = [1, 1, 1]} : vector<2x128x128xf32> to vector<1x128x128xf32>
    %53 = vector.shape_cast %52 : vector<1x128x128xf32> to vector<128x128xf32>
    %54 = tpu.concatenate %51, %53 in 1 : vector<128x128xf32>, vector<128x128xf32> -> vector<128x256xf32>
    %55 = vector.extract_strided_slice %12 {offsets = [128, 0], sizes = [128, 768], strides = [1, 1]} : vector<256x768xbf16> to vector<128x768xbf16>
    %56 = vector.extract_strided_slice %55 {offsets = [0, 0], sizes = [128, 128], strides = [1, 1]} : vector<128x768xbf16> to vector<128x128xbf16>
    %57 = vector.extract_strided_slice %55 {offsets = [0, 128], sizes = [128, 128], strides = [1, 1]} : vector<128x768xbf16> to vector<128x128xbf16>
    %58 = vector.shape_cast %56 : vector<128x128xbf16> to vector<1x128x128xbf16>
    %59 = vector.shape_cast %57 : vector<128x128xbf16> to vector<1x128x128xbf16>
    %60 = tpu.concatenate %58, %59 in 0 : vector<1x128x128xbf16>, vector<1x128x128xbf16> -> vector<2x128x128xbf16>
    %61 = vector.extract_strided_slice %55 {offsets = [0, 256], sizes = [128, 128], strides = [1, 1]} : vector<128x768xbf16> to vector<128x128xbf16>
    %62 = vector.extract_strided_slice %55 {offsets = [0, 384], sizes = [128, 128], strides = [1, 1]} : vector<128x768xbf16> to vector<128x128xbf16>
    %63 = vector.shape_cast %61 : vector<128x128xbf16> to vector<1x128x128xbf16>
    %64 = vector.shape_cast %62 : vector<128x128xbf16> to vector<1x128x128xbf16>
    %65 = tpu.concatenate %63, %64 in 0 : vector<1x128x128xbf16>, vector<1x128x128xbf16> -> vector<2x128x128xbf16>
    %66 = vector.extract_strided_slice %55 {offsets = [0, 512], sizes = [128, 128], strides = [1, 1]} : vector<128x768xbf16> to vector<128x128xbf16>
    %67 = vector.extract_strided_slice %55 {offsets = [0, 640], sizes = [128, 128], strides = [1, 1]} : vector<128x768xbf16> to vector<128x128xbf16>
    %68 = vector.shape_cast %66 : vector<128x128xbf16> to vector<1x128x128xbf16>
    %69 = vector.shape_cast %67 : vector<128x128xbf16> to vector<1x128x128xbf16>
    %70 = tpu.concatenate %68, %69 in 0 : vector<1x128x128xbf16>, vector<1x128x128xbf16> -> vector<2x128x128xbf16>
    "tpu.trace_start"() <{level = 10 : i32, message = "hqe,hke->hqk"}> : () -> ()
    %cst_14 = arith.constant dense<0.000000e+00> : vector<2x128x128xf32>
    %71 = tpu.matmul %60, %65, %cst_14 {dimension_numbers = #tpu.dot_dimension_numbers<[2], [2], [1], [1], [0, 0, 0, 1, 1, 1], [0], [0]>} : vector<2x128x128xbf16>, vector<2x128x128xbf16>, vector<2x128x128xf32> -> vector<2x128x128xf32>
    "tpu.trace_stop"() : () -> ()
    %72 = tpu.iota {dimensions = array<i32: 2>} : vector<1x1x128xi32>
    %c1 = arith.constant 1 : index
    %73 = memref.load %arg1[%c1] : memref<2xi32, #tpu.memory_space<smem>>
    %74 = vector.broadcast %73 : i32 to vector<1x1x128xi32>
    %75 = arith.cmpi slt, %72, %74 : vector<1x1x128xi32>
    %cst_15 = arith.constant -1.000000e+09 : f32
    %76 = vector.shape_cast %75 : vector<1x1x128xi1> to vector<1x1x128xi1>
    %77 = vector.broadcast %76 : vector<1x1x128xi1> to vector<2x128x128xi1>
    %78 = vector.broadcast %cst_15 : f32 to vector<2x128x128xf32>
    %79 = arith.select %77, %71, %78 : vector<2x128x128xi1>, vector<2x128x128xf32>
    %cst_16 = arith.constant dense<0xFF800000> : vector<2x128xf32>
    %80 = vector.multi_reduction <maximumf>, %79, %cst_16 [2] : vector<2x128x128xf32> to vector<2x128xf32>
    %81 = vector.shape_cast %80 : vector<2x128xf32> to vector<2x128x1xf32>
    %82 = vector.broadcast %81 : vector<2x128x1xf32> to vector<2x128x128xf32>
    %83 = arith.subf %79, %82 : vector<2x128x128xf32>
    %84 = math.exp %83 : vector<2x128x128xf32>
    %cst_17 = arith.constant dense<0.000000e+00> : vector<2x128xf32>
    %85 = vector.multi_reduction <add>, %84, %cst_17 [2] : vector<2x128x128xf32> to vector<2x128xf32>
    %86 = vector.shape_cast %85 : vector<2x128xf32> to vector<2x128x1xf32>
    %87 = arith.truncf %84 : vector<2x128x128xf32> to vector<2x128x128xbf16>
    "tpu.trace_start"() <{level = 10 : i32, message = "hqk,hke->hqe"}> : () -> ()
    %cst_18 = arith.constant dense<0.000000e+00> : vector<2x128x128xf32>
    %88 = tpu.matmul %87, %70, %cst_18 {dimension_numbers = #tpu.dot_dimension_numbers<[2], [1], [1], [2], [0, 0, 0, 1, 1, 2], [0], [0]>} : vector<2x128x128xbf16>, vector<2x128x128xbf16>, vector<2x128x128xf32> -> vector<2x128x128xf32>
    "tpu.trace_stop"() : () -> ()
    %89 = tpu.reciprocal %86 {approx = true} : vector<2x128x1xf32> -> vector<2x128x1xf32>
    %90 = vector.broadcast %89 : vector<2x128x1xf32> to vector<2x128x128xf32>
    %91 = arith.mulf %88, %90 : vector<2x128x128xf32>
    %92 = vector.extract_strided_slice %91 {offsets = [0, 0, 0], sizes = [1, 128, 128], strides = [1, 1, 1]} : vector<2x128x128xf32> to vector<1x128x128xf32>
    %93 = vector.shape_cast %92 : vector<1x128x128xf32> to vector<128x128xf32>
    %94 = vector.extract_strided_slice %91 {offsets = [1, 0, 0], sizes = [1, 128, 128], strides = [1, 1, 1]} : vector<2x128x128xf32> to vector<1x128x128xf32>
    %95 = vector.shape_cast %94 : vector<1x128x128xf32> to vector<128x128xf32>
    %96 = tpu.concatenate %93, %95 in 1 : vector<128x128xf32>, vector<128x128xf32> -> vector<128x256xf32>
    %97 = tpu.concatenate %54, %96 in 0 : vector<128x256xf32>, vector<128x256xf32> -> vector<256x256xf32>
    %98 = arith.truncf %97 : vector<256x256xf32> to vector<256x256xbf16>
    %c0_19 = arith.constant 0 : index
    %c0_20 = arith.constant 0 : index
    %c0_21 = arith.constant 0 : index
    %99 = vector.load %arg7[%c0_19, %c0_20, %c0_21] : memref<1x256x256xbf16, #tpu.memory_space<vmem>>, vector<1x256x256xbf16>
    %100 = vector.shape_cast %99 : vector<1x256x256xbf16> to vector<256x256xbf16>
    %cst_22 = arith.constant dense<0.000000e+00> : vector<256x256xf32>
    %101 = tpu.matmul %98, %100, %cst_22 {dimension_numbers = #tpu.dot_dimension_numbers<[1], [0], [0], [1], [0, 0, 1, 1], [], []>} : vector<256x256xbf16>, vector<256x256xbf16>, vector<256x256xf32> -> vector<256x256xf32>
    %c0_23 = arith.constant 0 : index
    %c0_24 = arith.constant 0 : index
    %c0_25 = arith.constant 0 : index
    %102 = vector.load %arg8[%c0_23, %c0_24, %c0_25] : memref<1x1x256xf32, #tpu.memory_space<vmem>>, vector<1x1x256xf32>
    %103 = vector.shape_cast %102 : vector<1x1x256xf32> to vector<1x256xf32>
    %104 = vector.broadcast %103 : vector<1x256xf32> to vector<256x256xf32>
    %105 = arith.addf %101, %104 : vector<256x256xf32>
    %106 = arith.addf %3, %105 : vector<256x256xf32>
    %c0_26 = arith.constant 0 : index
    %c0_27 = arith.constant 0 : index
    %c0_28 = arith.constant 0 : index
    %107 = vector.load %arg9[%c0_26, %c0_27, %c0_28] : memref<1x1x256xf32, #tpu.memory_space<vmem>>, vector<1x1x256xf32>
    %108 = vector.shape_cast %107 : vector<1x1x256xf32> to vector<1x256xf32>
    %c0_29 = arith.constant 0 : index
    %c0_30 = arith.constant 0 : index
    %c0_31 = arith.constant 0 : index
    %109 = vector.load %arg10[%c0_29, %c0_30, %c0_31] : memref<1x1x256xf32, #tpu.memory_space<vmem>>, vector<1x1x256xf32>
    %110 = vector.shape_cast %109 : vector<1x1x256xf32> to vector<1x256xf32>
    %cst_32 = arith.constant dense<0.000000e+00> : vector<256xf32>
    %111 = vector.multi_reduction <add>, %106, %cst_32 [1] : vector<256x256xf32> to vector<256xf32>
    %112 = vector.shape_cast %111 : vector<256xf32> to vector<256x1xf32>
    %cst_33 = arith.constant 2.560000e+02 : f32
    %113 = vector.broadcast %cst_33 : f32 to vector<256x1xf32>
    %114 = arith.divf %112, %113 : vector<256x1xf32>
    %115 = vector.broadcast %114 : vector<256x1xf32> to vector<256x256xf32>
    %116 = arith.subf %106, %115 : vector<256x256xf32>
    %117 = arith.mulf %116, %116 : vector<256x256xf32>
    %cst_34 = arith.constant dense<0.000000e+00> : vector<256xf32>
    %118 = vector.multi_reduction <add>, %117, %cst_34 [1] : vector<256x256xf32> to vector<256xf32>
    %119 = vector.shape_cast %118 : vector<256xf32> to vector<256x1xf32>
    %cst_35 = arith.constant 2.560000e+02 : f32
    %120 = vector.broadcast %cst_35 : f32 to vector<256x1xf32>
    %121 = arith.divf %119, %120 : vector<256x1xf32>
    %122 = vector.broadcast %114 : vector<256x1xf32> to vector<256x256xf32>
    %123 = arith.subf %106, %122 : vector<256x256xf32>
    %cst_36 = arith.constant 9.99999974E-6 : f32
    %124 = vector.broadcast %cst_36 : f32 to vector<256x1xf32>
    %125 = arith.addf %121, %124 : vector<256x1xf32>
    %126 = math.rsqrt %125 : vector<256x1xf32>
    %127 = vector.broadcast %126 : vector<256x1xf32> to vector<256x256xf32>
    %128 = arith.mulf %123, %127 : vector<256x256xf32>
    %129 = vector.broadcast %108 : vector<1x256xf32> to vector<256x256xf32>
    %130 = arith.mulf %128, %129 : vector<256x256xf32>
    %131 = vector.broadcast %110 : vector<1x256xf32> to vector<256x256xf32>
    %132 = arith.addf %130, %131 : vector<256x256xf32>
    %133 = arith.truncf %132 : vector<256x256xf32> to vector<256x256xbf16>
    %c0_37 = arith.constant 0 : index
    %c0_38 = arith.constant 0 : index
    %c0_39 = arith.constant 0 : index
    %134 = vector.load %arg11[%c0_37, %c0_38, %c0_39] : memref<1x256x512xbf16, #tpu.memory_space<vmem>>, vector<1x256x512xbf16>
    %135 = vector.shape_cast %134 : vector<1x256x512xbf16> to vector<256x512xbf16>
    %cst_40 = arith.constant dense<0.000000e+00> : vector<256x512xf32>
    %136 = tpu.matmul %133, %135, %cst_40 {dimension_numbers = #tpu.dot_dimension_numbers<[1], [0], [0], [1], [0, 0, 1, 1], [], []>} : vector<256x256xbf16>, vector<256x512xbf16>, vector<256x512xf32> -> vector<256x512xf32>
    %c0_41 = arith.constant 0 : index
    %c0_42 = arith.constant 0 : index
    %c0_43 = arith.constant 0 : index
    %137 = vector.load %arg12[%c0_41, %c0_42, %c0_43] : memref<1x1x512xf32, #tpu.memory_space<vmem>>, vector<1x1x512xf32>
    %138 = vector.shape_cast %137 : vector<1x1x512xf32> to vector<1x512xf32>
    %139 = vector.broadcast %138 : vector<1x512xf32> to vector<256x512xf32>
    %140 = arith.addf %136, %139 : vector<256x512xf32>
    %141 = arith.mulf %140, %140 : vector<256x512xf32>
    %142 = arith.mulf %140, %141 : vector<256x512xf32>
    %cst_44 = arith.constant 4.471500e-02 : f32
    %143 = vector.broadcast %cst_44 : f32 to vector<256x512xf32>
    %144 = arith.mulf %143, %142 : vector<256x512xf32>
    %145 = arith.addf %140, %144 : vector<256x512xf32>
    %cst_45 = arith.constant 0.797884583 : f32
    %146 = vector.broadcast %cst_45 : f32 to vector<256x512xf32>
    %147 = arith.mulf %146, %145 : vector<256x512xf32>
    %148 = math.tanh %147 : vector<256x512xf32>
    %cst_46 = arith.constant 1.000000e+00 : f32
    %149 = vector.broadcast %cst_46 : f32 to vector<256x512xf32>
    %150 = arith.addf %149, %148 : vector<256x512xf32>
    %cst_47 = arith.constant 5.000000e-01 : f32
    %151 = vector.broadcast %cst_47 : f32 to vector<256x512xf32>
    %152 = arith.mulf %151, %150 : vector<256x512xf32>
    %153 = arith.mulf %140, %152 : vector<256x512xf32>
    %154 = arith.truncf %153 : vector<256x512xf32> to vector<256x512xbf16>
    %c0_48 = arith.constant 0 : index
    %c0_49 = arith.constant 0 : index
    %c0_50 = arith.constant 0 : index
    %155 = vector.load %arg13[%c0_48, %c0_49, %c0_50] : memref<1x512x256xbf16, #tpu.memory_space<vmem>>, vector<1x512x256xbf16>
    %156 = vector.shape_cast %155 : vector<1x512x256xbf16> to vector<512x256xbf16>
    %cst_51 = arith.constant dense<0.000000e+00> : vector<256x256xf32>
    %157 = tpu.matmul %154, %156, %cst_51 {dimension_numbers = #tpu.dot_dimension_numbers<[1], [0], [0], [1], [0, 0, 1, 1], [], []>} : vector<256x512xbf16>, vector<512x256xbf16>, vector<256x256xf32> -> vector<256x256xf32>
    %c0_52 = arith.constant 0 : index
    %c0_53 = arith.constant 0 : index
    %c0_54 = arith.constant 0 : index
    %158 = vector.load %arg14[%c0_52, %c0_53, %c0_54] : memref<1x1x256xf32, #tpu.memory_space<vmem>>, vector<1x1x256xf32>
    %159 = vector.shape_cast %158 : vector<1x1x256xf32> to vector<1x256xf32>
    %160 = vector.broadcast %159 : vector<1x256xf32> to vector<256x256xf32>
    %161 = arith.addf %157, %160 : vector<256x256xf32>
    %162 = arith.addf %132, %161 : vector<256x256xf32>
    %c0_55 = arith.constant 0 : index
    %c0_56 = arith.constant 0 : index
    %c0_57 = arith.constant 0 : index
    %163 = vector.load %arg15[%c0_55, %c0_56, %c0_57] : memref<1x1x256xf32, #tpu.memory_space<vmem>>, vector<1x1x256xf32>
    %164 = vector.shape_cast %163 : vector<1x1x256xf32> to vector<1x256xf32>
    %c0_58 = arith.constant 0 : index
    %c0_59 = arith.constant 0 : index
    %c0_60 = arith.constant 0 : index
    %165 = vector.load %arg16[%c0_58, %c0_59, %c0_60] : memref<1x1x256xf32, #tpu.memory_space<vmem>>, vector<1x1x256xf32>
    %166 = vector.shape_cast %165 : vector<1x1x256xf32> to vector<1x256xf32>
    %cst_61 = arith.constant dense<0.000000e+00> : vector<256xf32>
    %167 = vector.multi_reduction <add>, %162, %cst_61 [1] : vector<256x256xf32> to vector<256xf32>
    %168 = vector.shape_cast %167 : vector<256xf32> to vector<256x1xf32>
    %cst_62 = arith.constant 2.560000e+02 : f32
    %169 = vector.broadcast %cst_62 : f32 to vector<256x1xf32>
    %170 = arith.divf %168, %169 : vector<256x1xf32>
    %171 = vector.broadcast %170 : vector<256x1xf32> to vector<256x256xf32>
    %172 = arith.subf %162, %171 : vector<256x256xf32>
    %173 = arith.mulf %172, %172 : vector<256x256xf32>
    %cst_63 = arith.constant dense<0.000000e+00> : vector<256xf32>
    %174 = vector.multi_reduction <add>, %173, %cst_63 [1] : vector<256x256xf32> to vector<256xf32>
    %175 = vector.shape_cast %174 : vector<256xf32> to vector<256x1xf32>
    %cst_64 = arith.constant 2.560000e+02 : f32
    %176 = vector.broadcast %cst_64 : f32 to vector<256x1xf32>
    %177 = arith.divf %175, %176 : vector<256x1xf32>
    %178 = vector.broadcast %170 : vector<256x1xf32> to vector<256x256xf32>
    %179 = arith.subf %162, %178 : vector<256x256xf32>
    %cst_65 = arith.constant 9.99999974E-6 : f32
    %180 = vector.broadcast %cst_65 : f32 to vector<256x1xf32>
    %181 = arith.addf %177, %180 : vector<256x1xf32>
    %182 = math.rsqrt %181 : vector<256x1xf32>
    %183 = vector.broadcast %182 : vector<256x1xf32> to vector<256x256xf32>
    %184 = arith.mulf %179, %183 : vector<256x256xf32>
    %185 = vector.broadcast %164 : vector<1x256xf32> to vector<256x256xf32>
    %186 = arith.mulf %184, %185 : vector<256x256xf32>
    %187 = vector.broadcast %166 : vector<1x256xf32> to vector<256x256xf32>
    %188 = arith.addf %186, %187 : vector<256x256xf32>
    %c0_66 = arith.constant 0 : index
    %c0_67 = arith.constant 0 : index
    %189 = vector.load %arg18[%c0_66, %c0_67] : memref<256x256xf32, #tpu.memory_space<vmem>>, vector<256x256xf32>
    tpu.vector_store %arg18[%c0_66, %c0_67], %188 {strides = array<i32>} : memref<256x256xf32, #tpu.memory_space<vmem>>, vector<256x256xf32>,
    %c1_i32 = arith.constant 1 : i32
    %190 = arith.cmpi eq, %arg0, %c1_i32 : i32
    %191 = arith.extui %190 : i1 to i32
    %c0_i32_68 = arith.constant 0 : i32
    %192 = arith.cmpi ne, %191, %c0_i32_68 : i32
    scf.if %192 {
      %193 = tpu.iota {dimensions = array<i32: 0>} : vector<128x1xi32>
      %c0_69 = arith.constant 0 : index
      %194 = memref.load %arg1[%c0_69] : memref<2xi32, #tpu.memory_space<smem>>
      %195 = vector.broadcast %194 : i32 to vector<128x1xi32>
      %196 = arith.cmpi slt, %193, %195 : vector<128x1xi32>
      %197 = vector.extract_strided_slice %188 {offsets = [0, 0], sizes = [128, 256], strides = [1, 1]} : vector<256x256xf32> to vector<128x256xf32>
      %cst_70 = arith.constant 0.000000e+00 : f32
      %198 = vector.shape_cast %196 : vector<128x1xi1> to vector<128x1xi1>
      %199 = vector.broadcast %198 : vector<128x1xi1> to vector<128x256xi1>
      %200 = vector.broadcast %cst_70 : f32 to vector<128x256xf32>
      %201 = arith.select %199, %197, %200 : vector<128x256xi1>, vector<128x256xf32>
      %c0_71 = arith.constant 0 : index
      %c0_72 = arith.constant 0 : index
      %c0_73 = arith.constant 0 : index
      %202 = vector.load %arg17[%c0_71, %c0_72, %c0_73] : memref<2x128x256xf32, #tpu.memory_space<vmem>>, vector<1x128x256xf32>
      %203 = vector.shape_cast %202 : vector<1x128x256xf32> to vector<128x256xf32>
      %204 = vector.shape_cast %201 : vector<128x256xf32> to vector<1x128x256xf32>
      tpu.vector_store %arg17[%c0_71, %c0_72, %c0_73], %204 {strides = array<i32>} : memref<2x128x256xf32, #tpu.memory_space<vmem>>, vector<1x128x256xf32>,
      %c1_74 = arith.constant 1 : index
      %205 = memref.load %arg1[%c1_74] : memref<2xi32, #tpu.memory_space<smem>>
      %206 = vector.broadcast %205 : i32 to vector<128x1xi32>
      %207 = arith.cmpi slt, %193, %206 : vector<128x1xi32>
      %208 = vector.extract_strided_slice %188 {offsets = [128, 0], sizes = [128, 256], strides = [1, 1]} : vector<256x256xf32> to vector<128x256xf32>
      %cst_75 = arith.constant 0.000000e+00 : f32
      %209 = vector.shape_cast %207 : vector<128x1xi1> to vector<128x1xi1>
      %210 = vector.broadcast %209 : vector<128x1xi1> to vector<128x256xi1>
      %211 = vector.broadcast %cst_75 : f32 to vector<128x256xf32>
      %212 = arith.select %210, %208, %211 : vector<128x256xi1>, vector<128x256xf32>
      %c1_76 = arith.constant 1 : index
      %c0_77 = arith.constant 0 : index
      %c0_78 = arith.constant 0 : index
      %213 = vector.load %arg17[%c1_76, %c0_77, %c0_78] : memref<2x128x256xf32, #tpu.memory_space<vmem>>, vector<1x128x256xf32>
      %214 = vector.shape_cast %213 : vector<1x128x256xf32> to vector<128x256xf32>
      %215 = vector.shape_cast %212 : vector<128x256xf32> to vector<1x128x256xf32>
      tpu.vector_store %arg17[%c1_76, %c0_77, %c0_78], %215 {strides = array<i32>} : memref<2x128x256xf32, #tpu.memory_space<vmem>>, vector<1x128x256xf32>,
    } else {
    }
    return
  }
  func.func @transform_0(%arg0: i32, %arg1: memref<2xi32, #tpu.memory_space<smem>>) -> (i32, i32, i32) {
    %c0_i32 = arith.constant 0 : i32
    %c0_i32_0 = arith.constant 0 : i32
    %c0_i32_1 = arith.constant 0 : i32
    %c0_i32_2 = arith.constant 0 : i32
    return %c0_i32, %c0_i32_0, %c0_i32_1 : i32, i32, i32
  }
  func.func @transform_1(%arg0: i32, %arg1: memref<2xi32, #tpu.memory_space<smem>>) -> (i32, i32) {
    %c0_i32 = arith.constant 0 : i32
    %c0_i32_0 = arith.constant 0 : i32
    %c0_i32_1 = arith.constant 0 : i32
    return %c0_i32, %c0_i32_0 : i32, i32
  }
  func.func @transform_2(%arg0: i32, %arg1: memref<2xi32, #tpu.memory_space<smem>>) -> (i32, i32) {
    %c0_i32 = arith.constant 0 : i32
    %c0_i32_0 = arith.constant 0 : i32
    %c0_i32_1 = arith.constant 0 : i32
    return %c0_i32, %c0_i32_0 : i32, i32
  }
  func.func @transform_3(%arg0: i32, %arg1: memref<2xi32, #tpu.memory_space<smem>>) -> (i32, i32, i32) {
    %c0_i32 = arith.constant 0 : i32
    %c0_i32_0 = arith.constant 0 : i32
    %c0_i32_1 = arith.constant 0 : i32
    return %arg0, %c0_i32, %c0_i32_0 : i32, i32, i32
  }
  func.func @transform_4(%arg0: i32, %arg1: memref<2xi32, #tpu.memory_space<smem>>) -> (i32, i32, i32) {
    %c0_i32 = arith.constant 0 : i32
    %c0_i32_0 = arith.constant 0 : i32
    %c0_i32_1 = arith.constant 0 : i32
    return %arg0, %c0_i32, %c0_i32_0 : i32, i32, i32
  }
  func.func @transform_5(%arg0: i32, %arg1: memref<2xi32, #tpu.memory_space<smem>>) -> (i32, i32, i32) {
    %c0_i32 = arith.constant 0 : i32
    %c0_i32_0 = arith.constant 0 : i32
    %c0_i32_1 = arith.constant 0 : i32
    return %arg0, %c0_i32, %c0_i32_0 : i32, i32, i32
  }
  func.func @transform_6(%arg0: i32, %arg1: memref<2xi32, #tpu.memory_space<smem>>) -> (i32, i32, i32) {
    %c0_i32 = arith.constant 0 : i32
    %c0_i32_0 = arith.constant 0 : i32
    %c0_i32_1 = arith.constant 0 : i32
    return %arg0, %c0_i32, %c0_i32_0 : i32, i32, i32
  }
  func.func @transform_7(%arg0: i32, %arg1: memref<2xi32, #tpu.memory_space<smem>>) -> (i32, i32, i32) {
    %c0_i32 = arith.constant 0 : i32
    %c0_i32_0 = arith.constant 0 : i32
    %c0_i32_1 = arith.constant 0 : i32
    return %arg0, %c0_i32, %c0_i32_0 : i32, i32, i32
  }
  func.func @transform_8(%arg0: i32, %arg1: memref<2xi32, #tpu.memory_space<smem>>) -> (i32, i32, i32) {
    %c0_i32 = arith.constant 0 : i32
    %c0_i32_0 = arith.constant 0 : i32
    %c0_i32_1 = arith.constant 0 : i32
    return %arg0, %c0_i32, %c0_i32_0 : i32, i32, i32
  }
  func.func @transform_9(%arg0: i32, %arg1: memref<2xi32, #tpu.memory_space<smem>>) -> (i32, i32, i32) {
    %c0_i32 = arith.constant 0 : i32
    %c0_i32_0 = arith.constant 0 : i32
    %c0_i32_1 = arith.constant 0 : i32
    return %arg0, %c0_i32, %c0_i32_0 : i32, i32, i32
  }
  func.func @transform_10(%arg0: i32, %arg1: memref<2xi32, #tpu.memory_space<smem>>) -> (i32, i32, i32) {
    %c0_i32 = arith.constant 0 : i32
    %c0_i32_0 = arith.constant 0 : i32
    %c0_i32_1 = arith.constant 0 : i32
    return %arg0, %c0_i32, %c0_i32_0 : i32, i32, i32
  }
  func.func @transform_11(%arg0: i32, %arg1: memref<2xi32, #tpu.memory_space<smem>>) -> (i32, i32, i32) {
    %c0_i32 = arith.constant 0 : i32
    %c0_i32_0 = arith.constant 0 : i32
    %c0_i32_1 = arith.constant 0 : i32
    return %arg0, %c0_i32, %c0_i32_0 : i32, i32, i32
  }
  func.func @transform_12(%arg0: i32, %arg1: memref<2xi32, #tpu.memory_space<smem>>) -> (i32, i32, i32) {
    %c0_i32 = arith.constant 0 : i32
    %c0_i32_0 = arith.constant 0 : i32
    %c0_i32_1 = arith.constant 0 : i32
    return %arg0, %c0_i32, %c0_i32_0 : i32, i32, i32
  }
  func.func @transform_13(%arg0: i32, %arg1: memref<2xi32, #tpu.memory_space<smem>>) -> (i32, i32, i32) {
    %c0_i32 = arith.constant 0 : i32
    %c0_i32_0 = arith.constant 0 : i32
    %c0_i32_1 = arith.constant 0 : i32
    return %arg0, %c0_i32, %c0_i32_0 : i32, i32, i32
  }
  func.func @transform_14(%arg0: i32, %arg1: memref<2xi32, #tpu.memory_space<smem>>) -> (i32, i32, i32) {
    %c0_i32 = arith.constant 0 : i32
    %c0_i32_0 = arith.constant 0 : i32
    %c0_i32_1 = arith.constant 0 : i32
    return %arg0, %c0_i32, %c0_i32_0 : i32, i32, i32
  }
  func.func @transform_15(%arg0: i32, %arg1: memref<2xi32, #tpu.memory_space<smem>>) -> (i32, i32, i32) {
    %c0_i32 = arith.constant 0 : i32
    %c0_i32_0 = arith.constant 0 : i32
    %c0_i32_1 = arith.constant 0 : i32
    %c0_i32_2 = arith.constant 0 : i32
    return %c0_i32, %c0_i32_0, %c0_i32_1 : i32, i32, i32
  }
}

</mosaic_0001>

<llo_original>
// kernel: tpu_custom_call.1
$region0: #{tpu_custom_call.1}
  #allocation0 [shape = 'u32[]', space=smem, size = 0x4, offset = 0x4, fixed_abs, tag = 'smem constant byte address 0x4 - core index']
  #allocation1 [shape = 'u32[144,128]{1,0:T(1,128)}', space=vmem, size = 0x12000, scoped, tag = 'internal scratch']
  #allocation2 [shape = 'f32[256,256]{1,0:T(8,128)}', space=vmem, size = 0x40000, scoped, tag = 'scratch operand']
  #allocation3 [shape = 's32[1]{0}', space=sflag, size = 0x4, scoped, tag = 'scoped memory for tpu_custom_call.1']
  #allocation4 [shape = 'u8[512]{0}', space=smem, size = 0x200, scoped, tag = 'prefetched SMEM operand 0']
  %s0 = inlined_call_operand.hbm [shape: s32[2], index: 0, kind: input, shape index: {}]
  %s1 = inlined_call_operand.hbm [shape: f32[2,128,256], index: 1, kind: input, shape index: {}]
  %s2 = inlined_call_operand.hbm [shape: f32[1,256], index: 2, kind: input, shape index: {}]
  %s3 = inlined_call_operand.hbm [shape: f32[1,256], index: 3, kind: input, shape index: {}]
  %s4 = inlined_call_operand.hbm [shape: bf16[2,256,768], index: 4, kind: input, shape index: {}]
  %s5 = inlined_call_operand.vmem [shape: f32[2,1,768], index: 5, kind: input, shape index: {}]
  %s6 = inlined_call_operand.hbm [shape: bf16[2,256,256], index: 6, kind: input, shape index: {}]
  %s7 = inlined_call_operand.vmem [shape: f32[2,1,256], index: 7, kind: input, shape index: {}]
  %s8 = inlined_call_operand.vmem [shape: f32[2,1,256], index: 8, kind: input, shape index: {}]
  %s9 = inlined_call_operand.vmem [shape: f32[2,1,256], index: 9, kind: input, shape index: {}]
  %s10 = inlined_call_operand.hbm [shape: bf16[2,256,512], index: 10, kind: input, shape index: {}]
  %s11 = inlined_call_operand.vmem [shape: f32[2,1,512], index: 11, kind: input, shape index: {}]
  %s12 = inlined_call_operand.hbm [shape: bf16[2,512,256], index: 12, kind: input, shape index: {}]
  %s13 = inlined_call_operand.vmem [shape: f32[2,1,256], index: 13, kind: input, shape index: {}]
  %s14 = inlined_call_operand.vmem [shape: f32[2,1,256], index: 14, kind: input, shape index: {}]
  %s15 = inlined_call_operand.vmem [shape: f32[2,1,256], index: 15, kind: input, shape index: {}]
  %s16 = inlined_call_operand.hbm [shape: f32[2,128,256], index: 16, kind: output, shape index: {}]
  %s17 = sld [smem:[#allocation0]]
  $region129: #{tpu_custom_call.1} parent=0
    _
  %s19 = ssub.s32 1, %s17
  %s20 = scalar_select 0, %s19, %s17
  %22 = dma.hbm_to_smem %s0, 16, [#allocation4], [#allocation3]
  %23 = dma.done [#allocation3], 16
  %24 = sfence
  $region1: #{tpu_custom_call.1} parent=0
    #allocation5 [shape = 'u8[262144]{0}', space=vmem, size = 0x40000, scoped, tag = 'input window, operand 1, single buffered']
    #allocation6 [shape = 's32[2]{0}', space=sflag, size = 0x8, scoped, tag = 'scoped memory for tpu_custom_call.1']
    #allocation7 [shape = 's32[2]{0}', space=sflag, size = 0x8, scoped, tag = 'scoped memory for tpu_custom_call.1']
    #allocation8 [shape = 'u8[1024]{0}', space=vmem, size = 0x400, scoped, tag = 'input window, operand 2, single buffered']
    #allocation9 [shape = 's32[1]{0}', space=sflag, size = 0x4, scoped, tag = 'scoped memory for tpu_custom_call.1']
    #allocation10 [shape = 'u8[1024]{0}', space=vmem, size = 0x400, scoped, tag = 'input window, operand 3, single buffered']
    #allocation11 [shape = 'u8[786432]{0}', space=vmem, size = 0xc0000, scoped, tag = 'input window, operand 4']
    #allocation12 [shape = 's32[2]{0}', space=sflag, size = 0x8, scoped, tag = 'scoped memory for tpu_custom_call.1']
    #allocation13 [shape = 'u8[262144]{0}', space=vmem, size = 0x40000, scoped, tag = 'input window, operand 6']
    #allocation14 [shape = 'u8[524288]{0}', space=vmem, size = 0x80000, scoped, tag = 'input window, operand 10']
    #allocation15 [shape = 's32[2]{0}', space=sflag, size = 0x8, scoped, tag = 'scoped memory for tpu_custom_call.1']
    #allocation16 [shape = 'u8[524288]{0}', space=vmem, size = 0x80000, scoped, tag = 'input window, operand 12']
    #allocation17 [shape = 'u8[262144]{0}', space=vmem, size = 0x40000, scoped, tag = 'output window, operand 0, single buffered']
    %25 = vsyncpa [#allocation6], 0
    %26 = vsyncpa [#allocation9], 0
    %27 = vsyncpa [#allocation12], 0
    %s28 = scalar_lea.sflag [#allocation12], 1
    %29 = vsyncpa %s28, 0
    %30 = vsyncpa [#allocation15], 0
    %s31 = scalar_lea.sflag [#allocation15], 1
    %32 = vsyncpa %s31, 0
    %33 = vsyncpa [#allocation7], 0
    loop: start=0, step=1, limit=4
    $region2: #{tpu_custom_call.1} parent=1 // loop_pre_header
      _
    $region3: #{tpu_custom_call.1} parent=1 // loop_header
      %s35 = sphi 0, %s39
      %p36 = scmp.ge.s32.totalorder %s35, 4
      %s43 = sphi 0, %s43
      %s45 = sphi 0, %s43
      %s46 = sphi 0, %s45
      %s60 = sphi 0, %s46
      %s64 = sphi 0, %s64
      %s66 = sphi 0, %s64
      %s67 = sphi 0, %s66
      %s81 = sphi 0, %s67
      %s85 = sphi 0, %s85
      %s87 = sphi 0, %s85
      %s88 = sphi 0, %s87
      %s102 = sphi 0, %s88
      %s108 = sphi 0, %s110
      %s111 = sphi 0, %s108
      %s112 = sphi 0, %s111
      %s128 = sphi 0, %s112
      %s134 = sphi 0, %s136
      %s137 = sphi 0, %s134
      %s138 = sphi 0, %s137
      %s154 = sphi 0, %s138
      %s160 = sphi 0, %s162
      %s163 = sphi 0, %s160
      %s164 = sphi 0, %s163
      %s180 = sphi 0, %s164
      %s186 = sphi 0, %s188
      %s189 = sphi 0, %s186
      %s190 = sphi 0, %s189
      %s206 = sphi 0, %s190
      %s212 = sphi 0, %s214
      %s215 = sphi 0, %s212
      %s216 = sphi 0, %s215
      %s232 = sphi 0, %s216
      %s238 = sphi 0, %s240
      %s241 = sphi 0, %s238
      %s242 = sphi 0, %s241
      %s258 = sphi 0, %s242
      %s264 = sphi 0, %s266
      %s267 = sphi 0, %s264
      %s268 = sphi 0, %s267
      %s284 = sphi 0, %s268
      %s290 = sphi 0, %s292
      %s293 = sphi 0, %s290
      %s294 = sphi 0, %s293
      %s310 = sphi 0, %s294
      %s316 = sphi 0, %s318
      %s319 = sphi 0, %s316
      %s320 = sphi 0, %s319
      %s336 = sphi 0, %s320
      %s342 = sphi 0, %s344
      %s345 = sphi 0, %s342
      %s346 = sphi 0, %s345
      %s362 = sphi 0, %s346
      %s368 = sphi 0, %s370
      %s371 = sphi 0, %s368
      %s372 = sphi 0, %s371
      %s388 = sphi 0, %s372
      %s394 = sphi 0, %s396
      %s397 = sphi 0, %s394
      %s398 = sphi 0, %s397
      %s414 = sphi 0, %s398
      %s418 = sphi 0, %s418
      %s420 = sphi 0, %s418
      %s421 = sphi 0, %s420
      %s435 = sphi 0, %s421
    $region4: #{tpu_custom_call.1} parent=1 // loop_header_branch
      %38 = sbr.rel (%p36) target = $region8
    $region5: #{tpu_custom_call.1} parent=1 // loop_body
      %s40 = ssub.s32 %s35, 1
      %s41 = ssub.s32 %s35, 2
      %s42 = sadd.s32 %s35, 1
      %s44 = sadd.s32 %s43, 1
      %p47 = scmp.eq.s32.totalorder %s35, 1
      %p48 = scmp.ne.s32.totalorder %s43, %s45
      %p49 = scmp.eq.s32.totalorder %s35, 0
      %p50 = por %p48, %p49
      %p51 = scmp.ne.s32.totalorder %s43, %s45
      %p52 = scmp.eq.s32.totalorder %s40, 1
      %p53 = por %p51, %p52
      %p54 = scmp.ne.s32.totalorder %s45, %s46
      %p55 = scmp.eq.s32.totalorder %s40, 0
      %p56 = por %p54, %p55
      %p57 = scmp.ne.s32.totalorder %s45, %s46
      %p58 = scmp.eq.s32.totalorder %s41, 1
      %p59 = por %p57, %p58
      %p61 = scmp.ne.s32.totalorder %s46, %s60
      %p62 = scmp.eq.s32.totalorder %s41, 0
      %p63 = por %p61, %p62
      %s65 = sadd.s32 %s64, 1
      %p68 = scmp.eq.s32.totalorder %s35, 1
      %p69 = scmp.ne.s32.totalorder %s64, %s66
      %p70 = scmp.eq.s32.totalorder %s35, 0
      %p71 = por %p69, %p70
      %p72 = scmp.ne.s32.totalorder %s64, %s66
      %p73 = scmp.eq.s32.totalorder %s40, 1
      %p74 = por %p72, %p73
      %p75 = scmp.ne.s32.totalorder %s66, %s67
      %p76 = scmp.eq.s32.totalorder %s40, 0
      %p77 = por %p75, %p76
      %p78 = scmp.ne.s32.totalorder %s66, %s67
      %p79 = scmp.eq.s32.totalorder %s41, 1
      %p80 = por %p78, %p79
      %p82 = scmp.ne.s32.totalorder %s67, %s81
      %p83 = scmp.eq.s32.totalorder %s41, 0
      %p84 = por %p82, %p83
      %s86 = sadd.s32 %s85, 1
      %p89 = scmp.eq.s32.totalorder %s35, 1
      %p90 = scmp.ne.s32.totalorder %s85, %s87
      %p91 = scmp.eq.s32.totalorder %s35, 0
      %p92 = por %p90, %p91
      %p93 = scmp.ne.s32.totalorder %s85, %s87
      %p94 = scmp.eq.s32.totalorder %s40, 1
      %p95 = por %p93, %p94
      %p96 = scmp.ne.s32.totalorder %s87, %s88
      %p97 = scmp.eq.s32.totalorder %s40, 0
      %p98 = por %p96, %p97
      %p99 = scmp.ne.s32.totalorder %s87, %s88
      %p100 = scmp.eq.s32.totalorder %s41, 1
      %p101 = por %p99, %p100
      %p103 = scmp.ne.s32.totalorder %s88, %s102
      %p104 = scmp.eq.s32.totalorder %s41, 0
      %p105 = por %p103, %p104
      %s106 = ssub.s32 %s35, %s42
      %p107 = scmp.eq.s32.totalorder %s106, 0
      %s109 = sadd.s32 %s108, 1
      %s110 = scalar_select %p107, %s108, %s109
      %p113 = pneg %p107
      %p114 = scmp.eq.s32.totalorder %s35, 1
      %p115 = por %p113, %p114
      %p116 = scmp.ne.s32.totalorder %s108, %s111
      %p117 = scmp.eq.s32.totalorder %s35, 0
      %p118 = por %p116, %p117
      %p119 = scmp.ne.s32.totalorder %s108, %s111
      %p120 = scmp.eq.s32.totalorder %s40, 1
      %p121 = por %p119, %p120
      %p122 = scmp.ne.s32.totalorder %s111, %s112
      %p123 = scmp.eq.s32.totalorder %s40, 0
      %p124 = por %p122, %p123
      %p125 = scmp.ne.s32.totalorder %s111, %s112
      %p126 = scmp.eq.s32.totalorder %s41, 1
      %p127 = por %p125, %p126
      %p129 = scmp.ne.s32.totalorder %s112, %s128
      %p130 = scmp.eq.s32.totalorder %s41, 0
      %p131 = por %p129, %p130
      %s132 = ssub.s32 %s35, %s42
      %p133 = scmp.eq.s32.totalorder %s132, 0
      %s135 = sadd.s32 %s134, 1
      %s136 = scalar_select %p133, %s134, %s135
      %p139 = pneg %p133
      %p140 = scmp.eq.s32.totalorder %s35, 1
      %p141 = por %p139, %p140
      %p142 = scmp.ne.s32.totalorder %s134, %s137
      %p143 = scmp.eq.s32.totalorder %s35, 0
      %p144 = por %p142, %p143
      %p145 = scmp.ne.s32.totalorder %s134, %s137
      %p146 = scmp.eq.s32.totalorder %s40, 1
      %p147 = por %p145, %p146
      %p148 = scmp.ne.s32.totalorder %s137, %s138
      %p149 = scmp.eq.s32.totalorder %s40, 0
      %p150 = por %p148, %p149
      %p151 = scmp.ne.s32.totalorder %s137, %s138
      %p152 = scmp.eq.s32.totalorder %s41, 1
      %p153 = por %p151, %p152
      %p155 = scmp.ne.s32.totalorder %s138, %s154
      %p156 = scmp.eq.s32.totalorder %s41, 0
      %p157 = por %p155, %p156
      %s158 = ssub.s32 %s35, %s42
      %p159 = scmp.eq.s32.totalorder %s158, 0
      %s161 = sadd.s32 %s160, 1
      %s162 = scalar_select %p159, %s160, %s161
      %p165 = pneg %p159
      %p166 = scmp.eq.s32.totalorder %s35, 1
      %p167 = por %p165, %p166
      %p168 = scmp.ne.s32.totalorder %s160, %s163
      %p169 = scmp.eq.s32.totalorder %s35, 0
      %p170 = por %p168, %p169
      %p171 = scmp.ne.s32.totalorder %s160, %s163
      %p172 = scmp.eq.s32.totalorder %s40, 1
      %p173 = por %p171, %p172
      %p174 = scmp.ne.s32.totalorder %s163, %s164
      %p175 = scmp.eq.s32.totalorder %s40, 0
      %p176 = por %p174, %p175
      %p177 = scmp.ne.s32.totalorder %s163, %s164
      %p178 = scmp.eq.s32.totalorder %s41, 1
      %p179 = por %p177, %p178
      %p181 = scmp.ne.s32.totalorder %s164, %s180
      %p182 = scmp.eq.s32.totalorder %s41, 0
      %p183 = por %p181, %p182
      %s184 = ssub.s32 %s35, %s42
      %p185 = scmp.eq.s32.totalorder %s184, 0
      %s187 = sadd.s32 %s186, 1
      %s188 = scalar_select %p185, %s186, %s187
      %p191 = pneg %p185
      %p192 = scmp.eq.s32.totalorder %s35, 1
      %p193 = por %p191, %p192
      %p194 = scmp.ne.s32.totalorder %s186, %s189
      %p195 = scmp.eq.s32.totalorder %s35, 0
      %p196 = por %p194, %p195
      %p197 = scmp.ne.s32.totalorder %s186, %s189
      %p198 = scmp.eq.s32.totalorder %s40, 1
      %p199 = por %p197, %p198
      %p200 = scmp.ne.s32.totalorder %s189, %s190
      %p201 = scmp.eq.s32.totalorder %s40, 0
      %p202 = por %p200, %p201
      %p203 = scmp.ne.s32.totalorder %s189, %s190
      %p204 = scmp.eq.s32.totalorder %s41, 1
      %p205 = por %p203, %p204
      %p207 = scmp.ne.s32.totalorder %s190, %s206
      %p208 = scmp.eq.s32.totalorder %s41, 0
      %p209 = por %p207, %p208
      %s210 = ssub.s32 %s35, %s42
      %p211 = scmp.eq.s32.totalorder %s210, 0
      %s213 = sadd.s32 %s212, 1
      %s214 = scalar_select %p211, %s212, %s213
      %p217 = pneg %p211
      %p218 = scmp.eq.s32.totalorder %s35, 1
      %p219 = por %p217, %p218
      %p220 = scmp.ne.s32.totalorder %s212, %s215
      %p221 = scmp.eq.s32.totalorder %s35, 0
      %p222 = por %p220, %p221
      %p223 = scmp.ne.s32.totalorder %s212, %s215
      %p224 = scmp.eq.s32.totalorder %s40, 1
      %p225 = por %p223, %p224
      %p226 = scmp.ne.s32.totalorder %s215, %s216
      %p227 = scmp.eq.s32.totalorder %s40, 0
      %p228 = por %p226, %p227
      %p229 = scmp.ne.s32.totalorder %s215, %s216
      %p230 = scmp.eq.s32.totalorder %s41, 1
      %p231 = por %p229, %p230
      %p233 = scmp.ne.s32.totalorder %s216, %s232
      %p234 = scmp.eq.s32.totalorder %s41, 0
      %p235 = por %p233, %p234
      %s236 = ssub.s32 %s35, %s42
      %p237 = scmp.eq.s32.totalorder %s236, 0
      %s239 = sadd.s32 %s238, 1
      %s240 = scalar_select %p237, %s238, %s239
      %p243 = pneg %p237
      %p244 = scmp.eq.s32.totalorder %s35, 1
      %p245 = por %p243, %p244
      %p246 = scmp.ne.s32.totalorder %s238, %s241
      %p247 = scmp.eq.s32.totalorder %s35, 0
      %p248 = por %p246, %p247
      %p249 = scmp.ne.s32.totalorder %s238, %s241
      %p250 = scmp.eq.s32.totalorder %s40, 1
      %p251 = por %p249, %p250
      %p252 = scmp.ne.s32.totalorder %s241, %s242
      %p253 = scmp.eq.s32.totalorder %s40, 0
      %p254 = por %p252, %p253
      %p255 = scmp.ne.s32.totalorder %s241, %s242
      %p256 = scmp.eq.s32.totalorder %s41, 1
      %p257 = por %p255, %p256
      %p259 = scmp.ne.s32.totalorder %s242, %s258
      %p260 = scmp.eq.s32.totalorder %s41, 0
      %p261 = por %p259, %p260
      %s262 = ssub.s32 %s35, %s42
      %p263 = scmp.eq.s32.totalorder %s262, 0
      %s265 = sadd.s32 %s264, 1
      %s266 = scalar_select %p263, %s264, %s265
      %p269 = pneg %p263
      %p270 = scmp.eq.s32.totalorder %s35, 1
      %p271 = por %p269, %p270
      %p272 = scmp.ne.s32.totalorder %s264, %s267
      %p273 = scmp.eq.s32.totalorder %s35, 0
      %p274 = por %p272, %p273
      %p275 = scmp.ne.s32.totalorder %s264, %s267
      %p276 = scmp.eq.s32.totalorder %s40, 1
      %p277 = por %p275, %p276
      %p278 = scmp.ne.s32.totalorder %s267, %s268
      %p279 = scmp.eq.s32.totalorder %s40, 0
      %p280 = por %p278, %p279
      %p281 = scmp.ne.s32.totalorder %s267, %s268
      %p282 = scmp.eq.s32.totalorder %s41, 1
      %p283 = por %p281, %p282
      %p285 = scmp.ne.s32.totalorder %s268, %s284
      %p286 = scmp.eq.s32.totalorder %s41, 0
      %p287 = por %p285, %p286
      %s288 = ssub.s32 %s35, %s42
      %p289 = scmp.eq.s32.totalorder %s288, 0
      %s291 = sadd.s32 %s290, 1
      %s292 = scalar_select %p289, %s290, %s291
      %p295 = pneg %p289
      %p296 = scmp.eq.s32.totalorder %s35, 1
      %p297 = por %p295, %p296
      %p298 = scmp.ne.s32.totalorder %s290, %s293
      %p299 = scmp.eq.s32.totalorder %s35, 0
      %p300 = por %p298, %p299
      %p301 = scmp.ne.s32.totalorder %s290, %s293
      %p302 = scmp.eq.s32.totalorder %s40, 1
      %p303 = por %p301, %p302
      %p304 = scmp.ne.s32.totalorder %s293, %s294
      %p305 = scmp.eq.s32.totalorder %s40, 0
      %p306 = por %p304, %p305
      %p307 = scmp.ne.s32.totalorder %s293, %s294
      %p308 = scmp.eq.s32.totalorder %s41, 1
      %p309 = por %p307, %p308
      %p311 = scmp.ne.s32.totalorder %s294, %s310
      %p312 = scmp.eq.s32.totalorder %s41, 0
      %p313 = por %p311, %p312
      %s314 = ssub.s32 %s35, %s42
      %p315 = scmp.eq.s32.totalorder %s314, 0
      %s317 = sadd.s32 %s316, 1
      %s318 = scalar_select %p315, %s316, %s317
      %p321 = pneg %p315
      %p322 = scmp.eq.s32.totalorder %s35, 1
      %p323 = por %p321, %p322
      %p324 = scmp.ne.s32.totalorder %s316, %s319
      %p325 = scmp.eq.s32.totalorder %s35, 0
      %p326 = por %p324, %p325
      %p327 = scmp.ne.s32.totalorder %s316, %s319
      %p328 = scmp.eq.s32.totalorder %s40, 1
      %p329 = por %p327, %p328
      %p330 = scmp.ne.s32.totalorder %s319, %s320
      %p331 = scmp.eq.s32.totalorder %s40, 0
      %p332 = por %p330, %p331
      %p333 = scmp.ne.s32.totalorder %s319, %s320
      %p334 = scmp.eq.s32.totalorder %s41, 1
      %p335 = por %p333, %p334
      %p337 = scmp.ne.s32.totalorder %s320, %s336
      %p338 = scmp.eq.s32.totalorder %s41, 0
      %p339 = por %p337, %p338
      %s340 = ssub.s32 %s35, %s42
      %p341 = scmp.eq.s32.totalorder %s340, 0
      %s343 = sadd.s32 %s342, 1
      %s344 = scalar_select %p341, %s342, %s343
      %p347 = pneg %p341
      %p348 = scmp.eq.s32.totalorder %s35, 1
      %p349 = por %p347, %p348
      %p350 = scmp.ne.s32.totalorder %s342, %s345
      %p351 = scmp.eq.s32.totalorder %s35, 0
      %p352 = por %p350, %p351
      %p353 = scmp.ne.s32.totalorder %s342, %s345
      %p354 = scmp.eq.s32.totalorder %s40, 1
      %p355 = por %p353, %p354
      %p356 = scmp.ne.s32.totalorder %s345, %s346
      %p357 = scmp.eq.s32.totalorder %s40, 0
      %p358 = por %p356, %p357
      %p359 = scmp.ne.s32.totalorder %s345, %s346
      %p360 = scmp.eq.s32.totalorder %s41, 1
      %p361 = por %p359, %p360
      %p363 = scmp.ne.s32.totalorder %s346, %s362
      %p364 = scmp.eq.s32.totalorder %s41, 0
      %p365 = por %p363, %p364
      %s366 = ssub.s32 %s35, %s42
      %p367 = scmp.eq.s32.totalorder %s366, 0
      %s369 = sadd.s32 %s368, 1
      %s370 = scalar_select %p367, %s368, %s369
      %p373 = pneg %p367
      %p374 = scmp.eq.s32.totalorder %s35, 1
      %p375 = por %p373, %p374
      %p376 = scmp.ne.s32.totalorder %s368, %s371
      %p377 = scmp.eq.s32.totalorder %s35, 0
      %p378 = por %p376, %p377
      %p379 = scmp.ne.s32.totalorder %s368, %s371
      %p380 = scmp.eq.s32.totalorder %s40, 1
      %p381 = por %p379, %p380
      %p382 = scmp.ne.s32.totalorder %s371, %s372
      %p383 = scmp.eq.s32.totalorder %s40, 0
      %p384 = por %p382, %p383
      %p385 = scmp.ne.s32.totalorder %s371, %s372
      %p386 = scmp.eq.s32.totalorder %s41, 1
      %p387 = por %p385, %p386
      %p389 = scmp.ne.s32.totalorder %s372, %s388
      %p390 = scmp.eq.s32.totalorder %s41, 0
      %p391 = por %p389, %p390
      %s392 = ssub.s32 %s35, %s42
      %p393 = scmp.eq.s32.totalorder %s392, 0
      %s395 = sadd.s32 %s394, 1
      %s396 = scalar_select %p393, %s394, %s395
      %p399 = pneg %p393
      %p400 = scmp.eq.s32.totalorder %s35, 1
      %p401 = por %p399, %p400
      %p402 = scmp.ne.s32.totalorder %s394, %s397
      %p403 = scmp.eq.s32.totalorder %s35, 0
      %p404 = por %p402, %p403
      %p405 = scmp.ne.s32.totalorder %s394, %s397
      %p406 = scmp.eq.s32.totalorder %s40, 1
      %p407 = por %p405, %p406
      %p408 = scmp.ne.s32.totalorder %s397, %s398
      %p409 = scmp.eq.s32.totalorder %s40, 0
      %p410 = por %p408, %p409
      %p411 = scmp.ne.s32.totalorder %s397, %s398
      %p412 = scmp.eq.s32.totalorder %s41, 1
      %p413 = por %p411, %p412
      %p415 = scmp.ne.s32.totalorder %s398, %s414
      %p416 = scmp.eq.s32.totalorder %s41, 0
      %p417 = por %p415, %p416
      %s419 = sadd.s32 %s418, 1
      %p422 = scmp.eq.s32.totalorder %s35, 1
      %p423 = scmp.ne.s32.totalorder %s418, %s420
      %p424 = scmp.eq.s32.totalorder %s35, 0
      %p425 = por %p423, %p424
      %p426 = scmp.ne.s32.totalorder %s418, %s420
      %p427 = scmp.eq.s32.totalorder %s40, 1
      %p428 = por %p426, %p427
      %p429 = scmp.ne.s32.totalorder %s420, %s421
      %p430 = scmp.eq.s32.totalorder %s40, 0
      %p431 = por %p429, %p430
      %p432 = scmp.ne.s32.totalorder %s420, %s421
      %p433 = scmp.eq.s32.totalorder %s41, 1
      %p434 = por %p432, %p433
      %p436 = scmp.ne.s32.totalorder %s421, %s435
      %p437 = scmp.eq.s32.totalorder %s41, 0
      %p438 = por %p436, %p437
      %p439 = scmp.le.s32.totalorder 1, %s35
      %p440 = scmp.lt.s32.totalorder %s35, 3
      %p441 = pnand %p439, %p440
      %p442 = pneg %p441
      // Predicated region
      $region9: #{tpu_custom_call.1} parent=5 // pred_check
        _
      $region10: #{tpu_custom_call.1} parent=5 // pred_check_branch
        %444 = sbr.rel (%p441) target = $region12
      $region11: #{tpu_custom_call.1} parent=5 // pred_region
        %s445 = ssub.s32 %s35, 1
        // Predicated region
        $region13: #{tpu_custom_call.1} parent=11 // pred_check
          %p446 = pneg %p56
        $region14: #{tpu_custom_call.1} parent=11 // pred_check_branch
          %448 = sbr.rel (%p446) target = $region16
        $region15: #{tpu_custom_call.1} parent=11 // pred_region
          %s450 = ssub.s32 8192, 8192
          %451 = vsyncadd [#allocation6], %s450
          %s452 = sshll.u32 [#allocation5], 4
          %s453 = int_to_ptr.vmem [resolvable:$true] %s452
          %458 = dma.hbm_to_vmem [thread:$0]  %s1, 8192, %s453, [#allocation6], 256, 256, 16
        $region16: #{tpu_custom_call.1} parent=11 // pred_fallthru
          _
        // Predicated region
        $region17: #{tpu_custom_call.1} parent=11 // pred_check
          %p459 = pneg %p77
        $region18: #{tpu_custom_call.1} parent=11 // pred_check_branch
          %461 = sbr.rel (%p459) target = $region20
        $region19: #{tpu_custom_call.1} parent=11 // pred_region
          %s463 = ssub.s32 32, 32
          %464 = vsyncadd [#allocation9], %s463
          %s466 = sshll.u32 [#allocation8], 4
          %s467 = int_to_ptr.vmem [resolvable:$true] %s466
          %469 = dma.hbm_to_vmem [thread:$0]  %s2, 32, %s467, [#allocation9]
        $region20: #{tpu_custom_call.1} parent=11 // pred_fallthru
          _
        // Predicated region
        $region21: #{tpu_custom_call.1} parent=11 // pred_check
          %p470 = pneg %p98
        $region22: #{tpu_custom_call.1} parent=11 // pred_check_branch
          %472 = sbr.rel (%p470) target = $region24
        $region23: #{tpu_custom_call.1} parent=11 // pred_region
          %s474 = ssub.s32 32, 32
          %475 = vsyncadd [#allocation9], %s474
          %s477 = sshll.u32 [#allocation10], 4
          %s478 = int_to_ptr.vmem [resolvable:$true] %s477
          %480 = dma.hbm_to_vmem [thread:$0]  %s3, 32, %s478, [#allocation9]
        $region24: #{tpu_custom_call.1} parent=11 // pred_fallthru
          _
      $region12: #{tpu_custom_call.1} parent=5 // pred_fallthru
        _
      %p481 = scmp.lt.s32.totalorder %s35, 2
      // Predicated region
      $region25: #{tpu_custom_call.1} parent=5 // pred_check
        %p482 = pneg %p481
      $region26: #{tpu_custom_call.1} parent=5 // pred_check_branch
        %484 = sbr.rel (%p482) target = $region28
      $region27: #{tpu_custom_call.1} parent=5 // pred_region
        // Predicated region
        $region29: #{tpu_custom_call.1} parent=27 // pred_check
          %p485 = pneg %p118
        $region30: #{tpu_custom_call.1} parent=27 // pred_check_branch
          %487 = sbr.rel (%p485) target = $region32
        $region31: #{tpu_custom_call.1} parent=27 // pred_region
          %s488 = sand.u32 %s35, 1
          %s489 = scalar_lea.sflag [#allocation12], %s488
          %s490 = sand.u32 %s108, 1
          %s491 = smul.addr %s490, 768
          %s492 = scalar_lea.vmem [#allocation11], %s491
          %s494 = ssub.s32 12288, 12288
          %495 = vsyncadd %s489, %s494
          %s496 = smul.addr %s35, 192
          %s497 = smul.addr %s496, 64
          %s498 = scalar_lea.hbm %s4, %s497
          %s499 = sshll.u32 %s492, 4
          %s500 = int_to_ptr.vmem [resolvable:$true] %s499
          %505 = dma.hbm_to_vmem [thread:$0]  %s498, 12288, %s500, %s489, 384, 384, 24
        $region32: #{tpu_custom_call.1} parent=27 // pred_fallthru
          _
        // Predicated region
        $region33: #{tpu_custom_call.1} parent=27 // pred_check
          %p506 = pneg %p144
        $region34: #{tpu_custom_call.1} parent=27 // pred_check_branch
          %508 = sbr.rel (%p506) target = $region36
        $region35: #{tpu_custom_call.1} parent=27 // pred_region
          %p509 = scmp.lt.s32.totalorder %s35, 1
          %s510 = scalar_select %p509, %s35, 1
          %s511 = smul.addr %s510, 6
          %s512 = scalar_lea.vmem %s5, %s511
        $region36: #{tpu_custom_call.1} parent=27 // pred_fallthru
          _
        // Predicated region
        $region37: #{tpu_custom_call.1} parent=27 // pred_check
          %p513 = pneg %p170
        $region38: #{tpu_custom_call.1} parent=27 // pred_check_branch
          %515 = sbr.rel (%p513) target = $region40
        $region39: #{tpu_custom_call.1} parent=27 // pred_region
          %s516 = sand.u32 %s35, 1
          %s517 = scalar_lea.sflag [#allocation12], %s516
          %s518 = sand.u32 %s160, 1
          %s519 = smul.addr %s518, 256
          %s520 = scalar_lea.vmem [#allocation13], %s519
          %s522 = ssub.s32 4096, 4096
          %523 = vsyncadd %s517, %s522
          %s524 = smul.addr %s35, 64
          %s525 = smul.addr %s524, 64
          %s526 = scalar_lea.hbm %s6, %s525
          %s527 = sshll.u32 %s520, 4
          %s528 = int_to_ptr.vmem [resolvable:$true] %s527
          %533 = dma.hbm_to_vmem [thread:$0]  %s526, 4096, %s528, %s517, 128, 128, 8
        $region40: #{tpu_custom_call.1} parent=27 // pred_fallthru
          _
        // Predicated region
        $region41: #{tpu_custom_call.1} parent=27 // pred_check
          %p534 = pneg %p196
        $region42: #{tpu_custom_call.1} parent=27 // pred_check_branch
          %536 = sbr.rel (%p534) target = $region44
        $region43: #{tpu_custom_call.1} parent=27 // pred_region
          %p537 = scmp.lt.s32.totalorder %s35, 1
          %s538 = scalar_select %p537, %s35, 1
          %s539 = smul.addr %s538, 2
          %s540 = scalar_lea.vmem %s7, %s539
        $region44: #{tpu_custom_call.1} parent=27 // pred_fallthru
          _
        // Predicated region
        $region45: #{tpu_custom_call.1} parent=27 // pred_check
          %p541 = pneg %p222
        $region46: #{tpu_custom_call.1} parent=27 // pred_check_branch
          %543 = sbr.rel (%p541) target = $region48
        $region47: #{tpu_custom_call.1} parent=27 // pred_region
          %p544 = scmp.lt.s32.totalorder %s35, 1
          %s545 = scalar_select %p544, %s35, 1
          %s546 = smul.addr %s545, 2
          %s547 = scalar_lea.vmem %s8, %s546
        $region48: #{tpu_custom_call.1} parent=27 // pred_fallthru
          _
        // Predicated region
        $region49: #{tpu_custom_call.1} parent=27 // pred_check
          %p548 = pneg %p248
        $region50: #{tpu_custom_call.1} parent=27 // pred_check_branch
          %550 = sbr.rel (%p548) target = $region52
        $region51: #{tpu_custom_call.1} parent=27 // pred_region
          %p551 = scmp.lt.s32.totalorder %s35, 1
          %s552 = scalar_select %p551, %s35, 1
          %s553 = smul.addr %s552, 2
          %s554 = scalar_lea.vmem %s9, %s553
        $region52: #{tpu_custom_call.1} parent=27 // pred_fallthru
          _
        // Predicated region
        $region53: #{tpu_custom_call.1} parent=27 // pred_check
          %p555 = pneg %p274
        $region54: #{tpu_custom_call.1} parent=27 // pred_check_branch
          %557 = sbr.rel (%p555) target = $region56
        $region55: #{tpu_custom_call.1} parent=27 // pred_region
          %s558 = sand.u32 %s35, 1
          %s559 = scalar_lea.sflag [#allocation15], %s558
          %s560 = sand.u32 %s264, 1
          %s561 = smul.addr %s560, 512
          %s562 = scalar_lea.vmem [#allocation14], %s561
          %s564 = ssub.s32 8192, 8192
          %565 = vsyncadd %s559, %s564
          %s566 = smul.addr %s35, 128
          %s567 = smul.addr %s566, 64
          %s568 = scalar_lea.hbm %s10, %s567
          %s569 = sshll.u32 %s562, 4
          %s570 = int_to_ptr.vmem [resolvable:$true] %s569
          %575 = dma.hbm_to_vmem [thread:$0]  %s568, 8192, %s570, %s559, 256, 256, 16
        $region56: #{tpu_custom_call.1} parent=27 // pred_fallthru
          _
        // Predicated region
        $region57: #{tpu_custom_call.1} parent=27 // pred_check
          %p576 = pneg %p300
        $region58: #{tpu_custom_call.1} parent=27 // pred_check_branch
          %578 = sbr.rel (%p576) target = $region60
        $region59: #{tpu_custom_call.1} parent=27 // pred_region
          %p579 = scmp.lt.s32.totalorder %s35, 1
          %s580 = scalar_select %p579, %s35, 1
          %s581 = smul.addr %s580, 4
          %s582 = scalar_lea.vmem %s11, %s581
        $region60: #{tpu_custom_call.1} parent=27 // pred_fallthru
          _
        // Predicated region
        $region61: #{tpu_custom_call.1} parent=27 // pred_check
          %p583 = pneg %p326
        $region62: #{tpu_custom_call.1} parent=27 // pred_check_branch
          %585 = sbr.rel (%p583) target = $region64
        $region63: #{tpu_custom_call.1} parent=27 // pred_region
          %s586 = sand.u32 %s35, 1
          %s587 = scalar_lea.sflag [#allocation15], %s586
          %s588 = sand.u32 %s316, 1
          %s589 = smul.addr %s588, 512
          %s590 = scalar_lea.vmem [#allocation16], %s589
          %s592 = ssub.s32 8192, 8192
          %593 = vsyncadd %s587, %s592
          %s594 = smul.addr %s35, 128
          %s595 = smul.addr %s594, 64
          %s596 = scalar_lea.hbm %s12, %s595
          %s597 = sshll.u32 %s590, 4
          %s598 = int_to_ptr.vmem [resolvable:$true] %s597
          %603 = dma.hbm_to_vmem [thread:$0]  %s596, 8192, %s598, %s587, 128, 128, 8
        $region64: #{tpu_custom_call.1} parent=27 // pred_fallthru
          _
        // Predicated region
        $region65: #{tpu_custom_call.1} parent=27 // pred_check
          %p604 = pneg %p352
        $region66: #{tpu_custom_call.1} parent=27 // pred_check_branch
          %606 = sbr.rel (%p604) target = $region68
        $region67: #{tpu_custom_call.1} parent=27 // pred_region
          %p607 = scmp.lt.s32.totalorder %s35, 1
          %s608 = scalar_select %p607, %s35, 1
          %s609 = smul.addr %s608, 2
          %s610 = scalar_lea.vmem %s13, %s609
        $region68: #{tpu_custom_call.1} parent=27 // pred_fallthru
          _
        // Predicated region
        $region69: #{tpu_custom_call.1} parent=27 // pred_check
          %p611 = pneg %p378
        $region70: #{tpu_custom_call.1} parent=27 // pred_check_branch
          %613 = sbr.rel (%p611) target = $region72
        $region71: #{tpu_custom_call.1} parent=27 // pred_region
          %p614 = scmp.lt.s32.totalorder %s35, 1
          %s615 = scalar_select %p614, %s35, 1
          %s616 = smul.addr %s615, 2
          %s617 = scalar_lea.vmem %s14, %s616
        $region72: #{tpu_custom_call.1} parent=27 // pred_fallthru
          _
        // Predicated region
        $region73: #{tpu_custom_call.1} parent=27 // pred_check
          %p618 = pneg %p404
        $region74: #{tpu_custom_call.1} parent=27 // pred_check_branch
          %620 = sbr.rel (%p618) target = $region76
        $region75: #{tpu_custom_call.1} parent=27 // pred_region
          %p621 = scmp.lt.s32.totalorder %s35, 1
          %s622 = scalar_select %p621, %s35, 1
          %s623 = smul.addr %s622, 2
          %s624 = scalar_lea.vmem %s15, %s623
        $region76: #{tpu_custom_call.1} parent=27 // pred_fallthru
          _
      $region28: #{tpu_custom_call.1} parent=5 // pred_fallthru
        _
      %p625 = scmp.le.s32.totalorder 1, %s35
      %p626 = scmp.lt.s32.totalorder %s35, 3
      %p627 = pnand %p625, %p626
      %p628 = pneg %p627
      // Predicated region
      $region77: #{tpu_custom_call.1} parent=5 // pred_check
        _
      $region78: #{tpu_custom_call.1} parent=5 // pred_check_branch
        %630 = sbr.rel (%p627) target = $region80
      $region79: #{tpu_custom_call.1} parent=5 // pred_region
        %s631 = ssub.s32 %s35, 1
        // Predicated region
        $region81: #{tpu_custom_call.1} parent=79 // pred_check
          %p632 = pneg %p56
        $region82: #{tpu_custom_call.1} parent=79 // pred_check_branch
          %634 = sbr.rel (%p632) target = $region84
        $region83: #{tpu_custom_call.1} parent=79 // pred_region
          %635 = dma.done [#allocation6], 8192
        $region84: #{tpu_custom_call.1} parent=79 // pred_fallthru
          _
        // Predicated region
        $region85: #{tpu_custom_call.1} parent=79 // pred_check
          %p636 = pneg %p77
        $region86: #{tpu_custom_call.1} parent=79 // pred_check_branch
          %638 = sbr.rel (%p636) target = $region88
        $region87: #{tpu_custom_call.1} parent=79 // pred_region
          %639 = dma.done [#allocation9], 32
        $region88: #{tpu_custom_call.1} parent=79 // pred_fallthru
          _
        // Predicated region
        $region89: #{tpu_custom_call.1} parent=79 // pred_check
          %p640 = pneg %p98
        $region90: #{tpu_custom_call.1} parent=79 // pred_check_branch
          %642 = sbr.rel (%p640) target = $region92
        $region91: #{tpu_custom_call.1} parent=79 // pred_region
          %643 = dma.done [#allocation9], 32
        $region92: #{tpu_custom_call.1} parent=79 // pred_fallthru
          _
        %s644 = sand.u32 %s40, 1
        %s645 = scalar_lea.sflag [#allocation12], %s644
        %s646 = sand.u32 %s111, 1
        %s647 = smul.addr %s646, 768
        %s648 = scalar_lea.vmem [#allocation11], %s647
        // Predicated region
        $region93: #{tpu_custom_call.1} parent=79 // pred_check
          %p649 = pneg %p124
        $region94: #{tpu_custom_call.1} parent=79 // pred_check_branch
          %651 = sbr.rel (%p649) target = $region96
        $region95: #{tpu_custom_call.1} parent=79 // pred_region
          %652 = dma.done %s645, 12288
        $region96: #{tpu_custom_call.1} parent=79 // pred_fallthru
          _
        %s653 = sand.u32 %s40, 1
        %s654 = scalar_lea.sflag [#allocation12], %s653
        %s655 = sand.u32 %s163, 1
        %s656 = smul.addr %s655, 256
        %s657 = scalar_lea.vmem [#allocation13], %s656
        // Predicated region
        $region97: #{tpu_custom_call.1} parent=79 // pred_check
          %p658 = pneg %p176
        $region98: #{tpu_custom_call.1} parent=79 // pred_check_branch
          %660 = sbr.rel (%p658) target = $region100
        $region99: #{tpu_custom_call.1} parent=79 // pred_region
          %661 = dma.done %s654, 4096
        $region100: #{tpu_custom_call.1} parent=79 // pred_fallthru
          _
        %s662 = sand.u32 %s40, 1
        %s663 = scalar_lea.sflag [#allocation15], %s662
        %s664 = sand.u32 %s267, 1
        %s665 = smul.addr %s664, 512
        %s666 = scalar_lea.vmem [#allocation14], %s665
        // Predicated region
        $region101: #{tpu_custom_call.1} parent=79 // pred_check
          %p667 = pneg %p280
        $region102: #{tpu_custom_call.1} parent=79 // pred_check_branch
          %669 = sbr.rel (%p667) target = $region104
        $region103: #{tpu_custom_call.1} parent=79 // pred_region
          %670 = dma.done %s663, 8192
        $region104: #{tpu_custom_call.1} parent=79 // pred_fallthru
          _
        %s671 = sand.u32 %s40, 1
        %s672 = scalar_lea.sflag [#allocation15], %s671
        %s673 = sand.u32 %s319, 1
        %s674 = smul.addr %s673, 512
        %s675 = scalar_lea.vmem [#allocation16], %s674
        // Predicated region
        $region105: #{tpu_custom_call.1} parent=79 // pred_check
          %p676 = pneg %p332
        $region106: #{tpu_custom_call.1} parent=79 // pred_check_branch
          %678 = sbr.rel (%p676) target = $region108
        $region107: #{tpu_custom_call.1} parent=79 // pred_region
          %679 = dma.done %s672, 8192
        $region108: #{tpu_custom_call.1} parent=79 // pred_fallthru
          _
        %p680 = pneg %p56
        %p681 = pneg %p53
        %p682 = pneg %p77
        %p683 = pneg %p74
        %p684 = pneg %p98
        %p685 = pneg %p95
        %s686 = sand.u32 %s40, 1
        %s687 = scalar_lea.sflag [#allocation12], %s686
        %s688 = sand.u32 %s111, 1
        %s689 = smul.addr %s688, 768
        %s690 = scalar_lea.vmem [#allocation11], %s689
        %p691 = pneg %p124
        %p692 = pneg %p121
        %p693 = scmp.lt.s32.totalorder %s40, 1
        %s694 = scalar_select %p693, %s40, 1
        %s695 = smul.addr %s694, 6
        %s696 = scalar_lea.vmem %s5, %s695
        %p697 = pneg %p150
        %p698 = pneg %p147
        %s699 = sand.u32 %s40, 1
        %s700 = scalar_lea.sflag [#allocation12], %s699
        %s701 = sand.u32 %s163, 1
        %s702 = smul.addr %s701, 256
        %s703 = scalar_lea.vmem [#allocation13], %s702
        %p704 = pneg %p176
        %p705 = pneg %p173
        %p706 = scmp.lt.s32.totalorder %s40, 1
        %s707 = scalar_select %p706, %s40, 1
        %s708 = smul.addr %s707, 2
        %s709 = scalar_lea.vmem %s7, %s708
        %p710 = pneg %p202
        %p711 = pneg %p199
        %p712 = scmp.lt.s32.totalorder %s40, 1
        %s713 = scalar_select %p712, %s40, 1
        %s714 = smul.addr %s713, 2
        %s715 = scalar_lea.vmem %s8, %s714
        %p716 = pneg %p228
        %p717 = pneg %p225
        %p718 = scmp.lt.s32.totalorder %s40, 1
        %s719 = scalar_select %p718, %s40, 1
        %s720 = smul.addr %s719, 2
        %s721 = scalar_lea.vmem %s9, %s720
        %p722 = pneg %p254
        %p723 = pneg %p251
        %s724 = sand.u32 %s40, 1
        %s725 = scalar_lea.sflag [#allocation15], %s724
        %s726 = sand.u32 %s267, 1
        %s727 = smul.addr %s726, 512
        %s728 = scalar_lea.vmem [#allocation14], %s727
        %p729 = pneg %p280
        %p730 = pneg %p277
        %p731 = scmp.lt.s32.totalorder %s40, 1
        %s732 = scalar_select %p731, %s40, 1
        %s733 = smul.addr %s732, 4
        %s734 = scalar_lea.vmem %s11, %s733
        %p735 = pneg %p306
        %p736 = pneg %p303
        %s737 = sand.u32 %s40, 1
        %s738 = scalar_lea.sflag [#allocation15], %s737
        %s739 = sand.u32 %s319, 1
        %s740 = smul.addr %s739, 512
        %s741 = scalar_lea.vmem [#allocation16], %s740
        %p742 = pneg %p332
        %p743 = pneg %p329
        %p744 = scmp.lt.s32.totalorder %s40, 1
        %s745 = scalar_select %p744, %s40, 1
        %s746 = smul.addr %s745, 2
        %s747 = scalar_lea.vmem %s13, %s746
        %p748 = pneg %p358
        %p749 = pneg %p355
        %p750 = scmp.lt.s32.totalorder %s40, 1
        %s751 = scalar_select %p750, %s40, 1
        %s752 = smul.addr %s751, 2
        %s753 = scalar_lea.vmem %s14, %s752
        %p754 = pneg %p384
        %p755 = pneg %p381
        %p756 = scmp.lt.s32.totalorder %s40, 1
        %s757 = scalar_select %p756, %s40, 1
        %s758 = smul.addr %s757, 2
        %s759 = scalar_lea.vmem %s15, %s758
        %p760 = pneg %p410
        %p761 = pneg %p407
        %p762 = pneg %p431
        %p763 = pneg %p428
        %p764 = scmp.lt.s32.totalorder %s40, 1
        %s765 = scalar_select %p764, %s40, 1
        %s766 = smul.addr %s765, 6
        %s767 = scalar_lea.vmem %s5, %s766
        %p768 = scmp.lt.s32.totalorder %s40, 1
        %s769 = scalar_select %p768, %s40, 1
        %s770 = smul.addr %s769, 2
        %s771 = scalar_lea.vmem %s7, %s770
        %p772 = scmp.lt.s32.totalorder %s40, 1
        %s773 = scalar_select %p772, %s40, 1
        %s774 = smul.addr %s773, 2
        %s775 = scalar_lea.vmem %s8, %s774
        %p776 = scmp.lt.s32.totalorder %s40, 1
        %s777 = scalar_select %p776, %s40, 1
        %s778 = smul.addr %s777, 2
        %s779 = scalar_lea.vmem %s9, %s778
        %p780 = scmp.lt.s32.totalorder %s40, 1
        %s781 = scalar_select %p780, %s40, 1
        %s782 = smul.addr %s781, 4
        %s783 = scalar_lea.vmem %s11, %s782
        %p784 = scmp.lt.s32.totalorder %s40, 1
        %s785 = scalar_select %p784, %s40, 1
        %s786 = smul.addr %s785, 2
        %s787 = scalar_lea.vmem %s13, %s786
        %p788 = scmp.lt.s32.totalorder %s40, 1
        %s789 = scalar_select %p788, %s40, 1
        %s790 = smul.addr %s789, 2
        %s791 = scalar_lea.vmem %s14, %s790
        %p792 = scmp.lt.s32.totalorder %s40, 1
        %s793 = scalar_select %p792, %s40, 1
        %s794 = smul.addr %s793, 2
        %s795 = scalar_lea.vmem %s15, %s794
        %p797 = scmp.eq.s32.totalorder %s40, 0
        // Predicated region
        $region109: #{tpu_custom_call.1} parent=79 // pred_check
          %p798 = pneg %p797
        $region110: #{tpu_custom_call.1} parent=79 // pred_check_branch
          %800 = sbr.rel (%p798) target = $region112
        $region111: #{tpu_custom_call.1} parent=79 // pred_region
          %v801 = vld [vmem:[#allocation5] sm:$0xff]
          %v802 = vld [vmem:[#allocation5 + $0x8] sm:$0xff]
          %v803 = vld [vmem:[#allocation5 + $0x10] sm:$0xff]
          %v804 = vld [vmem:[#allocation5 + $0x18] sm:$0xff]
          %v805 = vld [vmem:[#allocation5 + $0x20] sm:$0xff]
          %v806 = vld [vmem:[#allocation5 + $0x28] sm:$0xff]
          %v807 = vld [vmem:[#allocation5 + $0x30] sm:$0xff]
          %v808 = vld [vmem:[#allocation5 + $0x38] sm:$0xff]
          %v809 = vld [vmem:[#allocation5 + $0x40] sm:$0xff]
          %v810 = vld [vmem:[#allocation5 + $0x48] sm:$0xff]
          %v811 = vld [vmem:[#allocation5 + $0x50] sm:$0xff]
          %v812 = vld [vmem:[#allocation5 + $0x58] sm:$0xff]
          %v813 = vld [vmem:[#allocation5 + $0x60] sm:$0xff]
          %v814 = vld [vmem:[#allocation5 + $0x68] sm:$0xff]
          %v815 = vld [vmem:[#allocation5 + $0x70] sm:$0xff]
          %v816 = vld [vmem:[#allocation5 + $0x78] sm:$0xff]
          %v817 = vld [vmem:[#allocation5 + $0x80] sm:$0xff]
          %v818 = vld [vmem:[#allocation5 + $0x88] sm:$0xff]
          %v819 = vld [vmem:[#allocation5 + $0x90] sm:$0xff]
          %v820 = vld [vmem:[#allocation5 + $0x98] sm:$0xff]
          %v821 = vld [vmem:[#allocation5 + $0xa0] sm:$0xff]
          %v822 = vld [vmem:[#allocation5 + $0xa8] sm:$0xff]
          %v823 = vld [vmem:[#allocation5 + $0xb0] sm:$0xff]
          %v824 = vld [vmem:[#allocation5 + $0xb8] sm:$0xff]
          %v825 = vld [vmem:[#allocation5 + $0xc0] sm:$0xff]
          %v826 = vld [vmem:[#allocation5 + $0xc8] sm:$0xff]
          %v827 = vld [vmem:[#allocation5 + $0xd0] sm:$0xff]
          %v828 = vld [vmem:[#allocation5 + $0xd8] sm:$0xff]
          %v829 = vld [vmem:[#allocation5 + $0xe0] sm:$0xff]
          %v830 = vld [vmem:[#allocation5 + $0xe8] sm:$0xff]
          %v831 = vld [vmem:[#allocation5 + $0xf0] sm:$0xff]
          %v832 = vld [vmem:[#allocation5 + $0xf8] sm:$0xff]
          %v833 = vld [vmem:[#allocation5 + $0x100] sm:$0xff]
          %v834 = vld [vmem:[#allocation5 + $0x108] sm:$0xff]
          %v835 = vld [vmem:[#allocation5 + $0x110] sm:$0xff]
          %v836 = vld [vmem:[#allocation5 + $0x118] sm:$0xff]
          %v837 = vld [vmem:[#allocation5 + $0x120] sm:$0xff]
          %v838 = vld [vmem:[#allocation5 + $0x128] sm:$0xff]
          %v839 = vld [vmem:[#allocation5 + $0x130] sm:$0xff]
          %v840 = vld [vmem:[#allocation5 + $0x138] sm:$0xff]
          %v841 = vld [vmem:[#allocation5 + $0x140] sm:$0xff]
          %v842 = vld [vmem:[#allocation5 + $0x148] sm:$0xff]
          %v843 = vld [vmem:[#allocation5 + $0x150] sm:$0xff]
          %v844 = vld [vmem:[#allocation5 + $0x158] sm:$0xff]
          %v845 = vld [vmem:[#allocation5 + $0x160] sm:$0xff]
          %v846 = vld [vmem:[#allocation5 + $0x168] sm:$0xff]
          %v847 = vld [vmem:[#allocation5 + $0x170] sm:$0xff]
          %v848 = vld [vmem:[#allocation5 + $0x178] sm:$0xff]
          %v849 = vld [vmem:[#allocation5 + $0x180] sm:$0xff]
          %v850 = vld [vmem:[#allocation5 + $0x188] sm:$0xff]
          %v851 = vld [vmem:[#allocation5 + $0x190] sm:$0xff]
          %v852 = vld [vmem:[#allocation5 + $0x198] sm:$0xff]
          %v853 = vld [vmem:[#allocation5 + $0x1a0] sm:$0xff]
          %v854 = vld [vmem:[#allocation5 + $0x1a8] sm:$0xff]
          %v855 = vld [vmem:[#allocation5 + $0x1b0] sm:$0xff]
          %v856 = vld [vmem:[#allocation5 + $0x1b8] sm:$0xff]
          %v857 = vld [vmem:[#allocation5 + $0x1c0] sm:$0xff]
          %v858 = vld [vmem:[#allocation5 + $0x1c8] sm:$0xff]
          %v859 = vld [vmem:[#allocation5 + $0x1d0] sm:$0xff]
          %v860 = vld [vmem:[#allocation5 + $0x1d8] sm:$0xff]
          %v861 = vld [vmem:[#allocation5 + $0x1e0] sm:$0xff]
          %v862 = vld [vmem:[#allocation5 + $0x1e8] sm:$0xff]
          %v863 = vld [vmem:[#allocation5 + $0x1f0] sm:$0xff]
          %v864 = vld [vmem:[#allocation5 + $0x1f8] sm:$0xff]
          %v865 = vld [vmem:[#allocation8] sm:$0x3]
          %v866 = vld [vmem:[#allocation10] sm:$0x3]
          %v867 = vadd.f32 %v801, %v802
          %868 = vadd.xlane.f32.xlu0 %v867
          %v869 = vpop.xlane.xlu0 %868
          %v870 = vadd.f32 %v803, %v804
          %871 = vadd.xlane.f32.xlu0 %v870
          %v872 = vpop.xlane.xlu0 %871
          %v873 = vadd.f32 %v805, %v806
          %874 = vadd.xlane.f32.xlu0 %v873
          %v875 = vpop.xlane.xlu0 %874
          %v876 = vadd.f32 %v807, %v808
          %877 = vadd.xlane.f32.xlu0 %v876
          %v878 = vpop.xlane.xlu0 %877
          %v879 = vadd.f32 %v809, %v810
          %880 = vadd.xlane.f32.xlu0 %v879
          %v881 = vpop.xlane.xlu0 %880
          %v882 = vadd.f32 %v811, %v812
          %883 = vadd.xlane.f32.xlu0 %v882
          %v884 = vpop.xlane.xlu0 %883
          %v885 = vadd.f32 %v813, %v814
          %886 = vadd.xlane.f32.xlu0 %v885
          %v887 = vpop.xlane.xlu0 %886
          %v888 = vadd.f32 %v815, %v816
          %889 = vadd.xlane.f32.xlu0 %v888
          %v890 = vpop.xlane.xlu0 %889
          %v891 = vadd.f32 %v817, %v818
          %892 = vadd.xlane.f32.xlu0 %v891
          %v893 = vpop.xlane.xlu0 %892
          %v894 = vadd.f32 %v819, %v820
          %895 = vadd.xlane.f32.xlu0 %v894
          %v896 = vpop.xlane.xlu0 %895
          %v897 = vadd.f32 %v821, %v822
          %898 = vadd.xlane.f32.xlu0 %v897
          %v899 = vpop.xlane.xlu0 %898
          %v900 = vadd.f32 %v823, %v824
          %901 = vadd.xlane.f32.xlu0 %v900
          %v902 = vpop.xlane.xlu0 %901
          %v903 = vadd.f32 %v825, %v826
          %904 = vadd.xlane.f32.xlu0 %v903
          %v905 = vpop.xlane.xlu0 %904
          %v906 = vadd.f32 %v827, %v828
          %907 = vadd.xlane.f32.xlu0 %v906
          %v908 = vpop.xlane.xlu0 %907
          %v909 = vadd.f32 %v829, %v830
          %910 = vadd.xlane.f32.xlu0 %v909
          %v911 = vpop.xlane.xlu0 %910
          %v912 = vadd.f32 %v831, %v832
          %913 = vadd.xlane.f32.xlu0 %v912
          %v914 = vpop.xlane.xlu0 %913
          %v915 = vadd.f32 %v833, %v834
          %916 = vadd.xlane.f32.xlu0 %v915
          %v917 = vpop.xlane.xlu0 %916
          %v918 = vadd.f32 %v835, %v836
          %919 = vadd.xlane.f32.xlu0 %v918
          %v920 = vpop.xlane.xlu0 %919
          %v921 = vadd.f32 %v837, %v838
          %922 = vadd.xlane.f32.xlu0 %v921
          %v923 = vpop.xlane.xlu0 %922
          %v924 = vadd.f32 %v839, %v840
          %925 = vadd.xlane.f32.xlu0 %v924
          %v926 = vpop.xlane.xlu0 %925
          %v927 = vadd.f32 %v841, %v842
          %928 = vadd.xlane.f32.xlu0 %v927
          %v929 = vpop.xlane.xlu0 %928
          %v930 = vadd.f32 %v843, %v844
          %931 = vadd.xlane.f32.xlu0 %v930
          %v932 = vpop.xlane.xlu0 %931
          %v933 = vadd.f32 %v845, %v846
          %934 = vadd.xlane.f32.xlu0 %v933
          %v935 = vpop.xlane.xlu0 %934
          %v936 = vadd.f32 %v847, %v848
          %937 = vadd.xlane.f32.xlu0 %v936
          %v938 = vpop.xlane.xlu0 %937
          %v939 = vadd.f32 %v849, %v850
          %940 = vadd.xlane.f32.xlu0 %v939
          %v941 = vpop.xlane.xlu0 %940
          %v942 = vadd.f32 %v851, %v852
          %943 = vadd.xlane.f32.xlu0 %v942
          %v944 = vpop.xlane.xlu0 %943
          %v945 = vadd.f32 %v853, %v854
          %946 = vadd.xlane.f32.xlu0 %v945
          %v947 = vpop.xlane.xlu0 %946
          %v948 = vadd.f32 %v855, %v856
          %949 = vadd.xlane.f32.xlu0 %v948
          %v950 = vpop.xlane.xlu0 %949
          %v951 = vadd.f32 %v857, %v858
          %952 = vadd.xlane.f32.xlu0 %v951
          %v953 = vpop.xlane.xlu0 %952
          %v954 = vadd.f32 %v859, %v860
          %955 = vadd.xlane.f32.xlu0 %v954
          %v956 = vpop.xlane.xlu0 %955
          %v957 = vadd.f32 %v861, %v862
          %958 = vadd.xlane.f32.xlu0 %v957
          %v959 = vpop.xlane.xlu0 %958
          %v960 = vadd.f32 %v863, %v864
          %961 = vadd.xlane.f32.xlu0 %v960
          %v962 = vpop.xlane.xlu0 %961
          %v963 = vrcp.pop 256.0
          %v964 = vmul.f32 %v869, %v963
          %v965 = vmul.f32 %v872, %v963
          %v966 = vmul.f32 %v875, %v963
          %v967 = vmul.f32 %v878, %v963
          %v968 = vmul.f32 %v881, %v963
          %v969 = vmul.f32 %v884, %v963
          %v970 = vmul.f32 %v887, %v963
          %v971 = vmul.f32 %v890, %v963
          %v972 = vmul.f32 %v893, %v963
          %v973 = vmul.f32 %v896, %v963
          %v974 = vmul.f32 %v899, %v963
          %v975 = vmul.f32 %v902, %v963
          %v976 = vmul.f32 %v905, %v963
          %v977 = vmul.f32 %v908, %v963
          %v978 = vmul.f32 %v911, %v963
          %v979 = vmul.f32 %v914, %v963
          %v980 = vmul.f32 %v917, %v963
          %v981 = vmul.f32 %v920, %v963
          %v982 = vmul.f32 %v923, %v963
          %v983 = vmul.f32 %v926, %v963
          %v984 = vmul.f32 %v929, %v963
          %v985 = vmul.f32 %v932, %v963
          %v986 = vmul.f32 %v935, %v963
          %v987 = vmul.f32 %v938, %v963
          %v988 = vmul.f32 %v941, %v963
          %v989 = vmul.f32 %v944, %v963
          %v990 = vmul.f32 %v947, %v963
          %v991 = vmul.f32 %v950, %v963
          %v992 = vmul.f32 %v953, %v963
          %v993 = vmul.f32 %v956, %v963
          %v994 = vmul.f32 %v959, %v963
          %v995 = vmul.f32 %v962, %v963
          %v996 = vsub.f32 %v801, %v964
          %v997 = vsub.f32 %v802, %v964
          %v998 = vsub.f32 %v803, %v965
          %v999 = vsub.f32 %v804, %v965
          %v1000 = vsub.f32 %v805, %v966
          %v1001 = vsub.f32 %v806, %v966
          %v1002 = vsub.f32 %v807, %v967
          %v1003 = vsub.f32 %v808, %v967
          %v1004 = vsub.f32 %v809, %v968
          %v1005 = vsub.f32 %v810, %v968
          %v1006 = vsub.f32 %v811, %v969
          %v1007 = vsub.f32 %v812, %v969
          %v1008 = vsub.f32 %v813, %v970
          %v1009 = vsub.f32 %v814, %v970
          %v1010 = vsub.f32 %v815, %v971
          %v1011 = vsub.f32 %v816, %v971
          %v1012 = vsub.f32 %v817, %v972
          %v1013 = vsub.f32 %v818, %v972
          %v1014 = vsub.f32 %v819, %v973
          %v1015 = vsub.f32 %v820, %v973
          %v1016 = vsub.f32 %v821, %v974
          %v1017 = vsub.f32 %v822, %v974
          %v1018 = vsub.f32 %v823, %v975
          %v1019 = vsub.f32 %v824, %v975
          %v1020 = vsub.f32 %v825, %v976
          %v1021 = vsub.f32 %v826, %v976
          %v1022 = vsub.f32 %v827, %v977
          %v1023 = vsub.f32 %v828, %v977
          %v1024 = vsub.f32 %v829, %v978
          %v1025 = vsub.f32 %v830, %v978
          %v1026 = vsub.f32 %v831, %v979
          %v1027 = vsub.f32 %v832, %v979
          %v1028 = vsub.f32 %v833, %v980
          %v1029 = vsub.f32 %v834, %v980
          %v1030 = vsub.f32 %v835, %v981
          %v1031 = vsub.f32 %v836, %v981
          %v1032 = vsub.f32 %v837, %v982
          %v1033 = vsub.f32 %v838, %v982
          %v1034 = vsub.f32 %v839, %v983
          %v1035 = vsub.f32 %v840, %v983
          %v1036 = vsub.f32 %v841, %v984
          %v1037 = vsub.f32 %v842, %v984
          %v1038 = vsub.f32 %v843, %v985
          %v1039 = vsub.f32 %v844, %v985
          %v1040 = vsub.f32 %v845, %v986
          %v1041 = vsub.f32 %v846, %v986
          %v1042 = vsub.f32 %v847, %v987
          %v1043 = vsub.f32 %v848, %v987
          %v1044 = vsub.f32 %v849, %v988
          %v1045 = vsub.f32 %v850, %v988
          %v1046 = vsub.f32 %v851, %v989
          %v1047 = vsub.f32 %v852, %v989
          %v1048 = vsub.f32 %v853, %v990
          %v1049 = vsub.f32 %v854, %v990
          %v1050 = vsub.f32 %v855, %v991
          %v1051 = vsub.f32 %v856, %v991
          %v1052 = vsub.f32 %v857, %v992
          %v1053 = vsub.f32 %v858, %v992
          %v1054 = vsub.f32 %v859, %v993
          %v1055 = vsub.f32 %v860, %v993
          %v1056 = vsub.f32 %v861, %v994
          %v1057 = vsub.f32 %v862, %v994
          %v1058 = vsub.f32 %v863, %v995
          %v1059 = vsub.f32 %v864, %v995
          %v1060 = vmul.f32 %v996, %v996
          %v1061 = vmul.f32 %v997, %v997
          %v1062 = vmul.f32 %v998, %v998
          %v1063 = vmul.f32 %v999, %v999
          %v1064 = vmul.f32 %v1000, %v1000
          %v1065 = vmul.f32 %v1001, %v1001
          %v1066 = vmul.f32 %v1002, %v1002
          %v1067 = vmul.f32 %v1003, %v1003
          %v1068 = vmul.f32 %v1004, %v1004
          %v1069 = vmul.f32 %v1005, %v1005
          %v1070 = vmul.f32 %v1006, %v1006
          %v1071 = vmul.f32 %v1007, %v1007
          %v1072 = vmul.f32 %v1008, %v1008
          %v1073 = vmul.f32 %v1009, %v1009
          %v1074 = vmul.f32 %v1010, %v1010
          %v1075 = vmul.f32 %v1011, %v1011
          %v1076 = vmul.f32 %v1012, %v1012
          %v1077 = vmul.f32 %v1013, %v1013
          %v1078 = vmul.f32 %v1014, %v1014
          %v1079 = vmul.f32 %v1015, %v1015
          %v1080 = vmul.f32 %v1016, %v1016
          %v1081 = vmul.f32 %v1017, %v1017
          %v1082 = vmul.f32 %v1018, %v1018
          %v1083 = vmul.f32 %v1019, %v1019
          %v1084 = vmul.f32 %v1020, %v1020
          %v1085 = vmul.f32 %v1021, %v1021
          %v1086 = vmul.f32 %v1022, %v1022
          %v1087 = vmul.f32 %v1023, %v1023
          %v1088 = vmul.f32 %v1024, %v1024
          %v1089 = vmul.f32 %v1025, %v1025
          %v1090 = vmul.f32 %v1026, %v1026
          %v1091 = vmul.f32 %v1027, %v1027
          %v1092 = vmul.f32 %v1028, %v1028
          %v1093 = vmul.f32 %v1029, %v1029
          %v1094 = vmul.f32 %v1030, %v1030
          %v1095 = vmul.f32 %v1031, %v1031
          %v1096 = vmul.f32 %v1032, %v1032
          %v1097 = vmul.f32 %v1033, %v1033
          %v1098 = vmul.f32 %v1034, %v1034
          %v1099 = vmul.f32 %v1035, %v1035
          %v1100 = vmul.f32 %v1036, %v1036
          %v1101 = vmul.f32 %v1037, %v1037
          %v1102 = vmul.f32 %v1038, %v1038
          %v1103 = vmul.f32 %v1039, %v1039
          %v1104 = vmul.f32 %v1040, %v1040
          %v1105 = vmul.f32 %v1041, %v1041
          %v1106 = vmul.f32 %v1042, %v1042
          %v1107 = vmul.f32 %v1043, %v1043
          %v1108 = vmul.f32 %v1044, %v1044
          %v1109 = vmul.f32 %v1045, %v1045
          %v1110 = vmul.f32 %v1046, %v1046
          %v1111 = vmul.f32 %v1047, %v1047
          %v1112 = vmul.f32 %v1048, %v1048
          %v1113 = vmul.f32 %v1049, %v1049
          %v1114 = vmul.f32 %v1050, %v1050
          %v1115 = vmul.f32 %v1051, %v1051
          %v1116 = vmul.f32 %v1052, %v1052
          %v1117 = vmul.f32 %v1053, %v1053
          %v1118 = vmul.f32 %v1054, %v1054
          %v1119 = vmul.f32 %v1055, %v1055
          %v1120 = vmul.f32 %v1056, %v1056
          %v1121 = vmul.f32 %v1057, %v1057
          %v1122 = vmul.f32 %v1058, %v1058
          %v1123 = vmul.f32 %v1059, %v1059
          %v1124 = vadd.f32 %v1060, %v1061
          %1125 = vadd.xlane.f32.xlu0 %v1124
          %v1126 = vpop.xlane.xlu0 %1125
          %v1127 = vadd.f32 %v1062, %v1063
          %1128 = vadd.xlane.f32.xlu0 %v1127
          %v1129 = vpop.xlane.xlu0 %1128
          %v1130 = vadd.f32 %v1064, %v1065
          %1131 = vadd.xlane.f32.xlu0 %v1130
          %v1132 = vpop.xlane.xlu0 %1131
          %v1133 = vadd.f32 %v1066, %v1067
          %1134 = vadd.xlane.f32.xlu0 %v1133
          %v1135 = vpop.xlane.xlu0 %1134
          %v1136 = vadd.f32 %v1068, %v1069
          %1137 = vadd.xlane.f32.xlu0 %v1136
          %v1138 = vpop.xlane.xlu0 %1137
          %v1139 = vadd.f32 %v1070, %v1071
          %1140 = vadd.xlane.f32.xlu0 %v1139
          %v1141 = vpop.xlane.xlu0 %1140
          %v1142 = vadd.f32 %v1072, %v1073
          %1143 = vadd.xlane.f32.xlu0 %v1142
          %v1144 = vpop.xlane.xlu0 %1143
          %v1145 = vadd.f32 %v1074, %v1075
          %1146 = vadd.xlane.f32.xlu0 %v1145
          %v1147 = vpop.xlane.xlu0 %1146
          %v1148 = vadd.f32 %v1076, %v1077
          %1149 = vadd.xlane.f32.xlu0 %v1148
          %v1150 = vpop.xlane.xlu0 %1149
          %v1151 = vadd.f32 %v1078, %v1079
          %1152 = vadd.xlane.f32.xlu0 %v1151
          %v1153 = vpop.xlane.xlu0 %1152
          %v1154 = vadd.f32 %v1080, %v1081
          %1155 = vadd.xlane.f32.xlu0 %v1154
          %v1156 = vpop.xlane.xlu0 %1155
          %v1157 = vadd.f32 %v1082, %v1083
          %1158 = vadd.xlane.f32.xlu0 %v1157
          %v1159 = vpop.xlane.xlu0 %1158
          %v1160 = vadd.f32 %v1084, %v1085
          %1161 = vadd.xlane.f32.xlu0 %v1160
          %v1162 = vpop.xlane.xlu0 %1161
          %v1163 = vadd.f32 %v1086, %v1087
          %1164 = vadd.xlane.f32.xlu0 %v1163
          %v1165 = vpop.xlane.xlu0 %1164
          %v1166 = vadd.f32 %v1088, %v1089
          %1167 = vadd.xlane.f32.xlu0 %v1166
          %v1168 = vpop.xlane.xlu0 %1167
          %v1169 = vadd.f32 %v1090, %v1091
          %1170 = vadd.xlane.f32.xlu0 %v1169
          %v1171 = vpop.xlane.xlu0 %1170
          %v1172 = vadd.f32 %v1092, %v1093
          %1173 = vadd.xlane.f32.xlu0 %v1172
          %v1174 = vpop.xlane.xlu0 %1173
          %v1175 = vadd.f32 %v1094, %v1095
          %1176 = vadd.xlane.f32.xlu0 %v1175
          %v1177 = vpop.xlane.xlu0 %1176
          %v1178 = vadd.f32 %v1096, %v1097
          %1179 = vadd.xlane.f32.xlu0 %v1178
          %v1180 = vpop.xlane.xlu0 %1179
          %v1181 = vadd.f32 %v1098, %v1099
          %1182 = vadd.xlane.f32.xlu0 %v1181
          %v1183 = vpop.xlane.xlu0 %1182
          %v1184 = vadd.f32 %v1100, %v1101
          %1185 = vadd.xlane.f32.xlu0 %v1184
          %v1186 = vpop.xlane.xlu0 %1185
          %v1187 = vadd.f32 %v1102, %v1103
          %1188 = vadd.xlane.f32.xlu0 %v1187
          %v1189 = vpop.xlane.xlu0 %1188
          %v1190 = vadd.f32 %v1104, %v1105
          %1191 = vadd.xlane.f32.xlu0 %v1190
          %v1192 = vpop.xlane.xlu0 %1191
          %v1193 = vadd.f32 %v1106, %v1107
          %1194 = vadd.xlane.f32.xlu0 %v1193
          %v1195 = vpop.xlane.xlu0 %1194
          %v1196 = vadd.f32 %v1108, %v1109
          %1197 = vadd.xlane.f32.xlu0 %v1196
          %v1198 = vpop.xlane.xlu0 %1197
          %v1199 = vadd.f32 %v1110, %v1111
          %1200 = vadd.xlane.f32.xlu0 %v1199
          %v1201 = vpop.xlane.xlu0 %1200
          %v1202 = vadd.f32 %v1112, %v1113
          %1203 = vadd.xlane.f32.xlu0 %v1202
          %v1204 = vpop.xlane.xlu0 %1203
          %v1205 = vadd.f32 %v1114, %v1115
          %1206 = vadd.xlane.f32.xlu0 %v1205
          %v1207 = vpop.xlane.xlu0 %1206
          %v1208 = vadd.f32 %v1116, %v1117
          %1209 = vadd.xlane.f32.xlu0 %v1208
          %v1210 = vpop.xlane.xlu0 %1209
          %v1211 = vadd.f32 %v1118, %v1119
          %1212 = vadd.xlane.f32.xlu0 %v1211
          %v1213 = vpop.xlane.xlu0 %1212
          %v1214 = vadd.f32 %v1120, %v1121
          %1215 = vadd.xlane.f32.xlu0 %v1214
          %v1216 = vpop.xlane.xlu0 %1215
          %v1217 = vadd.f32 %v1122, %v1123
          %1218 = vadd.xlane.f32.xlu0 %v1217
          %v1219 = vpop.xlane.xlu0 %1218
          %v1220 = vmul.f32 %v1126, %v963
          %v1221 = vmul.f32 %v1129, %v963
          %v1222 = vmul.f32 %v1132, %v963
          %v1223 = vmul.f32 %v1135, %v963
          %v1224 = vmul.f32 %v1138, %v963
          %v1225 = vmul.f32 %v1141, %v963
          %v1226 = vmul.f32 %v1144, %v963
          %v1227 = vmul.f32 %v1147, %v963
          %v1228 = vmul.f32 %v1150, %v963
          %v1229 = vmul.f32 %v1153, %v963
          %v1230 = vmul.f32 %v1156, %v963
          %v1231 = vmul.f32 %v1159, %v963
          %v1232 = vmul.f32 %v1162, %v963
          %v1233 = vmul.f32 %v1165, %v963
          %v1234 = vmul.f32 %v1168, %v963
          %v1235 = vmul.f32 %v1171, %v963
          %v1236 = vmul.f32 %v1174, %v963
          %v1237 = vmul.f32 %v1177, %v963
          %v1238 = vmul.f32 %v1180, %v963
          %v1239 = vmul.f32 %v1183, %v963
          %v1240 = vmul.f32 %v1186, %v963
          %v1241 = vmul.f32 %v1189, %v963
          %v1242 = vmul.f32 %v1192, %v963
          %v1243 = vmul.f32 %v1195, %v963
          %v1244 = vmul.f32 %v1198, %v963
          %v1245 = vmul.f32 %v1201, %v963
          %v1246 = vmul.f32 %v1204, %v963
          %v1247 = vmul.f32 %v1207, %v963
          %v1248 = vmul.f32 %v1210, %v963
          %v1249 = vmul.f32 %v1213, %v963
          %v1250 = vmul.f32 %v1216, %v963
          %v1251 = vmul.f32 %v1219, %v963
          %v1252 = vadd.f32 %v1220, 1e-05
          %v1253 = vadd.f32 %v1221, 1e-05
          %v1254 = vadd.f32 %v1222, 1e-05
          %v1255 = vadd.f32 %v1223, 1e-05
          %v1256 = vadd.f32 %v1224, 1e-05
          %v1257 = vadd.f32 %v1225, 1e-05
          %v1258 = vadd.f32 %v1226, 1e-05
          %v1259 = vadd.f32 %v1227, 1e-05
          %v1260 = vadd.f32 %v1228, 1e-05
          %v1261 = vadd.f32 %v1229, 1e-05
          %v1262 = vadd.f32 %v1230, 1e-05
          %v1263 = vadd.f32 %v1231, 1e-05
          %v1264 = vadd.f32 %v1232, 1e-05
          %v1265 = vadd.f32 %v1233, 1e-05
          %v1266 = vadd.f32 %v1234, 1e-05
          %v1267 = vadd.f32 %v1235, 1e-05
          %v1268 = vadd.f32 %v1236, 1e-05
          %v1269 = vadd.f32 %v1237, 1e-05
          %v1270 = vadd.f32 %v1238, 1e-05
          %v1271 = vadd.f32 %v1239, 1e-05
          %v1272 = vadd.f32 %v1240, 1e-05
          %v1273 = vadd.f32 %v1241, 1e-05
          %v1274 = vadd.f32 %v1242, 1e-05
          %v1275 = vadd.f32 %v1243, 1e-05
          %v1276 = vadd.f32 %v1244, 1e-05
          %v1277 = vadd.f32 %v1245, 1e-05
          %v1278 = vadd.f32 %v1246, 1e-05
          %v1279 = vadd.f32 %v1247, 1e-05
          %v1280 = vadd.f32 %v1248, 1e-05
          %v1281 = vadd.f32 %v1249, 1e-05
          %v1282 = vadd.f32 %v1250, 1e-05
          %v1283 = vadd.f32 %v1251, 1e-05
          %v1284 = vrsqrt.pop %v1252
          %v1285 = vrsqrt.pop %v1253
          %v1286 = vrsqrt.pop %v1254
          %v1287 = vrsqrt.pop %v1255
          %v1288 = vrsqrt.pop %v1256
          %v1289 = vrsqrt.pop %v1257
          %v1290 = vrsqrt.pop %v1258
          %v1291 = vrsqrt.pop %v1259
          %v1292 = vrsqrt.pop %v1260
          %v1293 = vrsqrt.pop %v1261
          %v1294 = vrsqrt.pop %v1262
          %v1295 = vrsqrt.pop %v1263
          %v1296 = vrsqrt.pop %v1264
          %v1297 = vrsqrt.pop %v1265
          %v1298 = vrsqrt.pop %v1266
          %v1299 = vrsqrt.pop %v1267
          %v1300 = vrsqrt.pop %v1268
          %v1301 = vrsqrt.pop %v1269
          %v1302 = vrsqrt.pop %v1270
          %v1303 = vrsqrt.pop %v1271
          %v1304 = vrsqrt.pop %v1272
          %v1305 = vrsqrt.pop %v1273
          %v1306 = vrsqrt.pop %v1274
          %v1307 = vrsqrt.pop %v1275
          %v1308 = vrsqrt.pop %v1276
          %v1309 = vrsqrt.pop %v1277
          %v1310 = vrsqrt.pop %v1278
          %v1311 = vrsqrt.pop %v1279
          %v1312 = vrsqrt.pop %v1280
          %v1313 = vrsqrt.pop %v1281
          %v1314 = vrsqrt.pop %v1282
          %v1315 = vrsqrt.pop %v1283
          %v1316 = vmul.f32 %v996, %v1284
          %v1317 = vmul.f32 %v997, %v1284
          %v1318 = vmul.f32 %v998, %v1285
          %v1319 = vmul.f32 %v999, %v1285
          %v1320 = vmul.f32 %v1000, %v1286
          %v1321 = vmul.f32 %v1001, %v1286
          %v1322 = vmul.f32 %v1002, %v1287
          %v1323 = vmul.f32 %v1003, %v1287
          %v1324 = vmul.f32 %v1004, %v1288
          %v1325 = vmul.f32 %v1005, %v1288
          %v1326 = vmul.f32 %v1006, %v1289
          %v1327 = vmul.f32 %v1007, %v1289
          %v1328 = vmul.f32 %v1008, %v1290
          %v1329 = vmul.f32 %v1009, %v1290
          %v1330 = vmul.f32 %v1010, %v1291
          %v1331 = vmul.f32 %v1011, %v1291
          %v1332 = vmul.f32 %v1012, %v1292
          %v1333 = vmul.f32 %v1013, %v1292
          %v1334 = vmul.f32 %v1014, %v1293
          %v1335 = vmul.f32 %v1015, %v1293
          %v1336 = vmul.f32 %v1016, %v1294
          %v1337 = vmul.f32 %v1017, %v1294
          %v1338 = vmul.f32 %v1018, %v1295
          %v1339 = vmul.f32 %v1019, %v1295
          %v1340 = vmul.f32 %v1020, %v1296
          %v1341 = vmul.f32 %v1021, %v1296
          %v1342 = vmul.f32 %v1022, %v1297
          %v1343 = vmul.f32 %v1023, %v1297
          %v1344 = vmul.f32 %v1024, %v1298
          %v1345 = vmul.f32 %v1025, %v1298
          %v1346 = vmul.f32 %v1026, %v1299
          %v1347 = vmul.f32 %v1027, %v1299
          %v1348 = vmul.f32 %v1028, %v1300
          %v1349 = vmul.f32 %v1029, %v1300
          %v1350 = vmul.f32 %v1030, %v1301
          %v1351 = vmul.f32 %v1031, %v1301
          %v1352 = vmul.f32 %v1032, %v1302
          %v1353 = vmul.f32 %v1033, %v1302
          %v1354 = vmul.f32 %v1034, %v1303
          %v1355 = vmul.f32 %v1035, %v1303
          %v1356 = vmul.f32 %v1036, %v1304
          %v1357 = vmul.f32 %v1037, %v1304
          %v1358 = vmul.f32 %v1038, %v1305
          %v1359 = vmul.f32 %v1039, %v1305
          %v1360 = vmul.f32 %v1040, %v1306
          %v1361 = vmul.f32 %v1041, %v1306
          %v1362 = vmul.f32 %v1042, %v1307
          %v1363 = vmul.f32 %v1043, %v1307
          %v1364 = vmul.f32 %v1044, %v1308
          %v1365 = vmul.f32 %v1045, %v1308
          %v1366 = vmul.f32 %v1046, %v1309
          %v1367 = vmul.f32 %v1047, %v1309
          %v1368 = vmul.f32 %v1048, %v1310
          %v1369 = vmul.f32 %v1049, %v1310
          %v1370 = vmul.f32 %v1050, %v1311
          %v1371 = vmul.f32 %v1051, %v1311
          %v1372 = vmul.f32 %v1052, %v1312
          %v1373 = vmul.f32 %v1053, %v1312
          %v1374 = vmul.f32 %v1054, %v1313
          %v1375 = vmul.f32 %v1055, %v1313
          %v1376 = vmul.f32 %v1056, %v1314
          %v1377 = vmul.f32 %v1057, %v1314
          %v1378 = vmul.f32 %v1058, %v1315
          %v1379 = vmul.f32 %v1059, %v1315
          %v1381 = vlaneseq
          %v1382 = vshrl.u32 %v1381, 7
          %v1383 = vsub.s32 0, %v1382
          %v1384 = vrot.slane %v865, %v1383
          %v1385 = vlaneseq
          %v1386 = vshrl.u32 %v1385, 7
          %v1387 = vsub.s32 1, %v1386
          %v1388 = vrot.slane %v865, %v1387
          %v1391 = vmul.f32 %v1316, %v1384
          %v1392 = vmul.f32 %v1317, %v1388
          %v1393 = vmul.f32 %v1318, %v1384
          %v1394 = vmul.f32 %v1319, %v1388
          %v1395 = vmul.f32 %v1320, %v1384
          %v1396 = vmul.f32 %v1321, %v1388
          %v1397 = vmul.f32 %v1322, %v1384
          %v1398 = vmul.f32 %v1323, %v1388
          %v1399 = vmul.f32 %v1324, %v1384
          %v1400 = vmul.f32 %v1325, %v1388
          %v1401 = vmul.f32 %v1326, %v1384
          %v1402 = vmul.f32 %v1327, %v1388
          %v1403 = vmul.f32 %v1328, %v1384
          %v1404 = vmul.f32 %v1329, %v1388
          %v1405 = vmul.f32 %v1330, %v1384
          %v1406 = vmul.f32 %v1331, %v1388
          %v1407 = vmul.f32 %v1332, %v1384
          %v1408 = vmul.f32 %v1333, %v1388
          %v1409 = vmul.f32 %v1334, %v1384
          %v1410 = vmul.f32 %v1335, %v1388
          %v1411 = vmul.f32 %v1336, %v1384
          %v1412 = vmul.f32 %v1337, %v1388
          %v1413 = vmul.f32 %v1338, %v1384
          %v1414 = vmul.f32 %v1339, %v1388
          %v1415 = vmul.f32 %v1340, %v1384
          %v1416 = vmul.f32 %v1341, %v1388
          %v1417 = vmul.f32 %v1342, %v1384
          %v1418 = vmul.f32 %v1343, %v1388
          %v1419 = vmul.f32 %v1344, %v1384
          %v1420 = vmul.f32 %v1345, %v1388
          %v1421 = vmul.f32 %v1346, %v1384
          %v1422 = vmul.f32 %v1347, %v1388
          %v1423 = vmul.f32 %v1348, %v1384
          %v1424 = vmul.f32 %v1349, %v1388
          %v1425 = vmul.f32 %v1350, %v1384
          %v1426 = vmul.f32 %v1351, %v1388
          %v1427 = vmul.f32 %v1352, %v1384
          %v1428 = vmul.f32 %v1353, %v1388
          %v1429 = vmul.f32 %v1354, %v1384
          %v1430 = vmul.f32 %v1355, %v1388
          %v1431 = vmul.f32 %v1356, %v1384
          %v1432 = vmul.f32 %v1357, %v1388
          %v1433 = vmul.f32 %v1358, %v1384
          %v1434 = vmul.f32 %v1359, %v1388
          %v1435 = vmul.f32 %v1360, %v1384
          %v1436 = vmul.f32 %v1361, %v1388
          %v1437 = vmul.f32 %v1362, %v1384
          %v1438 = vmul.f32 %v1363, %v1388
          %v1439 = vmul.f32 %v1364, %v1384
          %v1440 = vmul.f32 %v1365, %v1388
          %v1441 = vmul.f32 %v1366, %v1384
          %v1442 = vmul.f32 %v1367, %v1388
          %v1443 = vmul.f32 %v1368, %v1384
          %v1444 = vmul.f32 %v1369, %v1388
          %v1445 = vmul.f32 %v1370, %v1384
          %v1446 = vmul.f32 %v1371, %v1388
          %v1447 = vmul.f32 %v1372, %v1384
          %v1448 = vmul.f32 %v1373, %v1388
          %v1449 = vmul.f32 %v1374, %v1384
          %v1450 = vmul.f32 %v1375, %v1388
          %v1451 = vmul.f32 %v1376, %v1384
          %v1452 = vmul.f32 %v1377, %v1388
          %v1453 = vmul.f32 %v1378, %v1384
          %v1454 = vmul.f32 %v1379, %v1388
          %v1456 = vlaneseq
          %v1457 = vshrl.u32 %v1456, 7
          %v1458 = vsub.s32 0, %v1457
          %v1459 = vrot.slane %v866, %v1458
          %v1460 = vlaneseq
          %v1461 = vshrl.u32 %v1460, 7
          %v1462 = vsub.s32 1, %v1461
          %v1463 = vrot.slane %v866, %v1462
          %v1466 = vadd.f32 %v1391, %v1459
          %v1467 = vadd.f32 %v1392, %v1463
          %v1468 = vadd.f32 %v1393, %v1459
          %v1469 = vadd.f32 %v1394, %v1463
          %v1470 = vadd.f32 %v1395, %v1459
          %v1471 = vadd.f32 %v1396, %v1463
          %v1472 = vadd.f32 %v1397, %v1459
          %v1473 = vadd.f32 %v1398, %v1463
          %v1474 = vadd.f32 %v1399, %v1459
          %v1475 = vadd.f32 %v1400, %v1463
          %v1476 = vadd.f32 %v1401, %v1459
          %v1477 = vadd.f32 %v1402, %v1463
          %v1478 = vadd.f32 %v1403, %v1459
          %v1479 = vadd.f32 %v1404, %v1463
          %v1480 = vadd.f32 %v1405, %v1459
          %v1481 = vadd.f32 %v1406, %v1463
          %v1482 = vadd.f32 %v1407, %v1459
          %v1483 = vadd.f32 %v1408, %v1463
          %v1484 = vadd.f32 %v1409, %v1459
          %v1485 = vadd.f32 %v1410, %v1463
          %v1486 = vadd.f32 %v1411, %v1459
          %v1487 = vadd.f32 %v1412, %v1463
          %v1488 = vadd.f32 %v1413, %v1459
          %v1489 = vadd.f32 %v1414, %v1463
          %v1490 = vadd.f32 %v1415, %v1459
          %v1491 = vadd.f32 %v1416, %v1463
          %v1492 = vadd.f32 %v1417, %v1459
          %v1493 = vadd.f32 %v1418, %v1463
          %v1494 = vadd.f32 %v1419, %v1459
          %v1495 = vadd.f32 %v1420, %v1463
          %v1496 = vadd.f32 %v1421, %v1459
          %v1497 = vadd.f32 %v1422, %v1463
          %v1498 = vadd.f32 %v1423, %v1459
          %v1499 = vadd.f32 %v1424, %v1463
          %v1500 = vadd.f32 %v1425, %v1459
          %v1501 = vadd.f32 %v1426, %v1463
          %v1502 = vadd.f32 %v1427, %v1459
          %v1503 = vadd.f32 %v1428, %v1463
          %v1504 = vadd.f32 %v1429, %v1459
          %v1505 = vadd.f32 %v1430, %v1463
          %v1506 = vadd.f32 %v1431, %v1459
          %v1507 = vadd.f32 %v1432, %v1463
          %v1508 = vadd.f32 %v1433, %v1459
          %v1509 = vadd.f32 %v1434, %v1463
          %v1510 = vadd.f32 %v1435, %v1459
          %v1511 = vadd.f32 %v1436, %v1463
          %v1512 = vadd.f32 %v1437, %v1459
          %v1513 = vadd.f32 %v1438, %v1463
          %v1514 = vadd.f32 %v1439, %v1459
          %v1515 = vadd.f32 %v1440, %v1463
          %v1516 = vadd.f32 %v1441, %v1459
          %v1517 = vadd.f32 %v1442, %v1463
          %v1518 = vadd.f32 %v1443, %v1459
          %v1519 = vadd.f32 %v1444, %v1463
          %v1520 = vadd.f32 %v1445, %v1459
          %v1521 = vadd.f32 %v1446, %v1463
          %v1522 = vadd.f32 %v1447, %v1459
          %v1523 = vadd.f32 %v1448, %v1463
          %v1524 = vadd.f32 %v1449, %v1459
          %v1525 = vadd.f32 %v1450, %v1463
          %v1526 = vadd.f32 %v1451, %v1459
          %v1527 = vadd.f32 %v1452, %v1463
          %v1528 = vadd.f32 %v1453, %v1459
          %v1529 = vadd.f32 %v1454, %v1463
          %1530 = vst [vmem:[#allocation2] sm:$0xff] %v1466
          %1531 = vst [vmem:[#allocation2 + $0x8] sm:$0xff] %v1467
          %1532 = vst [vmem:[#allocation2 + $0x10] sm:$0xff] %v1468
          %1533 = vst [vmem:[#allocation2 + $0x18] sm:$0xff] %v1469
          %1534 = vst [vmem:[#allocation2 + $0x20] sm:$0xff] %v1470
          %1535 = vst [vmem:[#allocation2 + $0x28] sm:$0xff] %v1471
          %1536 = vst [vmem:[#allocation2 + $0x30] sm:$0xff] %v1472
          %1537 = vst [vmem:[#allocation2 + $0x38] sm:$0xff] %v1473
          %1538 = vst [vmem:[#allocation2 + $0x40] sm:$0xff] %v1474
          %1539 = vst [vmem:[#allocation2 + $0x48] sm:$0xff] %v1475
          %1540 = vst [vmem:[#allocation2 + $0x50] sm:$0xff] %v1476
          %1541 = vst [vmem:[#allocation2 + $0x58] sm:$0xff] %v1477
          %1542 = vst [vmem:[#allocation2 + $0x60] sm:$0xff] %v1478
          %1543 = vst [vmem:[#allocation2 + $0x68] sm:$0xff] %v1479
          %1544 = vst [vmem:[#allocation2 + $0x70] sm:$0xff] %v1480
          %1545 = vst [vmem:[#allocation2 + $0x78] sm:$0xff] %v1481
          %1546 = vst [vmem:[#allocation2 + $0x80] sm:$0xff] %v1482
          %1547 = vst [vmem:[#allocation2 + $0x88] sm:$0xff] %v1483
          %1548 = vst [vmem:[#allocation2 + $0x90] sm:$0xff] %v1484
          %1549 = vst [vmem:[#allocation2 + $0x98] sm:$0xff] %v1485
          %1550 = vst [vmem:[#allocation2 + $0xa0] sm:$0xff] %v1486
          %1551 = vst [vmem:[#allocation2 + $0xa8] sm:$0xff] %v1487
          %1552 = vst [vmem:[#allocation2 + $0xb0] sm:$0xff] %v1488
          %1553 = vst [vmem:[#allocation2 + $0xb8] sm:$0xff] %v1489
          %1554 = vst [vmem:[#allocation2 + $0xc0] sm:$0xff] %v1490
          %1555 = vst [vmem:[#allocation2 + $0xc8] sm:$0xff] %v1491
          %1556 = vst [vmem:[#allocation2 + $0xd0] sm:$0xff] %v1492
          %1557 = vst [vmem:[#allocation2 + $0xd8] sm:$0xff] %v1493
          %1558 = vst [vmem:[#allocation2 + $0xe0] sm:$0xff] %v1494
          %1559 = vst [vmem:[#allocation2 + $0xe8] sm:$0xff] %v1495
          %1560 = vst [vmem:[#allocation2 + $0xf0] sm:$0xff] %v1496
          %1561 = vst [vmem:[#allocation2 + $0xf8] sm:$0xff] %v1497
          %1562 = vst [vmem:[#allocation2 + $0x100] sm:$0xff] %v1498
          %1563 = vst [vmem:[#allocation2 + $0x108] sm:$0xff] %v1499
          %1564 = vst [vmem:[#allocation2 + $0x110] sm:$0xff] %v1500
          %1565 = vst [vmem:[#allocation2 + $0x118] sm:$0xff] %v1501
          %1566 = vst [vmem:[#allocation2 + $0x120] sm:$0xff] %v1502
          %1567 = vst [vmem:[#allocation2 + $0x128] sm:$0xff] %v1503
          %1568 = vst [vmem:[#allocation2 + $0x130] sm:$0xff] %v1504
          %1569 = vst [vmem:[#allocation2 + $0x138] sm:$0xff] %v1505
          %1570 = vst [vmem:[#allocation2 + $0x140] sm:$0xff] %v1506
          %1571 = vst [vmem:[#allocation2 + $0x148] sm:$0xff] %v1507
          %1572 = vst [vmem:[#allocation2 + $0x150] sm:$0xff] %v1508
          %1573 = vst [vmem:[#allocation2 + $0x158] sm:$0xff] %v1509
          %1574 = vst [vmem:[#allocation2 + $0x160] sm:$0xff] %v1510
          %1575 = vst [vmem:[#allocation2 + $0x168] sm:$0xff] %v1511
          %1576 = vst [vmem:[#allocation2 + $0x170] sm:$0xff] %v1512
          %1577 = vst [vmem:[#allocation2 + $0x178] sm:$0xff] %v1513
          %1578 = vst [vmem:[#allocation2 + $0x180] sm:$0xff] %v1514
          %1579 = vst [vmem:[#allocation2 + $0x188] sm:$0xff] %v1515
          %1580 = vst [vmem:[#allocation2 + $0x190] sm:$0xff] %v1516
          %1581 = vst [vmem:[#allocation2 + $0x198] sm:$0xff] %v1517
          %1582 = vst [vmem:[#allocation2 + $0x1a0] sm:$0xff] %v1518
          %1583 = vst [vmem:[#allocation2 + $0x1a8] sm:$0xff] %v1519
          %1584 = vst [vmem:[#allocation2 + $0x1b0] sm:$0xff] %v1520
          %1585 = vst [vmem:[#allocation2 + $0x1b8] sm:$0xff] %v1521
          %1586 = vst [vmem:[#allocation2 + $0x1c0] sm:$0xff] %v1522
          %1587 = vst [vmem:[#allocation2 + $0x1c8] sm:$0xff] %v1523
          %1588 = vst [vmem:[#allocation2 + $0x1d0] sm:$0xff] %v1524
          %1589 = vst [vmem:[#allocation2 + $0x1d8] sm:$0xff] %v1525
          %1590 = vst [vmem:[#allocation2 + $0x1e0] sm:$0xff] %v1526
          %1591 = vst [vmem:[#allocation2 + $0x1e8] sm:$0xff] %v1527
          %1592 = vst [vmem:[#allocation2 + $0x1f0] sm:$0xff] %v1528
          %1593 = vst [vmem:[#allocation2 + $0x1f8] sm:$0xff] %v1529
        $region112: #{tpu_custom_call.1} parent=79 // pred_fallthru
          _
        %v1594 = vld [vmem:[#allocation2] sm:$0xff]
        %v1595 = vld [vmem:[#allocation2 + $0x8] sm:$0xff]
        %v1596 = vld [vmem:[#allocation2 + $0x10] sm:$0xff]
        %v1597 = vld [vmem:[#allocation2 + $0x18] sm:$0xff]
        %v1598 = vld [vmem:[#allocation2 + $0x20] sm:$0xff]
        %v1599 = vld [vmem:[#allocation2 + $0x28] sm:$0xff]
        %v1600 = vld [vmem:[#allocation2 + $0x30] sm:$0xff]
        %v1601 = vld [vmem:[#allocation2 + $0x38] sm:$0xff]
        %v1602 = vld [vmem:[#allocation2 + $0x40] sm:$0xff]
        %v1603 = vld [vmem:[#allocation2 + $0x48] sm:$0xff]
        %v1604 = vld [vmem:[#allocation2 + $0x50] sm:$0xff]
        %v1605 = vld [vmem:[#allocation2 + $0x58] sm:$0xff]
        %v1606 = vld [vmem:[#allocation2 + $0x60] sm:$0xff]
        %v1607 = vld [vmem:[#allocation2 + $0x68] sm:$0xff]
        %v1608 = vld [vmem:[#allocation2 + $0x70] sm:$0xff]
        %v1609 = vld [vmem:[#allocation2 + $0x78] sm:$0xff]
        %v1610 = vld [vmem:[#allocation2 + $0x80] sm:$0xff]
        %v1611 = vld [vmem:[#allocation2 + $0x88] sm:$0xff]
        %v1612 = vld [vmem:[#allocation2 + $0x90] sm:$0xff]
        %v1613 = vld [vmem:[#allocation2 + $0x98] sm:$0xff]
        %v1614 = vld [vmem:[#allocation2 + $0xa0] sm:$0xff]
        %v1615 = vld [vmem:[#allocation2 + $0xa8] sm:$0xff]
        %v1616 = vld [vmem:[#allocation2 + $0xb0] sm:$0xff]
        %v1617 = vld [vmem:[#allocation2 + $0xb8] sm:$0xff]
        %v1618 = vld [vmem:[#allocation2 + $0xc0] sm:$0xff]
        %v1619 = vld [vmem:[#allocation2 + $0xc8] sm:$0xff]
        %v1620 = vld [vmem:[#allocation2 + $0xd0] sm:$0xff]
        %v1621 = vld [vmem:[#allocation2 + $0xd8] sm:$0xff]
        %v1622 = vld [vmem:[#allocation2 + $0xe0] sm:$0xff]
        %v1623 = vld [vmem:[#allocation2 + $0xe8] sm:$0xff]
        %v1624 = vld [vmem:[#allocation2 + $0xf0] sm:$0xff]
        %v1625 = vld [vmem:[#allocation2 + $0xf8] sm:$0xff]
        %v1626 = vld [vmem:[#allocation2 + $0x100] sm:$0xff]
        %v1627 = vld [vmem:[#allocation2 + $0x108] sm:$0xff]
        %v1628 = vld [vmem:[#allocation2 + $0x110] sm:$0xff]
        %v1629 = vld [vmem:[#allocation2 + $0x118] sm:$0xff]
        %v1630 = vld [vmem:[#allocation2 + $0x120] sm:$0xff]
        %v1631 = vld [vmem:[#allocation2 + $0x128] sm:$0xff]
        %v1632 = vld [vmem:[#allocation2 + $0x130] sm:$0xff]
        %v1633 = vld [vmem:[#allocation2 + $0x138] sm:$0xff]
        %v1634 = vld [vmem:[#allocation2 + $0x140] sm:$0xff]
        %v1635 = vld [vmem:[#allocation2 + $0x148] sm:$0xff]
        %v1636 = vld [vmem:[#allocation2 + $0x150] sm:$0xff]
        %v1637 = vld [vmem:[#allocation2 + $0x158] sm:$0xff]
        %v1638 = vld [vmem:[#allocation2 + $0x160] sm:$0xff]
        %v1639 = vld [vmem:[#allocation2 + $0x168] sm:$0xff]
        %v1640 = vld [vmem:[#allocation2 + $0x170] sm:$0xff]
        %v1641 = vld [vmem:[#allocation2 + $0x178] sm:$0xff]
        %v1642 = vld [vmem:[#allocation2 + $0x180] sm:$0xff]
        %v1643 = vld [vmem:[#allocation2 + $0x188] sm:$0xff]
        %v1644 = vld [vmem:[#allocation2 + $0x190] sm:$0xff]
        %v1645 = vld [vmem:[#allocation2 + $0x198] sm:$0xff]
        %v1646 = vld [vmem:[#allocation2 + $0x1a0] sm:$0xff]
        %v1647 = vld [vmem:[#allocation2 + $0x1a8] sm:$0xff]
        %v1648 = vld [vmem:[#allocation2 + $0x1b0] sm:$0xff]
        %v1649 = vld [vmem:[#allocation2 + $0x1b8] sm:$0xff]
        %v1650 = vld [vmem:[#allocation2 + $0x1c0] sm:$0xff]
        %v1651 = vld [vmem:[#allocation2 + $0x1c8] sm:$0xff]
        %v1652 = vld [vmem:[#allocation2 + $0x1d0] sm:$0xff]
        %v1653 = vld [vmem:[#allocation2 + $0x1d8] sm:$0xff]
        %v1654 = vld [vmem:[#allocation2 + $0x1e0] sm:$0xff]
        %v1655 = vld [vmem:[#allocation2 + $0x1e8] sm:$0xff]
        %v1656 = vld [vmem:[#allocation2 + $0x1f0] sm:$0xff]
        %v1657 = vld [vmem:[#allocation2 + $0x1f8] sm:$0xff]
        %v1658 = vpack.c.bf16 %v1596, %v1594
        %v1659 = vpack.c.bf16 %v1597, %v1595
        %v1660 = vpack.c.bf16 %v1600, %v1598
        %v1661 = vpack.c.bf16 %v1601, %v1599
        %v1662 = vpack.c.bf16 %v1604, %v1602
        %v1663 = vpack.c.bf16 %v1605, %v1603
        %v1664 = vpack.c.bf16 %v1608, %v1606
        %v1665 = vpack.c.bf16 %v1609, %v1607
        %v1666 = vpack.c.bf16 %v1612, %v1610
        %v1667 = vpack.c.bf16 %v1613, %v1611
        %v1668 = vpack.c.bf16 %v1616, %v1614
        %v1669 = vpack.c.bf16 %v1617, %v1615
        %v1670 = vpack.c.bf16 %v1620, %v1618
        %v1671 = vpack.c.bf16 %v1621, %v1619
        %v1672 = vpack.c.bf16 %v1624, %v1622
        %v1673 = vpack.c.bf16 %v1625, %v1623
        %v1674 = vpack.c.bf16 %v1628, %v1626
        %v1675 = vpack.c.bf16 %v1629, %v1627
        %v1676 = vpack.c.bf16 %v1632, %v1630
        %v1677 = vpack.c.bf16 %v1633, %v1631
        %v1678 = vpack.c.bf16 %v1636, %v1634
        %v1679 = vpack.c.bf16 %v1637, %v1635
        %v1680 = vpack.c.bf16 %v1640, %v1638
        %v1681 = vpack.c.bf16 %v1641, %v1639
        %v1682 = vpack.c.bf16 %v1644, %v1642
        %v1683 = vpack.c.bf16 %v1645, %v1643
        %v1684 = vpack.c.bf16 %v1648, %v1646
        %v1685 = vpack.c.bf16 %v1649, %v1647
        %v1686 = vpack.c.bf16 %v1652, %v1650
        %v1687 = vpack.c.bf16 %v1653, %v1651
        %v1688 = vpack.c.bf16 %v1656, %v1654
        %v1689 = vpack.c.bf16 %v1657, %v1655
        %v1690 = vld [vmem:[%s648] sm:$0xff]
        %v1691 = vld [vmem:[%s648 + $0x8] sm:$0xff]
        %v1692 = vld [vmem:[%s648 + $0x10] sm:$0xff]
        %v1693 = vld [vmem:[%s648 + $0x18] sm:$0xff]
        %v1694 = vld [vmem:[%s648 + $0x20] sm:$0xff]
        %v1695 = vld [vmem:[%s648 + $0x28] sm:$0xff]
        %v1696 = vld [vmem:[%s648 + $0x30] sm:$0xff]
        %v1697 = vld [vmem:[%s648 + $0x38] sm:$0xff]
        %v1698 = vld [vmem:[%s648 + $0x40] sm:$0xff]
        %v1699 = vld [vmem:[%s648 + $0x48] sm:$0xff]
        %v1700 = vld [vmem:[%s648 + $0x50] sm:$0xff]
        %v1701 = vld [vmem:[%s648 + $0x58] sm:$0xff]
        %v1702 = vld [vmem:[%s648 + $0x60] sm:$0xff]
        %v1703 = vld [vmem:[%s648 + $0x68] sm:$0xff]
        %v1704 = vld [vmem:[%s648 + $0x70] sm:$0xff]
        %v1705 = vld [vmem:[%s648 + $0x78] sm:$0xff]
        %v1706 = vld [vmem:[%s648 + $0x80] sm:$0xff]
        %v1707 = vld [vmem:[%s648 + $0x88] sm:$0xff]
        %v1708 = vld [vmem:[%s648 + $0x90] sm:$0xff]
        %v1709 = vld [vmem:[%s648 + $0x98] sm:$0xff]
        %v1710 = vld [vmem:[%s648 + $0xa0] sm:$0xff]
        %v1711 = vld [vmem:[%s648 + $0xa8] sm:$0xff]
        %v1712 = vld [vmem:[%s648 + $0xb0] sm:$0xff]
        %v1713 = vld [vmem:[%s648 + $0xb8] sm:$0xff]
        %v1714 = vld [vmem:[%s648 + $0xc0] sm:$0xff]
        %v1715 = vld [vmem:[%s648 + $0xc8] sm:$0xff]
        %v1716 = vld [vmem:[%s648 + $0xd0] sm:$0xff]
        %v1717 = vld [vmem:[%s648 + $0xd8] sm:$0xff]
        %v1718 = vld [vmem:[%s648 + $0xe0] sm:$0xff]
        %v1719 = vld [vmem:[%s648 + $0xe8] sm:$0xff]
        %v1720 = vld [vmem:[%s648 + $0xf0] sm:$0xff]
        %v1721 = vld [vmem:[%s648 + $0xf8] sm:$0xff]
        %v1722 = vld [vmem:[%s648 + $0x100] sm:$0xff]
        %v1723 = vld [vmem:[%s648 + $0x108] sm:$0xff]
        %v1724 = vld [vmem:[%s648 + $0x110] sm:$0xff]
        %v1725 = vld [vmem:[%s648 + $0x118] sm:$0xff]
        %v1726 = vld [vmem:[%s648 + $0x120] sm:$0xff]
        %v1727 = vld [vmem:[%s648 + $0x128] sm:$0xff]
        %v1728 = vld [vmem:[%s648 + $0x130] sm:$0xff]
        %v1729 = vld [vmem:[%s648 + $0x138] sm:$0xff]
        %v1730 = vld [vmem:[%s648 + $0x140] sm:$0xff]
        %v1731 = vld [vmem:[%s648 + $0x148] sm:$0xff]
        %v1732 = vld [vmem:[%s648 + $0x150] sm:$0xff]
        %v1733 = vld [vmem:[%s648 + $0x158] sm:$0xff]
        %v1734 = vld [vmem:[%s648 + $0x160] sm:$0xff]
        %v1735 = vld [vmem:[%s648 + $0x168] sm:$0xff]
        %v1736 = vld [vmem:[%s648 + $0x170] sm:$0xff]
        %v1737 = vld [vmem:[%s648 + $0x178] sm:$0xff]
        %v1738 = vld [vmem:[%s648 + $0x180] sm:$0xff]
        %v1739 = vld [vmem:[%s648 + $0x188] sm:$0xff]
        %v1740 = vld [vmem:[%s648 + $0x190] sm:$0xff]
        %v1741 = vld [vmem:[%s648 + $0x198] sm:$0xff]
        %v1742 = vld [vmem:[%s648 + $0x1a0] sm:$0xff]
        %v1743 = vld [vmem:[%s648 + $0x1a8] sm:$0xff]
        %v1744 = vld [vmem:[%s648 + $0x1b0] sm:$0xff]
        %v1745 = vld [vmem:[%s648 + $0x1b8] sm:$0xff]
        %v1746 = vld [vmem:[%s648 + $0x1c0] sm:$0xff]
        %v1747 = vld [vmem:[%s648 + $0x1c8] sm:$0xff]
        %v1748 = vld [vmem:[%s648 + $0x1d0] sm:$0xff]
        %v1749 = vld [vmem:[%s648 + $0x1d8] sm:$0xff]
        %v1750 = vld [vmem:[%s648 + $0x1e0] sm:$0xff]
        %v1751 = vld [vmem:[%s648 + $0x1e8] sm:$0xff]
        %v1752 = vld [vmem:[%s648 + $0x1f0] sm:$0xff]
        %v1753 = vld [vmem:[%s648 + $0x1f8] sm:$0xff]
        %v1754 = vld [vmem:[%s648 + $0x200] sm:$0xff]
        %v1755 = vld [vmem:[%s648 + $0x208] sm:$0xff]
        %v1756 = vld [vmem:[%s648 + $0x210] sm:$0xff]
        %v1757 = vld [vmem:[%s648 + $0x218] sm:$0xff]
        %v1758 = vld [vmem:[%s648 + $0x220] sm:$0xff]
        %v1759 = vld [vmem:[%s648 + $0x228] sm:$0xff]
        %v1760 = vld [vmem:[%s648 + $0x230] sm:$0xff]
        %v1761 = vld [vmem:[%s648 + $0x238] sm:$0xff]
        %v1762 = vld [vmem:[%s648 + $0x240] sm:$0xff]
        %v1763 = vld [vmem:[%s648 + $0x248] sm:$0xff]
        %v1764 = vld [vmem:[%s648 + $0x250] sm:$0xff]
        %v1765 = vld [vmem:[%s648 + $0x258] sm:$0xff]
        %v1766 = vld [vmem:[%s648 + $0x260] sm:$0xff]
        %v1767 = vld [vmem:[%s648 + $0x268] sm:$0xff]
        %v1768 = vld [vmem:[%s648 + $0x270] sm:$0xff]
        %v1769 = vld [vmem:[%s648 + $0x278] sm:$0xff]
        %v1770 = vld [vmem:[%s648 + $0x280] sm:$0xff]
        %v1771 = vld [vmem:[%s648 + $0x288] sm:$0xff]
        %v1772 = vld [vmem:[%s648 + $0x290] sm:$0xff]
        %v1773 = vld [vmem:[%s648 + $0x298] sm:$0xff]
        %v1774 = vld [vmem:[%s648 + $0x2a0] sm:$0xff]
        %v1775 = vld [vmem:[%s648 + $0x2a8] sm:$0xff]
        %v1776 = vld [vmem:[%s648 + $0x2b0] sm:$0xff]
        %v1777 = vld [vmem:[%s648 + $0x2b8] sm:$0xff]
        %v1778 = vld [vmem:[%s648 + $0x2c0] sm:$0xff]
        %v1779 = vld [vmem:[%s648 + $0x2c8] sm:$0xff]
        %v1780 = vld [vmem:[%s648 + $0x2d0] sm:$0xff]
        %v1781 = vld [vmem:[%s648 + $0x2d8] sm:$0xff]
        %v1782 = vld [vmem:[%s648 + $0x2e0] sm:$0xff]
        %v1783 = vld [vmem:[%s648 + $0x2e8] sm:$0xff]
        %v1784 = vld [vmem:[%s648 + $0x2f0] sm:$0xff]
        %v1785 = vld [vmem:[%s648 + $0x2f8] sm:$0xff]
        %v1786 = vld [vmem:[%s767] sm:$0x3f]
        %v1788 = vlaneseq
        %v1789 = vshrl.u32 %v1788, 7
        %v1790 = vsub.s32 0, %v1789
        %v1791 = vrot.slane %v1786, %v1790
        %v1792 = vlaneseq
        %v1793 = vshrl.u32 %v1792, 7
        %v1794 = vsub.s32 1, %v1793
        %v1795 = vrot.slane %v1786, %v1794
        %v1796 = vlaneseq
        %v1797 = vshrl.u32 %v1796, 7
        %v1798 = vsub.s32 2, %v1797
        %v1799 = vrot.slane %v1786, %v1798
        %v1800 = vlaneseq
        %v1801 = vshrl.u32 %v1800, 7
        %v1802 = vsub.s32 3, %v1801
        %v1803 = vrot.slane %v1786, %v1802
        %v1804 = vlaneseq
        %v1805 = vshrl.u32 %v1804, 7
        %v1806 = vsub.s32 4, %v1805
        %v1807 = vrot.slane %v1786, %v1806
        %v1808 = vlaneseq
        %v1809 = vshrl.u32 %v1808, 7
        %v1810 = vsub.s32 5, %v1809
        %v1811 = vrot.slane %v1786, %v1810
        %v1914 = vunpack.c.l.b16 %v1690
        %v1915 = vunpack.c.h.b16 %v1690
        %v1916 = vunpack.c.l.b16 %v1691
        %v1917 = vunpack.c.h.b16 %v1691
        %v1918 = vunpack.c.l.b16 %v1692
        %v1919 = vunpack.c.h.b16 %v1692
        %v1920 = vunpack.c.l.b16 %v1693
        %v1921 = vunpack.c.h.b16 %v1693
        %v1922 = vunpack.c.l.b16 %v1694
        %v1923 = vunpack.c.h.b16 %v1694
        %v1924 = vunpack.c.l.b16 %v1695
        %v1925 = vunpack.c.h.b16 %v1695
        %v1926 = vunpack.c.l.b16 %v1696
        %v1927 = vunpack.c.h.b16 %v1696
        %v1928 = vunpack.c.l.b16 %v1697
        %v1929 = vunpack.c.h.b16 %v1697
        %v1930 = vunpack.c.l.b16 %v1698
        %v1931 = vunpack.c.h.b16 %v1698
        %v1932 = vunpack.c.l.b16 %v1699
        %v1933 = vunpack.c.h.b16 %v1699
        %v1934 = vunpack.c.l.b16 %v1700
        %v1935 = vunpack.c.h.b16 %v1700
        %v1936 = vunpack.c.l.b16 %v1701
        %v1937 = vunpack.c.h.b16 %v1701
        %v1938 = vunpack.c.l.b16 %v1702
        %v1939 = vunpack.c.h.b16 %v1702
        %v1940 = vunpack.c.l.b16 %v1703
        %v1941 = vunpack.c.h.b16 %v1703
        %v1942 = vunpack.c.l.b16 %v1704
        %v1943 = vunpack.c.h.b16 %v1704
        %v1944 = vunpack.c.l.b16 %v1705
        %v1945 = vunpack.c.h.b16 %v1705
        %v1946 = vunpack.c.l.b16 %v1706
        %v1947 = vunpack.c.h.b16 %v1706
        %v1948 = vunpack.c.l.b16 %v1707
        %v1949 = vunpack.c.h.b16 %v1707
        %v1950 = vunpack.c.l.b16 %v1708
        %v1951 = vunpack.c.h.b16 %v1708
        %v1952 = vunpack.c.l.b16 %v1709
        %v1953 = vunpack.c.h.b16 %v1709
        %v1954 = vunpack.c.l.b16 %v1710
        %v1955 = vunpack.c.h.b16 %v1710
        %v1956 = vunpack.c.l.b16 %v1711
        %v1957 = vunpack.c.h.b16 %v1711
        %v1958 = vunpack.c.l.b16 %v1712
        %v1959 = vunpack.c.h.b16 %v1712
        %v1960 = vunpack.c.l.b16 %v1713
        %v1961 = vunpack.c.h.b16 %v1713
        %v1962 = vunpack.c.l.b16 %v1714
        %v1963 = vunpack.c.h.b16 %v1714
        %v1964 = vunpack.c.l.b16 %v1715
        %v1965 = vunpack.c.h.b16 %v1715
        %v1966 = vunpack.c.l.b16 %v1716
        %v1967 = vunpack.c.h.b16 %v1716
        %v1968 = vunpack.c.l.b16 %v1717
        %v1969 = vunpack.c.h.b16 %v1717
        %v1970 = vunpack.c.l.b16 %v1718
        %v1971 = vunpack.c.h.b16 %v1718
        %v1972 = vunpack.c.l.b16 %v1719
        %v1973 = vunpack.c.h.b16 %v1719
        %v1974 = vunpack.c.l.b16 %v1720
        %v1975 = vunpack.c.h.b16 %v1720
        %v1976 = vunpack.c.l.b16 %v1721
        %v1977 = vunpack.c.h.b16 %v1721
        %v1978 = vunpack.c.l.b16 %v1722
        %v1979 = vunpack.c.h.b16 %v1722
        %v1980 = vunpack.c.l.b16 %v1723
        %v1981 = vunpack.c.h.b16 %v1723
        %v1982 = vunpack.c.l.b16 %v1724
        %v1983 = vunpack.c.h.b16 %v1724
        %v1984 = vunpack.c.l.b16 %v1725
        %v1985 = vunpack.c.h.b16 %v1725
        %v1986 = vunpack.c.l.b16 %v1726
        %v1987 = vunpack.c.h.b16 %v1726
        %v1988 = vunpack.c.l.b16 %v1727
        %v1989 = vunpack.c.h.b16 %v1727
        %v1990 = vunpack.c.l.b16 %v1728
        %v1991 = vunpack.c.h.b16 %v1728
        %v1992 = vunpack.c.l.b16 %v1729
        %v1993 = vunpack.c.h.b16 %v1729
        %v1994 = vunpack.c.l.b16 %v1730
        %v1995 = vunpack.c.h.b16 %v1730
        %v1996 = vunpack.c.l.b16 %v1731
        %v1997 = vunpack.c.h.b16 %v1731
        %v1998 = vunpack.c.l.b16 %v1732
        %v1999 = vunpack.c.h.b16 %v1732
        %v2000 = vunpack.c.l.b16 %v1733
        %v2001 = vunpack.c.h.b16 %v1733
        %v2002 = vunpack.c.l.b16 %v1734
        %v2003 = vunpack.c.h.b16 %v1734
        %v2004 = vunpack.c.l.b16 %v1735
        %v2005 = vunpack.c.h.b16 %v1735
        %v2006 = vunpack.c.l.b16 %v1736
        %v2007 = vunpack.c.h.b16 %v1736
        %v2008 = vunpack.c.l.b16 %v1737
        %v2009 = vunpack.c.h.b16 %v1737
        %v2010 = vunpack.c.l.b16 %v1738
        %v2011 = vunpack.c.h.b16 %v1738
        %v2012 = vunpack.c.l.b16 %v1739
        %v2013 = vunpack.c.h.b16 %v1739
        %v2014 = vunpack.c.l.b16 %v1740
        %v2015 = vunpack.c.h.b16 %v1740
        %v2016 = vunpack.c.l.b16 %v1741
        %v2017 = vunpack.c.h.b16 %v1741
        %v2018 = vunpack.c.l.b16 %v1742
        %v2019 = vunpack.c.h.b16 %v1742
        %v2020 = vunpack.c.l.b16 %v1743
        %v2021 = vunpack.c.h.b16 %v1743
        %v2022 = vunpack.c.l.b16 %v1744
        %v2023 = vunpack.c.h.b16 %v1744
        %v2024 = vunpack.c.l.b16 %v1745
        %v2025 = vunpack.c.h.b16 %v1745
        %v2026 = vunpack.c.l.b16 %v1746
        %v2027 = vunpack.c.h.b16 %v1746
        %v2028 = vunpack.c.l.b16 %v1747
        %v2029 = vunpack.c.h.b16 %v1747
        %v2030 = vunpack.c.l.b16 %v1748
        %v2031 = vunpack.c.h.b16 %v1748
        %v2032 = vunpack.c.l.b16 %v1749
        %v2033 = vunpack.c.h.b16 %v1749
        %v2034 = vunpack.c.l.b16 %v1750
        %v2035 = vunpack.c.h.b16 %v1750
        %v2036 = vunpack.c.l.b16 %v1751
        %v2037 = vunpack.c.h.b16 %v1751
        %v2038 = vunpack.c.l.b16 %v1752
        %v2039 = vunpack.c.h.b16 %v1752
        %v2040 = vunpack.c.l.b16 %v1753
        %v2041 = vunpack.c.h.b16 %v1753
        %v2042 = vunpack.c.l.b16 %v1754
        %v2043 = vunpack.c.h.b16 %v1754
        %v2044 = vunpack.c.l.b16 %v1755
        %v2045 = vunpack.c.h.b16 %v1755
        %v2046 = vunpack.c.l.b16 %v1756
        %v2047 = vunpack.c.h.b16 %v1756
        %v2048 = vunpack.c.l.b16 %v1757
        %v2049 = vunpack.c.h.b16 %v1757
        %v2050 = vunpack.c.l.b16 %v1758
        %v2051 = vunpack.c.h.b16 %v1758
        %v2052 = vunpack.c.l.b16 %v1759
        %v2053 = vunpack.c.h.b16 %v1759
        %v2054 = vunpack.c.l.b16 %v1760
        %v2055 = vunpack.c.h.b16 %v1760
        %v2056 = vunpack.c.l.b16 %v1761
        %v2057 = vunpack.c.h.b16 %v1761
        %v2058 = vunpack.c.l.b16 %v1762
        %v2059 = vunpack.c.h.b16 %v1762
        %v2060 = vunpack.c.l.b16 %v1763
        %v2061 = vunpack.c.h.b16 %v1763
        %v2062 = vunpack.c.l.b16 %v1764
        %v2063 = vunpack.c.h.b16 %v1764
        %v2064 = vunpack.c.l.b16 %v1765
        %v2065 = vunpack.c.h.b16 %v1765
        %v2066 = vunpack.c.l.b16 %v1766
        %v2067 = vunpack.c.h.b16 %v1766
        %v2068 = vunpack.c.l.b16 %v1767
        %v2069 = vunpack.c.h.b16 %v1767
        %v2070 = vunpack.c.l.b16 %v1768
        %v2071 = vunpack.c.h.b16 %v1768
        %v2072 = vunpack.c.l.b16 %v1769
        %v2073 = vunpack.c.h.b16 %v1769
        %v2074 = vunpack.c.l.b16 %v1770
        %v2075 = vunpack.c.h.b16 %v1770
        %v2076 = vunpack.c.l.b16 %v1771
        %v2077 = vunpack.c.h.b16 %v1771
        %v2078 = vunpack.c.l.b16 %v1772
        %v2079 = vunpack.c.h.b16 %v1772
        %v2080 = vunpack.c.l.b16 %v1773
        %v2081 = vunpack.c.h.b16 %v1773
        %v2082 = vunpack.c.l.b16 %v1774
        %v2083 = vunpack.c.h.b16 %v1774
        %v2084 = vunpack.c.l.b16 %v1775
        %v2085 = vunpack.c.h.b16 %v1775
        %v2086 = vunpack.c.l.b16 %v1776
        %v2087 = vunpack.c.h.b16 %v1776
        %v2088 = vunpack.c.l.b16 %v1777
        %v2089 = vunpack.c.h.b16 %v1777
        %v2090 = vunpack.c.l.b16 %v1778
        %v2091 = vunpack.c.h.b16 %v1778
        %v2092 = vunpack.c.l.b16 %v1779
        %v2093 = vunpack.c.h.b16 %v1779
        %v2094 = vunpack.c.l.b16 %v1780
        %v2095 = vunpack.c.h.b16 %v1780
        %v2096 = vunpack.c.l.b16 %v1781
        %v2097 = vunpack.c.h.b16 %v1781
        %v2098 = vunpack.c.l.b16 %v1782
        %v2099 = vunpack.c.h.b16 %v1782
        %v2100 = vunpack.c.l.b16 %v1783
        %v2101 = vunpack.c.h.b16 %v1783
        %v2102 = vunpack.c.l.b16 %v1784
        %v2103 = vunpack.c.h.b16 %v1784
        %v2104 = vunpack.c.l.b16 %v1785
        %v2105 = vunpack.c.h.b16 %v1785
        %v2106 = vpack.c.b16 %v1920, %v1914
        %v2107 = vpack.c.b16 %v1921, %v1915
        %v2108 = vpack.c.b16 %v1922, %v1916
        %v2109 = vpack.c.b16 %v1923, %v1917
        %v2110 = vpack.c.b16 %v1924, %v1918
        %v2111 = vpack.c.b16 %v1925, %v1919
        %v2112 = vpack.c.b16 %v1932, %v1926
        %v2113 = vpack.c.b16 %v1933, %v1927
        %v2114 = vpack.c.b16 %v1934, %v1928
        %v2115 = vpack.c.b16 %v1935, %v1929
        %v2116 = vpack.c.b16 %v1936, %v1930
        %v2117 = vpack.c.b16 %v1937, %v1931
        %v2118 = vpack.c.b16 %v1944, %v1938
        %v2119 = vpack.c.b16 %v1945, %v1939
        %v2120 = vpack.c.b16 %v1946, %v1940
        %v2121 = vpack.c.b16 %v1947, %v1941
        %v2122 = vpack.c.b16 %v1948, %v1942
        %v2123 = vpack.c.b16 %v1949, %v1943
        %v2124 = vpack.c.b16 %v1956, %v1950
        %v2125 = vpack.c.b16 %v1957, %v1951
        %v2126 = vpack.c.b16 %v1958, %v1952
        %v2127 = vpack.c.b16 %v1959, %v1953
        %v2128 = vpack.c.b16 %v1960, %v1954
        %v2129 = vpack.c.b16 %v1961, %v1955
        %v2130 = vpack.c.b16 %v1968, %v1962
        %v2131 = vpack.c.b16 %v1969, %v1963
        %v2132 = vpack.c.b16 %v1970, %v1964
        %v2133 = vpack.c.b16 %v1971, %v1965
        %v2134 = vpack.c.b16 %v1972, %v1966
        %v2135 = vpack.c.b16 %v1973, %v1967
        %v2136 = vpack.c.b16 %v1980, %v1974
        %v2137 = vpack.c.b16 %v1981, %v1975
        %v2138 = vpack.c.b16 %v1982, %v1976
        %v2139 = vpack.c.b16 %v1983, %v1977
        %v2140 = vpack.c.b16 %v1984, %v1978
        %v2141 = vpack.c.b16 %v1985, %v1979
        %v2142 = vpack.c.b16 %v1992, %v1986
        %v2143 = vpack.c.b16 %v1993, %v1987
        %v2144 = vpack.c.b16 %v1994, %v1988
        %v2145 = vpack.c.b16 %v1995, %v1989
        %v2146 = vpack.c.b16 %v1996, %v1990
        %v2147 = vpack.c.b16 %v1997, %v1991
        %v2148 = vpack.c.b16 %v2004, %v1998
        %v2149 = vpack.c.b16 %v2005, %v1999
        %v2150 = vpack.c.b16 %v2006, %v2000
        %v2151 = vpack.c.b16 %v2007, %v2001
        %v2152 = vpack.c.b16 %v2008, %v2002
        %v2153 = vpack.c.b16 %v2009, %v2003
        %v2154 = vpack.c.b16 %v2016, %v2010
        %v2155 = vpack.c.b16 %v2017, %v2011
        %v2156 = vpack.c.b16 %v2018, %v2012
        %v2157 = vpack.c.b16 %v2019, %v2013
        %v2158 = vpack.c.b16 %v2020, %v2014
        %v2159 = vpack.c.b16 %v2021, %v2015
        %v2160 = vpack.c.b16 %v2028, %v2022
        %v2161 = vpack.c.b16 %v2029, %v2023
        %v2162 = vpack.c.b16 %v2030, %v2024
        %v2163 = vpack.c.b16 %v2031, %v2025
        %v2164 = vpack.c.b16 %v2032, %v2026
        %v2165 = vpack.c.b16 %v2033, %v2027
        %v2166 = vpack.c.b16 %v2040, %v2034
        %v2167 = vpack.c.b16 %v2041, %v2035
        %v2168 = vpack.c.b16 %v2042, %v2036
        %v2169 = vpack.c.b16 %v2043, %v2037
        %v2170 = vpack.c.b16 %v2044, %v2038
        %v2171 = vpack.c.b16 %v2045, %v2039
        %v2172 = vpack.c.b16 %v2052, %v2046
        %v2173 = vpack.c.b16 %v2053, %v2047
        %v2174 = vpack.c.b16 %v2054, %v2048
        %v2175 = vpack.c.b16 %v2055, %v2049
        %v2176 = vpack.c.b16 %v2056, %v2050
        %v2177 = vpack.c.b16 %v2057, %v2051
        %v2178 = vpack.c.b16 %v2064, %v2058
        %v2179 = vpack.c.b16 %v2065, %v2059
        %v2180 = vpack.c.b16 %v2066, %v2060
        %v2181 = vpack.c.b16 %v2067, %v2061
        %v2182 = vpack.c.b16 %v2068, %v2062
        %v2183 = vpack.c.b16 %v2069, %v2063
        %v2184 = vpack.c.b16 %v2076, %v2070
        %v2185 = vpack.c.b16 %v2077, %v2071
        %v2186 = vpack.c.b16 %v2078, %v2072
        %v2187 = vpack.c.b16 %v2079, %v2073
        %v2188 = vpack.c.b16 %v2080, %v2074
        %v2189 = vpack.c.b16 %v2081, %v2075
        %v2190 = vpack.c.b16 %v2088, %v2082
        %v2191 = vpack.c.b16 %v2089, %v2083
        %v2192 = vpack.c.b16 %v2090, %v2084
        %v2193 = vpack.c.b16 %v2091, %v2085
        %v2194 = vpack.c.b16 %v2092, %v2086
        %v2195 = vpack.c.b16 %v2093, %v2087
        %v2196 = vpack.c.b16 %v2100, %v2094
        %v2197 = vpack.c.b16 %v2101, %v2095
        %v2198 = vpack.c.b16 %v2102, %v2096
        %v2199 = vpack.c.b16 %v2103, %v2097
        %v2200 = vpack.c.b16 %v2104, %v2098
        %v2201 = vpack.c.b16 %v2105, %v2099
        %2298 = vmatprep.subr.bf16.mxu0 %v2107
        %2299 = vmatpush1.bf16.msra.mxu0 %v2106
        %2300 = vmatprep.subr.bf16.mxu0 %v2113
        %2301 = vmatpush1.bf16.msra.mxu0 %v2112
        %2302 = vmatprep.subr.bf16.mxu0 %v2119
        %2303 = vmatpush1.bf16.msra.mxu0 %v2118
        %2304 = vmatprep.subr.bf16.mxu0 %v2125
        %2305 = vmatpush1.bf16.msra.mxu0 %v2124
        %2306 = vmatprep.subr.bf16.mxu0 %v2131
        %2307 = vmatpush1.bf16.msra.mxu0 %v2130
        %2308 = vmatprep.subr.bf16.mxu0 %v2137
        %2309 = vmatpush1.bf16.msra.mxu0 %v2136
        %2310 = vmatprep.subr.bf16.mxu0 %v2143
        %2311 = vmatpush1.bf16.msra.mxu0 %v2142
        %2312 = vmatprep.subr.bf16.mxu0 %v2149
        %2313 = vmatpush1.bf16.msra.mxu0 %v2148
        %2314 = vmatprep.subr.bf16.mxu0 %v2155
        %2315 = vmatpush1.bf16.msra.mxu0 %v2154
        %2316 = vmatprep.subr.bf16.mxu0 %v2161
        %2317 = vmatpush1.bf16.msra.mxu0 %v2160
        %2318 = vmatprep.subr.bf16.mxu0 %v2167
        %2319 = vmatpush1.bf16.msra.mxu0 %v2166
        %2320 = vmatprep.subr.bf16.mxu0 %v2173
        %2321 = vmatpush1.bf16.msra.mxu0 %v2172
        %2322 = vmatprep.subr.bf16.mxu0 %v2179
        %2323 = vmatpush1.bf16.msra.mxu0 %v2178
        %2324 = vmatprep.subr.bf16.mxu0 %v2185
        %2325 = vmatpush1.bf16.msra.mxu0 %v2184
        %2326 = vmatprep.subr.bf16.mxu0 %v2191
        %2327 = vmatpush1.bf16.msra.mxu0 %v2190
        %2328 = vmatprep.subr.bf16.mxu0 %v2197
        %2329 = vmatpush1.bf16.msra.mxu0 %v2196
        %2330 = vmatprep.mubr.bf16.mxu0 %v1659
        %2331 = vmatmul.mubr.bf16.gmra.mrb[0].mxu0 %v1658
        %v2332 = vpop.f32.mrb[0].mxu0
        %v2333 = vadd.f32 %v1791, %v2332
        %v2334 = vpop.f32.mrb[0].mxu0
        %v2335 = vadd.f32 %v1795, %v2334
        %v2336 = vpop.f32.mrb[0].mxu0
        %v2337 = vadd.f32 %v1791, %v2336
        %v2338 = vpop.f32.mrb[0].mxu0
        %v2339 = vadd.f32 %v1795, %v2338
        %2340 = vmatprep.mubr.bf16.mxu0 %v1661
        %2341 = vmatmul.mubr.bf16.gmra.mrb[0].mxu0 %v1660
        %v2342 = vpop.f32.mrb[0].mxu0
        %v2343 = vadd.f32 %v1791, %v2342
        %v2344 = vpop.f32.mrb[0].mxu0
        %v2345 = vadd.f32 %v1795, %v2344
        %v2346 = vpop.f32.mrb[0].mxu0
        %v2347 = vadd.f32 %v1791, %v2346
        %v2348 = vpop.f32.mrb[0].mxu0
        %v2349 = vadd.f32 %v1795, %v2348
        %2350 = vmatprep.mubr.bf16.mxu0 %v1663
        %2351 = vmatmul.mubr.bf16.gmra.mrb[0].mxu0 %v1662
        %v2352 = vpop.f32.mrb[0].mxu0
        %v2353 = vadd.f32 %v1791, %v2352
        %v2354 = vpop.f32.mrb[0].mxu0
        %v2355 = vadd.f32 %v1795, %v2354
        %v2356 = vpop.f32.mrb[0].mxu0
        %v2357 = vadd.f32 %v1791, %v2356
        %v2358 = vpop.f32.mrb[0].mxu0
        %v2359 = vadd.f32 %v1795, %v2358
        %2360 = vmatprep.mubr.bf16.mxu0 %v1665
        %2361 = vmatmul.mubr.bf16.gmra.mrb[0].mxu0 %v1664
        %v2362 = vpop.f32.mrb[0].mxu0
        %v2363 = vadd.f32 %v1791, %v2362
        %v2364 = vpop.f32.mrb[0].mxu0
        %v2365 = vadd.f32 %v1795, %v2364
        %v2366 = vpop.f32.mrb[0].mxu0
        %v2367 = vadd.f32 %v1791, %v2366
        %v2368 = vpop.f32.mrb[0].mxu0
        %v2369 = vadd.f32 %v1795, %v2368
        %2370 = vmatprep.mubr.bf16.mxu0 %v1667
        %2371 = vmatmul.mubr.bf16.gmra.mrb[0].mxu0 %v1666
        %v2372 = vpop.f32.mrb[0].mxu0
        %v2373 = vadd.f32 %v1791, %v2372
        %v2374 = vpop.f32.mrb[0].mxu0
        %v2375 = vadd.f32 %v1795, %v2374
        %v2376 = vpop.f32.mrb[0].mxu0
        %v2377 = vadd.f32 %v1791, %v2376
        %v2378 = vpop.f32.mrb[0].mxu0
        %v2379 = vadd.f32 %v1795, %v2378
        %2380 = vmatprep.mubr.bf16.mxu0 %v1669
        %2381 = vmatmul.mubr.bf16.gmra.mrb[0].mxu0 %v1668
        %v2382 = vpop.f32.mrb[0].mxu0
        %v2383 = vadd.f32 %v1791, %v2382
        %v2384 = vpop.f32.mrb[0].mxu0
        %v2385 = vadd.f32 %v1795, %v2384
        %v2386 = vpop.f32.mrb[0].mxu0
        %v2387 = vadd.f32 %v1791, %v2386
        %v2388 = vpop.f32.mrb[0].mxu0
        %v2389 = vadd.f32 %v1795, %v2388
        %2390 = vmatprep.mubr.bf16.mxu0 %v1671
        %2391 = vmatmul.mubr.bf16.gmra.mrb[0].mxu0 %v1670
        %v2392 = vpop.f32.mrb[0].mxu0
        %v2393 = vadd.f32 %v1791, %v2392
        %v2394 = vpop.f32.mrb[0].mxu0
        %v2395 = vadd.f32 %v1795, %v2394
        %v2396 = vpop.f32.mrb[0].mxu0
        %v2397 = vadd.f32 %v1791, %v2396
        %v2398 = vpop.f32.mrb[0].mxu0
        %v2399 = vadd.f32 %v1795, %v2398
        %2400 = vmatprep.mubr.bf16.mxu0 %v1673
        %2401 = vmatmul.mubr.bf16.gmra.mrb[0].mxu0 %v1672
        %v2402 = vpop.f32.mrb[0].mxu0
        %v2403 = vadd.f32 %v1791, %v2402
        %v2404 = vpop.f32.mrb[0].mxu0
        %v2405 = vadd.f32 %v1795, %v2404
        %v2406 = vpop.f32.mrb[0].mxu0
        %v2407 = vadd.f32 %v1791, %v2406
        %v2408 = vpop.f32.mrb[0].mxu0
        %v2409 = vadd.f32 %v1795, %v2408
        %2410 = vmatprep.mubr.bf16.mxu0 %v1675
        %2411 = vmatmul.mubr.bf16.gmra.mrb[0].mxu0 %v1674
        %v2412 = vpop.f32.mrb[0].mxu0
        %v2413 = vadd.f32 %v1791, %v2412
        %v2414 = vpop.f32.mrb[0].mxu0
        %v2415 = vadd.f32 %v1795, %v2414
        %v2416 = vpop.f32.mrb[0].mxu0
        %v2417 = vadd.f32 %v1791, %v2416
        %v2418 = vpop.f32.mrb[0].mxu0
        %v2419 = vadd.f32 %v1795, %v2418
        %2420 = vmatprep.mubr.bf16.mxu0 %v1677
        %2421 = vmatmul.mubr.bf16.gmra.mrb[0].mxu0 %v1676
        %v2422 = vpop.f32.mrb[0].mxu0
        %v2423 = vadd.f32 %v1791, %v2422
        %v2424 = vpop.f32.mrb[0].mxu0
        %v2425 = vadd.f32 %v1795, %v2424
        %v2426 = vpop.f32.mrb[0].mxu0
        %v2427 = vadd.f32 %v1791, %v2426
        %v2428 = vpop.f32.mrb[0].mxu0
        %v2429 = vadd.f32 %v1795, %v2428
        %2430 = vmatprep.mubr.bf16.mxu0 %v1679
        %2431 = vmatmul.mubr.bf16.gmra.mrb[0].mxu0 %v1678
        %v2432 = vpop.f32.mrb[0].mxu0
        %v2433 = vadd.f32 %v1791, %v2432
        %v2434 = vpop.f32.mrb[0].mxu0
        %v2435 = vadd.f32 %v1795, %v2434
        %v2436 = vpop.f32.mrb[0].mxu0
        %v2437 = vadd.f32 %v1791, %v2436
        %v2438 = vpop.f32.mrb[0].mxu0
        %v2439 = vadd.f32 %v1795, %v2438
        %2440 = vmatprep.mubr.bf16.mxu0 %v1681
        %2441 = vmatmul.mubr.bf16.gmra.mrb[0].mxu0 %v1680
        %v2442 = vpop.f32.mrb[0].mxu0
        %v2443 = vadd.f32 %v1791, %v2442
        %v2444 = vpop.f32.mrb[0].mxu0
        %v2445 = vadd.f32 %v1795, %v2444
        %v2446 = vpop.f32.mrb[0].mxu0
        %v2447 = vadd.f32 %v1791, %v2446
        %v2448 = vpop.f32.mrb[0].mxu0
        %v2449 = vadd.f32 %v1795, %v2448
        %2450 = vmatprep.mubr.bf16.mxu0 %v1683
        %2451 = vmatmul.mubr.bf16.gmra.mrb[0].mxu0 %v1682
        %v2452 = vpop.f32.mrb[0].mxu0
        %v2453 = vadd.f32 %v1791, %v2452
        %v2454 = vpop.f32.mrb[0].mxu0
        %v2455 = vadd.f32 %v1795, %v2454
        %v2456 = vpop.f32.mrb[0].mxu0
        %v2457 = vadd.f32 %v1791, %v2456
        %v2458 = vpop.f32.mrb[0].mxu0
        %v2459 = vadd.f32 %v1795, %v2458
        %2460 = vmatprep.mubr.bf16.mxu0 %v1685
        %2461 = vmatmul.mubr.bf16.gmra.mrb[0].mxu0 %v1684
        %v2462 = vpop.f32.mrb[0].mxu0
        %v2463 = vadd.f32 %v1791, %v2462
        %v2464 = vpop.f32.mrb[0].mxu0
        %v2465 = vadd.f32 %v1795, %v2464
        %v2466 = vpop.f32.mrb[0].mxu0
        %v2467 = vadd.f32 %v1791, %v2466
        %v2468 = vpop.f32.mrb[0].mxu0
        %v2469 = vadd.f32 %v1795, %v2468
        %2470 = vmatprep.mubr.bf16.mxu0 %v1687
        %2471 = vmatmul.mubr.bf16.gmra.mrb[0].mxu0 %v1686
        %v2472 = vpop.f32.mrb[0].mxu0
        %v2473 = vadd.f32 %v1791, %v2472
        %v2474 = vpop.f32.mrb[0].mxu0
        %v2475 = vadd.f32 %v1795, %v2474
        %v2476 = vpop.f32.mrb[0].mxu0
        %v2477 = vadd.f32 %v1791, %v2476
        %v2478 = vpop.f32.mrb[0].mxu0
        %v2479 = vadd.f32 %v1795, %v2478
        %2480 = vmatprep.mubr.bf16.mxu0 %v1689
        %2481 = vmatmul.mubr.bf16.gmra.mrb[0].mxu0 %v1688
        %v2482 = vpop.f32.mrb[0].mxu0
        %v2483 = vadd.f32 %v1791, %v2482
        %v2484 = vpop.f32.mrb[0].mxu0
        %v2485 = vadd.f32 %v1795, %v2484
        %v2486 = vpop.f32.mrb[0].mxu0
        %v2487 = vadd.f32 %v1791, %v2486
        %v2488 = vpop.f32.mrb[0].mxu0
        %v2489 = vadd.f32 %v1795, %v2488
        %2490 = vdwg.mxu0
        %2491 = vmatprep.subr.bf16.mxu0 %v2109
        %2492 = vmatpush1.bf16.msra.mxu0 %v2108
        %2493 = vmatprep.subr.bf16.mxu0 %v2115
        %2494 = vmatpush1.bf16.msra.mxu0 %v2114
        %2495 = vmatprep.subr.bf16.mxu0 %v2121
        %2496 = vmatpush1.bf16.msra.mxu0 %v2120
        %2497 = vmatprep.subr.bf16.mxu0 %v2127
        %2498 = vmatpush1.bf16.msra.mxu0 %v2126
        %2499 = vmatprep.subr.bf16.mxu0 %v2133
        %2500 = vmatpush1.bf16.msra.mxu0 %v2132
        %2501 = vmatprep.subr.bf16.mxu0 %v2139
        %2502 = vmatpush1.bf16.msra.mxu0 %v2138
        %2503 = vmatprep.subr.bf16.mxu0 %v2145
        %2504 = vmatpush1.bf16.msra.mxu0 %v2144
        %2505 = vmatprep.subr.bf16.mxu0 %v2151
        %2506 = vmatpush1.bf16.msra.mxu0 %v2150
        %2507 = vmatprep.subr.bf16.mxu0 %v2157
        %2508 = vmatpush1.bf16.msra.mxu0 %v2156
        %2509 = vmatprep.subr.bf16.mxu0 %v2163
        %2510 = vmatpush1.bf16.msra.mxu0 %v2162
        %2511 = vmatprep.subr.bf16.mxu0 %v2169
        %2512 = vmatpush1.bf16.msra.mxu0 %v2168
        %2513 = vmatprep.subr.bf16.mxu0 %v2175
        %2514 = vmatpush1.bf16.msra.mxu0 %v2174
        %2515 = vmatprep.subr.bf16.mxu0 %v2181
        %2516 = vmatpush1.bf16.msra.mxu0 %v2180
        %2517 = vmatprep.subr.bf16.mxu0 %v2187
        %2518 = vmatpush1.bf16.msra.mxu0 %v2186
        %2519 = vmatprep.subr.bf16.mxu0 %v2193
        %2520 = vmatpush1.bf16.msra.mxu0 %v2192
        %2521 = vmatprep.subr.bf16.mxu0 %v2199
        %2522 = vmatpush1.bf16.msra.mxu0 %v2198
        %2523 = vmatprep.mubr.bf16.mxu0 %v1659
        %2524 = vmatmul.mubr.bf16.gmra.mrb[0].mxu0 %v1658
        %v2525 = vpop.f32.mrb[0].mxu0
        %v2526 = vadd.f32 %v1799, %v2525
        %v2527 = vpop.f32.mrb[0].mxu0
        %v2528 = vadd.f32 %v1803, %v2527
        %v2529 = vpop.f32.mrb[0].mxu0
        %v2530 = vadd.f32 %v1799, %v2529
        %v2531 = vpop.f32.mrb[0].mxu0
        %v2532 = vadd.f32 %v1803, %v2531
        %2533 = vmatprep.mubr.bf16.mxu0 %v1661
        %2534 = vmatmul.mubr.bf16.gmra.mrb[0].mxu0 %v1660
        %v2535 = vpop.f32.mrb[0].mxu0
        %v2536 = vadd.f32 %v1799, %v2535
        %v2537 = vpop.f32.mrb[0].mxu0
        %v2538 = vadd.f32 %v1803, %v2537
        %v2539 = vpop.f32.mrb[0].mxu0
        %v2540 = vadd.f32 %v1799, %v2539
        %v2541 = vpop.f32.mrb[0].mxu0
        %v2542 = vadd.f32 %v1803, %v2541
        %2543 = vmatprep.mubr.bf16.mxu0 %v1663
        %2544 = vmatmul.mubr.bf16.gmra.mrb[0].mxu0 %v1662
        %v2545 = vpop.f32.mrb[0].mxu0
        %v2546 = vadd.f32 %v1799, %v2545
        %v2547 = vpop.f32.mrb[0].mxu0
        %v2548 = vadd.f32 %v1803, %v2547
        %v2549 = vpop.f32.mrb[0].mxu0
        %v2550 = vadd.f32 %v1799, %v2549
        %v2551 = vpop.f32.mrb[0].mxu0
        %v2552 = vadd.f32 %v1803, %v2551
        %2553 = vmatprep.mubr.bf16.mxu0 %v1665
        %2554 = vmatmul.mubr.bf16.gmra.mrb[0].mxu0 %v1664
        %v2555 = vpop.f32.mrb[0].mxu0
        %v2556 = vadd.f32 %v1799, %v2555
        %v2557 = vpop.f32.mrb[0].mxu0
        %v2558 = vadd.f32 %v1803, %v2557
        %v2559 = vpop.f32.mrb[0].mxu0
        %v2560 = vadd.f32 %v1799, %v2559
        %v2561 = vpop.f32.mrb[0].mxu0
        %v2562 = vadd.f32 %v1803, %v2561
        %2563 = vmatprep.mubr.bf16.mxu0 %v1667
        %2564 = vmatmul.mubr.bf16.gmra.mrb[0].mxu0 %v1666
        %v2565 = vpop.f32.mrb[0].mxu0
        %v2566 = vadd.f32 %v1799, %v2565
        %v2567 = vpop.f32.mrb[0].mxu0
        %v2568 = vadd.f32 %v1803, %v2567
        %v2569 = vpop.f32.mrb[0].mxu0
        %v2570 = vadd.f32 %v1799, %v2569
        %v2571 = vpop.f32.mrb[0].mxu0
        %v2572 = vadd.f32 %v1803, %v2571
        %2573 = vmatprep.mubr.bf16.mxu0 %v1669
        %2574 = vmatmul.mubr.bf16.gmra.mrb[0].mxu0 %v1668
        %v2575 = vpop.f32.mrb[0].mxu0
        %v2576 = vadd.f32 %v1799, %v2575
        %v2577 = vpop.f32.mrb[0].mxu0
        %v2578 = vadd.f32 %v1803, %v2577
        %v2579 = vpop.f32.mrb[0].mxu0
        %v2580 = vadd.f32 %v1799, %v2579
        %v2581 = vpop.f32.mrb[0].mxu0
        %v2582 = vadd.f32 %v1803, %v2581
        %2583 = vmatprep.mubr.bf16.mxu0 %v1671
        %2584 = vmatmul.mubr.bf16.gmra.mrb[0].mxu0 %v1670
        %v2585 = vpop.f32.mrb[0].mxu0
        %v2586 = vadd.f32 %v1799, %v2585
        %v2587 = vpop.f32.mrb[0].mxu0
        %v2588 = vadd.f32 %v1803, %v2587
        %v2589 = vpop.f32.mrb[0].mxu0
        %v2590 = vadd.f32 %v1799, %v2589
        %v2591 = vpop.f32.mrb[0].mxu0
        %v2592 = vadd.f32 %v1803, %v2591
        %2593 = vmatprep.mubr.bf16.mxu0 %v1673
        %2594 = vmatmul.mubr.bf16.gmra.mrb[0].mxu0 %v1672
        %v2595 = vpop.f32.mrb[0].mxu0
        %v2596 = vadd.f32 %v1799, %v2595
        %v2597 = vpop.f32.mrb[0].mxu0
        %v2598 = vadd.f32 %v1803, %v2597
        %v2599 = vpop.f32.mrb[0].mxu0
        %v2600 = vadd.f32 %v1799, %v2599
        %v2601 = vpop.f32.mrb[0].mxu0
        %v2602 = vadd.f32 %v1803, %v2601
        %2603 = vmatprep.mubr.bf16.mxu0 %v1675
        %2604 = vmatmul.mubr.bf16.gmra.mrb[0].mxu0 %v1674
        %v2605 = vpop.f32.mrb[0].mxu0
        %v2606 = vadd.f32 %v1799, %v2605
        %v2607 = vpop.f32.mrb[0].mxu0
        %v2608 = vadd.f32 %v1803, %v2607
        %v2609 = vpop.f32.mrb[0].mxu0
        %v2610 = vadd.f32 %v1799, %v2609
        %v2611 = vpop.f32.mrb[0].mxu0
        %v2612 = vadd.f32 %v1803, %v2611
        %2613 = vmatprep.mubr.bf16.mxu0 %v1677
        %2614 = vmatmul.mubr.bf16.gmra.mrb[0].mxu0 %v1676
        %v2615 = vpop.f32.mrb[0].mxu0
        %v2616 = vadd.f32 %v1799, %v2615
        %v2617 = vpop.f32.mrb[0].mxu0
        %v2618 = vadd.f32 %v1803, %v2617
        %v2619 = vpop.f32.mrb[0].mxu0
        %v2620 = vadd.f32 %v1799, %v2619
        %v2621 = vpop.f32.mrb[0].mxu0
        %v2622 = vadd.f32 %v1803, %v2621
        %2623 = vmatprep.mubr.bf16.mxu0 %v1679
        %2624 = vmatmul.mubr.bf16.gmra.mrb[0].mxu0 %v1678
        %v2625 = vpop.f32.mrb[0].mxu0
        %v2626 = vadd.f32 %v1799, %v2625
        %v2627 = vpop.f32.mrb[0].mxu0
        %v2628 = vadd.f32 %v1803, %v2627
        %v2629 = vpop.f32.mrb[0].mxu0
        %v2630 = vadd.f32 %v1799, %v2629
        %v2631 = vpop.f32.mrb[0].mxu0
        %v2632 = vadd.f32 %v1803, %v2631
        %2633 = vmatprep.mubr.bf16.mxu0 %v1681
        %2634 = vmatmul.mubr.bf16.gmra.mrb[0].mxu0 %v1680
        %v2635 = vpop.f32.mrb[0].mxu0
        %v2636 = vadd.f32 %v1799, %v2635
        %v2637 = vpop.f32.mrb[0].mxu0
        %v2638 = vadd.f32 %v1803, %v2637
        %v2639 = vpop.f32.mrb[0].mxu0
        %v2640 = vadd.f32 %v1799, %v2639
        %v2641 = vpop.f32.mrb[0].mxu0
        %v2642 = vadd.f32 %v1803, %v2641
        %2643 = vmatprep.mubr.bf16.mxu0 %v1683
        %2644 = vmatmul.mubr.bf16.gmra.mrb[0].mxu0 %v1682
        %v2645 = vpop.f32.mrb[0].mxu0
        %v2646 = vadd.f32 %v1799, %v2645
        %v2647 = vpop.f32.mrb[0].mxu0
        %v2648 = vadd.f32 %v1803, %v2647
        %v2649 = vpop.f32.mrb[0].mxu0
        %v2650 = vadd.f32 %v1799, %v2649
        %v2651 = vpop.f32.mrb[0].mxu0
        %v2652 = vadd.f32 %v1803, %v2651
        %2653 = vmatprep.mubr.bf16.mxu0 %v1685
        %2654 = vmatmul.mubr.bf16.gmra.mrb[0].mxu0 %v1684
        %v2655 = vpop.f32.mrb[0].mxu0
        %v2656 = vadd.f32 %v1799, %v2655
        %v2657 = vpop.f32.mrb[0].mxu0
        %v2658 = vadd.f32 %v1803, %v2657
        %v2659 = vpop.f32.mrb[0].mxu0
        %v2660 = vadd.f32 %v1799, %v2659
        %v2661 = vpop.f32.mrb[0].mxu0
        %v2662 = vadd.f32 %v1803, %v2661
        %2663 = vmatprep.mubr.bf16.mxu0 %v1687
        %2664 = vmatmul.mubr.bf16.gmra.mrb[0].mxu0 %v1686
        %v2665 = vpop.f32.mrb[0].mxu0
        %v2666 = vadd.f32 %v1799, %v2665
        %v2667 = vpop.f32.mrb[0].mxu0
        %v2668 = vadd.f32 %v1803, %v2667
        %v2669 = vpop.f32.mrb[0].mxu0
        %v2670 = vadd.f32 %v1799, %v2669
        %v2671 = vpop.f32.mrb[0].mxu0
        %v2672 = vadd.f32 %v1803, %v2671
        %2673 = vmatprep.mubr.bf16.mxu0 %v1689
        %2674 = vmatmul.mubr.bf16.gmra.mrb[0].mxu0 %v1688
        %v2675 = vpop.f32.mrb[0].mxu0
        %v2676 = vadd.f32 %v1799, %v2675
        %v2677 = vpop.f32.mrb[0].mxu0
        %v2678 = vadd.f32 %v1803, %v2677
        %v2679 = vpop.f32.mrb[0].mxu0
        %v2680 = vadd.f32 %v1799, %v2679
        %v2681 = vpop.f32.mrb[0].mxu0
        %v2682 = vadd.f32 %v1803, %v2681
        %2683 = vdwg.mxu0
        %2684 = vmatprep.subr.bf16.mxu0 %v2111
        %2685 = vmatpush1.bf16.msra.mxu0 %v2110
        %2686 = vmatprep.subr.bf16.mxu0 %v2117
        %2687 = vmatpush1.bf16.msra.mxu0 %v2116
        %2688 = vmatprep.subr.bf16.mxu0 %v2123
        %2689 = vmatpush1.bf16.msra.mxu0 %v2122
        %2690 = vmatprep.subr.bf16.mxu0 %v2129
        %2691 = vmatpush1.bf16.msra.mxu0 %v2128
        %2692 = vmatprep.subr.bf16.mxu0 %v2135
        %2693 = vmatpush1.bf16.msra.mxu0 %v2134
        %2694 = vmatprep.subr.bf16.mxu0 %v2141
        %2695 = vmatpush1.bf16.msra.mxu0 %v2140
        %2696 = vmatprep.subr.bf16.mxu0 %v2147
        %2697 = vmatpush1.bf16.msra.mxu0 %v2146
        %2698 = vmatprep.subr.bf16.mxu0 %v2153
        %2699 = vmatpush1.bf16.msra.mxu0 %v2152
        %2700 = vmatprep.subr.bf16.mxu0 %v2159
        %2701 = vmatpush1.bf16.msra.mxu0 %v2158
        %2702 = vmatprep.subr.bf16.mxu0 %v2165
        %2703 = vmatpush1.bf16.msra.mxu0 %v2164
        %2704 = vmatprep.subr.bf16.mxu0 %v2171
        %2705 = vmatpush1.bf16.msra.mxu0 %v2170
        %2706 = vmatprep.subr.bf16.mxu0 %v2177
        %2707 = vmatpush1.bf16.msra.mxu0 %v2176
        %2708 = vmatprep.subr.bf16.mxu0 %v2183
        %2709 = vmatpush1.bf16.msra.mxu0 %v2182
        %2710 = vmatprep.subr.bf16.mxu0 %v2189
        %2711 = vmatpush1.bf16.msra.mxu0 %v2188
        %2712 = vmatprep.subr.bf16.mxu0 %v2195
        %2713 = vmatpush1.bf16.msra.mxu0 %v2194
        %2714 = vmatprep.subr.bf16.mxu0 %v2201
        %2715 = vmatpush1.bf16.msra.mxu0 %v2200
        %2716 = vmatprep.mubr.bf16.mxu0 %v1659
        %2717 = vmatmul.mubr.bf16.gmra.mrb[0].mxu0 %v1658
        %v2718 = vpop.f32.mrb[0].mxu0
        %v2719 = vadd.f32 %v1807, %v2718
        %v2720 = vpop.f32.mrb[0].mxu0
        %v2721 = vadd.f32 %v1811, %v2720
        %v2722 = vpop.f32.mrb[0].mxu0
        %v2723 = vadd.f32 %v1807, %v2722
        %v2724 = vpop.f32.mrb[0].mxu0
        %v2725 = vadd.f32 %v1811, %v2724
        %2726 = vmatprep.mubr.bf16.mxu0 %v1661
        %2727 = vmatmul.mubr.bf16.gmra.mrb[0].mxu0 %v1660
        %v2728 = vpop.f32.mrb[0].mxu0
        %v2729 = vadd.f32 %v1807, %v2728
        %v2730 = vpop.f32.mrb[0].mxu0
        %v2731 = vadd.f32 %v1811, %v2730
        %v2732 = vpop.f32.mrb[0].mxu0
        %v2733 = vadd.f32 %v1807, %v2732
        %v2734 = vpop.f32.mrb[0].mxu0
        %v2735 = vadd.f32 %v1811, %v2734
        %2736 = vmatprep.mubr.bf16.mxu0 %v1663
        %2737 = vmatmul.mubr.bf16.gmra.mrb[0].mxu0 %v1662
        %v2738 = vpop.f32.mrb[0].mxu0
        %v2739 = vadd.f32 %v1807, %v2738
        %v2740 = vpop.f32.mrb[0].mxu0
        %v2741 = vadd.f32 %v1811, %v2740
        %v2742 = vpop.f32.mrb[0].mxu0
        %v2743 = vadd.f32 %v1807, %v2742
        %v2744 = vpop.f32.mrb[0].mxu0
        %v2745 = vadd.f32 %v1811, %v2744
        %2746 = vmatprep.mubr.bf16.mxu0 %v1665
        %2747 = vmatmul.mubr.bf16.gmra.mrb[0].mxu0 %v1664
        %v2748 = vpop.f32.mrb[0].mxu0
        %v2749 = vadd.f32 %v1807, %v2748
        %v2750 = vpop.f32.mrb[0].mxu0
        %v2751 = vadd.f32 %v1811, %v2750
        %v2752 = vpop.f32.mrb[0].mxu0
        %v2753 = vadd.f32 %v1807, %v2752
        %v2754 = vpop.f32.mrb[0].mxu0
        %v2755 = vadd.f32 %v1811, %v2754
        %2756 = vmatprep.mubr.bf16.mxu0 %v1667
        %2757 = vmatmul.mubr.bf16.gmra.mrb[0].mxu0 %v1666
        %v2758 = vpop.f32.mrb[0].mxu0
        %v2759 = vadd.f32 %v1807, %v2758
        %v2760 = vpop.f32.mrb[0].mxu0
        %v2761 = vadd.f32 %v1811, %v2760
        %v2762 = vpop.f32.mrb[0].mxu0
        %v2763 = vadd.f32 %v1807, %v2762
        %v2764 = vpop.f32.mrb[0].mxu0
        %v2765 = vadd.f32 %v1811, %v2764
        %2766 = vmatprep.mubr.bf16.mxu0 %v1669
        %2767 = vmatmul.mubr.bf16.gmra.mrb[0].mxu0 %v1668
        %v2768 = vpop.f32.mrb[0].mxu0
        %v2769 = vadd.f32 %v1807, %v2768
        %v2770 = vpop.f32.mrb[0].mxu0
        %v2771 = vadd.f32 %v1811, %v2770
        %v2772 = vpop.f32.mrb[0].mxu0
        %v2773 = vadd.f32 %v1807, %v2772
        %v2774 = vpop.f32.mrb[0].mxu0
        %v2775 = vadd.f32 %v1811, %v2774
        %2776 = vmatprep.mubr.bf16.mxu0 %v1671
        %2777 = vmatmul.mubr.bf16.gmra.mrb[0].mxu0 %v1670
        %v2778 = vpop.f32.mrb[0].mxu0
        %v2779 = vadd.f32 %v1807, %v2778
        %v2780 = vpop.f32.mrb[0].mxu0
        %v2781 = vadd.f32 %v1811, %v2780
        %v2782 = vpop.f32.mrb[0].mxu0
        %v2783 = vadd.f32 %v1807, %v2782
        %v2784 = vpop.f32.mrb[0].mxu0
        %v2785 = vadd.f32 %v1811, %v2784
        %2786 = vmatprep.mubr.bf16.mxu0 %v1673
        %2787 = vmatmul.mubr.bf16.gmra.mrb[0].mxu0 %v1672
        %v2788 = vpop.f32.mrb[0].mxu0
        %v2789 = vadd.f32 %v1807, %v2788
        %v2790 = vpop.f32.mrb[0].mxu0
        %v2791 = vadd.f32 %v1811, %v2790
        %v2792 = vpop.f32.mrb[0].mxu0
        %v2793 = vadd.f32 %v1807, %v2792
        %v2794 = vpop.f32.mrb[0].mxu0
        %v2795 = vadd.f32 %v1811, %v2794
        %2796 = vmatprep.mubr.bf16.mxu0 %v1675
        %2797 = vmatmul.mubr.bf16.gmra.mrb[0].mxu0 %v1674
        %v2798 = vpop.f32.mrb[0].mxu0
        %v2799 = vadd.f32 %v1807, %v2798
        %v2800 = vpop.f32.mrb[0].mxu0
        %v2801 = vadd.f32 %v1811, %v2800
        %v2802 = vpop.f32.mrb[0].mxu0
        %v2803 = vadd.f32 %v1807, %v2802
        %v2804 = vpop.f32.mrb[0].mxu0
        %v2805 = vadd.f32 %v1811, %v2804
        %2806 = vmatprep.mubr.bf16.mxu0 %v1677
        %2807 = vmatmul.mubr.bf16.gmra.mrb[0].mxu0 %v1676
        %v2808 = vpop.f32.mrb[0].mxu0
        %v2809 = vadd.f32 %v1807, %v2808
        %v2810 = vpop.f32.mrb[0].mxu0
        %v2811 = vadd.f32 %v1811, %v2810
        %v2812 = vpop.f32.mrb[0].mxu0
        %v2813 = vadd.f32 %v1807, %v2812
        %v2814 = vpop.f32.mrb[0].mxu0
        %v2815 = vadd.f32 %v1811, %v2814
        %2816 = vmatprep.mubr.bf16.mxu0 %v1679
        %2817 = vmatmul.mubr.bf16.gmra.mrb[0].mxu0 %v1678
        %v2818 = vpop.f32.mrb[0].mxu0
        %v2819 = vadd.f32 %v1807, %v2818
        %v2820 = vpop.f32.mrb[0].mxu0
        %v2821 = vadd.f32 %v1811, %v2820
        %v2822 = vpop.f32.mrb[0].mxu0
        %v2823 = vadd.f32 %v1807, %v2822
        %v2824 = vpop.f32.mrb[0].mxu0
        %v2825 = vadd.f32 %v1811, %v2824
        %2826 = vmatprep.mubr.bf16.mxu0 %v1681
        %2827 = vmatmul.mubr.bf16.gmra.mrb[0].mxu0 %v1680
        %v2828 = vpop.f32.mrb[0].mxu0
        %v2829 = vadd.f32 %v1807, %v2828
        %v2830 = vpop.f32.mrb[0].mxu0
        %v2831 = vadd.f32 %v1811, %v2830
        %v2832 = vpop.f32.mrb[0].mxu0
        %v2833 = vadd.f32 %v1807, %v2832
        %v2834 = vpop.f32.mrb[0].mxu0
        %v2835 = vadd.f32 %v1811, %v2834
        %2836 = vmatprep.mubr.bf16.mxu0 %v1683
        %2837 = vmatmul.mubr.bf16.gmra.mrb[0].mxu0 %v1682
        %v2838 = vpop.f32.mrb[0].mxu0
        %v2839 = vadd.f32 %v1807, %v2838
        %v2840 = vpop.f32.mrb[0].mxu0
        %v2841 = vadd.f32 %v1811, %v2840
        %v2842 = vpop.f32.mrb[0].mxu0
        %v2843 = vadd.f32 %v1807, %v2842
        %v2844 = vpop.f32.mrb[0].mxu0
        %v2845 = vadd.f32 %v1811, %v2844
        %2846 = vmatprep.mubr.bf16.mxu0 %v1685
        %2847 = vmatmul.mubr.bf16.gmra.mrb[0].mxu0 %v1684
        %v2848 = vpop.f32.mrb[0].mxu0
        %v2849 = vadd.f32 %v1807, %v2848
        %v2850 = vpop.f32.mrb[0].mxu0
        %v2851 = vadd.f32 %v1811, %v2850
        %v2852 = vpop.f32.mrb[0].mxu0
        %v2853 = vadd.f32 %v1807, %v2852
        %v2854 = vpop.f32.mrb[0].mxu0
        %v2855 = vadd.f32 %v1811, %v2854
        %2856 = vmatprep.mubr.bf16.mxu0 %v1687
        %2857 = vmatmul.mubr.bf16.gmra.mrb[0].mxu0 %v1686
        %v2858 = vpop.f32.mrb[0].mxu0
        %v2859 = vadd.f32 %v1807, %v2858
        %v2860 = vpop.f32.mrb[0].mxu0
        %v2861 = vadd.f32 %v1811, %v2860
        %v2862 = vpop.f32.mrb[0].mxu0
        %v2863 = vadd.f32 %v1807, %v2862
        %v2864 = vpop.f32.mrb[0].mxu0
        %v2865 = vadd.f32 %v1811, %v2864
        %2866 = vmatprep.mubr.bf16.mxu0 %v1689
        %2867 = vmatmul.mubr.bf16.gmra.mrb[0].mxu0 %v1688
        %v2868 = vpop.f32.mrb[0].mxu0
        %v2869 = vadd.f32 %v1807, %v2868
        %v2870 = vpop.f32.mrb[0].mxu0
        %v2871 = vadd.f32 %v1811, %v2870
        %v2872 = vpop.f32.mrb[0].mxu0
        %v2873 = vadd.f32 %v1807, %v2872
        %v2874 = vpop.f32.mrb[0].mxu0
        %v2875 = vadd.f32 %v1811, %v2874
        %2876 = vdwg.mxu0
        %v2877 = vpack.c.bf16 %v2337, %v2333
        %v2878 = vpack.c.bf16 %v2339, %v2335
        %v2879 = vpack.c.bf16 %v2530, %v2526
        %v2880 = vpack.c.bf16 %v2532, %v2528
        %v2881 = vpack.c.bf16 %v2723, %v2719
        %v2882 = vpack.c.bf16 %v2725, %v2721
        %v2883 = vpack.c.bf16 %v2347, %v2343
        %v2884 = vpack.c.bf16 %v2349, %v2345
        %v2885 = vpack.c.bf16 %v2540, %v2536
        %v2886 = vpack.c.bf16 %v2542, %v2538
        %v2887 = vpack.c.bf16 %v2733, %v2729
        %v2888 = vpack.c.bf16 %v2735, %v2731
        %v2889 = vpack.c.bf16 %v2357, %v2353
        %v2890 = vpack.c.bf16 %v2359, %v2355
        %v2891 = vpack.c.bf16 %v2550, %v2546
        %v2892 = vpack.c.bf16 %v2552, %v2548
        %v2893 = vpack.c.bf16 %v2743, %v2739
        %v2894 = vpack.c.bf16 %v2745, %v2741
        %v2895 = vpack.c.bf16 %v2367, %v2363
        %v2896 = vpack.c.bf16 %v2369, %v2365
        %v2897 = vpack.c.bf16 %v2560, %v2556
        %v2898 = vpack.c.bf16 %v2562, %v2558
        %v2899 = vpack.c.bf16 %v2753, %v2749
        %v2900 = vpack.c.bf16 %v2755, %v2751
        %v2901 = vpack.c.bf16 %v2377, %v2373
        %v2902 = vpack.c.bf16 %v2379, %v2375
        %v2903 = vpack.c.bf16 %v2570, %v2566
        %v2904 = vpack.c.bf16 %v2572, %v2568
        %v2905 = vpack.c.bf16 %v2763, %v2759
        %v2906 = vpack.c.bf16 %v2765, %v2761
        %v2907 = vpack.c.bf16 %v2387, %v2383
        %v2908 = vpack.c.bf16 %v2389, %v2385
        %v2909 = vpack.c.bf16 %v2580, %v2576
        %v2910 = vpack.c.bf16 %v2582, %v2578
        %v2911 = vpack.c.bf16 %v2773, %v2769
        %v2912 = vpack.c.bf16 %v2775, %v2771
        %v2913 = vpack.c.bf16 %v2397, %v2393
        %v2914 = vpack.c.bf16 %v2399, %v2395
        %v2915 = vpack.c.bf16 %v2590, %v2586
        %v2916 = vpack.c.bf16 %v2592, %v2588
        %v2917 = vpack.c.bf16 %v2783, %v2779
        %v2918 = vpack.c.bf16 %v2785, %v2781
        %v2919 = vpack.c.bf16 %v2407, %v2403
        %v2920 = vpack.c.bf16 %v2409, %v2405
        %v2921 = vpack.c.bf16 %v2600, %v2596
        %v2922 = vpack.c.bf16 %v2602, %v2598
        %v2923 = vpack.c.bf16 %v2793, %v2789
        %v2924 = vpack.c.bf16 %v2795, %v2791
        %v2925 = vpack.c.bf16 %v2417, %v2413
        %v2926 = vpack.c.bf16 %v2419, %v2415
        %v2927 = vpack.c.bf16 %v2610, %v2606
        %v2928 = vpack.c.bf16 %v2612, %v2608
        %v2929 = vpack.c.bf16 %v2803, %v2799
        %v2930 = vpack.c.bf16 %v2805, %v2801
        %v2931 = vpack.c.bf16 %v2427, %v2423
        %v2932 = vpack.c.bf16 %v2429, %v2425
        %v2933 = vpack.c.bf16 %v2620, %v2616
        %v2934 = vpack.c.bf16 %v2622, %v2618
        %v2935 = vpack.c.bf16 %v2813, %v2809
        %v2936 = vpack.c.bf16 %v2815, %v2811
        %v2937 = vpack.c.bf16 %v2437, %v2433
        %v2938 = vpack.c.bf16 %v2439, %v2435
        %v2939 = vpack.c.bf16 %v2630, %v2626
        %v2940 = vpack.c.bf16 %v2632, %v2628
        %v2941 = vpack.c.bf16 %v2823, %v2819
        %v2942 = vpack.c.bf16 %v2825, %v2821
        %v2943 = vpack.c.bf16 %v2447, %v2443
        %v2944 = vpack.c.bf16 %v2449, %v2445
        %v2945 = vpack.c.bf16 %v2640, %v2636
        %v2946 = vpack.c.bf16 %v2642, %v2638
        %v2947 = vpack.c.bf16 %v2833, %v2829
        %v2948 = vpack.c.bf16 %v2835, %v2831
        %v2949 = vpack.c.bf16 %v2457, %v2453
        %v2950 = vpack.c.bf16 %v2459, %v2455
        %v2951 = vpack.c.bf16 %v2650, %v2646
        %v2952 = vpack.c.bf16 %v2652, %v2648
        %v2953 = vpack.c.bf16 %v2843, %v2839
        %v2954 = vpack.c.bf16 %v2845, %v2841
        %v2955 = vpack.c.bf16 %v2467, %v2463
        %v2956 = vpack.c.bf16 %v2469, %v2465
        %v2957 = vpack.c.bf16 %v2660, %v2656
        %v2958 = vpack.c.bf16 %v2662, %v2658
        %v2959 = vpack.c.bf16 %v2853, %v2849
        %v2960 = vpack.c.bf16 %v2855, %v2851
        %v2961 = vpack.c.bf16 %v2477, %v2473
        %v2962 = vpack.c.bf16 %v2479, %v2475
        %v2963 = vpack.c.bf16 %v2670, %v2666
        %v2964 = vpack.c.bf16 %v2672, %v2668
        %v2965 = vpack.c.bf16 %v2863, %v2859
        %v2966 = vpack.c.bf16 %v2865, %v2861
        %v2967 = vpack.c.bf16 %v2487, %v2483
        %v2968 = vpack.c.bf16 %v2489, %v2485
        %v2969 = vpack.c.bf16 %v2680, %v2676
        %v2970 = vpack.c.bf16 %v2682, %v2678
        %v2971 = vpack.c.bf16 %v2873, %v2869
        %v2972 = vpack.c.bf16 %v2875, %v2871
        %2973 = vmatprep.subr.bf16.mxu0 0
        %2974 = vmatpush1.bf16.xpose.msra.mxu0 %v2879
        %2975 = vmatprep.subr.bf16.mxu0 0
        %2976 = vmatpush1.bf16.xpose.msra.mxu0 %v2885
        %2977 = vmatprep.subr.bf16.mxu0 0
        %2978 = vmatpush1.bf16.xpose.msra.mxu0 %v2891
        %2979 = vmatprep.subr.bf16.mxu0 0
        %2980 = vmatpush1.bf16.xpose.msra.mxu0 %v2897
        %2981 = vmatprep.subr.bf16.mxu0 0
        %2982 = vmatpush1.bf16.xpose.msra.mxu0 %v2903
        %2983 = vmatprep.subr.bf16.mxu0 0
        %2984 = vmatpush1.bf16.xpose.msra.mxu0 %v2909
        %2985 = vmatprep.subr.bf16.mxu0 0
        %2986 = vmatpush1.bf16.xpose.msra.mxu0 %v2915
        %2987 = vmatprep.subr.bf16.mxu0 0
        %2988 = vmatpush1.bf16.xpose.msra.mxu0 %v2921
        %2989 = vmatprep.subr.bf16.mxu0 0
        %2990 = vmatpush1.bf16.xpose.msra.mxu0 0
        %2991 = vmatprep.subr.bf16.mxu0 0
        %2992 = vmatpush1.bf16.xpose.msra.mxu0 0
        %2993 = vmatprep.subr.bf16.mxu0 0
        %2994 = vmatpush1.bf16.xpose.msra.mxu0 0
        %2995 = vmatprep.subr.bf16.mxu0 0
        %2996 = vmatpush1.bf16.xpose.msra.mxu0 0
        %2997 = vmatprep.subr.bf16.mxu0 0
        %2998 = vmatpush1.bf16.xpose.msra.mxu0 0
        %2999 = vmatprep.subr.bf16.mxu0 0
        %3000 = vmatpush1.bf16.xpose.msra.mxu0 0
        %3001 = vmatprep.subr.bf16.mxu0 0
        %3002 = vmatpush1.bf16.xpose.msra.mxu0 0
        %3003 = vmatprep.subr.bf16.mxu0 0
        %3004 = vmatpush1.bf16.xpose.msra.mxu0 0
        %3005 = vmatprep.mubr.bf16.mxu0 0
        %3006 = vmatmul.mubr.bf16.gmra.mrb[0].mxu0 %v2877
        %v3007 = vpop.f32.mrb[0].mxu0
        %v3008 = vadd.f32 0.0, %v3007
        %v3009 = vpop.f32.mrb[0].mxu0
        %v3010 = vpop.f32.mrb[0].mxu0
        %v3011 = vadd.f32 0.0, %v3010
        %v3012 = vpop.f32.mrb[0].mxu0
        %3013 = vmatprep.mubr.bf16.mxu0 0
        %3014 = vmatmul.mubr.bf16.gmra.mrb[0].mxu0 %v2883
        %v3015 = vpop.f32.mrb[0].mxu0
        %v3016 = vadd.f32 0.0, %v3015
        %v3017 = vpop.f32.mrb[0].mxu0
        %v3018 = vpop.f32.mrb[0].mxu0
        %v3019 = vadd.f32 0.0, %v3018
        %v3020 = vpop.f32.mrb[0].mxu0
        %3021 = vmatprep.mubr.bf16.mxu0 0
        %3022 = vmatmul.mubr.bf16.gmra.mrb[0].mxu0 %v2889
        %v3023 = vpop.f32.mrb[0].mxu0
        %v3024 = vadd.f32 0.0, %v3023
        %v3025 = vpop.f32.mrb[0].mxu0
        %v3026 = vpop.f32.mrb[0].mxu0
        %v3027 = vadd.f32 0.0, %v3026
        %v3028 = vpop.f32.mrb[0].mxu0
        %3029 = vmatprep.mubr.bf16.mxu0 0
        %3030 = vmatmul.mubr.bf16.gmra.mrb[0].mxu0 %v2895
        %v3031 = vpop.f32.mrb[0].mxu0
        %v3032 = vadd.f32 0.0, %v3031
        %v3033 = vpop.f32.mrb[0].mxu0
        %v3034 = vpop.f32.mrb[0].mxu0
        %v3035 = vadd.f32 0.0, %v3034
        %v3036 = vpop.f32.mrb[0].mxu0
        %3037 = vmatprep.mubr.bf16.mxu0 0
        %3038 = vmatmul.mubr.bf16.gmra.mrb[0].mxu0 %v2901
        %v3039 = vpop.f32.mrb[0].mxu0
        %v3040 = vadd.f32 0.0, %v3039
        %v3041 = vpop.f32.mrb[0].mxu0
        %v3042 = vpop.f32.mrb[0].mxu0
        %v3043 = vadd.f32 0.0, %v3042
        %v3044 = vpop.f32.mrb[0].mxu0
        %3045 = vmatprep.mubr.bf16.mxu0 0
        %3046 = vmatmul.mubr.bf16.gmra.mrb[0].mxu0 %v2907
        %v3047 = vpop.f32.mrb[0].mxu0
        %v3048 = vadd.f32 0.0, %v3047
        %v3049 = vpop.f32.mrb[0].mxu0
        %v3050 = vpop.f32.mrb[0].mxu0
        %v3051 = vadd.f32 0.0, %v3050
        %v3052 = vpop.f32.mrb[0].mxu0
        %3053 = vmatprep.mubr.bf16.mxu0 0
        %3054 = vmatmul.mubr.bf16.gmra.mrb[0].mxu0 %v2913
        %v3055 = vpop.f32.mrb[0].mxu0
        %v3056 = vadd.f32 0.0, %v3055
        %v3057 = vpop.f32.mrb[0].mxu0
        %v3058 = vpop.f32.mrb[0].mxu0
        %v3059 = vadd.f32 0.0, %v3058
        %v3060 = vpop.f32.mrb[0].mxu0
        %3061 = vmatprep.mubr.bf16.mxu0 0
        %3062 = vmatmul.mubr.bf16.gmra.mrb[0].mxu0 %v2919
        %v3063 = vpop.f32.mrb[0].mxu0
        %v3064 = vadd.f32 0.0, %v3063
        %v3065 = vpop.f32.mrb[0].mxu0
        %v3066 = vpop.f32.mrb[0].mxu0
        %v3067 = vadd.f32 0.0, %v3066
        %v3068 = vpop.f32.mrb[0].mxu0
        %3069 = vdwg.mxu0
        %3070 = vmatprep.subr.bf16.mxu0 0
        %3071 = vmatpush1.bf16.xpose.msra.mxu0 %v2880
        %3072 = vmatprep.subr.bf16.mxu0 0
        %3073 = vmatpush1.bf16.xpose.msra.mxu0 %v2886
        %3074 = vmatprep.subr.bf16.mxu0 0
        %3075 = vmatpush1.bf16.xpose.msra.mxu0 %v2892
        %3076 = vmatprep.subr.bf16.mxu0 0
        %3077 = vmatpush1.bf16.xpose.msra.mxu0 %v2898
        %3078 = vmatprep.subr.bf16.mxu0 0
        %3079 = vmatpush1.bf16.xpose.msra.mxu0 %v2904
        %3080 = vmatprep.subr.bf16.mxu0 0
        %3081 = vmatpush1.bf16.xpose.msra.mxu0 %v2910
        %3082 = vmatprep.subr.bf16.mxu0 0
        %3083 = vmatpush1.bf16.xpose.msra.mxu0 %v2916
        %3084 = vmatprep.subr.bf16.mxu0 0
        %3085 = vmatpush1.bf16.xpose.msra.mxu0 %v2922
        %3086 = vmatprep.subr.bf16.mxu0 0
        %3087 = vmatpush1.bf16.xpose.msra.mxu0 0
        %3088 = vmatprep.subr.bf16.mxu0 0
        %3089 = vmatpush1.bf16.xpose.msra.mxu0 0
        %3090 = vmatprep.subr.bf16.mxu0 0
        %3091 = vmatpush1.bf16.xpose.msra.mxu0 0
        %3092 = vmatprep.subr.bf16.mxu0 0
        %3093 = vmatpush1.bf16.xpose.msra.mxu0 0
        %3094 = vmatprep.subr.bf16.mxu0 0
        %3095 = vmatpush1.bf16.xpose.msra.mxu0 0
        %3096 = vmatprep.subr.bf16.mxu0 0
        %3097 = vmatpush1.bf16.xpose.msra.mxu0 0
        %3098 = vmatprep.subr.bf16.mxu0 0
        %3099 = vmatpush1.bf16.xpose.msra.mxu0 0
        %3100 = vmatprep.subr.bf16.mxu0 0
        %3101 = vmatpush1.bf16.xpose.msra.mxu0 0
        %3102 = vmatprep.mubr.bf16.mxu0 0
        %3103 = vmatmul.mubr.bf16.gmra.mrb[0].mxu0 %v2878
        %v3104 = vpop.f32.mrb[0].mxu0
        %v3105 = vadd.f32 0.0, %v3104
        %v3106 = vpop.f32.mrb[0].mxu0
        %v3107 = vpop.f32.mrb[0].mxu0
        %v3108 = vadd.f32 0.0, %v3107
        %v3109 = vpop.f32.mrb[0].mxu0
        %3110 = vmatprep.mubr.bf16.mxu0 0
        %3111 = vmatmul.mubr.bf16.gmra.mrb[0].mxu0 %v2884
        %v3112 = vpop.f32.mrb[0].mxu0
        %v3113 = vadd.f32 0.0, %v3112
        %v3114 = vpop.f32.mrb[0].mxu0
        %v3115 = vpop.f32.mrb[0].mxu0
        %v3116 = vadd.f32 0.0, %v3115
        %v3117 = vpop.f32.mrb[0].mxu0
        %3118 = vmatprep.mubr.bf16.mxu0 0
        %3119 = vmatmul.mubr.bf16.gmra.mrb[0].mxu0 %v2890
        %v3120 = vpop.f32.mrb[0].mxu0
        %v3121 = vadd.f32 0.0, %v3120
        %v3122 = vpop.f32.mrb[0].mxu0
        %v3123 = vpop.f32.mrb[0].mxu0
        %v3124 = vadd.f32 0.0, %v3123
        %v3125 = vpop.f32.mrb[0].mxu0
        %3126 = vmatprep.mubr.bf16.mxu0 0
        %3127 = vmatmul.mubr.bf16.gmra.mrb[0].mxu0 %v2896
        %v3128 = vpop.f32.mrb[0].mxu0
        %v3129 = vadd.f32 0.0, %v3128
        %v3130 = vpop.f32.mrb[0].mxu0
        %v3131 = vpop.f32.mrb[0].mxu0
        %v3132 = vadd.f32 0.0, %v3131
        %v3133 = vpop.f32.mrb[0].mxu0
        %3134 = vmatprep.mubr.bf16.mxu0 0
        %3135 = vmatmul.mubr.bf16.gmra.mrb[0].mxu0 %v2902
        %v3136 = vpop.f32.mrb[0].mxu0
        %v3137 = vadd.f32 0.0, %v3136
        %v3138 = vpop.f32.mrb[0].mxu0
        %v3139 = vpop.f32.mrb[0].mxu0
        %v3140 = vadd.f32 0.0, %v3139
        %v3141 = vpop.f32.mrb[0].mxu0
        %3142 = vmatprep.mubr.bf16.mxu0 0
        %3143 = vmatmul.mubr.bf16.gmra.mrb[0].mxu0 %v2908
        %v3144 = vpop.f32.mrb[0].mxu0
        %v3145 = vadd.f32 0.0, %v3144
        %v3146 = vpop.f32.mrb[0].mxu0
        %v3147 = vpop.f32.mrb[0].mxu0
        %v3148 = vadd.f32 0.0, %v3147
        %v3149 = vpop.f32.mrb[0].mxu0
        %3150 = vmatprep.mubr.bf16.mxu0 0
        %3151 = vmatmul.mubr.bf16.gmra.mrb[0].mxu0 %v2914
        %v3152 = vpop.f32.mrb[0].mxu0
        %v3153 = vadd.f32 0.0, %v3152
        %v3154 = vpop.f32.mrb[0].mxu0
        %v3155 = vpop.f32.mrb[0].mxu0
        %v3156 = vadd.f32 0.0, %v3155
        %v3157 = vpop.f32.mrb[0].mxu0
        %3158 = vmatprep.mubr.bf16.mxu0 0
        %3159 = vmatmul.mubr.bf16.gmra.mrb[0].mxu0 %v2920
        %v3160 = vpop.f32.mrb[0].mxu0
        %v3161 = vadd.f32 0.0, %v3160
        %v3162 = vpop.f32.mrb[0].mxu0
        %v3163 = vpop.f32.mrb[0].mxu0
        %v3164 = vadd.f32 0.0, %v3163
        %v3165 = vpop.f32.mrb[0].mxu0
        %3166 = vdwg.mxu0
        %v3167 = vlaneseq
        %v3168 = vand.u32 %v3167, 127
        %s3169 = sld [smem:[#allocation4]]
        %v3170 = vstv %s3169
        %vm3171 = vcmp.lt.s32.totalorder %v3168, %v3170
        %v3172 = vsel %vm3171, 1, 0
        %vm3173 = vcmp.eq.s32.totalorder %v3172, 1
        %v3174 = vsel %vm3173, %v3008, -1e+09
        %v3175 = vsel %vm3173, %v3011, -1e+09
        %v3176 = vsel %vm3173, %v3016, -1e+09
        %v3177 = vsel %vm3173, %v3019, -1e+09
        %v3178 = vsel %vm3173, %v3024, -1e+09
        %v3179 = vsel %vm3173, %v3027, -1e+09
        %v3180 = vsel %vm3173, %v3032, -1e+09
        %v3181 = vsel %vm3173, %v3035, -1e+09
        %v3182 = vsel %vm3173, %v3040, -1e+09
        %v3183 = vsel %vm3173, %v3043, -1e+09
        %v3184 = vsel %vm3173, %v3048, -1e+09
        %v3185 = vsel %vm3173, %v3051, -1e+09
        %v3186 = vsel %vm3173, %v3056, -1e+09
        %v3187 = vsel %vm3173, %v3059, -1e+09
        %v3188 = vsel %vm3173, %v3064, -1e+09
        %v3189 = vsel %vm3173, %v3067, -1e+09
        %v3190 = vsel %vm3173, %v3105, -1e+09
        %v3191 = vsel %vm3173, %v3108, -1e+09
        %v3192 = vsel %vm3173, %v3113, -1e+09
        %v3193 = vsel %vm3173, %v3116, -1e+09
        %v3194 = vsel %vm3173, %v3121, -1e+09
        %v3195 = vsel %vm3173, %v3124, -1e+09
        %v3196 = vsel %vm3173, %v3129, -1e+09
        %v3197 = vsel %vm3173, %v3132, -1e+09
        %v3198 = vsel %vm3173, %v3137, -1e+09
        %v3199 = vsel %vm3173, %v3140, -1e+09
        %v3200 = vsel %vm3173, %v3145, -1e+09
        %v3201 = vsel %vm3173, %v3148, -1e+09
        %v3202 = vsel %vm3173, %v3153, -1e+09
        %v3203 = vsel %vm3173, %v3156, -1e+09
        %v3204 = vsel %vm3173, %v3161, -1e+09
        %v3205 = vsel %vm3173, %v3164, -1e+09
        %3206 = vmax.xlane.f32.xlu0 %v3174
        %v3207 = vpop.xlane.xlu0 %3206
        %3208 = vmax.xlane.f32.xlu0 %v3175
        %v3209 = vpop.xlane.xlu0 %3208
        %3210 = vmax.xlane.f32.xlu0 %v3176
        %v3211 = vpop.xlane.xlu0 %3210
        %3212 = vmax.xlane.f32.xlu0 %v3177
        %v3213 = vpop.xlane.xlu0 %3212
        %3214 = vmax.xlane.f32.xlu0 %v3178
        %v3215 = vpop.xlane.xlu0 %3214
        %3216 = vmax.xlane.f32.xlu0 %v3179
        %v3217 = vpop.xlane.xlu0 %3216
        %3218 = vmax.xlane.f32.xlu0 %v3180
        %v3219 = vpop.xlane.xlu0 %3218
        %3220 = vmax.xlane.f32.xlu0 %v3181
        %v3221 = vpop.xlane.xlu0 %3220
        %3222 = vmax.xlane.f32.xlu0 %v3182
        %v3223 = vpop.xlane.xlu0 %3222
        %3224 = vmax.xlane.f32.xlu0 %v3183
        %v3225 = vpop.xlane.xlu0 %3224
        %3226 = vmax.xlane.f32.xlu0 %v3184
        %v3227 = vpop.xlane.xlu0 %3226
        %3228 = vmax.xlane.f32.xlu0 %v3185
        %v3229 = vpop.xlane.xlu0 %3228
        %3230 = vmax.xlane.f32.xlu0 %v3186
        %v3231 = vpop.xlane.xlu0 %3230
        %3232 = vmax.xlane.f32.xlu0 %v3187
        %v3233 = vpop.xlane.xlu0 %3232
        %3234 = vmax.xlane.f32.xlu0 %v3188
        %v3235 = vpop.xlane.xlu0 %3234
        %3236 = vmax.xlane.f32.xlu0 %v3189
        %v3237 = vpop.xlane.xlu0 %3236
        %3238 = vmax.xlane.f32.xlu0 %v3190
        %v3239 = vpop.xlane.xlu0 %3238
        %3240 = vmax.xlane.f32.xlu0 %v3191
        %v3241 = vpop.xlane.xlu0 %3240
        %3242 = vmax.xlane.f32.xlu0 %v3192
        %v3243 = vpop.xlane.xlu0 %3242
        %3244 = vmax.xlane.f32.xlu0 %v3193
        %v3245 = vpop.xlane.xlu0 %3244
        %3246 = vmax.xlane.f32.xlu0 %v3194
        %v3247 = vpop.xlane.xlu0 %3246
        %3248 = vmax.xlane.f32.xlu0 %v3195
        %v3249 = vpop.xlane.xlu0 %3248
        %3250 = vmax.xlane.f32.xlu0 %v3196
        %v3251 = vpop.xlane.xlu0 %3250
        %3252 = vmax.xlane.f32.xlu0 %v3197
        %v3253 = vpop.xlane.xlu0 %3252
        %3254 = vmax.xlane.f32.xlu0 %v3198
        %v3255 = vpop.xlane.xlu0 %3254
        %3256 = vmax.xlane.f32.xlu0 %v3199
        %v3257 = vpop.xlane.xlu0 %3256
        %3258 = vmax.xlane.f32.xlu0 %v3200
        %v3259 = vpop.xlane.xlu0 %3258
        %3260 = vmax.xlane.f32.xlu0 %v3201
        %v3261 = vpop.xlane.xlu0 %3260
        %3262 = vmax.xlane.f32.xlu0 %v3202
        %v3263 = vpop.xlane.xlu0 %3262
        %3264 = vmax.xlane.f32.xlu0 %v3203
        %v3265 = vpop.xlane.xlu0 %3264
        %3266 = vmax.xlane.f32.xlu0 %v3204
        %v3267 = vpop.xlane.xlu0 %3266
        %3268 = vmax.xlane.f32.xlu0 %v3205
        %v3269 = vpop.xlane.xlu0 %3268
        %v3270 = vsub.f32 %v3174, %v3207
        %v3271 = vsub.f32 %v3175, %v3209
        %v3272 = vsub.f32 %v3176, %v3211
        %v3273 = vsub.f32 %v3177, %v3213
        %v3274 = vsub.f32 %v3178, %v3215
        %v3275 = vsub.f32 %v3179, %v3217
        %v3276 = vsub.f32 %v3180, %v3219
        %v3277 = vsub.f32 %v3181, %v3221
        %v3278 = vsub.f32 %v3182, %v3223
        %v3279 = vsub.f32 %v3183, %v3225
        %v3280 = vsub.f32 %v3184, %v3227
        %v3281 = vsub.f32 %v3185, %v3229
        %v3282 = vsub.f32 %v3186, %v3231
        %v3283 = vsub.f32 %v3187, %v3233
        %v3284 = vsub.f32 %v3188, %v3235
        %v3285 = vsub.f32 %v3189, %v3237
        %v3286 = vsub.f32 %v3190, %v3239
        %v3287 = vsub.f32 %v3191, %v3241
        %v3288 = vsub.f32 %v3192, %v3243
        %v3289 = vsub.f32 %v3193, %v3245
        %v3290 = vsub.f32 %v3194, %v3247
        %v3291 = vsub.f32 %v3195, %v3249
        %v3292 = vsub.f32 %v3196, %v3251
        %v3293 = vsub.f32 %v3197, %v3253
        %v3294 = vsub.f32 %v3198, %v3255
        %v3295 = vsub.f32 %v3199, %v3257
        %v3296 = vsub.f32 %v3200, %v3259
        %v3297 = vsub.f32 %v3201, %v3261
        %v3298 = vsub.f32 %v3202, %v3263
        %v3299 = vsub.f32 %v3203, %v3265
        %v3300 = vsub.f32 %v3204, %v3267
        %v3301 = vsub.f32 %v3205, %v3269
        %v3302 = vmul.f32 %v3270, 1.442695
        %v3303 = vpow.pop %v3302
        %v3304 = vmul.f32 %v3271, 1.442695
        %v3305 = vpow.pop %v3304
        %v3306 = vmul.f32 %v3272, 1.442695
        %v3307 = vpow.pop %v3306
        %v3308 = vmul.f32 %v3273, 1.442695
        %v3309 = vpow.pop %v3308
        %v3310 = vmul.f32 %v3274, 1.442695
        %v3311 = vpow.pop %v3310
        %v3312 = vmul.f32 %v3275, 1.442695
        %v3313 = vpow.pop %v3312
        %v3314 = vmul.f32 %v3276, 1.442695
        %v3315 = vpow.pop %v3314
        %v3316 = vmul.f32 %v3277, 1.442695
        %v3317 = vpow.pop %v3316
        %v3318 = vmul.f32 %v3278, 1.442695
        %v3319 = vpow.pop %v3318
        %v3320 = vmul.f32 %v3279, 1.442695
        %v3321 = vpow.pop %v3320
        %v3322 = vmul.f32 %v3280, 1.442695
        %v3323 = vpow.pop %v3322
        %v3324 = vmul.f32 %v3281, 1.442695
        %v3325 = vpow.pop %v3324
        %v3326 = vmul.f32 %v3282, 1.442695
        %v3327 = vpow.pop %v3326
        %v3328 = vmul.f32 %v3283, 1.442695
        %v3329 = vpow.pop %v3328
        %v3330 = vmul.f32 %v3284, 1.442695
        %v3331 = vpow.pop %v3330
        %v3332 = vmul.f32 %v3285, 1.442695
        %v3333 = vpow.pop %v3332
        %v3334 = vmul.f32 %v3286, 1.442695
        %v3335 = vpow.pop %v3334
        %v3336 = vmul.f32 %v3287, 1.442695
        %v3337 = vpow.pop %v3336
        %v3338 = vmul.f32 %v3288, 1.442695
        %v3339 = vpow.pop %v3338
        %v3340 = vmul.f32 %v3289, 1.442695
        %v3341 = vpow.pop %v3340
        %v3342 = vmul.f32 %v3290, 1.442695
        %v3343 = vpow.pop %v3342
        %v3344 = vmul.f32 %v3291, 1.442695
        %v3345 = vpow.pop %v3344
        %v3346 = vmul.f32 %v3292, 1.442695
        %v3347 = vpow.pop %v3346
        %v3348 = vmul.f32 %v3293, 1.442695
        %v3349 = vpow.pop %v3348
        %v3350 = vmul.f32 %v3294, 1.442695
        %v3351 = vpow.pop %v3350
        %v3352 = vmul.f32 %v3295, 1.442695
        %v3353 = vpow.pop %v3352
        %v3354 = vmul.f32 %v3296, 1.442695
        %v3355 = vpow.pop %v3354
        %v3356 = vmul.f32 %v3297, 1.442695
        %v3357 = vpow.pop %v3356
        %v3358 = vmul.f32 %v3298, 1.442695
        %v3359 = vpow.pop %v3358
        %v3360 = vmul.f32 %v3299, 1.442695
        %v3361 = vpow.pop %v3360
        %v3362 = vmul.f32 %v3300, 1.442695
        %v3363 = vpow.pop %v3362
        %v3364 = vmul.f32 %v3301, 1.442695
        %v3365 = vpow.pop %v3364
        %3366 = vadd.xlane.f32.xlu0 %v3303
        %v3367 = vpop.xlane.xlu0 %3366
        %3368 = vadd.xlane.f32.xlu0 %v3305
        %v3369 = vpop.xlane.xlu0 %3368
        %3370 = vadd.xlane.f32.xlu0 %v3307
        %v3371 = vpop.xlane.xlu0 %3370
        %3372 = vadd.xlane.f32.xlu0 %v3309
        %v3373 = vpop.xlane.xlu0 %3372
        %3374 = vadd.xlane.f32.xlu0 %v3311
        %v3375 = vpop.xlane.xlu0 %3374
        %3376 = vadd.xlane.f32.xlu0 %v3313
        %v3377 = vpop.xlane.xlu0 %3376
        %3378 = vadd.xlane.f32.xlu0 %v3315
        %v3379 = vpop.xlane.xlu0 %3378
        %3380 = vadd.xlane.f32.xlu0 %v3317
        %v3381 = vpop.xlane.xlu0 %3380
        %3382 = vadd.xlane.f32.xlu0 %v3319
        %v3383 = vpop.xlane.xlu0 %3382
        %3384 = vadd.xlane.f32.xlu0 %v3321
        %v3385 = vpop.xlane.xlu0 %3384
        %3386 = vadd.xlane.f32.xlu0 %v3323
        %v3387 = vpop.xlane.xlu0 %3386
        %3388 = vadd.xlane.f32.xlu0 %v3325
        %v3389 = vpop.xlane.xlu0 %3388
        %3390 = vadd.xlane.f32.xlu0 %v3327
        %v3391 = vpop.xlane.xlu0 %3390
        %3392 = vadd.xlane.f32.xlu0 %v3329
        %v3393 = vpop.xlane.xlu0 %3392
        %3394 = vadd.xlane.f32.xlu0 %v3331
        %v3395 = vpop.xlane.xlu0 %3394
        %3396 = vadd.xlane.f32.xlu0 %v3333
        %v3397 = vpop.xlane.xlu0 %3396
        %3398 = vadd.xlane.f32.xlu0 %v3335
        %v3399 = vpop.xlane.xlu0 %3398
        %3400 = vadd.xlane.f32.xlu0 %v3337
        %v3401 = vpop.xlane.xlu0 %3400
        %3402 = vadd.xlane.f32.xlu0 %v3339
        %v3403 = vpop.xlane.xlu0 %3402
        %3404 = vadd.xlane.f32.xlu0 %v3341
        %v3405 = vpop.xlane.xlu0 %3404
        %3406 = vadd.xlane.f32.xlu0 %v3343
        %v3407 = vpop.xlane.xlu0 %3406
        %3408 = vadd.xlane.f32.xlu0 %v3345
        %v3409 = vpop.xlane.xlu0 %3408
        %3410 = vadd.xlane.f32.xlu0 %v3347
        %v3411 = vpop.xlane.xlu0 %3410
        %3412 = vadd.xlane.f32.xlu0 %v3349
        %v3413 = vpop.xlane.xlu0 %3412
        %3414 = vadd.xlane.f32.xlu0 %v3351
        %v3415 = vpop.xlane.xlu0 %3414
        %3416 = vadd.xlane.f32.xlu0 %v3353
        %v3417 = vpop.xlane.xlu0 %3416
        %3418 = vadd.xlane.f32.xlu0 %v3355
        %v3419 = vpop.xlane.xlu0 %3418
        %3420 = vadd.xlane.f32.xlu0 %v3357
        %v3421 = vpop.xlane.xlu0 %3420
        %3422 = vadd.xlane.f32.xlu0 %v3359
        %v3423 = vpop.xlane.xlu0 %3422
        %3424 = vadd.xlane.f32.xlu0 %v3361
        %v3425 = vpop.xlane.xlu0 %3424
        %3426 = vadd.xlane.f32.xlu0 %v3363
        %v3427 = vpop.xlane.xlu0 %3426
        %3428 = vadd.xlane.f32.xlu0 %v3365
        %v3429 = vpop.xlane.xlu0 %3428
        %v3430 = vpack.c.bf16 %v3305, %v3303
        %v3431 = vpack.c.bf16 %v3309, %v3307
        %v3432 = vpack.c.bf16 %v3313, %v3311
        %v3433 = vpack.c.bf16 %v3317, %v3315
        %v3434 = vpack.c.bf16 %v3321, %v3319
        %v3435 = vpack.c.bf16 %v3325, %v3323
        %v3436 = vpack.c.bf16 %v3329, %v3327
        %v3437 = vpack.c.bf16 %v3333, %v3331
        %v3438 = vpack.c.bf16 %v3337, %v3335
        %v3439 = vpack.c.bf16 %v3341, %v3339
        %v3440 = vpack.c.bf16 %v3345, %v3343
        %v3441 = vpack.c.bf16 %v3349, %v3347
        %v3442 = vpack.c.bf16 %v3353, %v3351
        %v3443 = vpack.c.bf16 %v3357, %v3355
        %v3444 = vpack.c.bf16 %v3361, %v3359
        %v3445 = vpack.c.bf16 %v3365, %v3363
        %3446 = vmatprep.subr.bf16.mxu0 0
        %3447 = vmatpush1.bf16.msra.mxu0 %v2881
        %3448 = vmatprep.subr.bf16.mxu0 0
        %3449 = vmatpush1.bf16.msra.mxu0 %v2887
        %3450 = vmatprep.subr.bf16.mxu0 0
        %3451 = vmatpush1.bf16.msra.mxu0 %v2893
        %3452 = vmatprep.subr.bf16.mxu0 0
        %3453 = vmatpush1.bf16.msra.mxu0 %v2899
        %3454 = vmatprep.subr.bf16.mxu0 0
        %3455 = vmatpush1.bf16.msra.mxu0 %v2905
        %3456 = vmatprep.subr.bf16.mxu0 0
        %3457 = vmatpush1.bf16.msra.mxu0 %v2911
        %3458 = vmatprep.subr.bf16.mxu0 0
        %3459 = vmatpush1.bf16.msra.mxu0 %v2917
        %3460 = vmatprep.subr.bf16.mxu0 0
        %3461 = vmatpush1.bf16.msra.mxu0 %v2923
        %3462 = vmatprep.subr.bf16.mxu0 0
        %3463 = vmatpush1.bf16.msra.mxu0 0
        %3464 = vmatprep.subr.bf16.mxu0 0
        %3465 = vmatpush1.bf16.msra.mxu0 0
        %3466 = vmatprep.subr.bf16.mxu0 0
        %3467 = vmatpush1.bf16.msra.mxu0 0
        %3468 = vmatprep.subr.bf16.mxu0 0
        %3469 = vmatpush1.bf16.msra.mxu0 0
        %3470 = vmatprep.subr.bf16.mxu0 0
        %3471 = vmatpush1.bf16.msra.mxu0 0
        %3472 = vmatprep.subr.bf16.mxu0 0
        %3473 = vmatpush1.bf16.msra.mxu0 0
        %3474 = vmatprep.subr.bf16.mxu0 0
        %3475 = vmatpush1.bf16.msra.mxu0 0
        %3476 = vmatprep.subr.bf16.mxu0 0
        %3477 = vmatpush1.bf16.msra.mxu0 0
        %3478 = vmatprep.mubr.bf16.mxu0 0
        %3479 = vmatmul.mubr.bf16.gmra.mrb[0].mxu0 %v3430
        %v3480 = vpop.f32.mrb[0].mxu0
        %v3481 = vadd.f32 0.0, %v3480
        %v3482 = vpop.f32.mrb[0].mxu0
        %v3483 = vpop.f32.mrb[0].mxu0
        %v3484 = vadd.f32 0.0, %v3483
        %v3485 = vpop.f32.mrb[0].mxu0
        %3486 = vmatprep.mubr.bf16.mxu0 0
        %3487 = vmatmul.mubr.bf16.gmra.mrb[0].mxu0 %v3431
        %v3488 = vpop.f32.mrb[0].mxu0
        %v3489 = vadd.f32 0.0, %v3488
        %v3490 = vpop.f32.mrb[0].mxu0
        %v3491 = vpop.f32.mrb[0].mxu0
        %v3492 = vadd.f32 0.0, %v3491
        %v3493 = vpop.f32.mrb[0].mxu0
        %3494 = vmatprep.mubr.bf16.mxu0 0
        %3495 = vmatmul.mubr.bf16.gmra.mrb[0].mxu0 %v3432
        %v3496 = vpop.f32.mrb[0].mxu0
        %v3497 = vadd.f32 0.0, %v3496
        %v3498 = vpop.f32.mrb[0].mxu0
        %v3499 = vpop.f32.mrb[0].mxu0
        %v3500 = vadd.f32 0.0, %v3499
        %v3501 = vpop.f32.mrb[0].mxu0
        %3502 = vmatprep.mubr.bf16.mxu0 0
        %3503 = vmatmul.mubr.bf16.gmra.mrb[0].mxu0 %v3433
        %v3504 = vpop.f32.mrb[0].mxu0
        %v3505 = vadd.f32 0.0, %v3504
        %v3506 = vpop.f32.mrb[0].mxu0
        %v3507 = vpop.f32.mrb[0].mxu0
        %v3508 = vadd.f32 0.0, %v3507
        %v3509 = vpop.f32.mrb[0].mxu0
        %3510 = vmatprep.mubr.bf16.mxu0 0
        %3511 = vmatmul.mubr.bf16.gmra.mrb[0].mxu0 %v3434
        %v3512 = vpop.f32.mrb[0].mxu0
        %v3513 = vadd.f32 0.0, %v3512
        %v3514 = vpop.f32.mrb[0].mxu0
        %v3515 = vpop.f32.mrb[0].mxu0
        %v3516 = vadd.f32 0.0, %v3515
        %v3517 = vpop.f32.mrb[0].mxu0
        %3518 = vmatprep.mubr.bf16.mxu0 0
        %3519 = vmatmul.mubr.bf16.gmra.mrb[0].mxu0 %v3435
        %v3520 = vpop.f32.mrb[0].mxu0
        %v3521 = vadd.f32 0.0, %v3520
        %v3522 = vpop.f32.mrb[0].mxu0
        %v3523 = vpop.f32.mrb[0].mxu0
        %v3524 = vadd.f32 0.0, %v3523
        %v3525 = vpop.f32.mrb[0].mxu0
        %3526 = vmatprep.mubr.bf16.mxu0 0
        %3527 = vmatmul.mubr.bf16.gmra.mrb[0].mxu0 %v3436
        %v3528 = vpop.f32.mrb[0].mxu0
        %v3529 = vadd.f32 0.0, %v3528
        %v3530 = vpop.f32.mrb[0].mxu0
        %v3531 = vpop.f32.mrb[0].mxu0
        %v3532 = vadd.f32 0.0, %v3531
        %v3533 = vpop.f32.mrb[0].mxu0
        %3534 = vmatprep.mubr.bf16.mxu0 0
        %3535 = vmatmul.mubr.bf16.gmra.mrb[0].mxu0 %v3437
        %v3536 = vpop.f32.mrb[0].mxu0
        %v3537 = vadd.f32 0.0, %v3536
        %v3538 = vpop.f32.mrb[0].mxu0
        %v3539 = vpop.f32.mrb[0].mxu0
        %v3540 = vadd.f32 0.0, %v3539
        %v3541 = vpop.f32.mrb[0].mxu0
        %3542 = vdwg.mxu0
        %3543 = vmatprep.subr.bf16.mxu0 0
        %3544 = vmatpush1.bf16.msra.mxu0 %v2882
        %3545 = vmatprep.subr.bf16.mxu0 0
        %3546 = vmatpush1.bf16.msra.mxu0 %v2888
        %3547 = vmatprep.subr.bf16.mxu0 0
        %3548 = vmatpush1.bf16.msra.mxu0 %v2894
        %3549 = vmatprep.subr.bf16.mxu0 0
        %3550 = vmatpush1.bf16.msra.mxu0 %v2900
        %3551 = vmatprep.subr.bf16.mxu0 0
        %3552 = vmatpush1.bf16.msra.mxu0 %v2906
        %3553 = vmatprep.subr.bf16.mxu0 0
        %3554 = vmatpush1.bf16.msra.mxu0 %v2912
        %3555 = vmatprep.subr.bf16.mxu0 0
        %3556 = vmatpush1.bf16.msra.mxu0 %v2918
        %3557 = vmatprep.subr.bf16.mxu0 0
        %3558 = vmatpush1.bf16.msra.mxu0 %v2924
        %3559 = vmatprep.subr.bf16.mxu0 0
        %3560 = vmatpush1.bf16.msra.mxu0 0
        %3561 = vmatprep.subr.bf16.mxu0 0
        %3562 = vmatpush1.bf16.msra.mxu0 0
        %3563 = vmatprep.subr.bf16.mxu0 0
        %3564 = vmatpush1.bf16.msra.mxu0 0
        %3565 = vmatprep.subr.bf16.mxu0 0
        %3566 = vmatpush1.bf16.msra.mxu0 0
        %3567 = vmatprep.subr.bf16.mxu0 0
        %3568 = vmatpush1.bf16.msra.mxu0 0
        %3569 = vmatprep.subr.bf16.mxu0 0
        %3570 = vmatpush1.bf16.msra.mxu0 0
        %3571 = vmatprep.subr.bf16.mxu0 0
        %3572 = vmatpush1.bf16.msra.mxu0 0
        %3573 = vmatprep.subr.bf16.mxu0 0
        %3574 = vmatpush1.bf16.msra.mxu0 0
        %3575 = vmatprep.mubr.bf16.mxu0 0
        %3576 = vmatmul.mubr.bf16.gmra.mrb[0].mxu0 %v3438
        %v3577 = vpop.f32.mrb[0].mxu0
        %v3578 = vadd.f32 0.0, %v3577
        %v3579 = vpop.f32.mrb[0].mxu0
        %v3580 = vpop.f32.mrb[0].mxu0
        %v3581 = vadd.f32 0.0, %v3580
        %v3582 = vpop.f32.mrb[0].mxu0
        %3583 = vmatprep.mubr.bf16.mxu0 0
        %3584 = vmatmul.mubr.bf16.gmra.mrb[0].mxu0 %v3439
        %v3585 = vpop.f32.mrb[0].mxu0
        %v3586 = vadd.f32 0.0, %v3585
        %v3587 = vpop.f32.mrb[0].mxu0
        %v3588 = vpop.f32.mrb[0].mxu0
        %v3589 = vadd.f32 0.0, %v3588
        %v3590 = vpop.f32.mrb[0].mxu0
        %3591 = vmatprep.mubr.bf16.mxu0 0
        %3592 = vmatmul.mubr.bf16.gmra.mrb[0].mxu0 %v3440
        %v3593 = vpop.f32.mrb[0].mxu0
        %v3594 = vadd.f32 0.0, %v3593
        %v3595 = vpop.f32.mrb[0].mxu0
        %v3596 = vpop.f32.mrb[0].mxu0
        %v3597 = vadd.f32 0.0, %v3596
        %v3598 = vpop.f32.mrb[0].mxu0
        %3599 = vmatprep.mubr.bf16.mxu0 0
        %3600 = vmatmul.mubr.bf16.gmra.mrb[0].mxu0 %v3441
        %v3601 = vpop.f32.mrb[0].mxu0
        %v3602 = vadd.f32 0.0, %v3601
        %v3603 = vpop.f32.mrb[0].mxu0
        %v3604 = vpop.f32.mrb[0].mxu0
        %v3605 = vadd.f32 0.0, %v3604
        %v3606 = vpop.f32.mrb[0].mxu0
        %3607 = vmatprep.mubr.bf16.mxu0 0
        %3608 = vmatmul.mubr.bf16.gmra.mrb[0].mxu0 %v3442
        %v3609 = vpop.f32.mrb[0].mxu0
        %v3610 = vadd.f32 0.0, %v3609
        %v3611 = vpop.f32.mrb[0].mxu0
        %v3612 = vpop.f32.mrb[0].mxu0
        %v3613 = vadd.f32 0.0, %v3612
        %v3614 = vpop.f32.mrb[0].mxu0
        %3615 = vmatprep.mubr.bf16.mxu0 0
        %3616 = vmatmul.mubr.bf16.gmra.mrb[0].mxu0 %v3443
        %v3617 = vpop.f32.mrb[0].mxu0
        %v3618 = vadd.f32 0.0, %v3617
        %v3619 = vpop.f32.mrb[0].mxu0
        %v3620 = vpop.f32.mrb[0].mxu0
        %v3621 = vadd.f32 0.0, %v3620
        %v3622 = vpop.f32.mrb[0].mxu0
        %3623 = vmatprep.mubr.bf16.mxu0 0
        %3624 = vmatmul.mubr.bf16.gmra.mrb[0].mxu0 %v3444
        %v3625 = vpop.f32.mrb[0].mxu0
        %v3626 = vadd.f32 0.0, %v3625
        %v3627 = vpop.f32.mrb[0].mxu0
        %v3628 = vpop.f32.mrb[0].mxu0
        %v3629 = vadd.f32 0.0, %v3628
        %v3630 = vpop.f32.mrb[0].mxu0
        %3631 = vmatprep.mubr.bf16.mxu0 0
        %3632 = vmatmul.mubr.bf16.gmra.mrb[0].mxu0 %v3445
        %v3633 = vpop.f32.mrb[0].mxu0
        %v3634 = vadd.f32 0.0, %v3633
        %v3635 = vpop.f32.mrb[0].mxu0
        %v3636 = vpop.f32.mrb[0].mxu0
        %v3637 = vadd.f32 0.0, %v3636
        %v3638 = vpop.f32.mrb[0].mxu0
        %3639 = vdwg.mxu0
        %v3640 = vrcp.pop %v3367
        %v3641 = vrcp.pop %v3369
        %v3642 = vrcp.pop %v3371
        %v3643 = vrcp.pop %v3373
        %v3644 = vrcp.pop %v3375
        %v3645 = vrcp.pop %v3377
        %v3646 = vrcp.pop %v3379
        %v3647 = vrcp.pop %v3381
        %v3648 = vrcp.pop %v3383
        %v3649 = vrcp.pop %v3385
        %v3650 = vrcp.pop %v3387
        %v3651 = vrcp.pop %v3389
        %v3652 = vrcp.pop %v3391
        %v3653 = vrcp.pop %v3393
        %v3654 = vrcp.pop %v3395
        %v3655 = vrcp.pop %v3397
        %v3656 = vrcp.pop %v3399
        %v3657 = vrcp.pop %v3401
        %v3658 = vrcp.pop %v3403
        %v3659 = vrcp.pop %v3405
        %v3660 = vrcp.pop %v3407
        %v3661 = vrcp.pop %v3409
        %v3662 = vrcp.pop %v3411
        %v3663 = vrcp.pop %v3413
        %v3664 = vrcp.pop %v3415
        %v3665 = vrcp.pop %v3417
        %v3666 = vrcp.pop %v3419
        %v3667 = vrcp.pop %v3421
        %v3668 = vrcp.pop %v3423
        %v3669 = vrcp.pop %v3425
        %v3670 = vrcp.pop %v3427
        %v3671 = vrcp.pop %v3429
        %v3672 = vmul.f32 %v3481, %v3640
        %v3673 = vmul.f32 %v3484, %v3641
        %v3674 = vmul.f32 %v3489, %v3642
        %v3675 = vmul.f32 %v3492, %v3643
        %v3676 = vmul.f32 %v3497, %v3644
        %v3677 = vmul.f32 %v3500, %v3645
        %v3678 = vmul.f32 %v3505, %v3646
        %v3679 = vmul.f32 %v3508, %v3647
        %v3680 = vmul.f32 %v3513, %v3648
        %v3681 = vmul.f32 %v3516, %v3649
        %v3682 = vmul.f32 %v3521, %v3650
        %v3683 = vmul.f32 %v3524, %v3651
        %v3684 = vmul.f32 %v3529, %v3652
        %v3685 = vmul.f32 %v3532, %v3653
        %v3686 = vmul.f32 %v3537, %v3654
        %v3687 = vmul.f32 %v3540, %v3655
        %v3688 = vmul.f32 %v3578, %v3656
        %v3689 = vmul.f32 %v3581, %v3657
        %v3690 = vmul.f32 %v3586, %v3658
        %v3691 = vmul.f32 %v3589, %v3659
        %v3692 = vmul.f32 %v3594, %v3660
        %v3693 = vmul.f32 %v3597, %v3661
        %v3694 = vmul.f32 %v3602, %v3662
        %v3695 = vmul.f32 %v3605, %v3663
        %v3696 = vmul.f32 %v3610, %v3664
        %v3697 = vmul.f32 %v3613, %v3665
        %v3698 = vmul.f32 %v3618, %v3666
        %v3699 = vmul.f32 %v3621, %v3667
        %v3700 = vmul.f32 %v3626, %v3668
        %v3701 = vmul.f32 %v3629, %v3669
        %v3702 = vmul.f32 %v3634, %v3670
        %v3703 = vmul.f32 %v3637, %v3671
        %3704 = vmatprep.subr.bf16.mxu0 0
        %3705 = vmatpush1.bf16.xpose.msra.mxu0 %v2927
        %3706 = vmatprep.subr.bf16.mxu0 0
        %3707 = vmatpush1.bf16.xpose.msra.mxu0 %v2933
        %3708 = vmatprep.subr.bf16.mxu0 0
        %3709 = vmatpush1.bf16.xpose.msra.mxu0 %v2939
        %3710 = vmatprep.subr.bf16.mxu0 0
        %3711 = vmatpush1.bf16.xpose.msra.mxu0 %v2945
        %3712 = vmatprep.subr.bf16.mxu0 0
        %3713 = vmatpush1.bf16.xpose.msra.mxu0 %v2951
        %3714 = vmatprep.subr.bf16.mxu0 0
        %3715 = vmatpush1.bf16.xpose.msra.mxu0 %v2957
        %3716 = vmatprep.subr.bf16.mxu0 0
        %3717 = vmatpush1.bf16.xpose.msra.mxu0 %v2963
        %3718 = vmatprep.subr.bf16.mxu0 0
        %3719 = vmatpush1.bf16.xpose.msra.mxu0 %v2969
        %3720 = vmatprep.subr.bf16.mxu0 0
        %3721 = vmatpush1.bf16.xpose.msra.mxu0 0
        %3722 = vmatprep.subr.bf16.mxu0 0
        %3723 = vmatpush1.bf16.xpose.msra.mxu0 0
        %3724 = vmatprep.subr.bf16.mxu0 0
        %3725 = vmatpush1.bf16.xpose.msra.mxu0 0
        %3726 = vmatprep.subr.bf16.mxu0 0
        %3727 = vmatpush1.bf16.xpose.msra.mxu0 0
        %3728 = vmatprep.subr.bf16.mxu0 0
        %3729 = vmatpush1.bf16.xpose.msra.mxu0 0
        %3730 = vmatprep.subr.bf16.mxu0 0
        %3731 = vmatpush1.bf16.xpose.msra.mxu0 0
        %3732 = vmatprep.subr.bf16.mxu0 0
        %3733 = vmatpush1.bf16.xpose.msra.mxu0 0
        %3734 = vmatprep.subr.bf16.mxu0 0
        %3735 = vmatpush1.bf16.xpose.msra.mxu0 0
        %3736 = vmatprep.mubr.bf16.mxu0 0
        %3737 = vmatmul.mubr.bf16.gmra.mrb[0].mxu0 %v2925
        %v3738 = vpop.f32.mrb[0].mxu0
        %v3739 = vadd.f32 0.0, %v3738
        %v3740 = vpop.f32.mrb[0].mxu0
        %v3741 = vpop.f32.mrb[0].mxu0
        %v3742 = vadd.f32 0.0, %v3741
        %v3743 = vpop.f32.mrb[0].mxu0
        %3744 = vmatprep.mubr.bf16.mxu0 0
        %3745 = vmatmul.mubr.bf16.gmra.mrb[0].mxu0 %v2931
        %v3746 = vpop.f32.mrb[0].mxu0
        %v3747 = vadd.f32 0.0, %v3746
        %v3748 = vpop.f32.mrb[0].mxu0
        %v3749 = vpop.f32.mrb[0].mxu0
        %v3750 = vadd.f32 0.0, %v3749
        %v3751 = vpop.f32.mrb[0].mxu0
        %3752 = vmatprep.mubr.bf16.mxu0 0
        %3753 = vmatmul.mubr.bf16.gmra.mrb[0].mxu0 %v2937
        %v3754 = vpop.f32.mrb[0].mxu0
        %v3755 = vadd.f32 0.0, %v3754
        %v3756 = vpop.f32.mrb[0].mxu0
        %v3757 = vpop.f32.mrb[0].mxu0
        %v3758 = vadd.f32 0.0, %v3757
        %v3759 = vpop.f32.mrb[0].mxu0
        %3760 = vmatprep.mubr.bf16.mxu0 0
        %3761 = vmatmul.mubr.bf16.gmra.mrb[0].mxu0 %v2943
        %v3762 = vpop.f32.mrb[0].mxu0
        %v3763 = vadd.f32 0.0, %v3762
        %v3764 = vpop.f32.mrb[0].mxu0
        %v3765 = vpop.f32.mrb[0].mxu0
        %v3766 = vadd.f32 0.0, %v3765
        %v3767 = vpop.f32.mrb[0].mxu0
        %3768 = vmatprep.mubr.bf16.mxu0 0
        %3769 = vmatmul.mubr.bf16.gmra.mrb[0].mxu0 %v2949
        %v3770 = vpop.f32.mrb[0].mxu0
        %v3771 = vadd.f32 0.0, %v3770
        %v3772 = vpop.f32.mrb[0].mxu0
        %v3773 = vpop.f32.mrb[0].mxu0
        %v3774 = vadd.f32 0.0, %v3773
        %v3775 = vpop.f32.mrb[0].mxu0
        %3776 = vmatprep.mubr.bf16.mxu0 0
        %3777 = vmatmul.mubr.bf16.gmra.mrb[0].mxu0 %v2955
        %v3778 = vpop.f32.mrb[0].mxu0
        %v3779 = vadd.f32 0.0, %v3778
        %v3780 = vpop.f32.mrb[0].mxu0
        %v3781 = vpop.f32.mrb[0].mxu0
        %v3782 = vadd.f32 0.0, %v3781
        %v3783 = vpop.f32.mrb[0].mxu0
        %3784 = vmatprep.mubr.bf16.mxu0 0
        %3785 = vmatmul.mubr.bf16.gmra.mrb[0].mxu0 %v2961
        %v3786 = vpop.f32.mrb[0].mxu0
        %v3787 = vadd.f32 0.0, %v3786
        %v3788 = vpop.f32.mrb[0].mxu0
        %v3789 = vpop.f32.mrb[0].mxu0
        %v3790 = vadd.f32 0.0, %v3789
        %v3791 = vpop.f32.mrb[0].mxu0
        %3792 = vmatprep.mubr.bf16.mxu0 0
        %3793 = vmatmul.mubr.bf16.gmra.mrb[0].mxu0 %v2967
        %v3794 = vpop.f32.mrb[0].mxu0
        %v3795 = vadd.f32 0.0, %v3794
        %v3796 = vpop.f32.mrb[0].mxu0
        %v3797 = vpop.f32.mrb[0].mxu0
        %v3798 = vadd.f32 0.0, %v3797
        %v3799 = vpop.f32.mrb[0].mxu0
        %3800 = vdwg.mxu0
        %3801 = vmatprep.subr.bf16.mxu0 0
        %3802 = vmatpush1.bf16.xpose.msra.mxu0 %v2928
        %3803 = vmatprep.subr.bf16.mxu0 0
        %3804 = vmatpush1.bf16.xpose.msra.mxu0 %v2934
        %3805 = vmatprep.subr.bf16.mxu0 0
        %3806 = vmatpush1.bf16.xpose.msra.mxu0 %v2940
        %3807 = vmatprep.subr.bf16.mxu0 0
        %3808 = vmatpush1.bf16.xpose.msra.mxu0 %v2946
        %3809 = vmatprep.subr.bf16.mxu0 0
        %3810 = vmatpush1.bf16.xpose.msra.mxu0 %v2952
        %3811 = vmatprep.subr.bf16.mxu0 0
        %3812 = vmatpush1.bf16.xpose.msra.mxu0 %v2958
        %3813 = vmatprep.subr.bf16.mxu0 0
        %3814 = vmatpush1.bf16.xpose.msra.mxu0 %v2964
        %3815 = vmatprep.subr.bf16.mxu0 0
        %3816 = vmatpush1.bf16.xpose.msra.mxu0 %v2970
        %3817 = vmatprep.subr.bf16.mxu0 0
        %3818 = vmatpush1.bf16.xpose.msra.mxu0 0
        %3819 = vmatprep.subr.bf16.mxu0 0
        %3820 = vmatpush1.bf16.xpose.msra.mxu0 0
        %3821 = vmatprep.subr.bf16.mxu0 0
        %3822 = vmatpush1.bf16.xpose.msra.mxu0 0
        %3823 = vmatprep.subr.bf16.mxu0 0
        %3824 = vmatpush1.bf16.xpose.msra.mxu0 0
        %3825 = vmatprep.subr.bf16.mxu0 0
        %3826 = vmatpush1.bf16.xpose.msra.mxu0 0
        %3827 = vmatprep.subr.bf16.mxu0 0
        %3828 = vmatpush1.bf16.xpose.msra.mxu0 0
        %3829 = vmatprep.subr.bf16.mxu0 0
        %3830 = vmatpush1.bf16.xpose.msra.mxu0 0
        %3831 = vmatprep.subr.bf16.mxu0 0
        %3832 = vmatpush1.bf16.xpose.msra.mxu0 0
        %3833 = vmatprep.mubr.bf16.mxu0 0
        %3834 = vmatmul.mubr.bf16.gmra.mrb[0].mxu0 %v2926
        %v3835 = vpop.f32.mrb[0].mxu0
        %v3836 = vadd.f32 0.0, %v3835
        %v3837 = vpop.f32.mrb[0].mxu0
        %v3838 = vpop.f32.mrb[0].mxu0
        %v3839 = vadd.f32 0.0, %v3838
        %v3840 = vpop.f32.mrb[0].mxu0
        %3841 = vmatprep.mubr.bf16.mxu0 0
        %3842 = vmatmul.mubr.bf16.gmra.mrb[0].mxu0 %v2932
        %v3843 = vpop.f32.mrb[0].mxu0
        %v3844 = vadd.f32 0.0, %v3843
        %v3845 = vpop.f32.mrb[0].mxu0
        %v3846 = vpop.f32.mrb[0].mxu0
        %v3847 = vadd.f32 0.0, %v3846
        %v3848 = vpop.f32.mrb[0].mxu0
        %3849 = vmatprep.mubr.bf16.mxu0 0
        %3850 = vmatmul.mubr.bf16.gmra.mrb[0].mxu0 %v2938
        %v3851 = vpop.f32.mrb[0].mxu0
        %v3852 = vadd.f32 0.0, %v3851
        %v3853 = vpop.f32.mrb[0].mxu0
        %v3854 = vpop.f32.mrb[0].mxu0
        %v3855 = vadd.f32 0.0, %v3854
        %v3856 = vpop.f32.mrb[0].mxu0
        %3857 = vmatprep.mubr.bf16.mxu0 0
        %3858 = vmatmul.mubr.bf16.gmra.mrb[0].mxu0 %v2944
        %v3859 = vpop.f32.mrb[0].mxu0
        %v3860 = vadd.f32 0.0, %v3859
        %v3861 = vpop.f32.mrb[0].mxu0
        %v3862 = vpop.f32.mrb[0].mxu0
        %v3863 = vadd.f32 0.0, %v3862
        %v3864 = vpop.f32.mrb[0].mxu0
        %3865 = vmatprep.mubr.bf16.mxu0 0
        %3866 = vmatmul.mubr.bf16.gmra.mrb[0].mxu0 %v2950
        %v3867 = vpop.f32.mrb[0].mxu0
        %v3868 = vadd.f32 0.0, %v3867
        %v3869 = vpop.f32.mrb[0].mxu0
        %v3870 = vpop.f32.mrb[0].mxu0
        %v3871 = vadd.f32 0.0, %v3870
        %v3872 = vpop.f32.mrb[0].mxu0
        %3873 = vmatprep.mubr.bf16.mxu0 0
        %3874 = vmatmul.mubr.bf16.gmra.mrb[0].mxu0 %v2956
        %v3875 = vpop.f32.mrb[0].mxu0
        %v3876 = vadd.f32 0.0, %v3875
        %v3877 = vpop.f32.mrb[0].mxu0
        %v3878 = vpop.f32.mrb[0].mxu0
        %v3879 = vadd.f32 0.0, %v3878
        %v3880 = vpop.f32.mrb[0].mxu0
        %3881 = vmatprep.mubr.bf16.mxu0 0
        %3882 = vmatmul.mubr.bf16.gmra.mrb[0].mxu0 %v2962
        %v3883 = vpop.f32.mrb[0].mxu0
        %v3884 = vadd.f32 0.0, %v3883
        %v3885 = vpop.f32.mrb[0].mxu0
        %v3886 = vpop.f32.mrb[0].mxu0
        %v3887 = vadd.f32 0.0, %v3886
        %v3888 = vpop.f32.mrb[0].mxu0
        %3889 = vmatprep.mubr.bf16.mxu0 0
        %3890 = vmatmul.mubr.bf16.gmra.mrb[0].mxu0 %v2968
        %v3891 = vpop.f32.mrb[0].mxu0
        %v3892 = vadd.f32 0.0, %v3891
        %v3893 = vpop.f32.mrb[0].mxu0
        %v3894 = vpop.f32.mrb[0].mxu0
        %v3895 = vadd.f32 0.0, %v3894
        %v3896 = vpop.f32.mrb[0].mxu0
        %3897 = vdwg.mxu0
        %s3898 = sld [smem:[#allocation4 + $0x1]]
        %v3899 = vstv %s3898
        %vm3900 = vcmp.lt.s32.totalorder %v3168, %v3899
        %v3901 = vsel %vm3900, 1, 0
        %vm3902 = vcmp.eq.s32.totalorder %v3901, 1
        %v3903 = vsel %vm3902, %v3739, -1e+09
        %v3904 = vsel %vm3902, %v3742, -1e+09
        %v3905 = vsel %vm3902, %v3747, -1e+09
        %v3906 = vsel %vm3902, %v3750, -1e+09
        %v3907 = vsel %vm3902, %v3755, -1e+09
        %v3908 = vsel %vm3902, %v3758, -1e+09
        %v3909 = vsel %vm3902, %v3763, -1e+09
        %v3910 = vsel %vm3902, %v3766, -1e+09
        %v3911 = vsel %vm3902, %v3771, -1e+09
        %v3912 = vsel %vm3902, %v3774, -1e+09
        %v3913 = vsel %vm3902, %v3779, -1e+09
        %v3914 = vsel %vm3902, %v3782, -1e+09
        %v3915 = vsel %vm3902, %v3787, -1e+09
        %v3916 = vsel %vm3902, %v3790, -1e+09
        %v3917 = vsel %vm3902, %v3795, -1e+09
        %v3918 = vsel %vm3902, %v3798, -1e+09
        %v3919 = vsel %vm3902, %v3836, -1e+09
        %v3920 = vsel %vm3902, %v3839, -1e+09
        %v3921 = vsel %vm3902, %v3844, -1e+09
        %v3922 = vsel %vm3902, %v3847, -1e+09
        %v3923 = vsel %vm3902, %v3852, -1e+09
        %v3924 = vsel %vm3902, %v3855, -1e+09
        %v3925 = vsel %vm3902, %v3860, -1e+09
        %v3926 = vsel %vm3902, %v3863, -1e+09
        %v3927 = vsel %vm3902, %v3868, -1e+09
        %v3928 = vsel %vm3902, %v3871, -1e+09
        %v3929 = vsel %vm3902, %v3876, -1e+09
        %v3930 = vsel %vm3902, %v3879, -1e+09
        %v3931 = vsel %vm3902, %v3884, -1e+09
        %v3932 = vsel %vm3902, %v3887, -1e+09
        %v3933 = vsel %vm3902, %v3892, -1e+09
        %v3934 = vsel %vm3902, %v3895, -1e+09
        %3935 = vmax.xlane.f32.xlu0 %v3903
        %v3936 = vpop.xlane.xlu0 %3935
        %3937 = vmax.xlane.f32.xlu0 %v3904
        %v3938 = vpop.xlane.xlu0 %3937
        %3939 = vmax.xlane.f32.xlu0 %v3905
        %v3940 = vpop.xlane.xlu0 %3939
        %3941 = vmax.xlane.f32.xlu0 %v3906
        %v3942 = vpop.xlane.xlu0 %3941
        %3943 = vmax.xlane.f32.xlu0 %v3907
        %v3944 = vpop.xlane.xlu0 %3943
        %3945 = vmax.xlane.f32.xlu0 %v3908
        %v3946 = vpop.xlane.xlu0 %3945
        %3947 = vmax.xlane.f32.xlu0 %v3909
        %v3948 = vpop.xlane.xlu0 %3947
        %3949 = vmax.xlane.f32.xlu0 %v3910
        %v3950 = vpop.xlane.xlu0 %3949
        %3951 = vmax.xlane.f32.xlu0 %v3911
        %v3952 = vpop.xlane.xlu0 %3951
        %3953 = vmax.xlane.f32.xlu0 %v3912
        %v3954 = vpop.xlane.xlu0 %3953
        %3955 = vmax.xlane.f32.xlu0 %v3913
        %v3956 = vpop.xlane.xlu0 %3955
        %3957 = vmax.xlane.f32.xlu0 %v3914
        %v3958 = vpop.xlane.xlu0 %3957
        %3959 = vmax.xlane.f32.xlu0 %v3915
        %v3960 = vpop.xlane.xlu0 %3959
        %3961 = vmax.xlane.f32.xlu0 %v3916
        %v3962 = vpop.xlane.xlu0 %3961
        %3963 = vmax.xlane.f32.xlu0 %v3917
        %v3964 = vpop.xlane.xlu0 %3963
        %3965 = vmax.xlane.f32.xlu0 %v3918
        %v3966 = vpop.xlane.xlu0 %3965
        %3967 = vmax.xlane.f32.xlu0 %v3919
        %v3968 = vpop.xlane.xlu0 %3967
        %3969 = vmax.xlane.f32.xlu0 %v3920
        %v3970 = vpop.xlane.xlu0 %3969
        %3971 = vmax.xlane.f32.xlu0 %v3921
        %v3972 = vpop.xlane.xlu0 %3971
        %3973 = vmax.xlane.f32.xlu0 %v3922
        %v3974 = vpop.xlane.xlu0 %3973
        %3975 = vmax.xlane.f32.xlu0 %v3923
        %v3976 = vpop.xlane.xlu0 %3975
        %3977 = vmax.xlane.f32.xlu0 %v3924
        %v3978 = vpop.xlane.xlu0 %3977
        %3979 = vmax.xlane.f32.xlu0 %v3925
        %v3980 = vpop.xlane.xlu0 %3979
        %3981 = vmax.xlane.f32.xlu0 %v3926
        %v3982 = vpop.xlane.xlu0 %3981
        %3983 = vmax.xlane.f32.xlu0 %v3927
        %v3984 = vpop.xlane.xlu0 %3983
        %3985 = vmax.xlane.f32.xlu0 %v3928
        %v3986 = vpop.xlane.xlu0 %3985
        %3987 = vmax.xlane.f32.xlu0 %v3929
        %v3988 = vpop.xlane.xlu0 %3987
        %3989 = vmax.xlane.f32.xlu0 %v3930
        %v3990 = vpop.xlane.xlu0 %3989
        %3991 = vmax.xlane.f32.xlu0 %v3931
        %v3992 = vpop.xlane.xlu0 %3991
        %3993 = vmax.xlane.f32.xlu0 %v3932
        %v3994 = vpop.xlane.xlu0 %3993
        %3995 = vmax.xlane.f32.xlu0 %v3933
        %v3996 = vpop.xlane.xlu0 %3995
        %3997 = vmax.xlane.f32.xlu0 %v3934
        %v3998 = vpop.xlane.xlu0 %3997
        %v3999 = vsub.f32 %v3903, %v3936
        %v4000 = vsub.f32 %v3904, %v3938
        %v4001 = vsub.f32 %v3905, %v3940
        %v4002 = vsub.f32 %v3906, %v3942
        %v4003 = vsub.f32 %v3907, %v3944
        %v4004 = vsub.f32 %v3908, %v3946
        %v4005 = vsub.f32 %v3909, %v3948
        %v4006 = vsub.f32 %v3910, %v3950
        %v4007 = vsub.f32 %v3911, %v3952
        %v4008 = vsub.f32 %v3912, %v3954
        %v4009 = vsub.f32 %v3913, %v3956
        %v4010 = vsub.f32 %v3914, %v3958
        %v4011 = vsub.f32 %v3915, %v3960
        %v4012 = vsub.f32 %v3916, %v3962
        %v4013 = vsub.f32 %v3917, %v3964
        %v4014 = vsub.f32 %v3918, %v3966
        %v4015 = vsub.f32 %v3919, %v3968
        %v4016 = vsub.f32 %v3920, %v3970
        %v4017 = vsub.f32 %v3921, %v3972
        %v4018 = vsub.f32 %v3922, %v3974
        %v4019 = vsub.f32 %v3923, %v3976
        %v4020 = vsub.f32 %v3924, %v3978
        %v4021 = vsub.f32 %v3925, %v3980
        %v4022 = vsub.f32 %v3926, %v3982
        %v4023 = vsub.f32 %v3927, %v3984
        %v4024 = vsub.f32 %v3928, %v3986
        %v4025 = vsub.f32 %v3929, %v3988
        %v4026 = vsub.f32 %v3930, %v3990
        %v4027 = vsub.f32 %v3931, %v3992
        %v4028 = vsub.f32 %v3932, %v3994
        %v4029 = vsub.f32 %v3933, %v3996
        %v4030 = vsub.f32 %v3934, %v3998
        %v4031 = vmul.f32 %v3999, 1.442695
        %v4032 = vpow.pop %v4031
        %v4033 = vmul.f32 %v4000, 1.442695
        %v4034 = vpow.pop %v4033
        %v4035 = vmul.f32 %v4001, 1.442695
        %v4036 = vpow.pop %v4035
        %v4037 = vmul.f32 %v4002, 1.442695
        %v4038 = vpow.pop %v4037
        %v4039 = vmul.f32 %v4003, 1.442695
        %v4040 = vpow.pop %v4039
        %v4041 = vmul.f32 %v4004, 1.442695
        %v4042 = vpow.pop %v4041
        %v4043 = vmul.f32 %v4005, 1.442695
        %v4044 = vpow.pop %v4043
        %v4045 = vmul.f32 %v4006, 1.442695
        %v4046 = vpow.pop %v4045
        %v4047 = vmul.f32 %v4007, 1.442695
        %v4048 = vpow.pop %v4047
        %v4049 = vmul.f32 %v4008, 1.442695
        %v4050 = vpow.pop %v4049
        %v4051 = vmul.f32 %v4009, 1.442695
        %v4052 = vpow.pop %v4051
        %v4053 = vmul.f32 %v4010, 1.442695
        %v4054 = vpow.pop %v4053
        %v4055 = vmul.f32 %v4011, 1.442695
        %v4056 = vpow.pop %v4055
        %v4057 = vmul.f32 %v4012, 1.442695
        %v4058 = vpow.pop %v4057
        %v4059 = vmul.f32 %v4013, 1.442695
        %v4060 = vpow.pop %v4059
        %v4061 = vmul.f32 %v4014, 1.442695
        %v4062 = vpow.pop %v4061
        %v4063 = vmul.f32 %v4015, 1.442695
        %v4064 = vpow.pop %v4063
        %v4065 = vmul.f32 %v4016, 1.442695
        %v4066 = vpow.pop %v4065
        %v4067 = vmul.f32 %v4017, 1.442695
        %v4068 = vpow.pop %v4067
        %v4069 = vmul.f32 %v4018, 1.442695
        %v4070 = vpow.pop %v4069
        %v4071 = vmul.f32 %v4019, 1.442695
        %v4072 = vpow.pop %v4071
        %v4073 = vmul.f32 %v4020, 1.442695
        %v4074 = vpow.pop %v4073
        %v4075 = vmul.f32 %v4021, 1.442695
        %v4076 = vpow.pop %v4075
        %v4077 = vmul.f32 %v4022, 1.442695
        %v4078 = vpow.pop %v4077
        %v4079 = vmul.f32 %v4023, 1.442695
        %v4080 = vpow.pop %v4079
        %v4081 = vmul.f32 %v4024, 1.442695
        %v4082 = vpow.pop %v4081
        %v4083 = vmul.f32 %v4025, 1.442695
        %v4084 = vpow.pop %v4083
        %v4085 = vmul.f32 %v4026, 1.442695
        %v4086 = vpow.pop %v4085
        %v4087 = vmul.f32 %v4027, 1.442695
        %v4088 = vpow.pop %v4087
        %v4089 = vmul.f32 %v4028, 1.442695
        %v4090 = vpow.pop %v4089
        %v4091 = vmul.f32 %v4029, 1.442695
        %v4092 = vpow.pop %v4091
        %v4093 = vmul.f32 %v4030, 1.442695
        %v4094 = vpow.pop %v4093
        %4095 = vadd.xlane.f32.xlu0 %v4032
        %v4096 = vpop.xlane.xlu0 %4095
        %4097 = vadd.xlane.f32.xlu0 %v4034
        %v4098 = vpop.xlane.xlu0 %4097
        %4099 = vadd.xlane.f32.xlu0 %v4036
        %v4100 = vpop.xlane.xlu0 %4099
        %4101 = vadd.xlane.f32.xlu0 %v4038
        %v4102 = vpop.xlane.xlu0 %4101
        %4103 = vadd.xlane.f32.xlu0 %v4040
        %v4104 = vpop.xlane.xlu0 %4103
        %4105 = vadd.xlane.f32.xlu0 %v4042
        %v4106 = vpop.xlane.xlu0 %4105
        %4107 = vadd.xlane.f32.xlu0 %v4044
        %v4108 = vpop.xlane.xlu0 %4107
        %4109 = vadd.xlane.f32.xlu0 %v4046
        %v4110 = vpop.xlane.xlu0 %4109
        %4111 = vadd.xlane.f32.xlu0 %v4048
        %v4112 = vpop.xlane.xlu0 %4111
        %4113 = vadd.xlane.f32.xlu0 %v4050
        %v4114 = vpop.xlane.xlu0 %4113
        %4115 = vadd.xlane.f32.xlu0 %v4052
        %v4116 = vpop.xlane.xlu0 %4115
        %4117 = vadd.xlane.f32.xlu0 %v4054
        %v4118 = vpop.xlane.xlu0 %4117
        %4119 = vadd.xlane.f32.xlu0 %v4056
        %v4120 = vpop.xlane.xlu0 %4119
        %4121 = vadd.xlane.f32.xlu0 %v4058
        %v4122 = vpop.xlane.xlu0 %4121
        %4123 = vadd.xlane.f32.xlu0 %v4060
        %v4124 = vpop.xlane.xlu0 %4123
        %4125 = vadd.xlane.f32.xlu0 %v4062
        %v4126 = vpop.xlane.xlu0 %4125
        %4127 = vadd.xlane.f32.xlu0 %v4064
        %v4128 = vpop.xlane.xlu0 %4127
        %4129 = vadd.xlane.f32.xlu0 %v4066
        %v4130 = vpop.xlane.xlu0 %4129
        %4131 = vadd.xlane.f32.xlu0 %v4068
        %v4132 = vpop.xlane.xlu0 %4131
        %4133 = vadd.xlane.f32.xlu0 %v4070
        %v4134 = vpop.xlane.xlu0 %4133
        %4135 = vadd.xlane.f32.xlu0 %v4072
        %v4136 = vpop.xlane.xlu0 %4135
        %4137 = vadd.xlane.f32.xlu0 %v4074
        %v4138 = vpop.xlane.xlu0 %4137
        %4139 = vadd.xlane.f32.xlu0 %v4076
        %v4140 = vpop.xlane.xlu0 %4139
        %4141 = vadd.xlane.f32.xlu0 %v4078
        %v4142 = vpop.xlane.xlu0 %4141
        %4143 = vadd.xlane.f32.xlu0 %v4080
        %v4144 = vpop.xlane.xlu0 %4143
        %4145 = vadd.xlane.f32.xlu0 %v4082
        %v4146 = vpop.xlane.xlu0 %4145
        %4147 = vadd.xlane.f32.xlu0 %v4084
        %v4148 = vpop.xlane.xlu0 %4147
        %4149 = vadd.xlane.f32.xlu0 %v4086
        %v4150 = vpop.xlane.xlu0 %4149
        %4151 = vadd.xlane.f32.xlu0 %v4088
        %v4152 = vpop.xlane.xlu0 %4151
        %4153 = vadd.xlane.f32.xlu0 %v4090
        %v4154 = vpop.xlane.xlu0 %4153
        %4155 = vadd.xlane.f32.xlu0 %v4092
        %v4156 = vpop.xlane.xlu0 %4155
        %4157 = vadd.xlane.f32.xlu0 %v4094
        %v4158 = vpop.xlane.xlu0 %4157
        %v4159 = vpack.c.bf16 %v4034, %v4032
        %v4160 = vpack.c.bf16 %v4038, %v4036
        %v4161 = vpack.c.bf16 %v4042, %v4040
        %v4162 = vpack.c.bf16 %v4046, %v4044
        %v4163 = vpack.c.bf16 %v4050, %v4048
        %v4164 = vpack.c.bf16 %v4054, %v4052
        %v4165 = vpack.c.bf16 %v4058, %v4056
        %v4166 = vpack.c.bf16 %v4062, %v4060
        %v4167 = vpack.c.bf16 %v4066, %v4064
        %v4168 = vpack.c.bf16 %v4070, %v4068
        %v4169 = vpack.c.bf16 %v4074, %v4072
        %v4170 = vpack.c.bf16 %v4078, %v4076
        %v4171 = vpack.c.bf16 %v4082, %v4080
        %v4172 = vpack.c.bf16 %v4086, %v4084
        %v4173 = vpack.c.bf16 %v4090, %v4088
        %v4174 = vpack.c.bf16 %v4094, %v4092
        %4175 = vmatprep.subr.bf16.mxu0 0
        %4176 = vmatpush1.bf16.msra.mxu0 %v2929
        %4177 = vmatprep.subr.bf16.mxu0 0
        %4178 = vmatpush1.bf16.msra.mxu0 %v2935
        %4179 = vmatprep.subr.bf16.mxu0 0
        %4180 = vmatpush1.bf16.msra.mxu0 %v2941
        %4181 = vmatprep.subr.bf16.mxu0 0
        %4182 = vmatpush1.bf16.msra.mxu0 %v2947
        %4183 = vmatprep.subr.bf16.mxu0 0
        %4184 = vmatpush1.bf16.msra.mxu0 %v2953
        %4185 = vmatprep.subr.bf16.mxu0 0
        %4186 = vmatpush1.bf16.msra.mxu0 %v2959
        %4187 = vmatprep.subr.bf16.mxu0 0
        %4188 = vmatpush1.bf16.msra.mxu0 %v2965
        %4189 = vmatprep.subr.bf16.mxu0 0
        %4190 = vmatpush1.bf16.msra.mxu0 %v2971
        %4191 = vmatprep.subr.bf16.mxu0 0
        %4192 = vmatpush1.bf16.msra.mxu0 0
        %4193 = vmatprep.subr.bf16.mxu0 0
        %4194 = vmatpush1.bf16.msra.mxu0 0
        %4195 = vmatprep.subr.bf16.mxu0 0
        %4196 = vmatpush1.bf16.msra.mxu0 0
        %4197 = vmatprep.subr.bf16.mxu0 0
        %4198 = vmatpush1.bf16.msra.mxu0 0
        %4199 = vmatprep.subr.bf16.mxu0 0
        %4200 = vmatpush1.bf16.msra.mxu0 0
        %4201 = vmatprep.subr.bf16.mxu0 0
        %4202 = vmatpush1.bf16.msra.mxu0 0
        %4203 = vmatprep.subr.bf16.mxu0 0
        %4204 = vmatpush1.bf16.msra.mxu0 0
        %4205 = vmatprep.subr.bf16.mxu0 0
        %4206 = vmatpush1.bf16.msra.mxu0 0
        %4207 = vmatprep.mubr.bf16.mxu0 0
        %4208 = vmatmul.mubr.bf16.gmra.mrb[0].mxu0 %v4159
        %v4209 = vpop.f32.mrb[0].mxu0
        %v4210 = vadd.f32 0.0, %v4209
        %v4211 = vpop.f32.mrb[0].mxu0
        %v4212 = vpop.f32.mrb[0].mxu0
        %v4213 = vadd.f32 0.0, %v4212
        %v4214 = vpop.f32.mrb[0].mxu0
        %4215 = vmatprep.mubr.bf16.mxu0 0
        %4216 = vmatmul.mubr.bf16.gmra.mrb[0].mxu0 %v4160
        %v4217 = vpop.f32.mrb[0].mxu0
        %v4218 = vadd.f32 0.0, %v4217
        %v4219 = vpop.f32.mrb[0].mxu0
        %v4220 = vpop.f32.mrb[0].mxu0
        %v4221 = vadd.f32 0.0, %v4220
        %v4222 = vpop.f32.mrb[0].mxu0
        %4223 = vmatprep.mubr.bf16.mxu0 0
        %4224 = vmatmul.mubr.bf16.gmra.mrb[0].mxu0 %v4161
        %v4225 = vpop.f32.mrb[0].mxu0
        %v4226 = vadd.f32 0.0, %v4225
        %v4227 = vpop.f32.mrb[0].mxu0
        %v4228 = vpop.f32.mrb[0].mxu0
        %v4229 = vadd.f32 0.0, %v4228
        %v4230 = vpop.f32.mrb[0].mxu0
        %4231 = vmatprep.mubr.bf16.mxu0 0
        %4232 = vmatmul.mubr.bf16.gmra.mrb[0].mxu0 %v4162
        %v4233 = vpop.f32.mrb[0].mxu0
        %v4234 = vadd.f32 0.0, %v4233
        %v4235 = vpop.f32.mrb[0].mxu0
        %v4236 = vpop.f32.mrb[0].mxu0
        %v4237 = vadd.f32 0.0, %v4236
        %v4238 = vpop.f32.mrb[0].mxu0
        %4239 = vmatprep.mubr.bf16.mxu0 0
        %4240 = vmatmul.mubr.bf16.gmra.mrb[0].mxu0 %v4163
        %v4241 = vpop.f32.mrb[0].mxu0
        %v4242 = vadd.f32 0.0, %v4241
        %v4243 = vpop.f32.mrb[0].mxu0
        %v4244 = vpop.f32.mrb[0].mxu0
        %v4245 = vadd.f32 0.0, %v4244
        %v4246 = vpop.f32.mrb[0].mxu0
        %4247 = vmatprep.mubr.bf16.mxu0 0
        %4248 = vmatmul.mubr.bf16.gmra.mrb[0].mxu0 %v4164
        %v4249 = vpop.f32.mrb[0].mxu0
        %v4250 = vadd.f32 0.0, %v4249
        %v4251 = vpop.f32.mrb[0].mxu0
        %v4252 = vpop.f32.mrb[0].mxu0
        %v4253 = vadd.f32 0.0, %v4252
        %v4254 = vpop.f32.mrb[0].mxu0
        %4255 = vmatprep.mubr.bf16.mxu0 0
        %4256 = vmatmul.mubr.bf16.gmra.mrb[0].mxu0 %v4165
        %v4257 = vpop.f32.mrb[0].mxu0
        %v4258 = vadd.f32 0.0, %v4257
        %v4259 = vpop.f32.mrb[0].mxu0
        %v4260 = vpop.f32.mrb[0].mxu0
        %v4261 = vadd.f32 0.0, %v4260
        %v4262 = vpop.f32.mrb[0].mxu0
        %4263 = vmatprep.mubr.bf16.mxu0 0
        %4264 = vmatmul.mubr.bf16.gmra.mrb[0].mxu0 %v4166
        %v4265 = vpop.f32.mrb[0].mxu0
        %v4266 = vadd.f32 0.0, %v4265
        %v4267 = vpop.f32.mrb[0].mxu0
        %v4268 = vpop.f32.mrb[0].mxu0
        %v4269 = vadd.f32 0.0, %v4268
        %v4270 = vpop.f32.mrb[0].mxu0
        %4271 = vdwg.mxu0
        %4272 = vmatprep.subr.bf16.mxu0 0
        %4273 = vmatpush1.bf16.msra.mxu0 %v2930
        %4274 = vmatprep.subr.bf16.mxu0 0
        %4275 = vmatpush1.bf16.msra.mxu0 %v2936
        %4276 = vmatprep.subr.bf16.mxu0 0
        %4277 = vmatpush1.bf16.msra.mxu0 %v2942
        %4278 = vmatprep.subr.bf16.mxu0 0
        %4279 = vmatpush1.bf16.msra.mxu0 %v2948
        %4280 = vmatprep.subr.bf16.mxu0 0
        %4281 = vmatpush1.bf16.msra.mxu0 %v2954
        %4282 = vmatprep.subr.bf16.mxu0 0
        %4283 = vmatpush1.bf16.msra.mxu0 %v2960
        %4284 = vmatprep.subr.bf16.mxu0 0
        %4285 = vmatpush1.bf16.msra.mxu0 %v2966
        %4286 = vmatprep.subr.bf16.mxu0 0
        %4287 = vmatpush1.bf16.msra.mxu0 %v2972
        %4288 = vmatprep.subr.bf16.mxu0 0
        %4289 = vmatpush1.bf16.msra.mxu0 0
        %4290 = vmatprep.subr.bf16.mxu0 0
        %4291 = vmatpush1.bf16.msra.mxu0 0
        %4292 = vmatprep.subr.bf16.mxu0 0
        %4293 = vmatpush1.bf16.msra.mxu0 0
        %4294 = vmatprep.subr.bf16.mxu0 0
        %4295 = vmatpush1.bf16.msra.mxu0 0
        %4296 = vmatprep.subr.bf16.mxu0 0
        %4297 = vmatpush1.bf16.msra.mxu0 0
        %4298 = vmatprep.subr.bf16.mxu0 0
        %4299 = vmatpush1.bf16.msra.mxu0 0
        %4300 = vmatprep.subr.bf16.mxu0 0
        %4301 = vmatpush1.bf16.msra.mxu0 0
        %4302 = vmatprep.subr.bf16.mxu0 0
        %4303 = vmatpush1.bf16.msra.mxu0 0
        %4304 = vmatprep.mubr.bf16.mxu0 0
        %4305 = vmatmul.mubr.bf16.gmra.mrb[0].mxu0 %v4167
        %v4306 = vpop.f32.mrb[0].mxu0
        %v4307 = vadd.f32 0.0, %v4306
        %v4308 = vpop.f32.mrb[0].mxu0
        %v4309 = vpop.f32.mrb[0].mxu0
        %v4310 = vadd.f32 0.0, %v4309
        %v4311 = vpop.f32.mrb[0].mxu0
        %4312 = vmatprep.mubr.bf16.mxu0 0
        %4313 = vmatmul.mubr.bf16.gmra.mrb[0].mxu0 %v4168
        %v4314 = vpop.f32.mrb[0].mxu0
        %v4315 = vadd.f32 0.0, %v4314
        %v4316 = vpop.f32.mrb[0].mxu0
        %v4317 = vpop.f32.mrb[0].mxu0
        %v4318 = vadd.f32 0.0, %v4317
        %v4319 = vpop.f32.mrb[0].mxu0
        %4320 = vmatprep.mubr.bf16.mxu0 0
        %4321 = vmatmul.mubr.bf16.gmra.mrb[0].mxu0 %v4169
        %v4322 = vpop.f32.mrb[0].mxu0
        %v4323 = vadd.f32 0.0, %v4322
        %v4324 = vpop.f32.mrb[0].mxu0
        %v4325 = vpop.f32.mrb[0].mxu0
        %v4326 = vadd.f32 0.0, %v4325
        %v4327 = vpop.f32.mrb[0].mxu0
        %4328 = vmatprep.mubr.bf16.mxu0 0
        %4329 = vmatmul.mubr.bf16.gmra.mrb[0].mxu0 %v4170
        %v4330 = vpop.f32.mrb[0].mxu0
        %v4331 = vadd.f32 0.0, %v4330
        %v4332 = vpop.f32.mrb[0].mxu0
        %v4333 = vpop.f32.mrb[0].mxu0
        %v4334 = vadd.f32 0.0, %v4333
        %v4335 = vpop.f32.mrb[0].mxu0
        %4336 = vmatprep.mubr.bf16.mxu0 0
        %4337 = vmatmul.mubr.bf16.gmra.mrb[0].mxu0 %v4171
        %v4338 = vpop.f32.mrb[0].mxu0
        %v4339 = vadd.f32 0.0, %v4338
        %v4340 = vpop.f32.mrb[0].mxu0
        %v4341 = vpop.f32.mrb[0].mxu0
        %v4342 = vadd.f32 0.0, %v4341
        %v4343 = vpop.f32.mrb[0].mxu0
        %4344 = vmatprep.mubr.bf16.mxu0 0
        %4345 = vmatmul.mubr.bf16.gmra.mrb[0].mxu0 %v4172
        %v4346 = vpop.f32.mrb[0].mxu0
        %v4347 = vadd.f32 0.0, %v4346
        %v4348 = vpop.f32.mrb[0].mxu0
        %v4349 = vpop.f32.mrb[0].mxu0
        %v4350 = vadd.f32 0.0, %v4349
        %v4351 = vpop.f32.mrb[0].mxu0
        %4352 = vmatprep.mubr.bf16.mxu0 0
        %4353 = vmatmul.mubr.bf16.gmra.mrb[0].mxu0 %v4173
        %v4354 = vpop.f32.mrb[0].mxu0
        %v4355 = vadd.f32 0.0, %v4354
        %v4356 = vpop.f32.mrb[0].mxu0
        %v4357 = vpop.f32.mrb[0].mxu0
        %v4358 = vadd.f32 0.0, %v4357
        %v4359 = vpop.f32.mrb[0].mxu0
        %4360 = vmatprep.mubr.bf16.mxu0 0
        %4361 = vmatmul.mubr.bf16.gmra.mrb[0].mxu0 %v4174
        %v4362 = vpop.f32.mrb[0].mxu0
        %v4363 = vadd.f32 0.0, %v4362
        %v4364 = vpop.f32.mrb[0].mxu0
        %v4365 = vpop.f32.mrb[0].mxu0
        %v4366 = vadd.f32 0.0, %v4365
        %v4367 = vpop.f32.mrb[0].mxu0
        %4368 = vdwg.mxu0
        %v4369 = vrcp.pop %v4096
        %v4370 = vrcp.pop %v4098
        %v4371 = vrcp.pop %v4100
        %v4372 = vrcp.pop %v4102
        %v4373 = vrcp.pop %v4104
        %v4374 = vrcp.pop %v4106
        %v4375 = vrcp.pop %v4108
        %v4376 = vrcp.pop %v4110
        %v4377 = vrcp.pop %v4112
        %v4378 = vrcp.pop %v4114
        %v4379 = vrcp.pop %v4116
        %v4380 = vrcp.pop %v4118
        %v4381 = vrcp.pop %v4120
        %v4382 = vrcp.pop %v4122
        %v4383 = vrcp.pop %v4124
        %v4384 = vrcp.pop %v4126
        %v4385 = vrcp.pop %v4128
        %v4386 = vrcp.pop %v4130
        %v4387 = vrcp.pop %v4132
        %v4388 = vrcp.pop %v4134
        %v4389 = vrcp.pop %v4136
        %v4390 = vrcp.pop %v4138
        %v4391 = vrcp.pop %v4140
        %v4392 = vrcp.pop %v4142
        %v4393 = vrcp.pop %v4144
        %v4394 = vrcp.pop %v4146
        %v4395 = vrcp.pop %v4148
        %v4396 = vrcp.pop %v4150
        %v4397 = vrcp.pop %v4152
        %v4398 = vrcp.pop %v4154
        %v4399 = vrcp.pop %v4156
        %v4400 = vrcp.pop %v4158
        %v4401 = vmul.f32 %v4210, %v4369
        %v4402 = vmul.f32 %v4213, %v4370
        %v4403 = vmul.f32 %v4218, %v4371
        %v4404 = vmul.f32 %v4221, %v4372
        %v4405 = vmul.f32 %v4226, %v4373
        %v4406 = vmul.f32 %v4229, %v4374
        %v4407 = vmul.f32 %v4234, %v4375
        %v4408 = vmul.f32 %v4237, %v4376
        %v4409 = vmul.f32 %v4242, %v4377
        %v4410 = vmul.f32 %v4245, %v4378
        %v4411 = vmul.f32 %v4250, %v4379
        %v4412 = vmul.f32 %v4253, %v4380
        %v4413 = vmul.f32 %v4258, %v4381
        %v4414 = vmul.f32 %v4261, %v4382
        %v4415 = vmul.f32 %v4266, %v4383
        %v4416 = vmul.f32 %v4269, %v4384
        %v4417 = vmul.f32 %v4307, %v4385
        %v4418 = vmul.f32 %v4310, %v4386
        %v4419 = vmul.f32 %v4315, %v4387
        %v4420 = vmul.f32 %v4318, %v4388
        %v4421 = vmul.f32 %v4323, %v4389
        %v4422 = vmul.f32 %v4326, %v4390
        %v4423 = vmul.f32 %v4331, %v4391
        %v4424 = vmul.f32 %v4334, %v4392
        %v4425 = vmul.f32 %v4339, %v4393
        %v4426 = vmul.f32 %v4342, %v4394
        %v4427 = vmul.f32 %v4347, %v4395
        %v4428 = vmul.f32 %v4350, %v4396
        %v4429 = vmul.f32 %v4355, %v4397
        %v4430 = vmul.f32 %v4358, %v4398
        %v4431 = vmul.f32 %v4363, %v4399
        %v4432 = vmul.f32 %v4366, %v4400
        %v4433 = vpack.c.bf16 %v3673, %v3672
        %v4434 = vpack.c.bf16 %v3689, %v3688
        %v4435 = vpack.c.bf16 %v3675, %v3674
        %v4436 = vpack.c.bf16 %v3691, %v3690
        %v4437 = vpack.c.bf16 %v3677, %v3676
        %v4438 = vpack.c.bf16 %v3693, %v3692
        %v4439 = vpack.c.bf16 %v3679, %v3678
        %v4440 = vpack.c.bf16 %v3695, %v3694
        %v4441 = vpack.c.bf16 %v3681, %v3680
        %v4442 = vpack.c.bf16 %v3697, %v3696
        %v4443 = vpack.c.bf16 %v3683, %v3682
        %v4444 = vpack.c.bf16 %v3699, %v3698
        %v4445 = vpack.c.bf16 %v3685, %v3684
        %v4446 = vpack.c.bf16 %v3701, %v3700
        %v4447 = vpack.c.bf16 %v3687, %v3686
        %v4448 = vpack.c.bf16 %v3703, %v3702
        %v4449 = vpack.c.bf16 %v4402, %v4401
        %v4450 = vpack.c.bf16 %v4418, %v4417
        %v4451 = vpack.c.bf16 %v4404, %v4403
        %v4452 = vpack.c.bf16 %v4420, %v4419
        %v4453 = vpack.c.bf16 %v4406, %v4405
        %v4454 = vpack.c.bf16 %v4422, %v4421
        %v4455 = vpack.c.bf16 %v4408, %v4407
        %v4456 = vpack.c.bf16 %v4424, %v4423
        %v4457 = vpack.c.bf16 %v4410, %v4409
        %v4458 = vpack.c.bf16 %v4426, %v4425
        %v4459 = vpack.c.bf16 %v4412, %v4411
        %v4460 = vpack.c.bf16 %v4428, %v4427
        %v4461 = vpack.c.bf16 %v4414, %v4413
        %v4462 = vpack.c.bf16 %v4430, %v4429
        %v4463 = vpack.c.bf16 %v4416, %v4415
        %v4464 = vpack.c.bf16 %v4432, %v4431
        %v4465 = vld [vmem:[%s657] sm:$0xff]
        %v4466 = vld [vmem:[%s657 + $0x8] sm:$0xff]
        %v4467 = vld [vmem:[%s657 + $0x10] sm:$0xff]
        %v4468 = vld [vmem:[%s657 + $0x18] sm:$0xff]
        %v4469 = vld [vmem:[%s657 + $0x20] sm:$0xff]
        %v4470 = vld [vmem:[%s657 + $0x28] sm:$0xff]
        %v4471 = vld [vmem:[%s657 + $0x30] sm:$0xff]
        %v4472 = vld [vmem:[%s657 + $0x38] sm:$0xff]
        %v4473 = vld [vmem:[%s657 + $0x40] sm:$0xff]
        %v4474 = vld [vmem:[%s657 + $0x48] sm:$0xff]
        %v4475 = vld [vmem:[%s657 + $0x50] sm:$0xff]
        %v4476 = vld [vmem:[%s657 + $0x58] sm:$0xff]
        %v4477 = vld [vmem:[%s657 + $0x60] sm:$0xff]
        %v4478 = vld [vmem:[%s657 + $0x68] sm:$0xff]
        %v4479 = vld [vmem:[%s657 + $0x70] sm:$0xff]
        %v4480 = vld [vmem:[%s657 + $0x78] sm:$0xff]
        %v4481 = vld [vmem:[%s657 + $0x80] sm:$0xff]
        %v4482 = vld [vmem:[%s657 + $0x88] sm:$0xff]
        %v4483 = vld [vmem:[%s657 + $0x90] sm:$0xff]
        %v4484 = vld [vmem:[%s657 + $0x98] sm:$0xff]
        %v4485 = vld [vmem:[%s657 + $0xa0] sm:$0xff]
        %v4486 = vld [vmem:[%s657 + $0xa8] sm:$0xff]
        %v4487 = vld [vmem:[%s657 + $0xb0] sm:$0xff]
        %v4488 = vld [vmem:[%s657 + $0xb8] sm:$0xff]
        %v4489 = vld [vmem:[%s657 + $0xc0] sm:$0xff]
        %v4490 = vld [vmem:[%s657 + $0xc8] sm:$0xff]
        %v4491 = vld [vmem:[%s657 + $0xd0] sm:$0xff]
        %v4492 = vld [vmem:[%s657 + $0xd8] sm:$0xff]
        %v4493 = vld [vmem:[%s657 + $0xe0] sm:$0xff]
        %v4494 = vld [vmem:[%s657 + $0xe8] sm:$0xff]
        %v4495 = vld [vmem:[%s657 + $0xf0] sm:$0xff]
        %v4496 = vld [vmem:[%s657 + $0xf8] sm:$0xff]
        %v4497 = vld [vmem:[%s771] sm:$0x3]
        %v4499 = vlaneseq
        %v4500 = vshrl.u32 %v4499, 7
        %v4501 = vsub.s32 0, %v4500
        %v4502 = vrot.slane %v4497, %v4501
        %v4503 = vlaneseq
        %v4504 = vshrl.u32 %v4503, 7
        %v4505 = vsub.s32 1, %v4504
        %v4506 = vrot.slane %v4497, %v4505
        %v4541 = vunpack.c.l.b16 %v4465
        %v4542 = vunpack.c.h.b16 %v4465
        %v4543 = vunpack.c.l.b16 %v4466
        %v4544 = vunpack.c.h.b16 %v4466
        %v4545 = vunpack.c.l.b16 %v4467
        %v4546 = vunpack.c.h.b16 %v4467
        %v4547 = vunpack.c.l.b16 %v4468
        %v4548 = vunpack.c.h.b16 %v4468
        %v4549 = vunpack.c.l.b16 %v4469
        %v4550 = vunpack.c.h.b16 %v4469
        %v4551 = vunpack.c.l.b16 %v4470
        %v4552 = vunpack.c.h.b16 %v4470
        %v4553 = vunpack.c.l.b16 %v4471
        %v4554 = vunpack.c.h.b16 %v4471
        %v4555 = vunpack.c.l.b16 %v4472
        %v4556 = vunpack.c.h.b16 %v4472
        %v4557 = vunpack.c.l.b16 %v4473
        %v4558 = vunpack.c.h.b16 %v4473
        %v4559 = vunpack.c.l.b16 %v4474
        %v4560 = vunpack.c.h.b16 %v4474
        %v4561 = vunpack.c.l.b16 %v4475
        %v4562 = vunpack.c.h.b16 %v4475
        %v4563 = vunpack.c.l.b16 %v4476
        %v4564 = vunpack.c.h.b16 %v4476
        %v4565 = vunpack.c.l.b16 %v4477
        %v4566 = vunpack.c.h.b16 %v4477
        %v4567 = vunpack.c.l.b16 %v4478
        %v4568 = vunpack.c.h.b16 %v4478
        %v4569 = vunpack.c.l.b16 %v4479
        %v4570 = vunpack.c.h.b16 %v4479
        %v4571 = vunpack.c.l.b16 %v4480
        %v4572 = vunpack.c.h.b16 %v4480
        %v4573 = vunpack.c.l.b16 %v4481
        %v4574 = vunpack.c.h.b16 %v4481
        %v4575 = vunpack.c.l.b16 %v4482
        %v4576 = vunpack.c.h.b16 %v4482
        %v4577 = vunpack.c.l.b16 %v4483
        %v4578 = vunpack.c.h.b16 %v4483
        %v4579 = vunpack.c.l.b16 %v4484
        %v4580 = vunpack.c.h.b16 %v4484
        %v4581 = vunpack.c.l.b16 %v4485
        %v4582 = vunpack.c.h.b16 %v4485
        %v4583 = vunpack.c.l.b16 %v4486
        %v4584 = vunpack.c.h.b16 %v4486
        %v4585 = vunpack.c.l.b16 %v4487
        %v4586 = vunpack.c.h.b16 %v4487
        %v4587 = vunpack.c.l.b16 %v4488
        %v4588 = vunpack.c.h.b16 %v4488
        %v4589 = vunpack.c.l.b16 %v4489
        %v4590 = vunpack.c.h.b16 %v4489
        %v4591 = vunpack.c.l.b16 %v4490
        %v4592 = vunpack.c.h.b16 %v4490
        %v4593 = vunpack.c.l.b16 %v4491
        %v4594 = vunpack.c.h.b16 %v4491
        %v4595 = vunpack.c.l.b16 %v4492
        %v4596 = vunpack.c.h.b16 %v4492
        %v4597 = vunpack.c.l.b16 %v4493
        %v4598 = vunpack.c.h.b16 %v4493
        %v4599 = vunpack.c.l.b16 %v4494
        %v4600 = vunpack.c.h.b16 %v4494
        %v4601 = vunpack.c.l.b16 %v4495
        %v4602 = vunpack.c.h.b16 %v4495
        %v4603 = vunpack.c.l.b16 %v4496
        %v4604 = vunpack.c.h.b16 %v4496
        %v4605 = vpack.c.b16 %v4543, %v4541
        %v4606 = vpack.c.b16 %v4544, %v4542
        %v4607 = vpack.c.b16 %v4547, %v4545
        %v4608 = vpack.c.b16 %v4548, %v4546
        %v4609 = vpack.c.b16 %v4551, %v4549
        %v4610 = vpack.c.b16 %v4552, %v4550
        %v4611 = vpack.c.b16 %v4555, %v4553
        %v4612 = vpack.c.b16 %v4556, %v4554
        %v4613 = vpack.c.b16 %v4559, %v4557
        %v4614 = vpack.c.b16 %v4560, %v4558
        %v4615 = vpack.c.b16 %v4563, %v4561
        %v4616 = vpack.c.b16 %v4564, %v4562
        %v4617 = vpack.c.b16 %v4567, %v4565
        %v4618 = vpack.c.b16 %v4568, %v4566
        %v4619 = vpack.c.b16 %v4571, %v4569
        %v4620 = vpack.c.b16 %v4572, %v4570
        %v4621 = vpack.c.b16 %v4575, %v4573
        %v4622 = vpack.c.b16 %v4576, %v4574
        %v4623 = vpack.c.b16 %v4579, %v4577
        %v4624 = vpack.c.b16 %v4580, %v4578
        %v4625 = vpack.c.b16 %v4583, %v4581
        %v4626 = vpack.c.b16 %v4584, %v4582
        %v4627 = vpack.c.b16 %v4587, %v4585
        %v4628 = vpack.c.b16 %v4588, %v4586
        %v4629 = vpack.c.b16 %v4591, %v4589
        %v4630 = vpack.c.b16 %v4592, %v4590
        %v4631 = vpack.c.b16 %v4595, %v4593
        %v4632 = vpack.c.b16 %v4596, %v4594
        %v4633 = vpack.c.b16 %v4599, %v4597
        %v4634 = vpack.c.b16 %v4600, %v4598
        %v4635 = vpack.c.b16 %v4603, %v4601
        %v4636 = vpack.c.b16 %v4604, %v4602
        %4669 = vmatprep.subr.bf16.mxu0 %v4606
        %4670 = vmatpush1.bf16.msra.mxu0 %v4605
        %4671 = vmatprep.subr.bf16.mxu0 %v4608
        %4672 = vmatpush1.bf16.msra.mxu0 %v4607
        %4673 = vmatprep.subr.bf16.mxu0 %v4610
        %4674 = vmatpush1.bf16.msra.mxu0 %v4609
        %4675 = vmatprep.subr.bf16.mxu0 %v4612
        %4676 = vmatpush1.bf16.msra.mxu0 %v4611
        %4677 = vmatprep.subr.bf16.mxu0 %v4614
        %4678 = vmatpush1.bf16.msra.mxu0 %v4613
        %4679 = vmatprep.subr.bf16.mxu0 %v4616
        %4680 = vmatpush1.bf16.msra.mxu0 %v4615
        %4681 = vmatprep.subr.bf16.mxu0 %v4618
        %4682 = vmatpush1.bf16.msra.mxu0 %v4617
        %4683 = vmatprep.subr.bf16.mxu0 %v4620
        %4684 = vmatpush1.bf16.msra.mxu0 %v4619
        %4685 = vmatprep.subr.bf16.mxu0 %v4622
        %4686 = vmatpush1.bf16.msra.mxu0 %v4621
        %4687 = vmatprep.subr.bf16.mxu0 %v4624
        %4688 = vmatpush1.bf16.msra.mxu0 %v4623
        %4689 = vmatprep.subr.bf16.mxu0 %v4626
        %4690 = vmatpush1.bf16.msra.mxu0 %v4625
        %4691 = vmatprep.subr.bf16.mxu0 %v4628
        %4692 = vmatpush1.bf16.msra.mxu0 %v4627
        %4693 = vmatprep.subr.bf16.mxu0 %v4630
        %4694 = vmatpush1.bf16.msra.mxu0 %v4629
        %4695 = vmatprep.subr.bf16.mxu0 %v4632
        %4696 = vmatpush1.bf16.msra.mxu0 %v4631
        %4697 = vmatprep.subr.bf16.mxu0 %v4634
        %4698 = vmatpush1.bf16.msra.mxu0 %v4633
        %4699 = vmatprep.subr.bf16.mxu0 %v4636
        %4700 = vmatpush1.bf16.msra.mxu0 %v4635
        %4701 = vmatprep.mubr.bf16.mxu0 %v4434
        %4702 = vmatmul.mubr.bf16.gmra.mrb[0].mxu0 %v4433
        %v4703 = vpop.f32.mrb[0].mxu0
        %v4704 = vadd.f32 %v4502, %v4703
        %v4705 = vpop.f32.mrb[0].mxu0
        %v4706 = vadd.f32 %v4506, %v4705
        %v4707 = vpop.f32.mrb[0].mxu0
        %v4708 = vadd.f32 %v4502, %v4707
        %v4709 = vpop.f32.mrb[0].mxu0
        %v4710 = vadd.f32 %v4506, %v4709
        %4711 = vmatprep.mubr.bf16.mxu0 %v4436
        %4712 = vmatmul.mubr.bf16.gmra.mrb[0].mxu0 %v4435
        %v4713 = vpop.f32.mrb[0].mxu0
        %v4714 = vadd.f32 %v4502, %v4713
        %v4715 = vpop.f32.mrb[0].mxu0
        %v4716 = vadd.f32 %v4506, %v4715
        %v4717 = vpop.f32.mrb[0].mxu0
        %v4718 = vadd.f32 %v4502, %v4717
        %v4719 = vpop.f32.mrb[0].mxu0
        %v4720 = vadd.f32 %v4506, %v4719
        %4721 = vmatprep.mubr.bf16.mxu0 %v4438
        %4722 = vmatmul.mubr.bf16.gmra.mrb[0].mxu0 %v4437
        %v4723 = vpop.f32.mrb[0].mxu0
        %v4724 = vadd.f32 %v4502, %v4723
        %v4725 = vpop.f32.mrb[0].mxu0
        %v4726 = vadd.f32 %v4506, %v4725
        %v4727 = vpop.f32.mrb[0].mxu0
        %v4728 = vadd.f32 %v4502, %v4727
        %v4729 = vpop.f32.mrb[0].mxu0
        %v4730 = vadd.f32 %v4506, %v4729
        %4731 = vmatprep.mubr.bf16.mxu0 %v4440
        %4732 = vmatmul.mubr.bf16.gmra.mrb[0].mxu0 %v4439
        %v4733 = vpop.f32.mrb[0].mxu0
        %v4734 = vadd.f32 %v4502, %v4733
        %v4735 = vpop.f32.mrb[0].mxu0
        %v4736 = vadd.f32 %v4506, %v4735
        %v4737 = vpop.f32.mrb[0].mxu0
        %v4738 = vadd.f32 %v4502, %v4737
        %v4739 = vpop.f32.mrb[0].mxu0
        %v4740 = vadd.f32 %v4506, %v4739
        %4741 = vmatprep.mubr.bf16.mxu0 %v4442
        %4742 = vmatmul.mubr.bf16.gmra.mrb[0].mxu0 %v4441
        %v4743 = vpop.f32.mrb[0].mxu0
        %v4744 = vadd.f32 %v4502, %v4743
        %v4745 = vpop.f32.mrb[0].mxu0
        %v4746 = vadd.f32 %v4506, %v4745
        %v4747 = vpop.f32.mrb[0].mxu0
        %v4748 = vadd.f32 %v4502, %v4747
        %v4749 = vpop.f32.mrb[0].mxu0
        %v4750 = vadd.f32 %v4506, %v4749
        %4751 = vmatprep.mubr.bf16.mxu0 %v4444
        %4752 = vmatmul.mubr.bf16.gmra.mrb[0].mxu0 %v4443
        %v4753 = vpop.f32.mrb[0].mxu0
        %v4754 = vadd.f32 %v4502, %v4753
        %v4755 = vpop.f32.mrb[0].mxu0
        %v4756 = vadd.f32 %v4506, %v4755
        %v4757 = vpop.f32.mrb[0].mxu0
        %v4758 = vadd.f32 %v4502, %v4757
        %v4759 = vpop.f32.mrb[0].mxu0
        %v4760 = vadd.f32 %v4506, %v4759
        %4761 = vmatprep.mubr.bf16.mxu0 %v4446
        %4762 = vmatmul.mubr.bf16.gmra.mrb[0].mxu0 %v4445
        %v4763 = vpop.f32.mrb[0].mxu0
        %v4764 = vadd.f32 %v4502, %v4763
        %v4765 = vpop.f32.mrb[0].mxu0
        %v4766 = vadd.f32 %v4506, %v4765
        %v4767 = vpop.f32.mrb[0].mxu0
        %v4768 = vadd.f32 %v4502, %v4767
        %v4769 = vpop.f32.mrb[0].mxu0
        %v4770 = vadd.f32 %v4506, %v4769
        %4771 = vmatprep.mubr.bf16.mxu0 %v4448
        %4772 = vmatmul.mubr.bf16.gmra.mrb[0].mxu0 %v4447
        %v4773 = vpop.f32.mrb[0].mxu0
        %v4774 = vadd.f32 %v4502, %v4773
        %v4775 = vpop.f32.mrb[0].mxu0
        %v4776 = vadd.f32 %v4506, %v4775
        %v4777 = vpop.f32.mrb[0].mxu0
        %v4778 = vadd.f32 %v4502, %v4777
        %v4779 = vpop.f32.mrb[0].mxu0
        %v4780 = vadd.f32 %v4506, %v4779
        %4781 = vmatprep.mubr.bf16.mxu0 %v4450
        %4782 = vmatmul.mubr.bf16.gmra.mrb[0].mxu0 %v4449
        %v4783 = vpop.f32.mrb[0].mxu0
        %v4784 = vadd.f32 %v4502, %v4783
        %v4785 = vpop.f32.mrb[0].mxu0
        %v4786 = vadd.f32 %v4506, %v4785
        %v4787 = vpop.f32.mrb[0].mxu0
        %v4788 = vadd.f32 %v4502, %v4787
        %v4789 = vpop.f32.mrb[0].mxu0
        %v4790 = vadd.f32 %v4506, %v4789
        %4791 = vmatprep.mubr.bf16.mxu0 %v4452
        %4792 = vmatmul.mubr.bf16.gmra.mrb[0].mxu0 %v4451
        %v4793 = vpop.f32.mrb[0].mxu0
        %v4794 = vadd.f32 %v4502, %v4793
        %v4795 = vpop.f32.mrb[0].mxu0
        %v4796 = vadd.f32 %v4506, %v4795
        %v4797 = vpop.f32.mrb[0].mxu0
        %v4798 = vadd.f32 %v4502, %v4797
        %v4799 = vpop.f32.mrb[0].mxu0
        %v4800 = vadd.f32 %v4506, %v4799
        %4801 = vmatprep.mubr.bf16.mxu0 %v4454
        %4802 = vmatmul.mubr.bf16.gmra.mrb[0].mxu0 %v4453
        %v4803 = vpop.f32.mrb[0].mxu0
        %v4804 = vadd.f32 %v4502, %v4803
        %v4805 = vpop.f32.mrb[0].mxu0
        %v4806 = vadd.f32 %v4506, %v4805
        %v4807 = vpop.f32.mrb[0].mxu0
        %v4808 = vadd.f32 %v4502, %v4807
        %v4809 = vpop.f32.mrb[0].mxu0
        %v4810 = vadd.f32 %v4506, %v4809
        %4811 = vmatprep.mubr.bf16.mxu0 %v4456
        %4812 = vmatmul.mubr.bf16.gmra.mrb[0].mxu0 %v4455
        %v4813 = vpop.f32.mrb[0].mxu0
        %v4814 = vadd.f32 %v4502, %v4813
        %v4815 = vpop.f32.mrb[0].mxu0
        %v4816 = vadd.f32 %v4506, %v4815
        %v4817 = vpop.f32.mrb[0].mxu0
        %v4818 = vadd.f32 %v4502, %v4817
        %v4819 = vpop.f32.mrb[0].mxu0
        %v4820 = vadd.f32 %v4506, %v4819
        %4821 = vmatprep.mubr.bf16.mxu0 %v4458
        %4822 = vmatmul.mubr.bf16.gmra.mrb[0].mxu0 %v4457
        %v4823 = vpop.f32.mrb[0].mxu0
        %v4824 = vadd.f32 %v4502, %v4823
        %v4825 = vpop.f32.mrb[0].mxu0
        %v4826 = vadd.f32 %v4506, %v4825
        %v4827 = vpop.f32.mrb[0].mxu0
        %v4828 = vadd.f32 %v4502, %v4827
        %v4829 = vpop.f32.mrb[0].mxu0
        %v4830 = vadd.f32 %v4506, %v4829
        %4831 = vmatprep.mubr.bf16.mxu0 %v4460
        %4832 = vmatmul.mubr.bf16.gmra.mrb[0].mxu0 %v4459
        %v4833 = vpop.f32.mrb[0].mxu0
        %v4834 = vadd.f32 %v4502, %v4833
        %v4835 = vpop.f32.mrb[0].mxu0
        %v4836 = vadd.f32 %v4506, %v4835
        %v4837 = vpop.f32.mrb[0].mxu0
        %v4838 = vadd.f32 %v4502, %v4837
        %v4839 = vpop.f32.mrb[0].mxu0
        %v4840 = vadd.f32 %v4506, %v4839
        %4841 = vmatprep.mubr.bf16.mxu0 %v4462
        %4842 = vmatmul.mubr.bf16.gmra.mrb[0].mxu0 %v4461
        %v4843 = vpop.f32.mrb[0].mxu0
        %v4844 = vadd.f32 %v4502, %v4843
        %v4845 = vpop.f32.mrb[0].mxu0
        %v4846 = vadd.f32 %v4506, %v4845
        %v4847 = vpop.f32.mrb[0].mxu0
        %v4848 = vadd.f32 %v4502, %v4847
        %v4849 = vpop.f32.mrb[0].mxu0
        %v4850 = vadd.f32 %v4506, %v4849
        %4851 = vmatprep.mubr.bf16.mxu0 %v4464
        %4852 = vmatmul.mubr.bf16.gmra.mrb[0].mxu0 %v4463
        %v4853 = vpop.f32.mrb[0].mxu0
        %v4854 = vadd.f32 %v4502, %v4853
        %v4855 = vpop.f32.mrb[0].mxu0
        %v4856 = vadd.f32 %v4506, %v4855
        %v4857 = vpop.f32.mrb[0].mxu0
        %v4858 = vadd.f32 %v4502, %v4857
        %v4859 = vpop.f32.mrb[0].mxu0
        %v4860 = vadd.f32 %v4506, %v4859
        %4861 = vdwg.mxu0
        %v4862 = vadd.f32 %v1594, %v4704
        %v4863 = vadd.f32 %v1595, %v4706
        %v4864 = vadd.f32 %v1596, %v4708
        %v4865 = vadd.f32 %v1597, %v4710
        %v4866 = vadd.f32 %v1598, %v4714
        %v4867 = vadd.f32 %v1599, %v4716
        %v4868 = vadd.f32 %v1600, %v4718
        %v4869 = vadd.f32 %v1601, %v4720
        %v4870 = vadd.f32 %v1602, %v4724
        %v4871 = vadd.f32 %v1603, %v4726
        %v4872 = vadd.f32 %v1604, %v4728
        %v4873 = vadd.f32 %v1605, %v4730
        %v4874 = vadd.f32 %v1606, %v4734
        %v4875 = vadd.f32 %v1607, %v4736
        %v4876 = vadd.f32 %v1608, %v4738
        %v4877 = vadd.f32 %v1609, %v4740
        %v4878 = vadd.f32 %v1610, %v4744
        %v4879 = vadd.f32 %v1611, %v4746
        %v4880 = vadd.f32 %v1612, %v4748
        %v4881 = vadd.f32 %v1613, %v4750
        %v4882 = vadd.f32 %v1614, %v4754
        %v4883 = vadd.f32 %v1615, %v4756
        %v4884 = vadd.f32 %v1616, %v4758
        %v4885 = vadd.f32 %v1617, %v4760
        %v4886 = vadd.f32 %v1618, %v4764
        %v4887 = vadd.f32 %v1619, %v4766
        %v4888 = vadd.f32 %v1620, %v4768
        %v4889 = vadd.f32 %v1621, %v4770
        %v4890 = vadd.f32 %v1622, %v4774
        %v4891 = vadd.f32 %v1623, %v4776
        %v4892 = vadd.f32 %v1624, %v4778
        %v4893 = vadd.f32 %v1625, %v4780
        %v4894 = vadd.f32 %v1626, %v4784
        %v4895 = vadd.f32 %v1627, %v4786
        %v4896 = vadd.f32 %v1628, %v4788
        %v4897 = vadd.f32 %v1629, %v4790
        %v4898 = vadd.f32 %v1630, %v4794
        %v4899 = vadd.f32 %v1631, %v4796
        %v4900 = vadd.f32 %v1632, %v4798
        %v4901 = vadd.f32 %v1633, %v4800
        %v4902 = vadd.f32 %v1634, %v4804
        %v4903 = vadd.f32 %v1635, %v4806
        %v4904 = vadd.f32 %v1636, %v4808
        %v4905 = vadd.f32 %v1637, %v4810
        %v4906 = vadd.f32 %v1638, %v4814
        %v4907 = vadd.f32 %v1639, %v4816
        %v4908 = vadd.f32 %v1640, %v4818
        %v4909 = vadd.f32 %v1641, %v4820
        %v4910 = vadd.f32 %v1642, %v4824
        %v4911 = vadd.f32 %v1643, %v4826
        %v4912 = vadd.f32 %v1644, %v4828
        %v4913 = vadd.f32 %v1645, %v4830
        %v4914 = vadd.f32 %v1646, %v4834
        %v4915 = vadd.f32 %v1647, %v4836
        %v4916 = vadd.f32 %v1648, %v4838
        %v4917 = vadd.f32 %v1649, %v4840
        %v4918 = vadd.f32 %v1650, %v4844
        %v4919 = vadd.f32 %v1651, %v4846
        %v4920 = vadd.f32 %v1652, %v4848
        %v4921 = vadd.f32 %v1653, %v4850
        %v4922 = vadd.f32 %v1654, %v4854
        %v4923 = vadd.f32 %v1655, %v4856
        %v4924 = vadd.f32 %v1656, %v4858
        %v4925 = vadd.f32 %v1657, %v4860
        %v4926 = vld [vmem:[%s775] sm:$0x3]
        %v4927 = vld [vmem:[%s779] sm:$0x3]
        %v4928 = vadd.f32 %v4862, %v4863
        %4929 = vadd.xlane.f32.xlu0 %v4928
        %v4930 = vpop.xlane.xlu0 %4929
        %v4931 = vadd.f32 %v4864, %v4865
        %4932 = vadd.xlane.f32.xlu0 %v4931
        %v4933 = vpop.xlane.xlu0 %4932
        %v4934 = vadd.f32 %v4866, %v4867
        %4935 = vadd.xlane.f32.xlu0 %v4934
        %v4936 = vpop.xlane.xlu0 %4935
        %v4937 = vadd.f32 %v4868, %v4869
        %4938 = vadd.xlane.f32.xlu0 %v4937
        %v4939 = vpop.xlane.xlu0 %4938
        %v4940 = vadd.f32 %v4870, %v4871
        %4941 = vadd.xlane.f32.xlu0 %v4940
        %v4942 = vpop.xlane.xlu0 %4941
        %v4943 = vadd.f32 %v4872, %v4873
        %4944 = vadd.xlane.f32.xlu0 %v4943
        %v4945 = vpop.xlane.xlu0 %4944
        %v4946 = vadd.f32 %v4874, %v4875
        %4947 = vadd.xlane.f32.xlu0 %v4946
        %v4948 = vpop.xlane.xlu0 %4947
        %v4949 = vadd.f32 %v4876, %v4877
        %4950 = vadd.xlane.f32.xlu0 %v4949
        %v4951 = vpop.xlane.xlu0 %4950
        %v4952 = vadd.f32 %v4878, %v4879
        %4953 = vadd.xlane.f32.xlu0 %v4952
        %v4954 = vpop.xlane.xlu0 %4953
        %v4955 = vadd.f32 %v4880, %v4881
        %4956 = vadd.xlane.f32.xlu0 %v4955
        %v4957 = vpop.xlane.xlu0 %4956
        %v4958 = vadd.f32 %v4882, %v4883
        %4959 = vadd.xlane.f32.xlu0 %v4958
        %v4960 = vpop.xlane.xlu0 %4959
        %v4961 = vadd.f32 %v4884, %v4885
        %4962 = vadd.xlane.f32.xlu0 %v4961
        %v4963 = vpop.xlane.xlu0 %4962
        %v4964 = vadd.f32 %v4886, %v4887
        %4965 = vadd.xlane.f32.xlu0 %v4964
        %v4966 = vpop.xlane.xlu0 %4965
        %v4967 = vadd.f32 %v4888, %v4889
        %4968 = vadd.xlane.f32.xlu0 %v4967
        %v4969 = vpop.xlane.xlu0 %4968
        %v4970 = vadd.f32 %v4890, %v4891
        %4971 = vadd.xlane.f32.xlu0 %v4970
        %v4972 = vpop.xlane.xlu0 %4971
        %v4973 = vadd.f32 %v4892, %v4893
        %4974 = vadd.xlane.f32.xlu0 %v4973
        %v4975 = vpop.xlane.xlu0 %4974
        %v4976 = vadd.f32 %v4894, %v4895
        %4977 = vadd.xlane.f32.xlu0 %v4976
        %v4978 = vpop.xlane.xlu0 %4977
        %v4979 = vadd.f32 %v4896, %v4897
        %4980 = vadd.xlane.f32.xlu0 %v4979
        %v4981 = vpop.xlane.xlu0 %4980
        %v4982 = vadd.f32 %v4898, %v4899
        %4983 = vadd.xlane.f32.xlu0 %v4982
        %v4984 = vpop.xlane.xlu0 %4983
        %v4985 = vadd.f32 %v4900, %v4901
        %4986 = vadd.xlane.f32.xlu0 %v4985
        %v4987 = vpop.xlane.xlu0 %4986
        %v4988 = vadd.f32 %v4902, %v4903
        %4989 = vadd.xlane.f32.xlu0 %v4988
        %v4990 = vpop.xlane.xlu0 %4989
        %v4991 = vadd.f32 %v4904, %v4905
        %4992 = vadd.xlane.f32.xlu0 %v4991
        %v4993 = vpop.xlane.xlu0 %4992
        %v4994 = vadd.f32 %v4906, %v4907
        %4995 = vadd.xlane.f32.xlu0 %v4994
        %v4996 = vpop.xlane.xlu0 %4995
        %v4997 = vadd.f32 %v4908, %v4909
        %4998 = vadd.xlane.f32.xlu0 %v4997
        %v4999 = vpop.xlane.xlu0 %4998
        %v5000 = vadd.f32 %v4910, %v4911
        %5001 = vadd.xlane.f32.xlu0 %v5000
        %v5002 = vpop.xlane.xlu0 %5001
        %v5003 = vadd.f32 %v4912, %v4913
        %5004 = vadd.xlane.f32.xlu0 %v5003
        %v5005 = vpop.xlane.xlu0 %5004
        %v5006 = vadd.f32 %v4914, %v4915
        %5007 = vadd.xlane.f32.xlu0 %v5006
        %v5008 = vpop.xlane.xlu0 %5007
        %v5009 = vadd.f32 %v4916, %v4917
        %5010 = vadd.xlane.f32.xlu0 %v5009
        %v5011 = vpop.xlane.xlu0 %5010
        %v5012 = vadd.f32 %v4918, %v4919
        %5013 = vadd.xlane.f32.xlu0 %v5012
        %v5014 = vpop.xlane.xlu0 %5013
        %v5015 = vadd.f32 %v4920, %v4921
        %5016 = vadd.xlane.f32.xlu0 %v5015
        %v5017 = vpop.xlane.xlu0 %5016
        %v5018 = vadd.f32 %v4922, %v4923
        %5019 = vadd.xlane.f32.xlu0 %v5018
        %v5020 = vpop.xlane.xlu0 %5019
        %v5021 = vadd.f32 %v4924, %v4925
        %5022 = vadd.xlane.f32.xlu0 %v5021
        %v5023 = vpop.xlane.xlu0 %5022
        %v5024 = vrcp.pop 256.0
        %v5025 = vmul.f32 %v4930, %v5024
        %v5026 = vmul.f32 %v4933, %v5024
        %v5027 = vmul.f32 %v4936, %v5024
        %v5028 = vmul.f32 %v4939, %v5024
        %v5029 = vmul.f32 %v4942, %v5024
        %v5030 = vmul.f32 %v4945, %v5024
        %v5031 = vmul.f32 %v4948, %v5024
        %v5032 = vmul.f32 %v4951, %v5024
        %v5033 = vmul.f32 %v4954, %v5024
        %v5034 = vmul.f32 %v4957, %v5024
        %v5035 = vmul.f32 %v4960, %v5024
        %v5036 = vmul.f32 %v4963, %v5024
        %v5037 = vmul.f32 %v4966, %v5024
        %v5038 = vmul.f32 %v4969, %v5024
        %v5039 = vmul.f32 %v4972, %v5024
        %v5040 = vmul.f32 %v4975, %v5024
        %v5041 = vmul.f32 %v4978, %v5024
        %v5042 = vmul.f32 %v4981, %v5024
        %v5043 = vmul.f32 %v4984, %v5024
        %v5044 = vmul.f32 %v4987, %v5024
        %v5045 = vmul.f32 %v4990, %v5024
        %v5046 = vmul.f32 %v4993, %v5024
        %v5047 = vmul.f32 %v4996, %v5024
        %v5048 = vmul.f32 %v4999, %v5024
        %v5049 = vmul.f32 %v5002, %v5024
        %v5050 = vmul.f32 %v5005, %v5024
        %v5051 = vmul.f32 %v5008, %v5024
        %v5052 = vmul.f32 %v5011, %v5024
        %v5053 = vmul.f32 %v5014, %v5024
        %v5054 = vmul.f32 %v5017, %v5024
        %v5055 = vmul.f32 %v5020, %v5024
        %v5056 = vmul.f32 %v5023, %v5024
        %v5057 = vsub.f32 %v4862, %v5025
        %v5058 = vsub.f32 %v4863, %v5025
        %v5059 = vsub.f32 %v4864, %v5026
        %v5060 = vsub.f32 %v4865, %v5026
        %v5061 = vsub.f32 %v4866, %v5027
        %v5062 = vsub.f32 %v4867, %v5027
        %v5063 = vsub.f32 %v4868, %v5028
        %v5064 = vsub.f32 %v4869, %v5028
        %v5065 = vsub.f32 %v4870, %v5029
        %v5066 = vsub.f32 %v4871, %v5029
        %v5067 = vsub.f32 %v4872, %v5030
        %v5068 = vsub.f32 %v4873, %v5030
        %v5069 = vsub.f32 %v4874, %v5031
        %v5070 = vsub.f32 %v4875, %v5031
        %v5071 = vsub.f32 %v4876, %v5032
        %v5072 = vsub.f32 %v4877, %v5032
        %v5073 = vsub.f32 %v4878, %v5033
        %v5074 = vsub.f32 %v4879, %v5033
        %v5075 = vsub.f32 %v4880, %v5034
        %v5076 = vsub.f32 %v4881, %v5034
        %v5077 = vsub.f32 %v4882, %v5035
        %v5078 = vsub.f32 %v4883, %v5035
        %v5079 = vsub.f32 %v4884, %v5036
        %v5080 = vsub.f32 %v4885, %v5036
        %v5081 = vsub.f32 %v4886, %v5037
        %v5082 = vsub.f32 %v4887, %v5037
        %v5083 = vsub.f32 %v4888, %v5038
        %v5084 = vsub.f32 %v4889, %v5038
        %v5085 = vsub.f32 %v4890, %v5039
        %v5086 = vsub.f32 %v4891, %v5039
        %v5087 = vsub.f32 %v4892, %v5040
        %v5088 = vsub.f32 %v4893, %v5040
        %v5089 = vsub.f32 %v4894, %v5041
        %v5090 = vsub.f32 %v4895, %v5041
        %v5091 = vsub.f32 %v4896, %v5042
        %v5092 = vsub.f32 %v4897, %v5042
        %v5093 = vsub.f32 %v4898, %v5043
        %v5094 = vsub.f32 %v4899, %v5043
        %v5095 = vsub.f32 %v4900, %v5044
        %v5096 = vsub.f32 %v4901, %v5044
        %v5097 = vsub.f32 %v4902, %v5045
        %v5098 = vsub.f32 %v4903, %v5045
        %v5099 = vsub.f32 %v4904, %v5046
        %v5100 = vsub.f32 %v4905, %v5046
        %v5101 = vsub.f32 %v4906, %v5047
        %v5102 = vsub.f32 %v4907, %v5047
        %v5103 = vsub.f32 %v4908, %v5048
        %v5104 = vsub.f32 %v4909, %v5048
        %v5105 = vsub.f32 %v4910, %v5049
        %v5106 = vsub.f32 %v4911, %v5049
        %v5107 = vsub.f32 %v4912, %v5050
        %v5108 = vsub.f32 %v4913, %v5050
        %v5109 = vsub.f32 %v4914, %v5051
        %v5110 = vsub.f32 %v4915, %v5051
        %v5111 = vsub.f32 %v4916, %v5052
        %v5112 = vsub.f32 %v4917, %v5052
        %v5113 = vsub.f32 %v4918, %v5053
        %v5114 = vsub.f32 %v4919, %v5053
        %v5115 = vsub.f32 %v4920, %v5054
        %v5116 = vsub.f32 %v4921, %v5054
        %v5117 = vsub.f32 %v4922, %v5055
        %v5118 = vsub.f32 %v4923, %v5055
        %v5119 = vsub.f32 %v4924, %v5056
        %v5120 = vsub.f32 %v4925, %v5056
        %v5121 = vmul.f32 %v5057, %v5057
        %v5122 = vmul.f32 %v5058, %v5058
        %v5123 = vmul.f32 %v5059, %v5059
        %v5124 = vmul.f32 %v5060, %v5060
        %v5125 = vmul.f32 %v5061, %v5061
        %v5126 = vmul.f32 %v5062, %v5062
        %v5127 = vmul.f32 %v5063, %v5063
        %v5128 = vmul.f32 %v5064, %v5064
        %v5129 = vmul.f32 %v5065, %v5065
        %v5130 = vmul.f32 %v5066, %v5066
        %v5131 = vmul.f32 %v5067, %v5067
        %v5132 = vmul.f32 %v5068, %v5068
        %v5133 = vmul.f32 %v5069, %v5069
        %v5134 = vmul.f32 %v5070, %v5070
        %v5135 = vmul.f32 %v5071, %v5071
        %v5136 = vmul.f32 %v5072, %v5072
        %v5137 = vmul.f32 %v5073, %v5073
        %v5138 = vmul.f32 %v5074, %v5074
        %v5139 = vmul.f32 %v5075, %v5075
        %v5140 = vmul.f32 %v5076, %v5076
        %v5141 = vmul.f32 %v5077, %v5077
        %v5142 = vmul.f32 %v5078, %v5078
        %v5143 = vmul.f32 %v5079, %v5079
        %v5144 = vmul.f32 %v5080, %v5080
        %v5145 = vmul.f32 %v5081, %v5081
        %v5146 = vmul.f32 %v5082, %v5082
        %v5147 = vmul.f32 %v5083, %v5083
        %v5148 = vmul.f32 %v5084, %v5084
        %v5149 = vmul.f32 %v5085, %v5085
        %v5150 = vmul.f32 %v5086, %v5086
        %v5151 = vmul.f32 %v5087, %v5087
        %v5152 = vmul.f32 %v5088, %v5088
        %v5153 = vmul.f32 %v5089, %v5089
        %v5154 = vmul.f32 %v5090, %v5090
        %v5155 = vmul.f32 %v5091, %v5091
        %v5156 = vmul.f32 %v5092, %v5092
        %v5157 = vmul.f32 %v5093, %v5093
        %v5158 = vmul.f32 %v5094, %v5094
        %v5159 = vmul.f32 %v5095, %v5095
        %v5160 = vmul.f32 %v5096, %v5096
        %v5161 = vmul.f32 %v5097, %v5097
        %v5162 = vmul.f32 %v5098, %v5098
        %v5163 = vmul.f32 %v5099, %v5099
        %v5164 = vmul.f32 %v5100, %v5100
        %v5165 = vmul.f32 %v5101, %v5101
        %v5166 = vmul.f32 %v5102, %v5102
        %v5167 = vmul.f32 %v5103, %v5103
        %v5168 = vmul.f32 %v5104, %v5104
        %v5169 = vmul.f32 %v5105, %v5105
        %v5170 = vmul.f32 %v5106, %v5106
        %v5171 = vmul.f32 %v5107, %v5107
        %v5172 = vmul.f32 %v5108, %v5108
        %v5173 = vmul.f32 %v5109, %v5109
        %v5174 = vmul.f32 %v5110, %v5110
        %v5175 = vmul.f32 %v5111, %v5111
        %v5176 = vmul.f32 %v5112, %v5112
        %v5177 = vmul.f32 %v5113, %v5113
        %v5178 = vmul.f32 %v5114, %v5114
        %v5179 = vmul.f32 %v5115, %v5115
        %v5180 = vmul.f32 %v5116, %v5116
        %v5181 = vmul.f32 %v5117, %v5117
        %v5182 = vmul.f32 %v5118, %v5118
        %v5183 = vmul.f32 %v5119, %v5119
        %v5184 = vmul.f32 %v5120, %v5120
        %v5185 = vadd.f32 %v5121, %v5122
        %5186 = vadd.xlane.f32.xlu0 %v5185
        %v5187 = vpop.xlane.xlu0 %5186
        %v5188 = vadd.f32 %v5123, %v5124
        %5189 = vadd.xlane.f32.xlu0 %v5188
        %v5190 = vpop.xlane.xlu0 %5189
        %v5191 = vadd.f32 %v5125, %v5126
        %5192 = vadd.xlane.f32.xlu0 %v5191
        %v5193 = vpop.xlane.xlu0 %5192
        %v5194 = vadd.f32 %v5127, %v5128
        %5195 = vadd.xlane.f32.xlu0 %v5194
        %v5196 = vpop.xlane.xlu0 %5195
        %v5197 = vadd.f32 %v5129, %v5130
        %5198 = vadd.xlane.f32.xlu0 %v5197
        %v5199 = vpop.xlane.xlu0 %5198
        %v5200 = vadd.f32 %v5131, %v5132
        %5201 = vadd.xlane.f32.xlu0 %v5200
        %v5202 = vpop.xlane.xlu0 %5201
        %v5203 = vadd.f32 %v5133, %v5134
        %5204 = vadd.xlane.f32.xlu0 %v5203
        %v5205 = vpop.xlane.xlu0 %5204
        %v5206 = vadd.f32 %v5135, %v5136
        %5207 = vadd.xlane.f32.xlu0 %v5206
        %v5208 = vpop.xlane.xlu0 %5207
        %v5209 = vadd.f32 %v5137, %v5138
        %5210 = vadd.xlane.f32.xlu0 %v5209
        %v5211 = vpop.xlane.xlu0 %5210
        %v5212 = vadd.f32 %v5139, %v5140
        %5213 = vadd.xlane.f32.xlu0 %v5212
        %v5214 = vpop.xlane.xlu0 %5213
        %v5215 = vadd.f32 %v5141, %v5142
        %5216 = vadd.xlane.f32.xlu0 %v5215
        %v5217 = vpop.xlane.xlu0 %5216
        %v5218 = vadd.f32 %v5143, %v5144
        %5219 = vadd.xlane.f32.xlu0 %v5218
        %v5220 = vpop.xlane.xlu0 %5219
        %v5221 = vadd.f32 %v5145, %v5146
        %5222 = vadd.xlane.f32.xlu0 %v5221
        %v5223 = vpop.xlane.xlu0 %5222
        %v5224 = vadd.f32 %v5147, %v5148
        %5225 = vadd.xlane.f32.xlu0 %v5224
        %v5226 = vpop.xlane.xlu0 %5225
        %v5227 = vadd.f32 %v5149, %v5150
        %5228 = vadd.xlane.f32.xlu0 %v5227
        %v5229 = vpop.xlane.xlu0 %5228
        %v5230 = vadd.f32 %v5151, %v5152
        %5231 = vadd.xlane.f32.xlu0 %v5230
        %v5232 = vpop.xlane.xlu0 %5231
        %v5233 = vadd.f32 %v5153, %v5154
        %5234 = vadd.xlane.f32.xlu0 %v5233
        %v5235 = vpop.xlane.xlu0 %5234
        %v5236 = vadd.f32 %v5155, %v5156
        %5237 = vadd.xlane.f32.xlu0 %v5236
        %v5238 = vpop.xlane.xlu0 %5237
        %v5239 = vadd.f32 %v5157, %v5158
        %5240 = vadd.xlane.f32.xlu0 %v5239
        %v5241 = vpop.xlane.xlu0 %5240
        %v5242 = vadd.f32 %v5159, %v5160
        %5243 = vadd.xlane.f32.xlu0 %v5242
        %v5244 = vpop.xlane.xlu0 %5243
        %v5245 = vadd.f32 %v5161, %v5162
        %5246 = vadd.xlane.f32.xlu0 %v5245
        %v5247 = vpop.xlane.xlu0 %5246
        %v5248 = vadd.f32 %v5163, %v5164
        %5249 = vadd.xlane.f32.xlu0 %v5248
        %v5250 = vpop.xlane.xlu0 %5249
        %v5251 = vadd.f32 %v5165, %v5166
        %5252 = vadd.xlane.f32.xlu0 %v5251
        %v5253 = vpop.xlane.xlu0 %5252
        %v5254 = vadd.f32 %v5167, %v5168
        %5255 = vadd.xlane.f32.xlu0 %v5254
        %v5256 = vpop.xlane.xlu0 %5255
        %v5257 = vadd.f32 %v5169, %v5170
        %5258 = vadd.xlane.f32.xlu0 %v5257
        %v5259 = vpop.xlane.xlu0 %5258
        %v5260 = vadd.f32 %v5171, %v5172
        %5261 = vadd.xlane.f32.xlu0 %v5260
        %v5262 = vpop.xlane.xlu0 %5261
        %v5263 = vadd.f32 %v5173, %v5174
        %5264 = vadd.xlane.f32.xlu0 %v5263
        %v5265 = vpop.xlane.xlu0 %5264
        %v5266 = vadd.f32 %v5175, %v5176
        %5267 = vadd.xlane.f32.xlu0 %v5266
        %v5268 = vpop.xlane.xlu0 %5267
        %v5269 = vadd.f32 %v5177, %v5178
        %5270 = vadd.xlane.f32.xlu0 %v5269
        %v5271 = vpop.xlane.xlu0 %5270
        %v5272 = vadd.f32 %v5179, %v5180
        %5273 = vadd.xlane.f32.xlu0 %v5272
        %v5274 = vpop.xlane.xlu0 %5273
        %v5275 = vadd.f32 %v5181, %v5182
        %5276 = vadd.xlane.f32.xlu0 %v5275
        %v5277 = vpop.xlane.xlu0 %5276
        %v5278 = vadd.f32 %v5183, %v5184
        %5279 = vadd.xlane.f32.xlu0 %v5278
        %v5280 = vpop.xlane.xlu0 %5279
        %v5281 = vmul.f32 %v5187, %v5024
        %v5282 = vmul.f32 %v5190, %v5024
        %v5283 = vmul.f32 %v5193, %v5024
        %v5284 = vmul.f32 %v5196, %v5024
        %v5285 = vmul.f32 %v5199, %v5024
        %v5286 = vmul.f32 %v5202, %v5024
        %v5287 = vmul.f32 %v5205, %v5024
        %v5288 = vmul.f32 %v5208, %v5024
        %v5289 = vmul.f32 %v5211, %v5024
        %v5290 = vmul.f32 %v5214, %v5024
        %v5291 = vmul.f32 %v5217, %v5024
        %v5292 = vmul.f32 %v5220, %v5024
        %v5293 = vmul.f32 %v5223, %v5024
        %v5294 = vmul.f32 %v5226, %v5024
        %v5295 = vmul.f32 %v5229, %v5024
        %v5296 = vmul.f32 %v5232, %v5024
        %v5297 = vmul.f32 %v5235, %v5024
        %v5298 = vmul.f32 %v5238, %v5024
        %v5299 = vmul.f32 %v5241, %v5024
        %v5300 = vmul.f32 %v5244, %v5024
        %v5301 = vmul.f32 %v5247, %v5024
        %v5302 = vmul.f32 %v5250, %v5024
        %v5303 = vmul.f32 %v5253, %v5024
        %v5304 = vmul.f32 %v5256, %v5024
        %v5305 = vmul.f32 %v5259, %v5024
        %v5306 = vmul.f32 %v5262, %v5024
        %v5307 = vmul.f32 %v5265, %v5024
        %v5308 = vmul.f32 %v5268, %v5024
        %v5309 = vmul.f32 %v5271, %v5024
        %v5310 = vmul.f32 %v5274, %v5024
        %v5311 = vmul.f32 %v5277, %v5024
        %v5312 = vmul.f32 %v5280, %v5024
        %v5313 = vadd.f32 %v5281, 1e-05
        %v5314 = vadd.f32 %v5282, 1e-05
        %v5315 = vadd.f32 %v5283, 1e-05
        %v5316 = vadd.f32 %v5284, 1e-05
        %v5317 = vadd.f32 %v5285, 1e-05
        %v5318 = vadd.f32 %v5286, 1e-05
        %v5319 = vadd.f32 %v5287, 1e-05
        %v5320 = vadd.f32 %v5288, 1e-05
        %v5321 = vadd.f32 %v5289, 1e-05
        %v5322 = vadd.f32 %v5290, 1e-05
        %v5323 = vadd.f32 %v5291, 1e-05
        %v5324 = vadd.f32 %v5292, 1e-05
        %v5325 = vadd.f32 %v5293, 1e-05
        %v5326 = vadd.f32 %v5294, 1e-05
        %v5327 = vadd.f32 %v5295, 1e-05
        %v5328 = vadd.f32 %v5296, 1e-05
        %v5329 = vadd.f32 %v5297, 1e-05
        %v5330 = vadd.f32 %v5298, 1e-05
        %v5331 = vadd.f32 %v5299, 1e-05
        %v5332 = vadd.f32 %v5300, 1e-05
        %v5333 = vadd.f32 %v5301, 1e-05
        %v5334 = vadd.f32 %v5302, 1e-05
        %v5335 = vadd.f32 %v5303, 1e-05
        %v5336 = vadd.f32 %v5304, 1e-05
        %v5337 = vadd.f32 %v5305, 1e-05
        %v5338 = vadd.f32 %v5306, 1e-05
        %v5339 = vadd.f32 %v5307, 1e-05
        %v5340 = vadd.f32 %v5308, 1e-05
        %v5341 = vadd.f32 %v5309, 1e-05
        %v5342 = vadd.f32 %v5310, 1e-05
        %v5343 = vadd.f32 %v5311, 1e-05
        %v5344 = vadd.f32 %v5312, 1e-05
        %v5345 = vrsqrt.pop %v5313
        %v5346 = vrsqrt.pop %v5314
        %v5347 = vrsqrt.pop %v5315
        %v5348 = vrsqrt.pop %v5316
        %v5349 = vrsqrt.pop %v5317
        %v5350 = vrsqrt.pop %v5318
        %v5351 = vrsqrt.pop %v5319
        %v5352 = vrsqrt.pop %v5320
        %v5353 = vrsqrt.pop %v5321
        %v5354 = vrsqrt.pop %v5322
        %v5355 = vrsqrt.pop %v5323
        %v5356 = vrsqrt.pop %v5324
        %v5357 = vrsqrt.pop %v5325
        %v5358 = vrsqrt.pop %v5326
        %v5359 = vrsqrt.pop %v5327
        %v5360 = vrsqrt.pop %v5328
        %v5361 = vrsqrt.pop %v5329
        %v5362 = vrsqrt.pop %v5330
        %v5363 = vrsqrt.pop %v5331
        %v5364 = vrsqrt.pop %v5332
        %v5365 = vrsqrt.pop %v5333
        %v5366 = vrsqrt.pop %v5334
        %v5367 = vrsqrt.pop %v5335
        %v5368 = vrsqrt.pop %v5336
        %v5369 = vrsqrt.pop %v5337
        %v5370 = vrsqrt.pop %v5338
        %v5371 = vrsqrt.pop %v5339
        %v5372 = vrsqrt.pop %v5340
        %v5373 = vrsqrt.pop %v5341
        %v5374 = vrsqrt.pop %v5342
        %v5375 = vrsqrt.pop %v5343
        %v5376 = vrsqrt.pop %v5344
        %v5377 = vmul.f32 %v5057, %v5345
        %v5378 = vmul.f32 %v5058, %v5345
        %v5379 = vmul.f32 %v5059, %v5346
        %v5380 = vmul.f32 %v5060, %v5346
        %v5381 = vmul.f32 %v5061, %v5347
        %v5382 = vmul.f32 %v5062, %v5347
        %v5383 = vmul.f32 %v5063, %v5348
        %v5384 = vmul.f32 %v5064, %v5348
        %v5385 = vmul.f32 %v5065, %v5349
        %v5386 = vmul.f32 %v5066, %v5349
        %v5387 = vmul.f32 %v5067, %v5350
        %v5388 = vmul.f32 %v5068, %v5350
        %v5389 = vmul.f32 %v5069, %v5351
        %v5390 = vmul.f32 %v5070, %v5351
        %v5391 = vmul.f32 %v5071, %v5352
        %v5392 = vmul.f32 %v5072, %v5352
        %v5393 = vmul.f32 %v5073, %v5353
        %v5394 = vmul.f32 %v5074, %v5353
        %v5395 = vmul.f32 %v5075, %v5354
        %v5396 = vmul.f32 %v5076, %v5354
        %v5397 = vmul.f32 %v5077, %v5355
        %v5398 = vmul.f32 %v5078, %v5355
        %v5399 = vmul.f32 %v5079, %v5356
        %v5400 = vmul.f32 %v5080, %v5356
        %v5401 = vmul.f32 %v5081, %v5357
        %v5402 = vmul.f32 %v5082, %v5357
        %v5403 = vmul.f32 %v5083, %v5358
        %v5404 = vmul.f32 %v5084, %v5358
        %v5405 = vmul.f32 %v5085, %v5359
        %v5406 = vmul.f32 %v5086, %v5359
        %v5407 = vmul.f32 %v5087, %v5360
        %v5408 = vmul.f32 %v5088, %v5360
        %v5409 = vmul.f32 %v5089, %v5361
        %v5410 = vmul.f32 %v5090, %v5361
        %v5411 = vmul.f32 %v5091, %v5362
        %v5412 = vmul.f32 %v5092, %v5362
        %v5413 = vmul.f32 %v5093, %v5363
        %v5414 = vmul.f32 %v5094, %v5363
        %v5415 = vmul.f32 %v5095, %v5364
        %v5416 = vmul.f32 %v5096, %v5364
        %v5417 = vmul.f32 %v5097, %v5365
        %v5418 = vmul.f32 %v5098, %v5365
        %v5419 = vmul.f32 %v5099, %v5366
        %v5420 = vmul.f32 %v5100, %v5366
        %v5421 = vmul.f32 %v5101, %v5367
        %v5422 = vmul.f32 %v5102, %v5367
        %v5423 = vmul.f32 %v5103, %v5368
        %v5424 = vmul.f32 %v5104, %v5368
        %v5425 = vmul.f32 %v5105, %v5369
        %v5426 = vmul.f32 %v5106, %v5369
        %v5427 = vmul.f32 %v5107, %v5370
        %v5428 = vmul.f32 %v5108, %v5370
        %v5429 = vmul.f32 %v5109, %v5371
        %v5430 = vmul.f32 %v5110, %v5371
        %v5431 = vmul.f32 %v5111, %v5372
        %v5432 = vmul.f32 %v5112, %v5372
        %v5433 = vmul.f32 %v5113, %v5373
        %v5434 = vmul.f32 %v5114, %v5373
        %v5435 = vmul.f32 %v5115, %v5374
        %v5436 = vmul.f32 %v5116, %v5374
        %v5437 = vmul.f32 %v5117, %v5375
        %v5438 = vmul.f32 %v5118, %v5375
        %v5439 = vmul.f32 %v5119, %v5376
        %v5440 = vmul.f32 %v5120, %v5376
        %v5442 = vlaneseq
        %v5443 = vshrl.u32 %v5442, 7
        %v5444 = vsub.s32 0, %v5443
        %v5445 = vrot.slane %v4926, %v5444
        %v5446 = vlaneseq
        %v5447 = vshrl.u32 %v5446, 7
        %v5448 = vsub.s32 1, %v5447
        %v5449 = vrot.slane %v4926, %v5448
        %v5452 = vmul.f32 %v5377, %v5445
        %v5453 = vmul.f32 %v5378, %v5449
        %v5454 = vmul.f32 %v5379, %v5445
        %v5455 = vmul.f32 %v5380, %v5449
        %v5456 = vmul.f32 %v5381, %v5445
        %v5457 = vmul.f32 %v5382, %v5449
        %v5458 = vmul.f32 %v5383, %v5445
        %v5459 = vmul.f32 %v5384, %v5449
        %v5460 = vmul.f32 %v5385, %v5445
        %v5461 = vmul.f32 %v5386, %v5449
        %v5462 = vmul.f32 %v5387, %v5445
        %v5463 = vmul.f32 %v5388, %v5449
        %v5464 = vmul.f32 %v5389, %v5445
        %v5465 = vmul.f32 %v5390, %v5449
        %v5466 = vmul.f32 %v5391, %v5445
        %v5467 = vmul.f32 %v5392, %v5449
        %v5468 = vmul.f32 %v5393, %v5445
        %v5469 = vmul.f32 %v5394, %v5449
        %v5470 = vmul.f32 %v5395, %v5445
        %v5471 = vmul.f32 %v5396, %v5449
        %v5472 = vmul.f32 %v5397, %v5445
        %v5473 = vmul.f32 %v5398, %v5449
        %v5474 = vmul.f32 %v5399, %v5445
        %v5475 = vmul.f32 %v5400, %v5449
        %v5476 = vmul.f32 %v5401, %v5445
        %v5477 = vmul.f32 %v5402, %v5449
        %v5478 = vmul.f32 %v5403, %v5445
        %v5479 = vmul.f32 %v5404, %v5449
        %v5480 = vmul.f32 %v5405, %v5445
        %v5481 = vmul.f32 %v5406, %v5449
        %v5482 = vmul.f32 %v5407, %v5445
        %v5483 = vmul.f32 %v5408, %v5449
        %v5484 = vmul.f32 %v5409, %v5445
        %v5485 = vmul.f32 %v5410, %v5449
        %v5486 = vmul.f32 %v5411, %v5445
        %v5487 = vmul.f32 %v5412, %v5449
        %v5488 = vmul.f32 %v5413, %v5445
        %v5489 = vmul.f32 %v5414, %v5449
        %v5490 = vmul.f32 %v5415, %v5445
        %v5491 = vmul.f32 %v5416, %v5449
        %v5492 = vmul.f32 %v5417, %v5445
        %v5493 = vmul.f32 %v5418, %v5449
        %v5494 = vmul.f32 %v5419, %v5445
        %v5495 = vmul.f32 %v5420, %v5449
        %v5496 = vmul.f32 %v5421, %v5445
        %v5497 = vmul.f32 %v5422, %v5449
        %v5498 = vmul.f32 %v5423, %v5445
        %v5499 = vmul.f32 %v5424, %v5449
        %v5500 = vmul.f32 %v5425, %v5445
        %v5501 = vmul.f32 %v5426, %v5449
        %v5502 = vmul.f32 %v5427, %v5445
        %v5503 = vmul.f32 %v5428, %v5449
        %v5504 = vmul.f32 %v5429, %v5445
        %v5505 = vmul.f32 %v5430, %v5449
        %v5506 = vmul.f32 %v5431, %v5445
        %v5507 = vmul.f32 %v5432, %v5449
        %v5508 = vmul.f32 %v5433, %v5445
        %v5509 = vmul.f32 %v5434, %v5449
        %v5510 = vmul.f32 %v5435, %v5445
        %v5511 = vmul.f32 %v5436, %v5449
        %v5512 = vmul.f32 %v5437, %v5445
        %v5513 = vmul.f32 %v5438, %v5449
        %v5514 = vmul.f32 %v5439, %v5445
        %v5515 = vmul.f32 %v5440, %v5449
        %v5517 = vlaneseq
        %v5518 = vshrl.u32 %v5517, 7
        %v5519 = vsub.s32 0, %v5518
        %v5520 = vrot.slane %v4927, %v5519
        %v5521 = vlaneseq
        %v5522 = vshrl.u32 %v5521, 7
        %v5523 = vsub.s32 1, %v5522
        %v5524 = vrot.slane %v4927, %v5523
        %v5527 = vadd.f32 %v5452, %v5520
        %v5528 = vadd.f32 %v5453, %v5524
        %v5529 = vadd.f32 %v5454, %v5520
        %v5530 = vadd.f32 %v5455, %v5524
        %v5531 = vadd.f32 %v5456, %v5520
        %v5532 = vadd.f32 %v5457, %v5524
        %v5533 = vadd.f32 %v5458, %v5520
        %v5534 = vadd.f32 %v5459, %v5524
        %v5535 = vadd.f32 %v5460, %v5520
        %v5536 = vadd.f32 %v5461, %v5524
        %v5537 = vadd.f32 %v5462, %v5520
        %v5538 = vadd.f32 %v5463, %v5524
        %v5539 = vadd.f32 %v5464, %v5520
        %v5540 = vadd.f32 %v5465, %v5524
        %v5541 = vadd.f32 %v5466, %v5520
        %v5542 = vadd.f32 %v5467, %v5524
        %v5543 = vadd.f32 %v5468, %v5520
        %v5544 = vadd.f32 %v5469, %v5524
        %v5545 = vadd.f32 %v5470, %v5520
        %v5546 = vadd.f32 %v5471, %v5524
        %v5547 = vadd.f32 %v5472, %v5520
        %v5548 = vadd.f32 %v5473, %v5524
        %v5549 = vadd.f32 %v5474, %v5520
        %v5550 = vadd.f32 %v5475, %v5524
        %v5551 = vadd.f32 %v5476, %v5520
        %v5552 = vadd.f32 %v5477, %v5524
        %v5553 = vadd.f32 %v5478, %v5520
        %v5554 = vadd.f32 %v5479, %v5524
        %v5555 = vadd.f32 %v5480, %v5520
        %v5556 = vadd.f32 %v5481, %v5524
        %v5557 = vadd.f32 %v5482, %v5520
        %v5558 = vadd.f32 %v5483, %v5524
        %v5559 = vadd.f32 %v5484, %v5520
        %v5560 = vadd.f32 %v5485, %v5524
        %v5561 = vadd.f32 %v5486, %v5520
        %v5562 = vadd.f32 %v5487, %v5524
        %v5563 = vadd.f32 %v5488, %v5520
        %v5564 = vadd.f32 %v5489, %v5524
        %v5565 = vadd.f32 %v5490, %v5520
        %v5566 = vadd.f32 %v5491, %v5524
        %v5567 = vadd.f32 %v5492, %v5520
        %v5568 = vadd.f32 %v5493, %v5524
        %v5569 = vadd.f32 %v5494, %v5520
        %v5570 = vadd.f32 %v5495, %v5524
        %v5571 = vadd.f32 %v5496, %v5520
        %v5572 = vadd.f32 %v5497, %v5524
        %v5573 = vadd.f32 %v5498, %v5520
        %v5574 = vadd.f32 %v5499, %v5524
        %v5575 = vadd.f32 %v5500, %v5520
        %v5576 = vadd.f32 %v5501, %v5524
        %v5577 = vadd.f32 %v5502, %v5520
        %v5578 = vadd.f32 %v5503, %v5524
        %v5579 = vadd.f32 %v5504, %v5520
        %v5580 = vadd.f32 %v5505, %v5524
        %v5581 = vadd.f32 %v5506, %v5520
        %v5582 = vadd.f32 %v5507, %v5524
        %v5583 = vadd.f32 %v5508, %v5520
        %v5584 = vadd.f32 %v5509, %v5524
        %v5585 = vadd.f32 %v5510, %v5520
        %v5586 = vadd.f32 %v5511, %v5524
        %v5587 = vadd.f32 %v5512, %v5520
        %v5588 = vadd.f32 %v5513, %v5524
        %v5589 = vadd.f32 %v5514, %v5520
        %v5590 = vadd.f32 %v5515, %v5524
        %v5591 = vpack.c.bf16 %v5529, %v5527
        %v5592 = vpack.c.bf16 %v5530, %v5528
        %v5593 = vpack.c.bf16 %v5533, %v5531
        %v5594 = vpack.c.bf16 %v5534, %v5532
        %v5595 = vpack.c.bf16 %v5537, %v5535
        %v5596 = vpack.c.bf16 %v5538, %v5536
        %v5597 = vpack.c.bf16 %v5541, %v5539
        %v5598 = vpack.c.bf16 %v5542, %v5540
        %v5599 = vpack.c.bf16 %v5545, %v5543
        %v5600 = vpack.c.bf16 %v5546, %v5544
        %v5601 = vpack.c.bf16 %v5549, %v5547
        %v5602 = vpack.c.bf16 %v5550, %v5548
        %v5603 = vpack.c.bf16 %v5553, %v5551
        %v5604 = vpack.c.bf16 %v5554, %v5552
        %v5605 = vpack.c.bf16 %v5557, %v5555
        %v5606 = vpack.c.bf16 %v5558, %v5556
        %v5607 = vpack.c.bf16 %v5561, %v5559
        %v5608 = vpack.c.bf16 %v5562, %v5560
        %v5609 = vpack.c.bf16 %v5565, %v5563
        %v5610 = vpack.c.bf16 %v5566, %v5564
        %v5611 = vpack.c.bf16 %v5569, %v5567
        %v5612 = vpack.c.bf16 %v5570, %v5568
        %v5613 = vpack.c.bf16 %v5573, %v5571
        %v5614 = vpack.c.bf16 %v5574, %v5572
        %v5615 = vpack.c.bf16 %v5577, %v5575
        %v5616 = vpack.c.bf16 %v5578, %v5576
        %v5617 = vpack.c.bf16 %v5581, %v5579
        %v5618 = vpack.c.bf16 %v5582, %v5580
        %v5619 = vpack.c.bf16 %v5585, %v5583
        %v5620 = vpack.c.bf16 %v5586, %v5584
        %v5621 = vpack.c.bf16 %v5589, %v5587
        %v5622 = vpack.c.bf16 %v5590, %v5588
        %v5623 = vld [vmem:[%s666] sm:$0xff]
        %v5624 = vld [vmem:[%s666 + $0x8] sm:$0xff]
        %v5625 = vld [vmem:[%s666 + $0x10] sm:$0xff]
        %v5626 = vld [vmem:[%s666 + $0x18] sm:$0xff]
        %v5627 = vld [vmem:[%s666 + $0x20] sm:$0xff]
        %v5628 = vld [vmem:[%s666 + $0x28] sm:$0xff]
        %v5629 = vld [vmem:[%s666 + $0x30] sm:$0xff]
        %v5630 = vld [vmem:[%s666 + $0x38] sm:$0xff]
        %v5631 = vld [vmem:[%s666 + $0x40] sm:$0xff]
        %v5632 = vld [vmem:[%s666 + $0x48] sm:$0xff]
        %v5633 = vld [vmem:[%s666 + $0x50] sm:$0xff]
        %v5634 = vld [vmem:[%s666 + $0x58] sm:$0xff]
        %v5635 = vld [vmem:[%s666 + $0x60] sm:$0xff]
        %v5636 = vld [vmem:[%s666 + $0x68] sm:$0xff]
        %v5637 = vld [vmem:[%s666 + $0x70] sm:$0xff]
        %v5638 = vld [vmem:[%s666 + $0x78] sm:$0xff]
        %v5639 = vld [vmem:[%s666 + $0x80] sm:$0xff]
        %v5640 = vld [vmem:[%s666 + $0x88] sm:$0xff]
        %v5641 = vld [vmem:[%s666 + $0x90] sm:$0xff]
        %v5642 = vld [vmem:[%s666 + $0x98] sm:$0xff]
        %v5643 = vld [vmem:[%s666 + $0xa0] sm:$0xff]
        %v5644 = vld [vmem:[%s666 + $0xa8] sm:$0xff]
        %v5645 = vld [vmem:[%s666 + $0xb0] sm:$0xff]
        %v5646 = vld [vmem:[%s666 + $0xb8] sm:$0xff]
        %v5647 = vld [vmem:[%s666 + $0xc0] sm:$0xff]
        %v5648 = vld [vmem:[%s666 + $0xc8] sm:$0xff]
        %v5649 = vld [vmem:[%s666 + $0xd0] sm:$0xff]
        %v5650 = vld [vmem:[%s666 + $0xd8] sm:$0xff]
        %v5651 = vld [vmem:[%s666 + $0xe0] sm:$0xff]
        %v5652 = vld [vmem:[%s666 + $0xe8] sm:$0xff]
        %v5653 = vld [vmem:[%s666 + $0xf0] sm:$0xff]
        %v5654 = vld [vmem:[%s666 + $0xf8] sm:$0xff]
        %v5655 = vld [vmem:[%s666 + $0x100] sm:$0xff]
        %v5656 = vld [vmem:[%s666 + $0x108] sm:$0xff]
        %v5657 = vld [vmem:[%s666 + $0x110] sm:$0xff]
        %v5658 = vld [vmem:[%s666 + $0x118] sm:$0xff]
        %v5659 = vld [vmem:[%s666 + $0x120] sm:$0xff]
        %v5660 = vld [vmem:[%s666 + $0x128] sm:$0xff]
        %v5661 = vld [vmem:[%s666 + $0x130] sm:$0xff]
        %v5662 = vld [vmem:[%s666 + $0x138] sm:$0xff]
        %v5663 = vld [vmem:[%s666 + $0x140] sm:$0xff]
        %v5664 = vld [vmem:[%s666 + $0x148] sm:$0xff]
        %v5665 = vld [vmem:[%s666 + $0x150] sm:$0xff]
        %v5666 = vld [vmem:[%s666 + $0x158] sm:$0xff]
        %v5667 = vld [vmem:[%s666 + $0x160] sm:$0xff]
        %v5668 = vld [vmem:[%s666 + $0x168] sm:$0xff]
        %v5669 = vld [vmem:[%s666 + $0x170] sm:$0xff]
        %v5670 = vld [vmem:[%s666 + $0x178] sm:$0xff]
        %v5671 = vld [vmem:[%s666 + $0x180] sm:$0xff]
        %v5672 = vld [vmem:[%s666 + $0x188] sm:$0xff]
        %v5673 = vld [vmem:[%s666 + $0x190] sm:$0xff]
        %v5674 = vld [vmem:[%s666 + $0x198] sm:$0xff]
        %v5675 = vld [vmem:[%s666 + $0x1a0] sm:$0xff]
        %v5676 = vld [vmem:[%s666 + $0x1a8] sm:$0xff]
        %v5677 = vld [vmem:[%s666 + $0x1b0] sm:$0xff]
        %v5678 = vld [vmem:[%s666 + $0x1b8] sm:$0xff]
        %v5679 = vld [vmem:[%s666 + $0x1c0] sm:$0xff]
        %v5680 = vld [vmem:[%s666 + $0x1c8] sm:$0xff]
        %v5681 = vld [vmem:[%s666 + $0x1d0] sm:$0xff]
        %v5682 = vld [vmem:[%s666 + $0x1d8] sm:$0xff]
        %v5683 = vld [vmem:[%s666 + $0x1e0] sm:$0xff]
        %v5684 = vld [vmem:[%s666 + $0x1e8] sm:$0xff]
        %v5685 = vld [vmem:[%s666 + $0x1f0] sm:$0xff]
        %v5686 = vld [vmem:[%s666 + $0x1f8] sm:$0xff]
        %v5687 = vld [vmem:[%s783] sm:$0xf]
        %v5689 = vlaneseq
        %v5690 = vshrl.u32 %v5689, 7
        %v5691 = vsub.s32 0, %v5690
        %v5692 = vrot.slane %v5687, %v5691
        %v5693 = vlaneseq
        %v5694 = vshrl.u32 %v5693, 7
        %v5695 = vsub.s32 1, %v5694
        %v5696 = vrot.slane %v5687, %v5695
        %v5697 = vlaneseq
        %v5698 = vshrl.u32 %v5697, 7
        %v5699 = vsub.s32 2, %v5698
        %v5700 = vrot.slane %v5687, %v5699
        %v5701 = vlaneseq
        %v5702 = vshrl.u32 %v5701, 7
        %v5703 = vsub.s32 3, %v5702
        %v5704 = vrot.slane %v5687, %v5703
        %v5773 = vunpack.c.l.b16 %v5623
        %v5774 = vunpack.c.h.b16 %v5623
        %v5775 = vunpack.c.l.b16 %v5624
        %v5776 = vunpack.c.h.b16 %v5624
        %v5777 = vunpack.c.l.b16 %v5625
        %v5778 = vunpack.c.h.b16 %v5625
        %v5779 = vunpack.c.l.b16 %v5626
        %v5780 = vunpack.c.h.b16 %v5626
        %v5781 = vunpack.c.l.b16 %v5627
        %v5782 = vunpack.c.h.b16 %v5627
        %v5783 = vunpack.c.l.b16 %v5628
        %v5784 = vunpack.c.h.b16 %v5628
        %v5785 = vunpack.c.l.b16 %v5629
        %v5786 = vunpack.c.h.b16 %v5629
        %v5787 = vunpack.c.l.b16 %v5630
        %v5788 = vunpack.c.h.b16 %v5630
        %v5789 = vunpack.c.l.b16 %v5631
        %v5790 = vunpack.c.h.b16 %v5631
        %v5791 = vunpack.c.l.b16 %v5632
        %v5792 = vunpack.c.h.b16 %v5632
        %v5793 = vunpack.c.l.b16 %v5633
        %v5794 = vunpack.c.h.b16 %v5633
        %v5795 = vunpack.c.l.b16 %v5634
        %v5796 = vunpack.c.h.b16 %v5634
        %v5797 = vunpack.c.l.b16 %v5635
        %v5798 = vunpack.c.h.b16 %v5635
        %v5799 = vunpack.c.l.b16 %v5636
        %v5800 = vunpack.c.h.b16 %v5636
        %v5801 = vunpack.c.l.b16 %v5637
        %v5802 = vunpack.c.h.b16 %v5637
        %v5803 = vunpack.c.l.b16 %v5638
        %v5804 = vunpack.c.h.b16 %v5638
        %v5805 = vunpack.c.l.b16 %v5639
        %v5806 = vunpack.c.h.b16 %v5639
        %v5807 = vunpack.c.l.b16 %v5640
        %v5808 = vunpack.c.h.b16 %v5640
        %v5809 = vunpack.c.l.b16 %v5641
        %v5810 = vunpack.c.h.b16 %v5641
        %v5811 = vunpack.c.l.b16 %v5642
        %v5812 = vunpack.c.h.b16 %v5642
        %v5813 = vunpack.c.l.b16 %v5643
        %v5814 = vunpack.c.h.b16 %v5643
        %v5815 = vunpack.c.l.b16 %v5644
        %v5816 = vunpack.c.h.b16 %v5644
        %v5817 = vunpack.c.l.b16 %v5645
        %v5818 = vunpack.c.h.b16 %v5645
        %v5819 = vunpack.c.l.b16 %v5646
        %v5820 = vunpack.c.h.b16 %v5646
        %v5821 = vunpack.c.l.b16 %v5647
        %v5822 = vunpack.c.h.b16 %v5647
        %v5823 = vunpack.c.l.b16 %v5648
        %v5824 = vunpack.c.h.b16 %v5648
        %v5825 = vunpack.c.l.b16 %v5649
        %v5826 = vunpack.c.h.b16 %v5649
        %v5827 = vunpack.c.l.b16 %v5650
        %v5828 = vunpack.c.h.b16 %v5650
        %v5829 = vunpack.c.l.b16 %v5651
        %v5830 = vunpack.c.h.b16 %v5651
        %v5831 = vunpack.c.l.b16 %v5652
        %v5832 = vunpack.c.h.b16 %v5652
        %v5833 = vunpack.c.l.b16 %v5653
        %v5834 = vunpack.c.h.b16 %v5653
        %v5835 = vunpack.c.l.b16 %v5654
        %v5836 = vunpack.c.h.b16 %v5654
        %v5837 = vunpack.c.l.b16 %v5655
        %v5838 = vunpack.c.h.b16 %v5655
        %v5839 = vunpack.c.l.b16 %v5656
        %v5840 = vunpack.c.h.b16 %v5656
        %v5841 = vunpack.c.l.b16 %v5657
        %v5842 = vunpack.c.h.b16 %v5657
        %v5843 = vunpack.c.l.b16 %v5658
        %v5844 = vunpack.c.h.b16 %v5658
        %v5845 = vunpack.c.l.b16 %v5659
        %v5846 = vunpack.c.h.b16 %v5659
        %v5847 = vunpack.c.l.b16 %v5660
        %v5848 = vunpack.c.h.b16 %v5660
        %v5849 = vunpack.c.l.b16 %v5661
        %v5850 = vunpack.c.h.b16 %v5661
        %v5851 = vunpack.c.l.b16 %v5662
        %v5852 = vunpack.c.h.b16 %v5662
        %v5853 = vunpack.c.l.b16 %v5663
        %v5854 = vunpack.c.h.b16 %v5663
        %v5855 = vunpack.c.l.b16 %v5664
        %v5856 = vunpack.c.h.b16 %v5664
        %v5857 = vunpack.c.l.b16 %v5665
        %v5858 = vunpack.c.h.b16 %v5665
        %v5859 = vunpack.c.l.b16 %v5666
        %v5860 = vunpack.c.h.b16 %v5666
        %v5861 = vunpack.c.l.b16 %v5667
        %v5862 = vunpack.c.h.b16 %v5667
        %v5863 = vunpack.c.l.b16 %v5668
        %v5864 = vunpack.c.h.b16 %v5668
        %v5865 = vunpack.c.l.b16 %v5669
        %v5866 = vunpack.c.h.b16 %v5669
        %v5867 = vunpack.c.l.b16 %v5670
        %v5868 = vunpack.c.h.b16 %v5670
        %v5869 = vunpack.c.l.b16 %v5671
        %v5870 = vunpack.c.h.b16 %v5671
        %v5871 = vunpack.c.l.b16 %v5672
        %v5872 = vunpack.c.h.b16 %v5672
        %v5873 = vunpack.c.l.b16 %v5673
        %v5874 = vunpack.c.h.b16 %v5673
        %v5875 = vunpack.c.l.b16 %v5674
        %v5876 = vunpack.c.h.b16 %v5674
        %v5877 = vunpack.c.l.b16 %v5675
        %v5878 = vunpack.c.h.b16 %v5675
        %v5879 = vunpack.c.l.b16 %v5676
        %v5880 = vunpack.c.h.b16 %v5676
        %v5881 = vunpack.c.l.b16 %v5677
        %v5882 = vunpack.c.h.b16 %v5677
        %v5883 = vunpack.c.l.b16 %v5678
        %v5884 = vunpack.c.h.b16 %v5678
        %v5885 = vunpack.c.l.b16 %v5679
        %v5886 = vunpack.c.h.b16 %v5679
        %v5887 = vunpack.c.l.b16 %v5680
        %v5888 = vunpack.c.h.b16 %v5680
        %v5889 = vunpack.c.l.b16 %v5681
        %v5890 = vunpack.c.h.b16 %v5681
        %v5891 = vunpack.c.l.b16 %v5682
        %v5892 = vunpack.c.h.b16 %v5682
        %v5893 = vunpack.c.l.b16 %v5683
        %v5894 = vunpack.c.h.b16 %v5683
        %v5895 = vunpack.c.l.b16 %v5684
        %v5896 = vunpack.c.h.b16 %v5684
        %v5897 = vunpack.c.l.b16 %v5685
        %v5898 = vunpack.c.h.b16 %v5685
        %v5899 = vunpack.c.l.b16 %v5686
        %v5900 = vunpack.c.h.b16 %v5686
        %v5901 = vpack.c.b16 %v5777, %v5773
        %v5902 = vpack.c.b16 %v5778, %v5774
        %v5903 = vpack.c.b16 %v5779, %v5775
        %v5904 = vpack.c.b16 %v5780, %v5776
        %v5905 = vpack.c.b16 %v5785, %v5781
        %v5906 = vpack.c.b16 %v5786, %v5782
        %v5907 = vpack.c.b16 %v5787, %v5783
        %v5908 = vpack.c.b16 %v5788, %v5784
        %v5909 = vpack.c.b16 %v5793, %v5789
        %v5910 = vpack.c.b16 %v5794, %v5790
        %v5911 = vpack.c.b16 %v5795, %v5791
        %v5912 = vpack.c.b16 %v5796, %v5792
        %v5913 = vpack.c.b16 %v5801, %v5797
        %v5914 = vpack.c.b16 %v5802, %v5798
        %v5915 = vpack.c.b16 %v5803, %v5799
        %v5916 = vpack.c.b16 %v5804, %v5800
        %v5917 = vpack.c.b16 %v5809, %v5805
        %v5918 = vpack.c.b16 %v5810, %v5806
        %v5919 = vpack.c.b16 %v5811, %v5807
        %v5920 = vpack.c.b16 %v5812, %v5808
        %v5921 = vpack.c.b16 %v5817, %v5813
        %v5922 = vpack.c.b16 %v5818, %v5814
        %v5923 = vpack.c.b16 %v5819, %v5815
        %v5924 = vpack.c.b16 %v5820, %v5816
        %v5925 = vpack.c.b16 %v5825, %v5821
        %v5926 = vpack.c.b16 %v5826, %v5822
        %v5927 = vpack.c.b16 %v5827, %v5823
        %v5928 = vpack.c.b16 %v5828, %v5824
        %v5929 = vpack.c.b16 %v5833, %v5829
        %v5930 = vpack.c.b16 %v5834, %v5830
        %v5931 = vpack.c.b16 %v5835, %v5831
        %v5932 = vpack.c.b16 %v5836, %v5832
        %v5933 = vpack.c.b16 %v5841, %v5837
        %v5934 = vpack.c.b16 %v5842, %v5838
        %v5935 = vpack.c.b16 %v5843, %v5839
        %v5936 = vpack.c.b16 %v5844, %v5840
        %v5937 = vpack.c.b16 %v5849, %v5845
        %v5938 = vpack.c.b16 %v5850, %v5846
        %v5939 = vpack.c.b16 %v5851, %v5847
        %v5940 = vpack.c.b16 %v5852, %v5848
        %v5941 = vpack.c.b16 %v5857, %v5853
        %v5942 = vpack.c.b16 %v5858, %v5854
        %v5943 = vpack.c.b16 %v5859, %v5855
        %v5944 = vpack.c.b16 %v5860, %v5856
        %v5945 = vpack.c.b16 %v5865, %v5861
        %v5946 = vpack.c.b16 %v5866, %v5862
        %v5947 = vpack.c.b16 %v5867, %v5863
        %v5948 = vpack.c.b16 %v5868, %v5864
        %v5949 = vpack.c.b16 %v5873, %v5869
        %v5950 = vpack.c.b16 %v5874, %v5870
        %v5951 = vpack.c.b16 %v5875, %v5871
        %v5952 = vpack.c.b16 %v5876, %v5872
        %v5953 = vpack.c.b16 %v5881, %v5877
        %v5954 = vpack.c.b16 %v5882, %v5878
        %v5955 = vpack.c.b16 %v5883, %v5879
        %v5956 = vpack.c.b16 %v5884, %v5880
        %v5957 = vpack.c.b16 %v5889, %v5885
        %v5958 = vpack.c.b16 %v5890, %v5886
        %v5959 = vpack.c.b16 %v5891, %v5887
        %v5960 = vpack.c.b16 %v5892, %v5888
        %v5961 = vpack.c.b16 %v5897, %v5893
        %v5962 = vpack.c.b16 %v5898, %v5894
        %v5963 = vpack.c.b16 %v5899, %v5895
        %v5964 = vpack.c.b16 %v5900, %v5896
        %6029 = vmatprep.subr.bf16.mxu0 %v5902
        %6030 = vmatpush1.bf16.msra.mxu0 %v5901
        %6031 = vmatprep.subr.bf16.mxu0 %v5906
        %6032 = vmatpush1.bf16.msra.mxu0 %v5905
        %6033 = vmatprep.subr.bf16.mxu0 %v5910
        %6034 = vmatpush1.bf16.msra.mxu0 %v5909
        %6035 = vmatprep.subr.bf16.mxu0 %v5914
        %6036 = vmatpush1.bf16.msra.mxu0 %v5913
        %6037 = vmatprep.subr.bf16.mxu0 %v5918
        %6038 = vmatpush1.bf16.msra.mxu0 %v5917
        %6039 = vmatprep.subr.bf16.mxu0 %v5922
        %6040 = vmatpush1.bf16.msra.mxu0 %v5921
        %6041 = vmatprep.subr.bf16.mxu0 %v5926
        %6042 = vmatpush1.bf16.msra.mxu0 %v5925
        %6043 = vmatprep.subr.bf16.mxu0 %v5930
        %6044 = vmatpush1.bf16.msra.mxu0 %v5929
        %6045 = vmatprep.subr.bf16.mxu0 %v5934
        %6046 = vmatpush1.bf16.msra.mxu0 %v5933
        %6047 = vmatprep.subr.bf16.mxu0 %v5938
        %6048 = vmatpush1.bf16.msra.mxu0 %v5937
        %6049 = vmatprep.subr.bf16.mxu0 %v5942
        %6050 = vmatpush1.bf16.msra.mxu0 %v5941
        %6051 = vmatprep.subr.bf16.mxu0 %v5946
        %6052 = vmatpush1.bf16.msra.mxu0 %v5945
        %6053 = vmatprep.subr.bf16.mxu0 %v5950
        %6054 = vmatpush1.bf16.msra.mxu0 %v5949
        %6055 = vmatprep.subr.bf16.mxu0 %v5954
        %6056 = vmatpush1.bf16.msra.mxu0 %v5953
        %6057 = vmatprep.subr.bf16.mxu0 %v5958
        %6058 = vmatpush1.bf16.msra.mxu0 %v5957
        %6059 = vmatprep.subr.bf16.mxu0 %v5962
        %6060 = vmatpush1.bf16.msra.mxu0 %v5961
        %6061 = vmatprep.mubr.bf16.mxu0 %v5592
        %6062 = vmatmul.mubr.bf16.gmra.mrb[0].mxu0 %v5591
        %v6063 = vpop.f32.mrb[0].mxu0
        %v6064 = vadd.f32 %v5692, %v6063
        %v6065 = vpop.f32.mrb[0].mxu0
        %v6066 = vadd.f32 %v5696, %v6065
        %v6067 = vpop.f32.mrb[0].mxu0
        %v6068 = vadd.f32 %v5692, %v6067
        %v6069 = vpop.f32.mrb[0].mxu0
        %v6070 = vadd.f32 %v5696, %v6069
        %6071 = vmatprep.mubr.bf16.mxu0 %v5594
        %6072 = vmatmul.mubr.bf16.gmra.mrb[0].mxu0 %v5593
        %v6073 = vpop.f32.mrb[0].mxu0
        %v6074 = vadd.f32 %v5692, %v6073
        %v6075 = vpop.f32.mrb[0].mxu0
        %v6076 = vadd.f32 %v5696, %v6075
        %v6077 = vpop.f32.mrb[0].mxu0
        %v6078 = vadd.f32 %v5692, %v6077
        %v6079 = vpop.f32.mrb[0].mxu0
        %v6080 = vadd.f32 %v5696, %v6079
        %6081 = vmatprep.mubr.bf16.mxu0 %v5596
        %6082 = vmatmul.mubr.bf16.gmra.mrb[0].mxu0 %v5595
        %v6083 = vpop.f32.mrb[0].mxu0
        %v6084 = vadd.f32 %v5692, %v6083
        %v6085 = vpop.f32.mrb[0].mxu0
        %v6086 = vadd.f32 %v5696, %v6085
        %v6087 = vpop.f32.mrb[0].mxu0
        %v6088 = vadd.f32 %v5692, %v6087
        %v6089 = vpop.f32.mrb[0].mxu0
        %v6090 = vadd.f32 %v5696, %v6089
        %6091 = vmatprep.mubr.bf16.mxu0 %v5598
        %6092 = vmatmul.mubr.bf16.gmra.mrb[0].mxu0 %v5597
        %v6093 = vpop.f32.mrb[0].mxu0
        %v6094 = vadd.f32 %v5692, %v6093
        %v6095 = vpop.f32.mrb[0].mxu0
        %v6096 = vadd.f32 %v5696, %v6095
        %v6097 = vpop.f32.mrb[0].mxu0
        %v6098 = vadd.f32 %v5692, %v6097
        %v6099 = vpop.f32.mrb[0].mxu0
        %v6100 = vadd.f32 %v5696, %v6099
        %6101 = vmatprep.mubr.bf16.mxu0 %v5600
        %6102 = vmatmul.mubr.bf16.gmra.mrb[0].mxu0 %v5599
        %v6103 = vpop.f32.mrb[0].mxu0
        %v6104 = vadd.f32 %v5692, %v6103
        %v6105 = vpop.f32.mrb[0].mxu0
        %v6106 = vadd.f32 %v5696, %v6105
        %v6107 = vpop.f32.mrb[0].mxu0
        %v6108 = vadd.f32 %v5692, %v6107
        %v6109 = vpop.f32.mrb[0].mxu0
        %v6110 = vadd.f32 %v5696, %v6109
        %6111 = vmatprep.mubr.bf16.mxu0 %v5602
        %6112 = vmatmul.mubr.bf16.gmra.mrb[0].mxu0 %v5601
        %v6113 = vpop.f32.mrb[0].mxu0
        %v6114 = vadd.f32 %v5692, %v6113
        %v6115 = vpop.f32.mrb[0].mxu0
        %v6116 = vadd.f32 %v5696, %v6115
        %v6117 = vpop.f32.mrb[0].mxu0
        %v6118 = vadd.f32 %v5692, %v6117
        %v6119 = vpop.f32.mrb[0].mxu0
        %v6120 = vadd.f32 %v5696, %v6119
        %6121 = vmatprep.mubr.bf16.mxu0 %v5604
        %6122 = vmatmul.mubr.bf16.gmra.mrb[0].mxu0 %v5603
        %v6123 = vpop.f32.mrb[0].mxu0
        %v6124 = vadd.f32 %v5692, %v6123
        %v6125 = vpop.f32.mrb[0].mxu0
        %v6126 = vadd.f32 %v5696, %v6125
        %v6127 = vpop.f32.mrb[0].mxu0
        %v6128 = vadd.f32 %v5692, %v6127
        %v6129 = vpop.f32.mrb[0].mxu0
        %v6130 = vadd.f32 %v5696, %v6129
        %6131 = vmatprep.mubr.bf16.mxu0 %v5606
        %6132 = vmatmul.mubr.bf16.gmra.mrb[0].mxu0 %v5605
        %v6133 = vpop.f32.mrb[0].mxu0
        %v6134 = vadd.f32 %v5692, %v6133
        %v6135 = vpop.f32.mrb[0].mxu0
        %v6136 = vadd.f32 %v5696, %v6135
        %v6137 = vpop.f32.mrb[0].mxu0
        %v6138 = vadd.f32 %v5692, %v6137
        %v6139 = vpop.f32.mrb[0].mxu0
        %v6140 = vadd.f32 %v5696, %v6139
        %6141 = vmatprep.mubr.bf16.mxu0 %v5608
        %6142 = vmatmul.mubr.bf16.gmra.mrb[0].mxu0 %v5607
        %v6143 = vpop.f32.mrb[0].mxu0
        %v6144 = vadd.f32 %v5692, %v6143
        %v6145 = vpop.f32.mrb[0].mxu0
        %v6146 = vadd.f32 %v5696, %v6145
        %v6147 = vpop.f32.mrb[0].mxu0
        %v6148 = vadd.f32 %v5692, %v6147
        %v6149 = vpop.f32.mrb[0].mxu0
        %v6150 = vadd.f32 %v5696, %v6149
        %6151 = vmatprep.mubr.bf16.mxu0 %v5610
        %6152 = vmatmul.mubr.bf16.gmra.mrb[0].mxu0 %v5609
        %v6153 = vpop.f32.mrb[0].mxu0
        %v6154 = vadd.f32 %v5692, %v6153
        %v6155 = vpop.f32.mrb[0].mxu0
        %v6156 = vadd.f32 %v5696, %v6155
        %v6157 = vpop.f32.mrb[0].mxu0
        %v6158 = vadd.f32 %v5692, %v6157
        %v6159 = vpop.f32.mrb[0].mxu0
        %v6160 = vadd.f32 %v5696, %v6159
        %6161 = vmatprep.mubr.bf16.mxu0 %v5612
        %6162 = vmatmul.mubr.bf16.gmra.mrb[0].mxu0 %v5611
        %v6163 = vpop.f32.mrb[0].mxu0
        %v6164 = vadd.f32 %v5692, %v6163
        %v6165 = vpop.f32.mrb[0].mxu0
        %v6166 = vadd.f32 %v5696, %v6165
        %v6167 = vpop.f32.mrb[0].mxu0
        %v6168 = vadd.f32 %v5692, %v6167
        %v6169 = vpop.f32.mrb[0].mxu0
        %v6170 = vadd.f32 %v5696, %v6169
        %6171 = vmatprep.mubr.bf16.mxu0 %v5614
        %6172 = vmatmul.mubr.bf16.gmra.mrb[0].mxu0 %v5613
        %v6173 = vpop.f32.mrb[0].mxu0
        %v6174 = vadd.f32 %v5692, %v6173
        %v6175 = vpop.f32.mrb[0].mxu0
        %v6176 = vadd.f32 %v5696, %v6175
        %v6177 = vpop.f32.mrb[0].mxu0
        %v6178 = vadd.f32 %v5692, %v6177
        %v6179 = vpop.f32.mrb[0].mxu0
        %v6180 = vadd.f32 %v5696, %v6179
        %6181 = vmatprep.mubr.bf16.mxu0 %v5616
        %6182 = vmatmul.mubr.bf16.gmra.mrb[0].mxu0 %v5615
        %v6183 = vpop.f32.mrb[0].mxu0
        %v6184 = vadd.f32 %v5692, %v6183
        %v6185 = vpop.f32.mrb[0].mxu0
        %v6186 = vadd.f32 %v5696, %v6185
        %v6187 = vpop.f32.mrb[0].mxu0
        %v6188 = vadd.f32 %v5692, %v6187
        %v6189 = vpop.f32.mrb[0].mxu0
        %v6190 = vadd.f32 %v5696, %v6189
        %6191 = vmatprep.mubr.bf16.mxu0 %v5618
        %6192 = vmatmul.mubr.bf16.gmra.mrb[0].mxu0 %v5617
        %v6193 = vpop.f32.mrb[0].mxu0
        %v6194 = vadd.f32 %v5692, %v6193
        %v6195 = vpop.f32.mrb[0].mxu0
        %v6196 = vadd.f32 %v5696, %v6195
        %v6197 = vpop.f32.mrb[0].mxu0
        %v6198 = vadd.f32 %v5692, %v6197
        %v6199 = vpop.f32.mrb[0].mxu0
        %v6200 = vadd.f32 %v5696, %v6199
        %6201 = vmatprep.mubr.bf16.mxu0 %v5620
        %6202 = vmatmul.mubr.bf16.gmra.mrb[0].mxu0 %v5619
        %v6203 = vpop.f32.mrb[0].mxu0
        %v6204 = vadd.f32 %v5692, %v6203
        %v6205 = vpop.f32.mrb[0].mxu0
        %v6206 = vadd.f32 %v5696, %v6205
        %v6207 = vpop.f32.mrb[0].mxu0
        %v6208 = vadd.f32 %v5692, %v6207
        %v6209 = vpop.f32.mrb[0].mxu0
        %v6210 = vadd.f32 %v5696, %v6209
        %6211 = vmatprep.mubr.bf16.mxu0 %v5622
        %6212 = vmatmul.mubr.bf16.gmra.mrb[0].mxu0 %v5621
        %v6213 = vpop.f32.mrb[0].mxu0
        %v6214 = vadd.f32 %v5692, %v6213
        %v6215 = vpop.f32.mrb[0].mxu0
        %v6216 = vadd.f32 %v5696, %v6215
        %v6217 = vpop.f32.mrb[0].mxu0
        %v6218 = vadd.f32 %v5692, %v6217
        %v6219 = vpop.f32.mrb[0].mxu0
        %v6220 = vadd.f32 %v5696, %v6219
        %6221 = vdwg.mxu0
        %6222 = vmatprep.subr.bf16.mxu0 %v5904
        %6223 = vmatpush1.bf16.msra.mxu0 %v5903
        %6224 = vmatprep.subr.bf16.mxu0 %v5908
        %6225 = vmatpush1.bf16.msra.mxu0 %v5907
        %6226 = vmatprep.subr.bf16.mxu0 %v5912
        %6227 = vmatpush1.bf16.msra.mxu0 %v5911
        %6228 = vmatprep.subr.bf16.mxu0 %v5916
        %6229 = vmatpush1.bf16.msra.mxu0 %v5915
        %6230 = vmatprep.subr.bf16.mxu0 %v5920
        %6231 = vmatpush1.bf16.msra.mxu0 %v5919
        %6232 = vmatprep.subr.bf16.mxu0 %v5924
        %6233 = vmatpush1.bf16.msra.mxu0 %v5923
        %6234 = vmatprep.subr.bf16.mxu0 %v5928
        %6235 = vmatpush1.bf16.msra.mxu0 %v5927
        %6236 = vmatprep.subr.bf16.mxu0 %v5932
        %6237 = vmatpush1.bf16.msra.mxu0 %v5931
        %6238 = vmatprep.subr.bf16.mxu0 %v5936
        %6239 = vmatpush1.bf16.msra.mxu0 %v5935
        %6240 = vmatprep.subr.bf16.mxu0 %v5940
        %6241 = vmatpush1.bf16.msra.mxu0 %v5939
        %6242 = vmatprep.subr.bf16.mxu0 %v5944
        %6243 = vmatpush1.bf16.msra.mxu0 %v5943
        %6244 = vmatprep.subr.bf16.mxu0 %v5948
        %6245 = vmatpush1.bf16.msra.mxu0 %v5947
        %6246 = vmatprep.subr.bf16.mxu0 %v5952
        %6247 = vmatpush1.bf16.msra.mxu0 %v5951
        %6248 = vmatprep.subr.bf16.mxu0 %v5956
        %6249 = vmatpush1.bf16.msra.mxu0 %v5955
        %6250 = vmatprep.subr.bf16.mxu0 %v5960
        %6251 = vmatpush1.bf16.msra.mxu0 %v5959
        %6252 = vmatprep.subr.bf16.mxu0 %v5964
        %6253 = vmatpush1.bf16.msra.mxu0 %v5963
        %6254 = vmatprep.mubr.bf16.mxu0 %v5592
        %6255 = vmatmul.mubr.bf16.gmra.mrb[0].mxu0 %v5591
        %v6256 = vpop.f32.mrb[0].mxu0
        %v6257 = vadd.f32 %v5700, %v6256
        %v6258 = vpop.f32.mrb[0].mxu0
        %v6259 = vadd.f32 %v5704, %v6258
        %v6260 = vpop.f32.mrb[0].mxu0
        %v6261 = vadd.f32 %v5700, %v6260
        %v6262 = vpop.f32.mrb[0].mxu0
        %v6263 = vadd.f32 %v5704, %v6262
        %6264 = vmatprep.mubr.bf16.mxu0 %v5594
        %6265 = vmatmul.mubr.bf16.gmra.mrb[0].mxu0 %v5593
        %v6266 = vpop.f32.mrb[0].mxu0
        %v6267 = vadd.f32 %v5700, %v6266
        %v6268 = vpop.f32.mrb[0].mxu0
        %v6269 = vadd.f32 %v5704, %v6268
        %v6270 = vpop.f32.mrb[0].mxu0
        %v6271 = vadd.f32 %v5700, %v6270
        %v6272 = vpop.f32.mrb[0].mxu0
        %v6273 = vadd.f32 %v5704, %v6272
        %6274 = vmatprep.mubr.bf16.mxu0 %v5596
        %6275 = vmatmul.mubr.bf16.gmra.mrb[0].mxu0 %v5595
        %v6276 = vpop.f32.mrb[0].mxu0
        %v6277 = vadd.f32 %v5700, %v6276
        %v6278 = vpop.f32.mrb[0].mxu0
        %v6279 = vadd.f32 %v5704, %v6278
        %v6280 = vpop.f32.mrb[0].mxu0
        %v6281 = vadd.f32 %v5700, %v6280
        %v6282 = vpop.f32.mrb[0].mxu0
        %v6283 = vadd.f32 %v5704, %v6282
        %6284 = vmatprep.mubr.bf16.mxu0 %v5598
        %6285 = vmatmul.mubr.bf16.gmra.mrb[0].mxu0 %v5597
        %v6286 = vpop.f32.mrb[0].mxu0
        %v6287 = vadd.f32 %v5700, %v6286
        %v6288 = vpop.f32.mrb[0].mxu0
        %v6289 = vadd.f32 %v5704, %v6288
        %v6290 = vpop.f32.mrb[0].mxu0
        %v6291 = vadd.f32 %v5700, %v6290
        %v6292 = vpop.f32.mrb[0].mxu0
        %v6293 = vadd.f32 %v5704, %v6292
        %6294 = vmatprep.mubr.bf16.mxu0 %v5600
        %6295 = vmatmul.mubr.bf16.gmra.mrb[0].mxu0 %v5599
        %v6296 = vpop.f32.mrb[0].mxu0
        %v6297 = vadd.f32 %v5700, %v6296
        %v6298 = vpop.f32.mrb[0].mxu0
        %v6299 = vadd.f32 %v5704, %v6298
        %v6300 = vpop.f32.mrb[0].mxu0
        %v6301 = vadd.f32 %v5700, %v6300
        %v6302 = vpop.f32.mrb[0].mxu0
        %v6303 = vadd.f32 %v5704, %v6302
        %6304 = vmatprep.mubr.bf16.mxu0 %v5602
        %6305 = vmatmul.mubr.bf16.gmra.mrb[0].mxu0 %v5601
        %v6306 = vpop.f32.mrb[0].mxu0
        %v6307 = vadd.f32 %v5700, %v6306
        %v6308 = vpop.f32.mrb[0].mxu0
        %v6309 = vadd.f32 %v5704, %v6308
        %v6310 = vpop.f32.mrb[0].mxu0
        %v6311 = vadd.f32 %v5700, %v6310
        %v6312 = vpop.f32.mrb[0].mxu0
        %v6313 = vadd.f32 %v5704, %v6312
        %6314 = vmatprep.mubr.bf16.mxu0 %v5604
        %6315 = vmatmul.mubr.bf16.gmra.mrb[0].mxu0 %v5603
        %v6316 = vpop.f32.mrb[0].mxu0
        %v6317 = vadd.f32 %v5700, %v6316
        %v6318 = vpop.f32.mrb[0].mxu0
        %v6319 = vadd.f32 %v5704, %v6318
        %v6320 = vpop.f32.mrb[0].mxu0
        %v6321 = vadd.f32 %v5700, %v6320
        %v6322 = vpop.f32.mrb[0].mxu0
        %v6323 = vadd.f32 %v5704, %v6322
        %6324 = vmatprep.mubr.bf16.mxu0 %v5606
        %6325 = vmatmul.mubr.bf16.gmra.mrb[0].mxu0 %v5605
        %v6326 = vpop.f32.mrb[0].mxu0
        %v6327 = vadd.f32 %v5700, %v6326
        %v6328 = vpop.f32.mrb[0].mxu0
        %v6329 = vadd.f32 %v5704, %v6328
        %v6330 = vpop.f32.mrb[0].mxu0
        %v6331 = vadd.f32 %v5700, %v6330
        %v6332 = vpop.f32.mrb[0].mxu0
        %v6333 = vadd.f32 %v5704, %v6332
        %6334 = vmatprep.mubr.bf16.mxu0 %v5608
        %6335 = vmatmul.mubr.bf16.gmra.mrb[0].mxu0 %v5607
        %v6336 = vpop.f32.mrb[0].mxu0
        %v6337 = vadd.f32 %v5700, %v6336
        %v6338 = vpop.f32.mrb[0].mxu0
        %v6339 = vadd.f32 %v5704, %v6338
        %v6340 = vpop.f32.mrb[0].mxu0
        %v6341 = vadd.f32 %v5700, %v6340
        %v6342 = vpop.f32.mrb[0].mxu0
        %v6343 = vadd.f32 %v5704, %v6342
        %6344 = vmatprep.mubr.bf16.mxu0 %v5610
        %6345 = vmatmul.mubr.bf16.gmra.mrb[0].mxu0 %v5609
        %v6346 = vpop.f32.mrb[0].mxu0
        %v6347 = vadd.f32 %v5700, %v6346
        %v6348 = vpop.f32.mrb[0].mxu0
        %v6349 = vadd.f32 %v5704, %v6348
        %v6350 = vpop.f32.mrb[0].mxu0
        %v6351 = vadd.f32 %v5700, %v6350
        %v6352 = vpop.f32.mrb[0].mxu0
        %v6353 = vadd.f32 %v5704, %v6352
        %6354 = vmatprep.mubr.bf16.mxu0 %v5612
        %6355 = vmatmul.mubr.bf16.gmra.mrb[0].mxu0 %v5611
        %v6356 = vpop.f32.mrb[0].mxu0
        %v6357 = vadd.f32 %v5700, %v6356
        %v6358 = vpop.f32.mrb[0].mxu0
        %v6359 = vadd.f32 %v5704, %v6358
        %v6360 = vpop.f32.mrb[0].mxu0
        %v6361 = vadd.f32 %v5700, %v6360
        %v6362 = vpop.f32.mrb[0].mxu0
        %v6363 = vadd.f32 %v5704, %v6362
        %6364 = vmatprep.mubr.bf16.mxu0 %v5614
        %6365 = vmatmul.mubr.bf16.gmra.mrb[0].mxu0 %v5613
        %v6366 = vpop.f32.mrb[0].mxu0
        %v6367 = vadd.f32 %v5700, %v6366
        %v6368 = vpop.f32.mrb[0].mxu0
        %v6369 = vadd.f32 %v5704, %v6368
        %v6370 = vpop.f32.mrb[0].mxu0
        %v6371 = vadd.f32 %v5700, %v6370
        %v6372 = vpop.f32.mrb[0].mxu0
        %v6373 = vadd.f32 %v5704, %v6372
        %6374 = vmatprep.mubr.bf16.mxu0 %v5616
        %6375 = vmatmul.mubr.bf16.gmra.mrb[0].mxu0 %v5615
        %v6376 = vpop.f32.mrb[0].mxu0
        %v6377 = vadd.f32 %v5700, %v6376
        %v6378 = vpop.f32.mrb[0].mxu0
        %v6379 = vadd.f32 %v5704, %v6378
        %v6380 = vpop.f32.mrb[0].mxu0
        %v6381 = vadd.f32 %v5700, %v6380
        %v6382 = vpop.f32.mrb[0].mxu0
        %v6383 = vadd.f32 %v5704, %v6382
        %6384 = vmatprep.mubr.bf16.mxu0 %v5618
        %6385 = vmatmul.mubr.bf16.gmra.mrb[0].mxu0 %v5617
        %v6386 = vpop.f32.mrb[0].mxu0
        %v6387 = vadd.f32 %v5700, %v6386
        %v6388 = vpop.f32.mrb[0].mxu0
        %v6389 = vadd.f32 %v5704, %v6388
        %v6390 = vpop.f32.mrb[0].mxu0
        %v6391 = vadd.f32 %v5700, %v6390
        %v6392 = vpop.f32.mrb[0].mxu0
        %v6393 = vadd.f32 %v5704, %v6392
        %6394 = vmatprep.mubr.bf16.mxu0 %v5620
        %6395 = vmatmul.mubr.bf16.gmra.mrb[0].mxu0 %v5619
        %v6396 = vpop.f32.mrb[0].mxu0
        %v6397 = vadd.f32 %v5700, %v6396
        %v6398 = vpop.f32.mrb[0].mxu0
        %v6399 = vadd.f32 %v5704, %v6398
        %v6400 = vpop.f32.mrb[0].mxu0
        %v6401 = vadd.f32 %v5700, %v6400
        %v6402 = vpop.f32.mrb[0].mxu0
        %v6403 = vadd.f32 %v5704, %v6402
        %6404 = vmatprep.mubr.bf16.mxu0 %v5622
        %6405 = vmatmul.mubr.bf16.gmra.mrb[0].mxu0 %v5621
        %v6406 = vpop.f32.mrb[0].mxu0
        %v6407 = vadd.f32 %v5700, %v6406
        %v6408 = vpop.f32.mrb[0].mxu0
        %v6409 = vadd.f32 %v5704, %v6408
        %v6410 = vpop.f32.mrb[0].mxu0
        %v6411 = vadd.f32 %v5700, %v6410
        %v6412 = vpop.f32.mrb[0].mxu0
        %v6413 = vadd.f32 %v5704, %v6412
        %6414 = vdwg.mxu0
        %v6415 = vmul.f32 %v6064, %v6064
        %v6416 = vmul.f32 %v6066, %v6066
        %v6417 = vmul.f32 %v6257, %v6257
        %v6418 = vmul.f32 %v6259, %v6259
        %v6419 = vmul.f32 %v6068, %v6068
        %v6420 = vmul.f32 %v6070, %v6070
        %v6421 = vmul.f32 %v6261, %v6261
        %v6422 = vmul.f32 %v6263, %v6263
        %v6423 = vmul.f32 %v6074, %v6074
        %v6424 = vmul.f32 %v6076, %v6076
        %v6425 = vmul.f32 %v6267, %v6267
        %v6426 = vmul.f32 %v6269, %v6269
        %v6427 = vmul.f32 %v6078, %v6078
        %v6428 = vmul.f32 %v6080, %v6080
        %v6429 = vmul.f32 %v6271, %v6271
        %v6430 = vmul.f32 %v6273, %v6273
        %v6431 = vmul.f32 %v6084, %v6084
        %v6432 = vmul.f32 %v6086, %v6086
        %v6433 = vmul.f32 %v6277, %v6277
        %v6434 = vmul.f32 %v6279, %v6279
        %v6435 = vmul.f32 %v6088, %v6088
        %v6436 = vmul.f32 %v6090, %v6090
        %v6437 = vmul.f32 %v6281, %v6281
        %v6438 = vmul.f32 %v6283, %v6283
        %v6439 = vmul.f32 %v6094, %v6094
        %v6440 = vmul.f32 %v6096, %v6096
        %v6441 = vmul.f32 %v6287, %v6287
        %v6442 = vmul.f32 %v6289, %v6289
        %v6443 = vmul.f32 %v6098, %v6098
        %v6444 = vmul.f32 %v6100, %v6100
        %v6445 = vmul.f32 %v6291, %v6291
        %v6446 = vmul.f32 %v6293, %v6293
        %v6447 = vmul.f32 %v6104, %v6104
        %v6448 = vmul.f32 %v6106, %v6106
        %v6449 = vmul.f32 %v6297, %v6297
        %v6450 = vmul.f32 %v6299, %v6299
        %v6451 = vmul.f32 %v6108, %v6108
        %v6452 = vmul.f32 %v6110, %v6110
        %v6453 = vmul.f32 %v6301, %v6301
        %v6454 = vmul.f32 %v6303, %v6303
        %v6455 = vmul.f32 %v6114, %v6114
        %v6456 = vmul.f32 %v6116, %v6116
        %v6457 = vmul.f32 %v6307, %v6307
        %v6458 = vmul.f32 %v6309, %v6309
        %v6459 = vmul.f32 %v6118, %v6118
        %v6460 = vmul.f32 %v6120, %v6120
        %v6461 = vmul.f32 %v6311, %v6311
        %v6462 = vmul.f32 %v6313, %v6313
        %v6463 = vmul.f32 %v6124, %v6124
        %v6464 = vmul.f32 %v6126, %v6126
        %v6465 = vmul.f32 %v6317, %v6317
        %v6466 = vmul.f32 %v6319, %v6319
        %v6467 = vmul.f32 %v6128, %v6128
        %v6468 = vmul.f32 %v6130, %v6130
        %v6469 = vmul.f32 %v6321, %v6321
        %v6470 = vmul.f32 %v6323, %v6323
        %v6471 = vmul.f32 %v6134, %v6134
        %v6472 = vmul.f32 %v6136, %v6136
        %v6473 = vmul.f32 %v6327, %v6327
        %v6474 = vmul.f32 %v6329, %v6329
        %v6475 = vmul.f32 %v6138, %v6138
        %v6476 = vmul.f32 %v6140, %v6140
        %v6477 = vmul.f32 %v6331, %v6331
        %v6478 = vmul.f32 %v6333, %v6333
        %v6479 = vmul.f32 %v6144, %v6144
        %v6480 = vmul.f32 %v6146, %v6146
        %v6481 = vmul.f32 %v6337, %v6337
        %v6482 = vmul.f32 %v6339, %v6339
        %v6483 = vmul.f32 %v6148, %v6148
        %v6484 = vmul.f32 %v6150, %v6150
        %v6485 = vmul.f32 %v6341, %v6341
        %v6486 = vmul.f32 %v6343, %v6343
        %v6487 = vmul.f32 %v6154, %v6154
        %v6488 = vmul.f32 %v6156, %v6156
        %v6489 = vmul.f32 %v6347, %v6347
        %v6490 = vmul.f32 %v6349, %v6349
        %v6491 = vmul.f32 %v6158, %v6158
        %v6492 = vmul.f32 %v6160, %v6160
        %v6493 = vmul.f32 %v6351, %v6351
        %v6494 = vmul.f32 %v6353, %v6353
        %v6495 = vmul.f32 %v6164, %v6164
        %v6496 = vmul.f32 %v6166, %v6166
        %v6497 = vmul.f32 %v6357, %v6357
        %v6498 = vmul.f32 %v6359, %v6359
        %v6499 = vmul.f32 %v6168, %v6168
        %v6500 = vmul.f32 %v6170, %v6170
        %v6501 = vmul.f32 %v6361, %v6361
        %v6502 = vmul.f32 %v6363, %v6363
        %v6503 = vmul.f32 %v6174, %v6174
        %v6504 = vmul.f32 %v6176, %v6176
        %v6505 = vmul.f32 %v6367, %v6367
        %v6506 = vmul.f32 %v6369, %v6369
        %v6507 = vmul.f32 %v6178, %v6178
        %v6508 = vmul.f32 %v6180, %v6180
        %v6509 = vmul.f32 %v6371, %v6371
        %v6510 = vmul.f32 %v6373, %v6373
        %v6511 = vmul.f32 %v6184, %v6184
        %v6512 = vmul.f32 %v6186, %v6186
        %v6513 = vmul.f32 %v6377, %v6377
        %v6514 = vmul.f32 %v6379, %v6379
        %v6515 = vmul.f32 %v6188, %v6188
        %v6516 = vmul.f32 %v6190, %v6190
        %v6517 = vmul.f32 %v6381, %v6381
        %v6518 = vmul.f32 %v6383, %v6383
        %v6519 = vmul.f32 %v6194, %v6194
        %v6520 = vmul.f32 %v6196, %v6196
        %v6521 = vmul.f32 %v6387, %v6387
        %v6522 = vmul.f32 %v6389, %v6389
        %v6523 = vmul.f32 %v6198, %v6198
        %v6524 = vmul.f32 %v6200, %v6200
        %v6525 = vmul.f32 %v6391, %v6391
        %v6526 = vmul.f32 %v6393, %v6393
        %v6527 = vmul.f32 %v6204, %v6204
        %v6528 = vmul.f32 %v6206, %v6206
        %v6529 = vmul.f32 %v6397, %v6397
        %v6530 = vmul.f32 %v6399, %v6399
        %v6531 = vmul.f32 %v6208, %v6208
        %v6532 = vmul.f32 %v6210, %v6210
        %v6533 = vmul.f32 %v6401, %v6401
        %v6534 = vmul.f32 %v6403, %v6403
        %v6535 = vmul.f32 %v6214, %v6214
        %v6536 = vmul.f32 %v6216, %v6216
        %v6537 = vmul.f32 %v6407, %v6407
        %v6538 = vmul.f32 %v6409, %v6409
        %v6539 = vmul.f32 %v6218, %v6218
        %v6540 = vmul.f32 %v6220, %v6220
        %v6541 = vmul.f32 %v6411, %v6411
        %v6542 = vmul.f32 %v6413, %v6413
        %v6543 = vmul.f32 %v6064, %v6415
        %v6544 = vmul.f32 %v6066, %v6416
        %v6545 = vmul.f32 %v6257, %v6417
        %v6546 = vmul.f32 %v6259, %v6418
        %v6547 = vmul.f32 %v6068, %v6419
        %v6548 = vmul.f32 %v6070, %v6420
        %v6549 = vmul.f32 %v6261, %v6421
        %v6550 = vmul.f32 %v6263, %v6422
        %v6551 = vmul.f32 %v6074, %v6423
        %v6552 = vmul.f32 %v6076, %v6424
        %v6553 = vmul.f32 %v6267, %v6425
        %v6554 = vmul.f32 %v6269, %v6426
        %v6555 = vmul.f32 %v6078, %v6427
        %v6556 = vmul.f32 %v6080, %v6428
        %v6557 = vmul.f32 %v6271, %v6429
        %v6558 = vmul.f32 %v6273, %v6430
        %v6559 = vmul.f32 %v6084, %v6431
        %v6560 = vmul.f32 %v6086, %v6432
        %v6561 = vmul.f32 %v6277, %v6433
        %v6562 = vmul.f32 %v6279, %v6434
        %v6563 = vmul.f32 %v6088, %v6435
        %v6564 = vmul.f32 %v6090, %v6436
        %v6565 = vmul.f32 %v6281, %v6437
        %v6566 = vmul.f32 %v6283, %v6438
        %v6567 = vmul.f32 %v6094, %v6439
        %v6568 = vmul.f32 %v6096, %v6440
        %v6569 = vmul.f32 %v6287, %v6441
        %v6570 = vmul.f32 %v6289, %v6442
        %v6571 = vmul.f32 %v6098, %v6443
        %v6572 = vmul.f32 %v6100, %v6444
        %v6573 = vmul.f32 %v6291, %v6445
        %v6574 = vmul.f32 %v6293, %v6446
        %v6575 = vmul.f32 %v6104, %v6447
        %v6576 = vmul.f32 %v6106, %v6448
        %v6577 = vmul.f32 %v6297, %v6449
        %v6578 = vmul.f32 %v6299, %v6450
        %v6579 = vmul.f32 %v6108, %v6451
        %v6580 = vmul.f32 %v6110, %v6452
        %v6581 = vmul.f32 %v6301, %v6453
        %v6582 = vmul.f32 %v6303, %v6454
        %v6583 = vmul.f32 %v6114, %v6455
        %v6584 = vmul.f32 %v6116, %v6456
        %v6585 = vmul.f32 %v6307, %v6457
        %v6586 = vmul.f32 %v6309, %v6458
        %v6587 = vmul.f32 %v6118, %v6459
        %v6588 = vmul.f32 %v6120, %v6460
        %v6589 = vmul.f32 %v6311, %v6461
        %v6590 = vmul.f32 %v6313, %v6462
        %v6591 = vmul.f32 %v6124, %v6463
        %v6592 = vmul.f32 %v6126, %v6464
        %v6593 = vmul.f32 %v6317, %v6465
        %v6594 = vmul.f32 %v6319, %v6466
        %v6595 = vmul.f32 %v6128, %v6467
        %v6596 = vmul.f32 %v6130, %v6468
        %v6597 = vmul.f32 %v6321, %v6469
        %v6598 = vmul.f32 %v6323, %v6470
        %v6599 = vmul.f32 %v6134, %v6471
        %v6600 = vmul.f32 %v6136, %v6472
        %v6601 = vmul.f32 %v6327, %v6473
        %v6602 = vmul.f32 %v6329, %v6474
        %v6603 = vmul.f32 %v6138, %v6475
        %v6604 = vmul.f32 %v6140, %v6476
        %v6605 = vmul.f32 %v6331, %v6477
        %v6606 = vmul.f32 %v6333, %v6478
        %v6607 = vmul.f32 %v6144, %v6479
        %v6608 = vmul.f32 %v6146, %v6480
        %v6609 = vmul.f32 %v6337, %v6481
        %v6610 = vmul.f32 %v6339, %v6482
        %v6611 = vmul.f32 %v6148, %v6483
        %v6612 = vmul.f32 %v6150, %v6484
        %v6613 = vmul.f32 %v6341, %v6485
        %v6614 = vmul.f32 %v6343, %v6486
        %v6615 = vmul.f32 %v6154, %v6487
        %v6616 = vmul.f32 %v6156, %v6488
        %v6617 = vmul.f32 %v6347, %v6489
        %v6618 = vmul.f32 %v6349, %v6490
        %v6619 = vmul.f32 %v6158, %v6491
        %v6620 = vmul.f32 %v6160, %v6492
        %v6621 = vmul.f32 %v6351, %v6493
        %v6622 = vmul.f32 %v6353, %v6494
        %v6623 = vmul.f32 %v6164, %v6495
        %v6624 = vmul.f32 %v6166, %v6496
        %v6625 = vmul.f32 %v6357, %v6497
        %v6626 = vmul.f32 %v6359, %v6498
        %v6627 = vmul.f32 %v6168, %v6499
        %v6628 = vmul.f32 %v6170, %v6500
        %v6629 = vmul.f32 %v6361, %v6501
        %v6630 = vmul.f32 %v6363, %v6502
        %v6631 = vmul.f32 %v6174, %v6503
        %v6632 = vmul.f32 %v6176, %v6504
        %v6633 = vmul.f32 %v6367, %v6505
        %v6634 = vmul.f32 %v6369, %v6506
        %v6635 = vmul.f32 %v6178, %v6507
        %v6636 = vmul.f32 %v6180, %v6508
        %v6637 = vmul.f32 %v6371, %v6509
        %v6638 = vmul.f32 %v6373, %v6510
        %v6639 = vmul.f32 %v6184, %v6511
        %v6640 = vmul.f32 %v6186, %v6512
        %v6641 = vmul.f32 %v6377, %v6513
        %v6642 = vmul.f32 %v6379, %v6514
        %v6643 = vmul.f32 %v6188, %v6515
        %v6644 = vmul.f32 %v6190, %v6516
        %v6645 = vmul.f32 %v6381, %v6517
        %v6646 = vmul.f32 %v6383, %v6518
        %v6647 = vmul.f32 %v6194, %v6519
        %v6648 = vmul.f32 %v6196, %v6520
        %v6649 = vmul.f32 %v6387, %v6521
        %v6650 = vmul.f32 %v6389, %v6522
        %v6651 = vmul.f32 %v6198, %v6523
        %v6652 = vmul.f32 %v6200, %v6524
        %v6653 = vmul.f32 %v6391, %v6525
        %v6654 = vmul.f32 %v6393, %v6526
        %v6655 = vmul.f32 %v6204, %v6527
        %v6656 = vmul.f32 %v6206, %v6528
        %v6657 = vmul.f32 %v6397, %v6529
        %v6658 = vmul.f32 %v6399, %v6530
        %v6659 = vmul.f32 %v6208, %v6531
        %v6660 = vmul.f32 %v6210, %v6532
        %v6661 = vmul.f32 %v6401, %v6533
        %v6662 = vmul.f32 %v6403, %v6534
        %v6663 = vmul.f32 %v6214, %v6535
        %v6664 = vmul.f32 %v6216, %v6536
        %v6665 = vmul.f32 %v6407, %v6537
        %v6666 = vmul.f32 %v6409, %v6538
        %v6667 = vmul.f32 %v6218, %v6539
        %v6668 = vmul.f32 %v6220, %v6540
        %v6669 = vmul.f32 %v6411, %v6541
        %v6670 = vmul.f32 %v6413, %v6542
        %v6671 = vmul.f32 %v6543, 0.044715
        %v6672 = vmul.f32 %v6544, 0.044715
        %v6673 = vmul.f32 %v6545, 0.044715
        %v6674 = vmul.f32 %v6546, 0.044715
        %v6675 = vmul.f32 %v6547, 0.044715
        %v6676 = vmul.f32 %v6548, 0.044715
        %v6677 = vmul.f32 %v6549, 0.044715
        %v6678 = vmul.f32 %v6550, 0.044715
        %v6679 = vmul.f32 %v6551, 0.044715
        %v6680 = vmul.f32 %v6552, 0.044715
        %v6681 = vmul.f32 %v6553, 0.044715
        %v6682 = vmul.f32 %v6554, 0.044715
        %v6683 = vmul.f32 %v6555, 0.044715
        %v6684 = vmul.f32 %v6556, 0.044715
        %v6685 = vmul.f32 %v6557, 0.044715
        %v6686 = vmul.f32 %v6558, 0.044715
        %v6687 = vmul.f32 %v6559, 0.044715
        %v6688 = vmul.f32 %v6560, 0.044715
        %v6689 = vmul.f32 %v6561, 0.044715
        %v6690 = vmul.f32 %v6562, 0.044715
        %v6691 = vmul.f32 %v6563, 0.044715
        %v6692 = vmul.f32 %v6564, 0.044715
        %v6693 = vmul.f32 %v6565, 0.044715
        %v6694 = vmul.f32 %v6566, 0.044715
        %v6695 = vmul.f32 %v6567, 0.044715
        %v6696 = vmul.f32 %v6568, 0.044715
        %v6697 = vmul.f32 %v6569, 0.044715
        %v6698 = vmul.f32 %v6570, 0.044715
        %v6699 = vmul.f32 %v6571, 0.044715
        %v6700 = vmul.f32 %v6572, 0.044715
        %v6701 = vmul.f32 %v6573, 0.044715
        %v6702 = vmul.f32 %v6574, 0.044715
        %v6703 = vmul.f32 %v6575, 0.044715
        %v6704 = vmul.f32 %v6576, 0.044715
        %v6705 = vmul.f32 %v6577, 0.044715
        %v6706 = vmul.f32 %v6578, 0.044715
        %v6707 = vmul.f32 %v6579, 0.044715
        %v6708 = vmul.f32 %v6580, 0.044715
        %v6709 = vmul.f32 %v6581, 0.044715
        %v6710 = vmul.f32 %v6582, 0.044715
        %v6711 = vmul.f32 %v6583, 0.044715
        %v6712 = vmul.f32 %v6584, 0.044715
        %v6713 = vmul.f32 %v6585, 0.044715
        %v6714 = vmul.f32 %v6586, 0.044715
        %v6715 = vmul.f32 %v6587, 0.044715
        %v6716 = vmul.f32 %v6588, 0.044715
        %v6717 = vmul.f32 %v6589, 0.044715
        %v6718 = vmul.f32 %v6590, 0.044715
        %v6719 = vmul.f32 %v6591, 0.044715
        %v6720 = vmul.f32 %v6592, 0.044715
        %v6721 = vmul.f32 %v6593, 0.044715
        %v6722 = vmul.f32 %v6594, 0.044715
        %v6723 = vmul.f32 %v6595, 0.044715
        %v6724 = vmul.f32 %v6596, 0.044715
        %v6725 = vmul.f32 %v6597, 0.044715
        %v6726 = vmul.f32 %v6598, 0.044715
        %v6727 = vmul.f32 %v6599, 0.044715
        %v6728 = vmul.f32 %v6600, 0.044715
        %v6729 = vmul.f32 %v6601, 0.044715
        %v6730 = vmul.f32 %v6602, 0.044715
        %v6731 = vmul.f32 %v6603, 0.044715
        %v6732 = vmul.f32 %v6604, 0.044715
        %v6733 = vmul.f32 %v6605, 0.044715
        %v6734 = vmul.f32 %v6606, 0.044715
        %v6735 = vmul.f32 %v6607, 0.044715
        %v6736 = vmul.f32 %v6608, 0.044715
        %v6737 = vmul.f32 %v6609, 0.044715
        %v6738 = vmul.f32 %v6610, 0.044715
        %v6739 = vmul.f32 %v6611, 0.044715
        %v6740 = vmul.f32 %v6612, 0.044715
        %v6741 = vmul.f32 %v6613, 0.044715
        %v6742 = vmul.f32 %v6614, 0.044715
        %v6743 = vmul.f32 %v6615, 0.044715
        %v6744 = vmul.f32 %v6616, 0.044715
        %v6745 = vmul.f32 %v6617, 0.044715
        %v6746 = vmul.f32 %v6618, 0.044715
        %v6747 = vmul.f32 %v6619, 0.044715
        %v6748 = vmul.f32 %v6620, 0.044715
        %v6749 = vmul.f32 %v6621, 0.044715
        %v6750 = vmul.f32 %v6622, 0.044715
        %v6751 = vmul.f32 %v6623, 0.044715
        %v6752 = vmul.f32 %v6624, 0.044715
        %v6753 = vmul.f32 %v6625, 0.044715
        %v6754 = vmul.f32 %v6626, 0.044715
        %v6755 = vmul.f32 %v6627, 0.044715
        %v6756 = vmul.f32 %v6628, 0.044715
        %v6757 = vmul.f32 %v6629, 0.044715
        %v6758 = vmul.f32 %v6630, 0.044715
        %v6759 = vmul.f32 %v6631, 0.044715
        %v6760 = vmul.f32 %v6632, 0.044715
        %v6761 = vmul.f32 %v6633, 0.044715
        %v6762 = vmul.f32 %v6634, 0.044715
        %v6763 = vmul.f32 %v6635, 0.044715
        %v6764 = vmul.f32 %v6636, 0.044715
        %v6765 = vmul.f32 %v6637, 0.044715
        %v6766 = vmul.f32 %v6638, 0.044715
        %v6767 = vmul.f32 %v6639, 0.044715
        %v6768 = vmul.f32 %v6640, 0.044715
        %v6769 = vmul.f32 %v6641, 0.044715
        %v6770 = vmul.f32 %v6642, 0.044715
        %v6771 = vmul.f32 %v6643, 0.044715
        %v6772 = vmul.f32 %v6644, 0.044715
        %v6773 = vmul.f32 %v6645, 0.044715
        %v6774 = vmul.f32 %v6646, 0.044715
        %v6775 = vmul.f32 %v6647, 0.044715
        %v6776 = vmul.f32 %v6648, 0.044715
        %v6777 = vmul.f32 %v6649, 0.044715
        %v6778 = vmul.f32 %v6650, 0.044715
        %v6779 = vmul.f32 %v6651, 0.044715
        %v6780 = vmul.f32 %v6652, 0.044715
        %v6781 = vmul.f32 %v6653, 0.044715
        %v6782 = vmul.f32 %v6654, 0.044715
        %v6783 = vmul.f32 %v6655, 0.044715
        %v6784 = vmul.f32 %v6656, 0.044715
        %v6785 = vmul.f32 %v6657, 0.044715
        %v6786 = vmul.f32 %v6658, 0.044715
        %v6787 = vmul.f32 %v6659, 0.044715
        %v6788 = vmul.f32 %v6660, 0.044715
        %v6789 = vmul.f32 %v6661, 0.044715
        %v6790 = vmul.f32 %v6662, 0.044715
        %v6791 = vmul.f32 %v6663, 0.044715
        %v6792 = vmul.f32 %v6664, 0.044715
        %v6793 = vmul.f32 %v6665, 0.044715
        %v6794 = vmul.f32 %v6666, 0.044715
        %v6795 = vmul.f32 %v6667, 0.044715
        %v6796 = vmul.f32 %v6668, 0.044715
        %v6797 = vmul.f32 %v6669, 0.044715
        %v6798 = vmul.f32 %v6670, 0.044715
        %v6799 = vadd.f32 %v6064, %v6671
        %v6800 = vadd.f32 %v6066, %v6672
        %v6801 = vadd.f32 %v6257, %v6673
        %v6802 = vadd.f32 %v6259, %v6674
        %v6803 = vadd.f32 %v6068, %v6675
        %v6804 = vadd.f32 %v6070, %v6676
        %v6805 = vadd.f32 %v6261, %v6677
        %v6806 = vadd.f32 %v6263, %v6678
        %v6807 = vadd.f32 %v6074, %v6679
        %v6808 = vadd.f32 %v6076, %v6680
        %v6809 = vadd.f32 %v6267, %v6681
        %v6810 = vadd.f32 %v6269, %v6682
        %v6811 = vadd.f32 %v6078, %v6683
        %v6812 = vadd.f32 %v6080, %v6684
        %v6813 = vadd.f32 %v6271, %v6685
        %v6814 = vadd.f32 %v6273, %v6686
        %v6815 = vadd.f32 %v6084, %v6687
        %v6816 = vadd.f32 %v6086, %v6688
        %v6817 = vadd.f32 %v6277, %v6689
        %v6818 = vadd.f32 %v6279, %v6690
        %v6819 = vadd.f32 %v6088, %v6691
        %v6820 = vadd.f32 %v6090, %v6692
        %v6821 = vadd.f32 %v6281, %v6693
        %v6822 = vadd.f32 %v6283, %v6694
        %v6823 = vadd.f32 %v6094, %v6695
        %v6824 = vadd.f32 %v6096, %v6696
        %v6825 = vadd.f32 %v6287, %v6697
        %v6826 = vadd.f32 %v6289, %v6698
        %v6827 = vadd.f32 %v6098, %v6699
        %v6828 = vadd.f32 %v6100, %v6700
        %v6829 = vadd.f32 %v6291, %v6701
        %v6830 = vadd.f32 %v6293, %v6702
        %v6831 = vadd.f32 %v6104, %v6703
        %v6832 = vadd.f32 %v6106, %v6704
        %v6833 = vadd.f32 %v6297, %v6705
        %v6834 = vadd.f32 %v6299, %v6706
        %v6835 = vadd.f32 %v6108, %v6707
        %v6836 = vadd.f32 %v6110, %v6708
        %v6837 = vadd.f32 %v6301, %v6709
        %v6838 = vadd.f32 %v6303, %v6710
        %v6839 = vadd.f32 %v6114, %v6711
        %v6840 = vadd.f32 %v6116, %v6712
        %v6841 = vadd.f32 %v6307, %v6713
        %v6842 = vadd.f32 %v6309, %v6714
        %v6843 = vadd.f32 %v6118, %v6715
        %v6844 = vadd.f32 %v6120, %v6716
        %v6845 = vadd.f32 %v6311, %v6717
        %v6846 = vadd.f32 %v6313, %v6718
        %v6847 = vadd.f32 %v6124, %v6719
        %v6848 = vadd.f32 %v6126, %v6720
        %v6849 = vadd.f32 %v6317, %v6721
        %v6850 = vadd.f32 %v6319, %v6722
        %v6851 = vadd.f32 %v6128, %v6723
        %v6852 = vadd.f32 %v6130, %v6724
        %v6853 = vadd.f32 %v6321, %v6725
        %v6854 = vadd.f32 %v6323, %v6726
        %v6855 = vadd.f32 %v6134, %v6727
        %v6856 = vadd.f32 %v6136, %v6728
        %v6857 = vadd.f32 %v6327, %v6729
        %v6858 = vadd.f32 %v6329, %v6730
        %v6859 = vadd.f32 %v6138, %v6731
        %v6860 = vadd.f32 %v6140, %v6732
        %v6861 = vadd.f32 %v6331, %v6733
        %v6862 = vadd.f32 %v6333, %v6734
        %v6863 = vadd.f32 %v6144, %v6735
        %v6864 = vadd.f32 %v6146, %v6736
        %v6865 = vadd.f32 %v6337, %v6737
        %v6866 = vadd.f32 %v6339, %v6738
        %v6867 = vadd.f32 %v6148, %v6739
        %v6868 = vadd.f32 %v6150, %v6740
        %v6869 = vadd.f32 %v6341, %v6741
        %v6870 = vadd.f32 %v6343, %v6742
        %v6871 = vadd.f32 %v6154, %v6743
        %v6872 = vadd.f32 %v6156, %v6744
        %v6873 = vadd.f32 %v6347, %v6745
        %v6874 = vadd.f32 %v6349, %v6746
        %v6875 = vadd.f32 %v6158, %v6747
        %v6876 = vadd.f32 %v6160, %v6748
        %v6877 = vadd.f32 %v6351, %v6749
        %v6878 = vadd.f32 %v6353, %v6750
        %v6879 = vadd.f32 %v6164, %v6751
        %v6880 = vadd.f32 %v6166, %v6752
        %v6881 = vadd.f32 %v6357, %v6753
        %v6882 = vadd.f32 %v6359, %v6754
        %v6883 = vadd.f32 %v6168, %v6755
        %v6884 = vadd.f32 %v6170, %v6756
        %v6885 = vadd.f32 %v6361, %v6757
        %v6886 = vadd.f32 %v6363, %v6758
        %v6887 = vadd.f32 %v6174, %v6759
        %v6888 = vadd.f32 %v6176, %v6760
        %v6889 = vadd.f32 %v6367, %v6761
        %v6890 = vadd.f32 %v6369, %v6762
        %v6891 = vadd.f32 %v6178, %v6763
        %v6892 = vadd.f32 %v6180, %v6764
        %v6893 = vadd.f32 %v6371, %v6765
        %v6894 = vadd.f32 %v6373, %v6766
        %v6895 = vadd.f32 %v6184, %v6767
        %v6896 = vadd.f32 %v6186, %v6768
        %v6897 = vadd.f32 %v6377, %v6769
        %v6898 = vadd.f32 %v6379, %v6770
        %v6899 = vadd.f32 %v6188, %v6771
        %v6900 = vadd.f32 %v6190, %v6772
        %v6901 = vadd.f32 %v6381, %v6773
        %v6902 = vadd.f32 %v6383, %v6774
        %v6903 = vadd.f32 %v6194, %v6775
        %v6904 = vadd.f32 %v6196, %v6776
        %v6905 = vadd.f32 %v6387, %v6777
        %v6906 = vadd.f32 %v6389, %v6778
        %v6907 = vadd.f32 %v6198, %v6779
        %v6908 = vadd.f32 %v6200, %v6780
        %v6909 = vadd.f32 %v6391, %v6781
        %v6910 = vadd.f32 %v6393, %v6782
        %v6911 = vadd.f32 %v6204, %v6783
        %v6912 = vadd.f32 %v6206, %v6784
        %v6913 = vadd.f32 %v6397, %v6785
        %v6914 = vadd.f32 %v6399, %v6786
        %v6915 = vadd.f32 %v6208, %v6787
        %v6916 = vadd.f32 %v6210, %v6788
        %v6917 = vadd.f32 %v6401, %v6789
        %v6918 = vadd.f32 %v6403, %v6790
        %v6919 = vadd.f32 %v6214, %v6791
        %v6920 = vadd.f32 %v6216, %v6792
        %v6921 = vadd.f32 %v6407, %v6793
        %v6922 = vadd.f32 %v6409, %v6794
        %v6923 = vadd.f32 %v6218, %v6795
        %v6924 = vadd.f32 %v6220, %v6796
        %v6925 = vadd.f32 %v6411, %v6797
        %v6926 = vadd.f32 %v6413, %v6798
        %v6927 = vmul.f32 %v6799, 0.7978846
        %v6928 = vmul.f32 %v6800, 0.7978846
        %v6929 = vmul.f32 %v6801, 0.7978846
        %v6930 = vmul.f32 %v6802, 0.7978846
        %v6931 = vmul.f32 %v6803, 0.7978846
        %v6932 = vmul.f32 %v6804, 0.7978846
        %v6933 = vmul.f32 %v6805, 0.7978846
        %v6934 = vmul.f32 %v6806, 0.7978846
        %v6935 = vmul.f32 %v6807, 0.7978846
        %v6936 = vmul.f32 %v6808, 0.7978846
        %v6937 = vmul.f32 %v6809, 0.7978846
        %v6938 = vmul.f32 %v6810, 0.7978846
        %v6939 = vmul.f32 %v6811, 0.7978846
        %v6940 = vmul.f32 %v6812, 0.7978846
        %v6941 = vmul.f32 %v6813, 0.7978846
        %v6942 = vmul.f32 %v6814, 0.7978846
        %v6943 = vmul.f32 %v6815, 0.7978846
        %v6944 = vmul.f32 %v6816, 0.7978846
        %v6945 = vmul.f32 %v6817, 0.7978846
        %v6946 = vmul.f32 %v6818, 0.7978846
        %v6947 = vmul.f32 %v6819, 0.7978846
        %v6948 = vmul.f32 %v6820, 0.7978846
        %v6949 = vmul.f32 %v6821, 0.7978846
        %v6950 = vmul.f32 %v6822, 0.7978846
        %v6951 = vmul.f32 %v6823, 0.7978846
        %v6952 = vmul.f32 %v6824, 0.7978846
        %v6953 = vmul.f32 %v6825, 0.7978846
        %v6954 = vmul.f32 %v6826, 0.7978846
        %v6955 = vmul.f32 %v6827, 0.7978846
        %v6956 = vmul.f32 %v6828, 0.7978846
        %v6957 = vmul.f32 %v6829, 0.7978846
        %v6958 = vmul.f32 %v6830, 0.7978846
        %v6959 = vmul.f32 %v6831, 0.7978846
        %v6960 = vmul.f32 %v6832, 0.7978846
        %v6961 = vmul.f32 %v6833, 0.7978846
        %v6962 = vmul.f32 %v6834, 0.7978846
        %v6963 = vmul.f32 %v6835, 0.7978846
        %v6964 = vmul.f32 %v6836, 0.7978846
        %v6965 = vmul.f32 %v6837, 0.7978846
        %v6966 = vmul.f32 %v6838, 0.7978846
        %v6967 = vmul.f32 %v6839, 0.7978846
        %v6968 = vmul.f32 %v6840, 0.7978846
        %v6969 = vmul.f32 %v6841, 0.7978846
        %v6970 = vmul.f32 %v6842, 0.7978846
        %v6971 = vmul.f32 %v6843, 0.7978846
        %v6972 = vmul.f32 %v6844, 0.7978846
        %v6973 = vmul.f32 %v6845, 0.7978846
        %v6974 = vmul.f32 %v6846, 0.7978846
        %v6975 = vmul.f32 %v6847, 0.7978846
        %v6976 = vmul.f32 %v6848, 0.7978846
        %v6977 = vmul.f32 %v6849, 0.7978846
        %v6978 = vmul.f32 %v6850, 0.7978846
        %v6979 = vmul.f32 %v6851, 0.7978846
        %v6980 = vmul.f32 %v6852, 0.7978846
        %v6981 = vmul.f32 %v6853, 0.7978846
        %v6982 = vmul.f32 %v6854, 0.7978846
        %v6983 = vmul.f32 %v6855, 0.7978846
        %v6984 = vmul.f32 %v6856, 0.7978846
        %v6985 = vmul.f32 %v6857, 0.7978846
        %v6986 = vmul.f32 %v6858, 0.7978846
        %v6987 = vmul.f32 %v6859, 0.7978846
        %v6988 = vmul.f32 %v6860, 0.7978846
        %v6989 = vmul.f32 %v6861, 0.7978846
        %v6990 = vmul.f32 %v6862, 0.7978846
        %v6991 = vmul.f32 %v6863, 0.7978846
        %v6992 = vmul.f32 %v6864, 0.7978846
        %v6993 = vmul.f32 %v6865, 0.7978846
        %v6994 = vmul.f32 %v6866, 0.7978846
        %v6995 = vmul.f32 %v6867, 0.7978846
        %v6996 = vmul.f32 %v6868, 0.7978846
        %v6997 = vmul.f32 %v6869, 0.7978846
        %v6998 = vmul.f32 %v6870, 0.7978846
        %v6999 = vmul.f32 %v6871, 0.7978846
        %v7000 = vmul.f32 %v6872, 0.7978846
        %v7001 = vmul.f32 %v6873, 0.7978846
        %v7002 = vmul.f32 %v6874, 0.7978846
        %v7003 = vmul.f32 %v6875, 0.7978846
        %v7004 = vmul.f32 %v6876, 0.7978846
        %v7005 = vmul.f32 %v6877, 0.7978846
        %v7006 = vmul.f32 %v6878, 0.7978846
        %v7007 = vmul.f32 %v6879, 0.7978846
        %v7008 = vmul.f32 %v6880, 0.7978846
        %v7009 = vmul.f32 %v6881, 0.7978846
        %v7010 = vmul.f32 %v6882, 0.7978846
        %v7011 = vmul.f32 %v6883, 0.7978846
        %v7012 = vmul.f32 %v6884, 0.7978846
        %v7013 = vmul.f32 %v6885, 0.7978846
        %v7014 = vmul.f32 %v6886, 0.7978846
        %v7015 = vmul.f32 %v6887, 0.7978846
        %v7016 = vmul.f32 %v6888, 0.7978846
        %v7017 = vmul.f32 %v6889, 0.7978846
        %v7018 = vmul.f32 %v6890, 0.7978846
        %v7019 = vmul.f32 %v6891, 0.7978846
        %v7020 = vmul.f32 %v6892, 0.7978846
        %v7021 = vmul.f32 %v6893, 0.7978846
        %v7022 = vmul.f32 %v6894, 0.7978846
        %v7023 = vmul.f32 %v6895, 0.7978846
        %v7024 = vmul.f32 %v6896, 0.7978846
        %v7025 = vmul.f32 %v6897, 0.7978846
        %v7026 = vmul.f32 %v6898, 0.7978846
        %v7027 = vmul.f32 %v6899, 0.7978846
        %v7028 = vmul.f32 %v6900, 0.7978846
        %v7029 = vmul.f32 %v6901, 0.7978846
        %v7030 = vmul.f32 %v6902, 0.7978846
        %v7031 = vmul.f32 %v6903, 0.7978846
        %v7032 = vmul.f32 %v6904, 0.7978846
        %v7033 = vmul.f32 %v6905, 0.7978846
        %v7034 = vmul.f32 %v6906, 0.7978846
        %v7035 = vmul.f32 %v6907, 0.7978846
        %v7036 = vmul.f32 %v6908, 0.7978846
        %v7037 = vmul.f32 %v6909, 0.7978846
        %v7038 = vmul.f32 %v6910, 0.7978846
        %v7039 = vmul.f32 %v6911, 0.7978846
        %v7040 = vmul.f32 %v6912, 0.7978846
        %v7041 = vmul.f32 %v6913, 0.7978846
        %v7042 = vmul.f32 %v6914, 0.7978846
        %v7043 = vmul.f32 %v6915, 0.7978846
        %v7044 = vmul.f32 %v6916, 0.7978846
        %v7045 = vmul.f32 %v6917, 0.7978846
        %v7046 = vmul.f32 %v6918, 0.7978846
        %v7047 = vmul.f32 %v6919, 0.7978846
        %v7048 = vmul.f32 %v6920, 0.7978846
        %v7049 = vmul.f32 %v6921, 0.7978846
        %v7050 = vmul.f32 %v6922, 0.7978846
        %v7051 = vmul.f32 %v6923, 0.7978846
        %v7052 = vmul.f32 %v6924, 0.7978846
        %v7053 = vmul.f32 %v6925, 0.7978846
        %v7054 = vmul.f32 %v6926, 0.7978846
        %v7055 = vtanh.pop %v6927
        %v7056 = vtanh.pop %v6928
        %v7057 = vtanh.pop %v6929
        %v7058 = vtanh.pop %v6930
        %v7059 = vtanh.pop %v6931
        %v7060 = vtanh.pop %v6932
        %v7061 = vtanh.pop %v6933
        %v7062 = vtanh.pop %v6934
        %v7063 = vtanh.pop %v6935
        %v7064 = vtanh.pop %v6936
        %v7065 = vtanh.pop %v6937
        %v7066 = vtanh.pop %v6938
        %v7067 = vtanh.pop %v6939
        %v7068 = vtanh.pop %v6940
        %v7069 = vtanh.pop %v6941
        %v7070 = vtanh.pop %v6942
        %v7071 = vtanh.pop %v6943
        %v7072 = vtanh.pop %v6944
        %v7073 = vtanh.pop %v6945
        %v7074 = vtanh.pop %v6946
        %v7075 = vtanh.pop %v6947
        %v7076 = vtanh.pop %v6948
        %v7077 = vtanh.pop %v6949
        %v7078 = vtanh.pop %v6950
        %v7079 = vtanh.pop %v6951
        %v7080 = vtanh.pop %v6952
        %v7081 = vtanh.pop %v6953
        %v7082 = vtanh.pop %v6954
        %v7083 = vtanh.pop %v6955
        %v7084 = vtanh.pop %v6956
        %v7085 = vtanh.pop %v6957
        %v7086 = vtanh.pop %v6958
        %v7087 = vtanh.pop %v6959
        %v7088 = vtanh.pop %v6960
        %v7089 = vtanh.pop %v6961
        %v7090 = vtanh.pop %v6962
        %v7091 = vtanh.pop %v6963
        %v7092 = vtanh.pop %v6964
        %v7093 = vtanh.pop %v6965
        %v7094 = vtanh.pop %v6966
        %v7095 = vtanh.pop %v6967
        %v7096 = vtanh.pop %v6968
        %v7097 = vtanh.pop %v6969
        %v7098 = vtanh.pop %v6970
        %v7099 = vtanh.pop %v6971
        %v7100 = vtanh.pop %v6972
        %v7101 = vtanh.pop %v6973
        %v7102 = vtanh.pop %v6974
        %v7103 = vtanh.pop %v6975
        %v7104 = vtanh.pop %v6976
        %v7105 = vtanh.pop %v6977
        %v7106 = vtanh.pop %v6978
        %v7107 = vtanh.pop %v6979
        %v7108 = vtanh.pop %v6980
        %v7109 = vtanh.pop %v6981
        %v7110 = vtanh.pop %v6982
        %v7111 = vtanh.pop %v6983
        %v7112 = vtanh.pop %v6984
        %v7113 = vtanh.pop %v6985
        %v7114 = vtanh.pop %v6986
        %v7115 = vtanh.pop %v6987
        %v7116 = vtanh.pop %v6988
        %v7117 = vtanh.pop %v6989
        %v7118 = vtanh.pop %v6990
        %v7119 = vtanh.pop %v6991
        %v7120 = vtanh.pop %v6992
        %v7121 = vtanh.pop %v6993
        %v7122 = vtanh.pop %v6994
        %v7123 = vtanh.pop %v6995
        %v7124 = vtanh.pop %v6996
        %v7125 = vtanh.pop %v6997
        %v7126 = vtanh.pop %v6998
        %v7127 = vtanh.pop %v6999
        %v7128 = vtanh.pop %v7000
        %v7129 = vtanh.pop %v7001
        %v7130 = vtanh.pop %v7002
        %v7131 = vtanh.pop %v7003
        %v7132 = vtanh.pop %v7004
        %v7133 = vtanh.pop %v7005
        %v7134 = vtanh.pop %v7006
        %v7135 = vtanh.pop %v7007
        %v7136 = vtanh.pop %v7008
        %v7137 = vtanh.pop %v7009
        %v7138 = vtanh.pop %v7010
        %v7139 = vtanh.pop %v7011
        %v7140 = vtanh.pop %v7012
        %v7141 = vtanh.pop %v7013
        %v7142 = vtanh.pop %v7014
        %v7143 = vtanh.pop %v7015
        %v7144 = vtanh.pop %v7016
        %v7145 = vtanh.pop %v7017
        %v7146 = vtanh.pop %v7018
        %v7147 = vtanh.pop %v7019
        %v7148 = vtanh.pop %v7020
        %v7149 = vtanh.pop %v7021
        %v7150 = vtanh.pop %v7022
        %v7151 = vtanh.pop %v7023
        %v7152 = vtanh.pop %v7024
        %v7153 = vtanh.pop %v7025
        %v7154 = vtanh.pop %v7026
        %v7155 = vtanh.pop %v7027
        %v7156 = vtanh.pop %v7028
        %v7157 = vtanh.pop %v7029
        %v7158 = vtanh.pop %v7030
        %v7159 = vtanh.pop %v7031
        %v7160 = vtanh.pop %v7032
        %v7161 = vtanh.pop %v7033
        %v7162 = vtanh.pop %v7034
        %v7163 = vtanh.pop %v7035
        %v7164 = vtanh.pop %v7036
        %v7165 = vtanh.pop %v7037
        %v7166 = vtanh.pop %v7038
        %v7167 = vtanh.pop %v7039
        %v7168 = vtanh.pop %v7040
        %v7169 = vtanh.pop %v7041
        %v7170 = vtanh.pop %v7042
        %v7171 = vtanh.pop %v7043
        %v7172 = vtanh.pop %v7044
        %v7173 = vtanh.pop %v7045
        %v7174 = vtanh.pop %v7046
        %v7175 = vtanh.pop %v7047
        %v7176 = vtanh.pop %v7048
        %v7177 = vtanh.pop %v7049
        %v7178 = vtanh.pop %v7050
        %v7179 = vtanh.pop %v7051
        %v7180 = vtanh.pop %v7052
        %v7181 = vtanh.pop %v7053
        %v7182 = vtanh.pop %v7054
        %v7183 = vadd.f32 %v7055, 1.0
        %v7184 = vadd.f32 %v7056, 1.0
        %v7185 = vadd.f32 %v7057, 1.0
        %v7186 = vadd.f32 %v7058, 1.0
        %v7187 = vadd.f32 %v7059, 1.0
        %v7188 = vadd.f32 %v7060, 1.0
        %v7189 = vadd.f32 %v7061, 1.0
        %v7190 = vadd.f32 %v7062, 1.0
        %v7191 = vadd.f32 %v7063, 1.0
        %v7192 = vadd.f32 %v7064, 1.0
        %v7193 = vadd.f32 %v7065, 1.0
        %v7194 = vadd.f32 %v7066, 1.0
        %v7195 = vadd.f32 %v7067, 1.0
        %v7196 = vadd.f32 %v7068, 1.0
        %v7197 = vadd.f32 %v7069, 1.0
        %v7198 = vadd.f32 %v7070, 1.0
        %v7199 = vadd.f32 %v7071, 1.0
        %v7200 = vadd.f32 %v7072, 1.0
        %v7201 = vadd.f32 %v7073, 1.0
        %v7202 = vadd.f32 %v7074, 1.0
        %v7203 = vadd.f32 %v7075, 1.0
        %v7204 = vadd.f32 %v7076, 1.0
        %v7205 = vadd.f32 %v7077, 1.0
        %v7206 = vadd.f32 %v7078, 1.0
        %v7207 = vadd.f32 %v7079, 1.0
        %v7208 = vadd.f32 %v7080, 1.0
        %v7209 = vadd.f32 %v7081, 1.0
        %v7210 = vadd.f32 %v7082, 1.0
        %v7211 = vadd.f32 %v7083, 1.0
        %v7212 = vadd.f32 %v7084, 1.0
        %v7213 = vadd.f32 %v7085, 1.0
        %v7214 = vadd.f32 %v7086, 1.0
        %v7215 = vadd.f32 %v7087, 1.0
        %v7216 = vadd.f32 %v7088, 1.0
        %v7217 = vadd.f32 %v7089, 1.0
        %v7218 = vadd.f32 %v7090, 1.0
        %v7219 = vadd.f32 %v7091, 1.0
        %v7220 = vadd.f32 %v7092, 1.0
        %v7221 = vadd.f32 %v7093, 1.0
        %v7222 = vadd.f32 %v7094, 1.0
        %v7223 = vadd.f32 %v7095, 1.0
        %v7224 = vadd.f32 %v7096, 1.0
        %v7225 = vadd.f32 %v7097, 1.0
        %v7226 = vadd.f32 %v7098, 1.0
        %v7227 = vadd.f32 %v7099, 1.0
        %v7228 = vadd.f32 %v7100, 1.0
        %v7229 = vadd.f32 %v7101, 1.0
        %v7230 = vadd.f32 %v7102, 1.0
        %v7231 = vadd.f32 %v7103, 1.0
        %v7232 = vadd.f32 %v7104, 1.0
        %v7233 = vadd.f32 %v7105, 1.0
        %v7234 = vadd.f32 %v7106, 1.0
        %v7235 = vadd.f32 %v7107, 1.0
        %v7236 = vadd.f32 %v7108, 1.0
        %v7237 = vadd.f32 %v7109, 1.0
        %v7238 = vadd.f32 %v7110, 1.0
        %v7239 = vadd.f32 %v7111, 1.0
        %v7240 = vadd.f32 %v7112, 1.0
        %v7241 = vadd.f32 %v7113, 1.0
        %v7242 = vadd.f32 %v7114, 1.0
        %v7243 = vadd.f32 %v7115, 1.0
        %v7244 = vadd.f32 %v7116, 1.0
        %v7245 = vadd.f32 %v7117, 1.0
        %v7246 = vadd.f32 %v7118, 1.0
        %v7247 = vadd.f32 %v7119, 1.0
        %v7248 = vadd.f32 %v7120, 1.0
        %v7249 = vadd.f32 %v7121, 1.0
        %v7250 = vadd.f32 %v7122, 1.0
        %v7251 = vadd.f32 %v7123, 1.0
        %v7252 = vadd.f32 %v7124, 1.0
        %v7253 = vadd.f32 %v7125, 1.0
        %v7254 = vadd.f32 %v7126, 1.0
        %v7255 = vadd.f32 %v7127, 1.0
        %v7256 = vadd.f32 %v7128, 1.0
        %v7257 = vadd.f32 %v7129, 1.0
        %v7258 = vadd.f32 %v7130, 1.0
        %v7259 = vadd.f32 %v7131, 1.0
        %v7260 = vadd.f32 %v7132, 1.0
        %v7261 = vadd.f32 %v7133, 1.0
        %v7262 = vadd.f32 %v7134, 1.0
        %v7263 = vadd.f32 %v7135, 1.0
        %v7264 = vadd.f32 %v7136, 1.0
        %v7265 = vadd.f32 %v7137, 1.0
        %v7266 = vadd.f32 %v7138, 1.0
        %v7267 = vadd.f32 %v7139, 1.0
        %v7268 = vadd.f32 %v7140, 1.0
        %v7269 = vadd.f32 %v7141, 1.0
        %v7270 = vadd.f32 %v7142, 1.0
        %v7271 = vadd.f32 %v7143, 1.0
        %v7272 = vadd.f32 %v7144, 1.0
        %v7273 = vadd.f32 %v7145, 1.0
        %v7274 = vadd.f32 %v7146, 1.0
        %v7275 = vadd.f32 %v7147, 1.0
        %v7276 = vadd.f32 %v7148, 1.0
        %v7277 = vadd.f32 %v7149, 1.0
        %v7278 = vadd.f32 %v7150, 1.0
        %v7279 = vadd.f32 %v7151, 1.0
        %v7280 = vadd.f32 %v7152, 1.0
        %v7281 = vadd.f32 %v7153, 1.0
        %v7282 = vadd.f32 %v7154, 1.0
        %v7283 = vadd.f32 %v7155, 1.0
        %v7284 = vadd.f32 %v7156, 1.0
        %v7285 = vadd.f32 %v7157, 1.0
        %v7286 = vadd.f32 %v7158, 1.0
        %v7287 = vadd.f32 %v7159, 1.0
        %v7288 = vadd.f32 %v7160, 1.0
        %v7289 = vadd.f32 %v7161, 1.0
        %v7290 = vadd.f32 %v7162, 1.0
        %v7291 = vadd.f32 %v7163, 1.0
        %v7292 = vadd.f32 %v7164, 1.0
        %v7293 = vadd.f32 %v7165, 1.0
        %v7294 = vadd.f32 %v7166, 1.0
        %v7295 = vadd.f32 %v7167, 1.0
        %v7296 = vadd.f32 %v7168, 1.0
        %v7297 = vadd.f32 %v7169, 1.0
        %v7298 = vadd.f32 %v7170, 1.0
        %v7299 = vadd.f32 %v7171, 1.0
        %v7300 = vadd.f32 %v7172, 1.0
        %v7301 = vadd.f32 %v7173, 1.0
        %v7302 = vadd.f32 %v7174, 1.0
        %v7303 = vadd.f32 %v7175, 1.0
        %v7304 = vadd.f32 %v7176, 1.0
        %v7305 = vadd.f32 %v7177, 1.0
        %v7306 = vadd.f32 %v7178, 1.0
        %v7307 = vadd.f32 %v7179, 1.0
        %v7308 = vadd.f32 %v7180, 1.0
        %v7309 = vadd.f32 %v7181, 1.0
        %v7310 = vadd.f32 %v7182, 1.0
        %v7311 = vmul.f32 %v7183, 0.5
        %v7312 = vmul.f32 %v7184, 0.5
        %v7313 = vmul.f32 %v7185, 0.5
        %v7314 = vmul.f32 %v7186, 0.5
        %v7315 = vmul.f32 %v7187, 0.5
        %v7316 = vmul.f32 %v7188, 0.5
        %v7317 = vmul.f32 %v7189, 0.5
        %v7318 = vmul.f32 %v7190, 0.5
        %v7319 = vmul.f32 %v7191, 0.5
        %v7320 = vmul.f32 %v7192, 0.5
        %v7321 = vmul.f32 %v7193, 0.5
        %v7322 = vmul.f32 %v7194, 0.5
        %v7323 = vmul.f32 %v7195, 0.5
        %v7324 = vmul.f32 %v7196, 0.5
        %v7325 = vmul.f32 %v7197, 0.5
        %v7326 = vmul.f32 %v7198, 0.5
        %v7327 = vmul.f32 %v7199, 0.5
        %v7328 = vmul.f32 %v7200, 0.5
        %v7329 = vmul.f32 %v7201, 0.5
        %v7330 = vmul.f32 %v7202, 0.5
        %v7331 = vmul.f32 %v7203, 0.5
        %v7332 = vmul.f32 %v7204, 0.5
        %v7333 = vmul.f32 %v7205, 0.5
        %v7334 = vmul.f32 %v7206, 0.5
        %v7335 = vmul.f32 %v7207, 0.5
        %v7336 = vmul.f32 %v7208, 0.5
        %v7337 = vmul.f32 %v7209, 0.5
        %v7338 = vmul.f32 %v7210, 0.5
        %v7339 = vmul.f32 %v7211, 0.5
        %v7340 = vmul.f32 %v7212, 0.5
        %v7341 = vmul.f32 %v7213, 0.5
        %v7342 = vmul.f32 %v7214, 0.5
        %v7343 = vmul.f32 %v7215, 0.5
        %v7344 = vmul.f32 %v7216, 0.5
        %v7345 = vmul.f32 %v7217, 0.5
        %v7346 = vmul.f32 %v7218, 0.5
        %v7347 = vmul.f32 %v7219, 0.5
        %v7348 = vmul.f32 %v7220, 0.5
        %v7349 = vmul.f32 %v7221, 0.5
        %v7350 = vmul.f32 %v7222, 0.5
        %v7351 = vmul.f32 %v7223, 0.5
        %v7352 = vmul.f32 %v7224, 0.5
        %v7353 = vmul.f32 %v7225, 0.5
        %v7354 = vmul.f32 %v7226, 0.5
        %v7355 = vmul.f32 %v7227, 0.5
        %v7356 = vmul.f32 %v7228, 0.5
        %v7357 = vmul.f32 %v7229, 0.5
        %v7358 = vmul.f32 %v7230, 0.5
        %v7359 = vmul.f32 %v7231, 0.5
        %v7360 = vmul.f32 %v7232, 0.5
        %v7361 = vmul.f32 %v7233, 0.5
        %v7362 = vmul.f32 %v7234, 0.5
        %v7363 = vmul.f32 %v7235, 0.5
        %v7364 = vmul.f32 %v7236, 0.5
        %v7365 = vmul.f32 %v7237, 0.5
        %v7366 = vmul.f32 %v7238, 0.5
        %v7367 = vmul.f32 %v7239, 0.5
        %v7368 = vmul.f32 %v7240, 0.5
        %v7369 = vmul.f32 %v7241, 0.5
        %v7370 = vmul.f32 %v7242, 0.5
        %v7371 = vmul.f32 %v7243, 0.5
        %v7372 = vmul.f32 %v7244, 0.5
        %v7373 = vmul.f32 %v7245, 0.5
        %v7374 = vmul.f32 %v7246, 0.5
        %v7375 = vmul.f32 %v7247, 0.5
        %v7376 = vmul.f32 %v7248, 0.5
        %v7377 = vmul.f32 %v7249, 0.5
        %v7378 = vmul.f32 %v7250, 0.5
        %v7379 = vmul.f32 %v7251, 0.5
        %v7380 = vmul.f32 %v7252, 0.5
        %v7381 = vmul.f32 %v7253, 0.5
        %v7382 = vmul.f32 %v7254, 0.5
        %v7383 = vmul.f32 %v7255, 0.5
        %v7384 = vmul.f32 %v7256, 0.5
        %v7385 = vmul.f32 %v7257, 0.5
        %v7386 = vmul.f32 %v7258, 0.5
        %v7387 = vmul.f32 %v7259, 0.5
        %v7388 = vmul.f32 %v7260, 0.5
        %v7389 = vmul.f32 %v7261, 0.5
        %v7390 = vmul.f32 %v7262, 0.5
        %v7391 = vmul.f32 %v7263, 0.5
        %v7392 = vmul.f32 %v7264, 0.5
        %v7393 = vmul.f32 %v7265, 0.5
        %v7394 = vmul.f32 %v7266, 0.5
        %v7395 = vmul.f32 %v7267, 0.5
        %v7396 = vmul.f32 %v7268, 0.5
        %v7397 = vmul.f32 %v7269, 0.5
        %v7398 = vmul.f32 %v7270, 0.5
        %v7399 = vmul.f32 %v7271, 0.5
        %v7400 = vmul.f32 %v7272, 0.5
        %v7401 = vmul.f32 %v7273, 0.5
        %v7402 = vmul.f32 %v7274, 0.5
        %v7403 = vmul.f32 %v7275, 0.5
        %v7404 = vmul.f32 %v7276, 0.5
        %v7405 = vmul.f32 %v7277, 0.5
        %v7406 = vmul.f32 %v7278, 0.5
        %v7407 = vmul.f32 %v7279, 0.5
        %v7408 = vmul.f32 %v7280, 0.5
        %v7409 = vmul.f32 %v7281, 0.5
        %v7410 = vmul.f32 %v7282, 0.5
        %v7411 = vmul.f32 %v7283, 0.5
        %v7412 = vmul.f32 %v7284, 0.5
        %v7413 = vmul.f32 %v7285, 0.5
        %v7414 = vmul.f32 %v7286, 0.5
        %v7415 = vmul.f32 %v7287, 0.5
        %v7416 = vmul.f32 %v7288, 0.5
        %v7417 = vmul.f32 %v7289, 0.5
        %v7418 = vmul.f32 %v7290, 0.5
        %v7419 = vmul.f32 %v7291, 0.5
        %v7420 = vmul.f32 %v7292, 0.5
        %v7421 = vmul.f32 %v7293, 0.5
        %v7422 = vmul.f32 %v7294, 0.5
        %v7423 = vmul.f32 %v7295, 0.5
        %v7424 = vmul.f32 %v7296, 0.5
        %v7425 = vmul.f32 %v7297, 0.5
        %v7426 = vmul.f32 %v7298, 0.5
        %v7427 = vmul.f32 %v7299, 0.5
        %v7428 = vmul.f32 %v7300, 0.5
        %v7429 = vmul.f32 %v7301, 0.5
        %v7430 = vmul.f32 %v7302, 0.5
        %v7431 = vmul.f32 %v7303, 0.5
        %v7432 = vmul.f32 %v7304, 0.5
        %v7433 = vmul.f32 %v7305, 0.5
        %v7434 = vmul.f32 %v7306, 0.5
        %v7435 = vmul.f32 %v7307, 0.5
        %v7436 = vmul.f32 %v7308, 0.5
        %v7437 = vmul.f32 %v7309, 0.5
        %v7438 = vmul.f32 %v7310, 0.5
        %v7439 = vmul.f32 %v6064, %v7311
        %v7440 = vmul.f32 %v6066, %v7312
        %v7441 = vmul.f32 %v6257, %v7313
        %v7442 = vmul.f32 %v6259, %v7314
        %v7443 = vmul.f32 %v6068, %v7315
        %v7444 = vmul.f32 %v6070, %v7316
        %v7445 = vmul.f32 %v6261, %v7317
        %v7446 = vmul.f32 %v6263, %v7318
        %v7447 = vmul.f32 %v6074, %v7319
        %v7448 = vmul.f32 %v6076, %v7320
        %v7449 = vmul.f32 %v6267, %v7321
        %v7450 = vmul.f32 %v6269, %v7322
        %v7451 = vmul.f32 %v6078, %v7323
        %v7452 = vmul.f32 %v6080, %v7324
        %v7453 = vmul.f32 %v6271, %v7325
        %v7454 = vmul.f32 %v6273, %v7326
        %v7455 = vmul.f32 %v6084, %v7327
        %v7456 = vmul.f32 %v6086, %v7328
        %v7457 = vmul.f32 %v6277, %v7329
        %v7458 = vmul.f32 %v6279, %v7330
        %v7459 = vmul.f32 %v6088, %v7331
        %v7460 = vmul.f32 %v6090, %v7332
        %v7461 = vmul.f32 %v6281, %v7333
        %v7462 = vmul.f32 %v6283, %v7334
        %v7463 = vmul.f32 %v6094, %v7335
        %v7464 = vmul.f32 %v6096, %v7336
        %v7465 = vmul.f32 %v6287, %v7337
        %v7466 = vmul.f32 %v6289, %v7338
        %v7467 = vmul.f32 %v6098, %v7339
        %v7468 = vmul.f32 %v6100, %v7340
        %v7469 = vmul.f32 %v6291, %v7341
        %v7470 = vmul.f32 %v6293, %v7342
        %v7471 = vmul.f32 %v6104, %v7343
        %v7472 = vmul.f32 %v6106, %v7344
        %v7473 = vmul.f32 %v6297, %v7345
        %v7474 = vmul.f32 %v6299, %v7346
        %v7475 = vmul.f32 %v6108, %v7347
        %v7476 = vmul.f32 %v6110, %v7348
        %v7477 = vmul.f32 %v6301, %v7349
        %v7478 = vmul.f32 %v6303, %v7350
        %v7479 = vmul.f32 %v6114, %v7351
        %v7480 = vmul.f32 %v6116, %v7352
        %v7481 = vmul.f32 %v6307, %v7353
        %v7482 = vmul.f32 %v6309, %v7354
        %v7483 = vmul.f32 %v6118, %v7355
        %v7484 = vmul.f32 %v6120, %v7356
        %v7485 = vmul.f32 %v6311, %v7357
        %v7486 = vmul.f32 %v6313, %v7358
        %v7487 = vmul.f32 %v6124, %v7359
        %v7488 = vmul.f32 %v6126, %v7360
        %v7489 = vmul.f32 %v6317, %v7361
        %v7490 = vmul.f32 %v6319, %v7362
        %v7491 = vmul.f32 %v6128, %v7363
        %v7492 = vmul.f32 %v6130, %v7364
        %v7493 = vmul.f32 %v6321, %v7365
        %v7494 = vmul.f32 %v6323, %v7366
        %v7495 = vmul.f32 %v6134, %v7367
        %v7496 = vmul.f32 %v6136, %v7368
        %v7497 = vmul.f32 %v6327, %v7369
        %v7498 = vmul.f32 %v6329, %v7370
        %v7499 = vmul.f32 %v6138, %v7371
        %v7500 = vmul.f32 %v6140, %v7372
        %v7501 = vmul.f32 %v6331, %v7373
        %v7502 = vmul.f32 %v6333, %v7374
        %v7503 = vmul.f32 %v6144, %v7375
        %v7504 = vmul.f32 %v6146, %v7376
        %v7505 = vmul.f32 %v6337, %v7377
        %v7506 = vmul.f32 %v6339, %v7378
        %v7507 = vmul.f32 %v6148, %v7379
        %v7508 = vmul.f32 %v6150, %v7380
        %v7509 = vmul.f32 %v6341, %v7381
        %v7510 = vmul.f32 %v6343, %v7382
        %v7511 = vmul.f32 %v6154, %v7383
        %v7512 = vmul.f32 %v6156, %v7384
        %v7513 = vmul.f32 %v6347, %v7385
        %v7514 = vmul.f32 %v6349, %v7386
        %v7515 = vmul.f32 %v6158, %v7387
        %v7516 = vmul.f32 %v6160, %v7388
        %v7517 = vmul.f32 %v6351, %v7389
        %v7518 = vmul.f32 %v6353, %v7390
        %v7519 = vmul.f32 %v6164, %v7391
        %v7520 = vmul.f32 %v6166, %v7392
        %v7521 = vmul.f32 %v6357, %v7393
        %v7522 = vmul.f32 %v6359, %v7394
        %v7523 = vmul.f32 %v6168, %v7395
        %v7524 = vmul.f32 %v6170, %v7396
        %v7525 = vmul.f32 %v6361, %v7397
        %v7526 = vmul.f32 %v6363, %v7398
        %v7527 = vmul.f32 %v6174, %v7399
        %v7528 = vmul.f32 %v6176, %v7400
        %v7529 = vmul.f32 %v6367, %v7401
        %v7530 = vmul.f32 %v6369, %v7402
        %v7531 = vmul.f32 %v6178, %v7403
        %v7532 = vmul.f32 %v6180, %v7404
        %v7533 = vmul.f32 %v6371, %v7405
        %v7534 = vmul.f32 %v6373, %v7406
        %v7535 = vmul.f32 %v6184, %v7407
        %v7536 = vmul.f32 %v6186, %v7408
        %v7537 = vmul.f32 %v6377, %v7409
        %v7538 = vmul.f32 %v6379, %v7410
        %v7539 = vmul.f32 %v6188, %v7411
        %v7540 = vmul.f32 %v6190, %v7412
        %v7541 = vmul.f32 %v6381, %v7413
        %v7542 = vmul.f32 %v6383, %v7414
        %v7543 = vmul.f32 %v6194, %v7415
        %v7544 = vmul.f32 %v6196, %v7416
        %v7545 = vmul.f32 %v6387, %v7417
        %v7546 = vmul.f32 %v6389, %v7418
        %v7547 = vmul.f32 %v6198, %v7419
        %v7548 = vmul.f32 %v6200, %v7420
        %v7549 = vmul.f32 %v6391, %v7421
        %v7550 = vmul.f32 %v6393, %v7422
        %v7551 = vmul.f32 %v6204, %v7423
        %v7552 = vmul.f32 %v6206, %v7424
        %v7553 = vmul.f32 %v6397, %v7425
        %v7554 = vmul.f32 %v6399, %v7426
        %v7555 = vmul.f32 %v6208, %v7427
        %v7556 = vmul.f32 %v6210, %v7428
        %v7557 = vmul.f32 %v6401, %v7429
        %v7558 = vmul.f32 %v6403, %v7430
        %v7559 = vmul.f32 %v6214, %v7431
        %v7560 = vmul.f32 %v6216, %v7432
        %v7561 = vmul.f32 %v6407, %v7433
        %v7562 = vmul.f32 %v6409, %v7434
        %v7563 = vmul.f32 %v6218, %v7435
        %v7564 = vmul.f32 %v6220, %v7436
        %v7565 = vmul.f32 %v6411, %v7437
        %v7566 = vmul.f32 %v6413, %v7438
        %v7567 = vpack.c.bf16 %v7443, %v7439
        %v7568 = vpack.c.bf16 %v7444, %v7440
        %v7569 = vpack.c.bf16 %v7445, %v7441
        %v7570 = vpack.c.bf16 %v7446, %v7442
        %v7571 = vpack.c.bf16 %v7451, %v7447
        %v7572 = vpack.c.bf16 %v7452, %v7448
        %v7573 = vpack.c.bf16 %v7453, %v7449
        %v7574 = vpack.c.bf16 %v7454, %v7450
        %v7575 = vpack.c.bf16 %v7459, %v7455
        %v7576 = vpack.c.bf16 %v7460, %v7456
        %v7577 = vpack.c.bf16 %v7461, %v7457
        %v7578 = vpack.c.bf16 %v7462, %v7458
        %v7579 = vpack.c.bf16 %v7467, %v7463
        %v7580 = vpack.c.bf16 %v7468, %v7464
        %v7581 = vpack.c.bf16 %v7469, %v7465
        %v7582 = vpack.c.bf16 %v7470, %v7466
        %v7583 = vpack.c.bf16 %v7475, %v7471
        %v7584 = vpack.c.bf16 %v7476, %v7472
        %v7585 = vpack.c.bf16 %v7477, %v7473
        %v7586 = vpack.c.bf16 %v7478, %v7474
        %v7587 = vpack.c.bf16 %v7483, %v7479
        %v7588 = vpack.c.bf16 %v7484, %v7480
        %v7589 = vpack.c.bf16 %v7485, %v7481
        %v7590 = vpack.c.bf16 %v7486, %v7482
        %v7591 = vpack.c.bf16 %v7491, %v7487
        %v7592 = vpack.c.bf16 %v7492, %v7488
        %v7593 = vpack.c.bf16 %v7493, %v7489
        %v7594 = vpack.c.bf16 %v7494, %v7490
        %v7595 = vpack.c.bf16 %v7499, %v7495
        %v7596 = vpack.c.bf16 %v7500, %v7496
        %v7597 = vpack.c.bf16 %v7501, %v7497
        %v7598 = vpack.c.bf16 %v7502, %v7498
        %v7599 = vpack.c.bf16 %v7507, %v7503
        %v7600 = vpack.c.bf16 %v7508, %v7504
        %v7601 = vpack.c.bf16 %v7509, %v7505
        %v7602 = vpack.c.bf16 %v7510, %v7506
        %v7603 = vpack.c.bf16 %v7515, %v7511
        %v7604 = vpack.c.bf16 %v7516, %v7512
        %v7605 = vpack.c.bf16 %v7517, %v7513
        %v7606 = vpack.c.bf16 %v7518, %v7514
        %v7607 = vpack.c.bf16 %v7523, %v7519
        %v7608 = vpack.c.bf16 %v7524, %v7520
        %v7609 = vpack.c.bf16 %v7525, %v7521
        %v7610 = vpack.c.bf16 %v7526, %v7522
        %v7611 = vpack.c.bf16 %v7531, %v7527
        %v7612 = vpack.c.bf16 %v7532, %v7528
        %v7613 = vpack.c.bf16 %v7533, %v7529
        %v7614 = vpack.c.bf16 %v7534, %v7530
        %v7615 = vpack.c.bf16 %v7539, %v7535
        %v7616 = vpack.c.bf16 %v7540, %v7536
        %v7617 = vpack.c.bf16 %v7541, %v7537
        %v7618 = vpack.c.bf16 %v7542, %v7538
        %v7619 = vpack.c.bf16 %v7547, %v7543
        %v7620 = vpack.c.bf16 %v7548, %v7544
        %v7621 = vpack.c.bf16 %v7549, %v7545
        %v7622 = vpack.c.bf16 %v7550, %v7546
        %v7623 = vpack.c.bf16 %v7555, %v7551
        %v7624 = vpack.c.bf16 %v7556, %v7552
        %v7625 = vpack.c.bf16 %v7557, %v7553
        %v7626 = vpack.c.bf16 %v7558, %v7554
        %v7627 = vpack.c.bf16 %v7563, %v7559
        %v7628 = vpack.c.bf16 %v7564, %v7560
        %v7629 = vpack.c.bf16 %v7565, %v7561
        %v7630 = vpack.c.bf16 %v7566, %v7562
        %v7631 = vld [vmem:[%s675] sm:$0xff]
        %v7632 = vld [vmem:[%s675 + $0x8] sm:$0xff]
        %v7633 = vld [vmem:[%s675 + $0x10] sm:$0xff]
        %v7634 = vld [vmem:[%s675 + $0x18] sm:$0xff]
        %v7635 = vld [vmem:[%s675 + $0x20] sm:$0xff]
        %v7636 = vld [vmem:[%s675 + $0x28] sm:$0xff]
        %v7637 = vld [vmem:[%s675 + $0x30] sm:$0xff]
        %v7638 = vld [vmem:[%s675 + $0x38] sm:$0xff]
        %v7639 = vld [vmem:[%s675 + $0x40] sm:$0xff]
        %v7640 = vld [vmem:[%s675 + $0x48] sm:$0xff]
        %v7641 = vld [vmem:[%s675 + $0x50] sm:$0xff]
        %v7642 = vld [vmem:[%s675 + $0x58] sm:$0xff]
        %v7643 = vld [vmem:[%s675 + $0x60] sm:$0xff]
        %v7644 = vld [vmem:[%s675 + $0x68] sm:$0xff]
        %v7645 = vld [vmem:[%s675 + $0x70] sm:$0xff]
        %v7646 = vld [vmem:[%s675 + $0x78] sm:$0xff]
        %v7647 = vld [vmem:[%s675 + $0x80] sm:$0xff]
        %v7648 = vld [vmem:[%s675 + $0x88] sm:$0xff]
        %v7649 = vld [vmem:[%s675 + $0x90] sm:$0xff]
        %v7650 = vld [vmem:[%s675 + $0x98] sm:$0xff]
        %v7651 = vld [vmem:[%s675 + $0xa0] sm:$0xff]
        %v7652 = vld [vmem:[%s675 + $0xa8] sm:$0xff]
        %v7653 = vld [vmem:[%s675 + $0xb0] sm:$0xff]
        %v7654 = vld [vmem:[%s675 + $0xb8] sm:$0xff]
        %v7655 = vld [vmem:[%s675 + $0xc0] sm:$0xff]
        %v7656 = vld [vmem:[%s675 + $0xc8] sm:$0xff]
        %v7657 = vld [vmem:[%s675 + $0xd0] sm:$0xff]
        %v7658 = vld [vmem:[%s675 + $0xd8] sm:$0xff]
        %v7659 = vld [vmem:[%s675 + $0xe0] sm:$0xff]
        %v7660 = vld [vmem:[%s675 + $0xe8] sm:$0xff]
        %v7661 = vld [vmem:[%s675 + $0xf0] sm:$0xff]
        %v7662 = vld [vmem:[%s675 + $0xf8] sm:$0xff]
        %v7663 = vld [vmem:[%s675 + $0x100] sm:$0xff]
        %v7664 = vld [vmem:[%s675 + $0x108] sm:$0xff]
        %v7665 = vld [vmem:[%s675 + $0x110] sm:$0xff]
        %v7666 = vld [vmem:[%s675 + $0x118] sm:$0xff]
        %v7667 = vld [vmem:[%s675 + $0x120] sm:$0xff]
        %v7668 = vld [vmem:[%s675 + $0x128] sm:$0xff]
        %v7669 = vld [vmem:[%s675 + $0x130] sm:$0xff]
        %v7670 = vld [vmem:[%s675 + $0x138] sm:$0xff]
        %v7671 = vld [vmem:[%s675 + $0x140] sm:$0xff]
        %v7672 = vld [vmem:[%s675 + $0x148] sm:$0xff]
        %v7673 = vld [vmem:[%s675 + $0x150] sm:$0xff]
        %v7674 = vld [vmem:[%s675 + $0x158] sm:$0xff]
        %v7675 = vld [vmem:[%s675 + $0x160] sm:$0xff]
        %v7676 = vld [vmem:[%s675 + $0x168] sm:$0xff]
        %v7677 = vld [vmem:[%s675 + $0x170] sm:$0xff]
        %v7678 = vld [vmem:[%s675 + $0x178] sm:$0xff]
        %v7679 = vld [vmem:[%s675 + $0x180] sm:$0xff]
        %v7680 = vld [vmem:[%s675 + $0x188] sm:$0xff]
        %v7681 = vld [vmem:[%s675 + $0x190] sm:$0xff]
        %v7682 = vld [vmem:[%s675 + $0x198] sm:$0xff]
        %v7683 = vld [vmem:[%s675 + $0x1a0] sm:$0xff]
        %v7684 = vld [vmem:[%s675 + $0x1a8] sm:$0xff]
        %v7685 = vld [vmem:[%s675 + $0x1b0] sm:$0xff]
        %v7686 = vld [vmem:[%s675 + $0x1b8] sm:$0xff]
        %v7687 = vld [vmem:[%s675 + $0x1c0] sm:$0xff]
        %v7688 = vld [vmem:[%s675 + $0x1c8] sm:$0xff]
        %v7689 = vld [vmem:[%s675 + $0x1d0] sm:$0xff]
        %v7690 = vld [vmem:[%s675 + $0x1d8] sm:$0xff]
        %v7691 = vld [vmem:[%s675 + $0x1e0] sm:$0xff]
        %v7692 = vld [vmem:[%s675 + $0x1e8] sm:$0xff]
        %v7693 = vld [vmem:[%s675 + $0x1f0] sm:$0xff]
        %v7694 = vld [vmem:[%s675 + $0x1f8] sm:$0xff]
        %v7695 = vld [vmem:[%s787] sm:$0x3]
        %v7697 = vlaneseq
        %v7698 = vshrl.u32 %v7697, 7
        %v7699 = vsub.s32 0, %v7698
        %v7700 = vrot.slane %v7695, %v7699
        %v7701 = vlaneseq
        %v7702 = vshrl.u32 %v7701, 7
        %v7703 = vsub.s32 1, %v7702
        %v7704 = vrot.slane %v7695, %v7703
        %v7771 = vunpack.c.l.b16 %v7631
        %v7772 = vunpack.c.h.b16 %v7631
        %v7773 = vunpack.c.l.b16 %v7632
        %v7774 = vunpack.c.h.b16 %v7632
        %v7775 = vunpack.c.l.b16 %v7633
        %v7776 = vunpack.c.h.b16 %v7633
        %v7777 = vunpack.c.l.b16 %v7634
        %v7778 = vunpack.c.h.b16 %v7634
        %v7779 = vunpack.c.l.b16 %v7635
        %v7780 = vunpack.c.h.b16 %v7635
        %v7781 = vunpack.c.l.b16 %v7636
        %v7782 = vunpack.c.h.b16 %v7636
        %v7783 = vunpack.c.l.b16 %v7637
        %v7784 = vunpack.c.h.b16 %v7637
        %v7785 = vunpack.c.l.b16 %v7638
        %v7786 = vunpack.c.h.b16 %v7638
        %v7787 = vunpack.c.l.b16 %v7639
        %v7788 = vunpack.c.h.b16 %v7639
        %v7789 = vunpack.c.l.b16 %v7640
        %v7790 = vunpack.c.h.b16 %v7640
        %v7791 = vunpack.c.l.b16 %v7641
        %v7792 = vunpack.c.h.b16 %v7641
        %v7793 = vunpack.c.l.b16 %v7642
        %v7794 = vunpack.c.h.b16 %v7642
        %v7795 = vunpack.c.l.b16 %v7643
        %v7796 = vunpack.c.h.b16 %v7643
        %v7797 = vunpack.c.l.b16 %v7644
        %v7798 = vunpack.c.h.b16 %v7644
        %v7799 = vunpack.c.l.b16 %v7645
        %v7800 = vunpack.c.h.b16 %v7645
        %v7801 = vunpack.c.l.b16 %v7646
        %v7802 = vunpack.c.h.b16 %v7646
        %v7803 = vunpack.c.l.b16 %v7647
        %v7804 = vunpack.c.h.b16 %v7647
        %v7805 = vunpack.c.l.b16 %v7648
        %v7806 = vunpack.c.h.b16 %v7648
        %v7807 = vunpack.c.l.b16 %v7649
        %v7808 = vunpack.c.h.b16 %v7649
        %v7809 = vunpack.c.l.b16 %v7650
        %v7810 = vunpack.c.h.b16 %v7650
        %v7811 = vunpack.c.l.b16 %v7651
        %v7812 = vunpack.c.h.b16 %v7651
        %v7813 = vunpack.c.l.b16 %v7652
        %v7814 = vunpack.c.h.b16 %v7652
        %v7815 = vunpack.c.l.b16 %v7653
        %v7816 = vunpack.c.h.b16 %v7653
        %v7817 = vunpack.c.l.b16 %v7654
        %v7818 = vunpack.c.h.b16 %v7654
        %v7819 = vunpack.c.l.b16 %v7655
        %v7820 = vunpack.c.h.b16 %v7655
        %v7821 = vunpack.c.l.b16 %v7656
        %v7822 = vunpack.c.h.b16 %v7656
        %v7823 = vunpack.c.l.b16 %v7657
        %v7824 = vunpack.c.h.b16 %v7657
        %v7825 = vunpack.c.l.b16 %v7658
        %v7826 = vunpack.c.h.b16 %v7658
        %v7827 = vunpack.c.l.b16 %v7659
        %v7828 = vunpack.c.h.b16 %v7659
        %v7829 = vunpack.c.l.b16 %v7660
        %v7830 = vunpack.c.h.b16 %v7660
        %v7831 = vunpack.c.l.b16 %v7661
        %v7832 = vunpack.c.h.b16 %v7661
        %v7833 = vunpack.c.l.b16 %v7662
        %v7834 = vunpack.c.h.b16 %v7662
        %v7835 = vunpack.c.l.b16 %v7663
        %v7836 = vunpack.c.h.b16 %v7663
        %v7837 = vunpack.c.l.b16 %v7664
        %v7838 = vunpack.c.h.b16 %v7664
        %v7839 = vunpack.c.l.b16 %v7665
        %v7840 = vunpack.c.h.b16 %v7665
        %v7841 = vunpack.c.l.b16 %v7666
        %v7842 = vunpack.c.h.b16 %v7666
        %v7843 = vunpack.c.l.b16 %v7667
        %v7844 = vunpack.c.h.b16 %v7667
        %v7845 = vunpack.c.l.b16 %v7668
        %v7846 = vunpack.c.h.b16 %v7668
        %v7847 = vunpack.c.l.b16 %v7669
        %v7848 = vunpack.c.h.b16 %v7669
        %v7849 = vunpack.c.l.b16 %v7670
        %v7850 = vunpack.c.h.b16 %v7670
        %v7851 = vunpack.c.l.b16 %v7671
        %v7852 = vunpack.c.h.b16 %v7671
        %v7853 = vunpack.c.l.b16 %v7672
        %v7854 = vunpack.c.h.b16 %v7672
        %v7855 = vunpack.c.l.b16 %v7673
        %v7856 = vunpack.c.h.b16 %v7673
        %v7857 = vunpack.c.l.b16 %v7674
        %v7858 = vunpack.c.h.b16 %v7674
        %v7859 = vunpack.c.l.b16 %v7675
        %v7860 = vunpack.c.h.b16 %v7675
        %v7861 = vunpack.c.l.b16 %v7676
        %v7862 = vunpack.c.h.b16 %v7676
        %v7863 = vunpack.c.l.b16 %v7677
        %v7864 = vunpack.c.h.b16 %v7677
        %v7865 = vunpack.c.l.b16 %v7678
        %v7866 = vunpack.c.h.b16 %v7678
        %v7867 = vunpack.c.l.b16 %v7679
        %v7868 = vunpack.c.h.b16 %v7679
        %v7869 = vunpack.c.l.b16 %v7680
        %v7870 = vunpack.c.h.b16 %v7680
        %v7871 = vunpack.c.l.b16 %v7681
        %v7872 = vunpack.c.h.b16 %v7681
        %v7873 = vunpack.c.l.b16 %v7682
        %v7874 = vunpack.c.h.b16 %v7682
        %v7875 = vunpack.c.l.b16 %v7683
        %v7876 = vunpack.c.h.b16 %v7683
        %v7877 = vunpack.c.l.b16 %v7684
        %v7878 = vunpack.c.h.b16 %v7684
        %v7879 = vunpack.c.l.b16 %v7685
        %v7880 = vunpack.c.h.b16 %v7685
        %v7881 = vunpack.c.l.b16 %v7686
        %v7882 = vunpack.c.h.b16 %v7686
        %v7883 = vunpack.c.l.b16 %v7687
        %v7884 = vunpack.c.h.b16 %v7687
        %v7885 = vunpack.c.l.b16 %v7688
        %v7886 = vunpack.c.h.b16 %v7688
        %v7887 = vunpack.c.l.b16 %v7689
        %v7888 = vunpack.c.h.b16 %v7689
        %v7889 = vunpack.c.l.b16 %v7690
        %v7890 = vunpack.c.h.b16 %v7690
        %v7891 = vunpack.c.l.b16 %v7691
        %v7892 = vunpack.c.h.b16 %v7691
        %v7893 = vunpack.c.l.b16 %v7692
        %v7894 = vunpack.c.h.b16 %v7692
        %v7895 = vunpack.c.l.b16 %v7693
        %v7896 = vunpack.c.h.b16 %v7693
        %v7897 = vunpack.c.l.b16 %v7694
        %v7898 = vunpack.c.h.b16 %v7694
        %v7899 = vpack.c.b16 %v7773, %v7771
        %v7900 = vpack.c.b16 %v7774, %v7772
        %v7901 = vpack.c.b16 %v7777, %v7775
        %v7902 = vpack.c.b16 %v7778, %v7776
        %v7903 = vpack.c.b16 %v7781, %v7779
        %v7904 = vpack.c.b16 %v7782, %v7780
        %v7905 = vpack.c.b16 %v7785, %v7783
        %v7906 = vpack.c.b16 %v7786, %v7784
        %v7907 = vpack.c.b16 %v7789, %v7787
        %v7908 = vpack.c.b16 %v7790, %v7788
        %v7909 = vpack.c.b16 %v7793, %v7791
        %v7910 = vpack.c.b16 %v7794, %v7792
        %v7911 = vpack.c.b16 %v7797, %v7795
        %v7912 = vpack.c.b16 %v7798, %v7796
        %v7913 = vpack.c.b16 %v7801, %v7799
        %v7914 = vpack.c.b16 %v7802, %v7800
        %v7915 = vpack.c.b16 %v7805, %v7803
        %v7916 = vpack.c.b16 %v7806, %v7804
        %v7917 = vpack.c.b16 %v7809, %v7807
        %v7918 = vpack.c.b16 %v7810, %v7808
        %v7919 = vpack.c.b16 %v7813, %v7811
        %v7920 = vpack.c.b16 %v7814, %v7812
        %v7921 = vpack.c.b16 %v7817, %v7815
        %v7922 = vpack.c.b16 %v7818, %v7816
        %v7923 = vpack.c.b16 %v7821, %v7819
        %v7924 = vpack.c.b16 %v7822, %v7820
        %v7925 = vpack.c.b16 %v7825, %v7823
        %v7926 = vpack.c.b16 %v7826, %v7824
        %v7927 = vpack.c.b16 %v7829, %v7827
        %v7928 = vpack.c.b16 %v7830, %v7828
        %v7929 = vpack.c.b16 %v7833, %v7831
        %v7930 = vpack.c.b16 %v7834, %v7832
        %v7931 = vpack.c.b16 %v7837, %v7835
        %v7932 = vpack.c.b16 %v7838, %v7836
        %v7933 = vpack.c.b16 %v7841, %v7839
        %v7934 = vpack.c.b16 %v7842, %v7840
        %v7935 = vpack.c.b16 %v7845, %v7843
        %v7936 = vpack.c.b16 %v7846, %v7844
        %v7937 = vpack.c.b16 %v7849, %v7847
        %v7938 = vpack.c.b16 %v7850, %v7848
        %v7939 = vpack.c.b16 %v7853, %v7851
        %v7940 = vpack.c.b16 %v7854, %v7852
        %v7941 = vpack.c.b16 %v7857, %v7855
        %v7942 = vpack.c.b16 %v7858, %v7856
        %v7943 = vpack.c.b16 %v7861, %v7859
        %v7944 = vpack.c.b16 %v7862, %v7860
        %v7945 = vpack.c.b16 %v7865, %v7863
        %v7946 = vpack.c.b16 %v7866, %v7864
        %v7947 = vpack.c.b16 %v7869, %v7867
        %v7948 = vpack.c.b16 %v7870, %v7868
        %v7949 = vpack.c.b16 %v7873, %v7871
        %v7950 = vpack.c.b16 %v7874, %v7872
        %v7951 = vpack.c.b16 %v7877, %v7875
        %v7952 = vpack.c.b16 %v7878, %v7876
        %v7953 = vpack.c.b16 %v7881, %v7879
        %v7954 = vpack.c.b16 %v7882, %v7880
        %v7955 = vpack.c.b16 %v7885, %v7883
        %v7956 = vpack.c.b16 %v7886, %v7884
        %v7957 = vpack.c.b16 %v7889, %v7887
        %v7958 = vpack.c.b16 %v7890, %v7888
        %v7959 = vpack.c.b16 %v7893, %v7891
        %v7960 = vpack.c.b16 %v7894, %v7892
        %v7961 = vpack.c.b16 %v7897, %v7895
        %v7962 = vpack.c.b16 %v7898, %v7896
        %8027 = vmatprep.subr.bf16.mxu0 %v7900
        %8028 = vmatpush1.bf16.msra.mxu0 %v7899
        %8029 = vmatprep.subr.bf16.mxu0 %v7902
        %8030 = vmatpush1.bf16.msra.mxu0 %v7901
        %8031 = vmatprep.subr.bf16.mxu0 %v7904
        %8032 = vmatpush1.bf16.msra.mxu0 %v7903
        %8033 = vmatprep.subr.bf16.mxu0 %v7906
        %8034 = vmatpush1.bf16.msra.mxu0 %v7905
        %8035 = vmatprep.subr.bf16.mxu0 %v7908
        %8036 = vmatpush1.bf16.msra.mxu0 %v7907
        %8037 = vmatprep.subr.bf16.mxu0 %v7910
        %8038 = vmatpush1.bf16.msra.mxu0 %v7909
        %8039 = vmatprep.subr.bf16.mxu0 %v7912
        %8040 = vmatpush1.bf16.msra.mxu0 %v7911
        %8041 = vmatprep.subr.bf16.mxu0 %v7914
        %8042 = vmatpush1.bf16.msra.mxu0 %v7913
        %8043 = vmatprep.subr.bf16.mxu0 %v7916
        %8044 = vmatpush1.bf16.msra.mxu0 %v7915
        %8045 = vmatprep.subr.bf16.mxu0 %v7918
        %8046 = vmatpush1.bf16.msra.mxu0 %v7917
        %8047 = vmatprep.subr.bf16.mxu0 %v7920
        %8048 = vmatpush1.bf16.msra.mxu0 %v7919
        %8049 = vmatprep.subr.bf16.mxu0 %v7922
        %8050 = vmatpush1.bf16.msra.mxu0 %v7921
        %8051 = vmatprep.subr.bf16.mxu0 %v7924
        %8052 = vmatpush1.bf16.msra.mxu0 %v7923
        %8053 = vmatprep.subr.bf16.mxu0 %v7926
        %8054 = vmatpush1.bf16.msra.mxu0 %v7925
        %8055 = vmatprep.subr.bf16.mxu0 %v7928
        %8056 = vmatpush1.bf16.msra.mxu0 %v7927
        %8057 = vmatprep.subr.bf16.mxu0 %v7930
        %8058 = vmatpush1.bf16.msra.mxu0 %v7929
        %8059 = vmatprep.mubr.bf16.mxu0 %v7568
        %8060 = vmatmul.mubr.bf16.gmra.mrb[0].mxu0 %v7567
        %v8061 = vpop.f32.mrb[0].mxu0
        %v8062 = vadd.f32 %v7700, %v8061
        %v8063 = vpop.f32.mrb[0].mxu0
        %v8064 = vadd.f32 %v7704, %v8063
        %v8065 = vpop.f32.mrb[0].mxu0
        %v8066 = vadd.f32 %v7700, %v8065
        %v8067 = vpop.f32.mrb[0].mxu0
        %v8068 = vadd.f32 %v7704, %v8067
        %8069 = vmatprep.mubr.bf16.mxu0 %v7572
        %8070 = vmatmul.mubr.bf16.gmra.mrb[0].mxu0 %v7571
        %v8071 = vpop.f32.mrb[0].mxu0
        %v8072 = vadd.f32 %v7700, %v8071
        %v8073 = vpop.f32.mrb[0].mxu0
        %v8074 = vadd.f32 %v7704, %v8073
        %v8075 = vpop.f32.mrb[0].mxu0
        %v8076 = vadd.f32 %v7700, %v8075
        %v8077 = vpop.f32.mrb[0].mxu0
        %v8078 = vadd.f32 %v7704, %v8077
        %8079 = vmatprep.mubr.bf16.mxu0 %v7576
        %8080 = vmatmul.mubr.bf16.gmra.mrb[0].mxu0 %v7575
        %v8081 = vpop.f32.mrb[0].mxu0
        %v8082 = vadd.f32 %v7700, %v8081
        %v8083 = vpop.f32.mrb[0].mxu0
        %v8084 = vadd.f32 %v7704, %v8083
        %v8085 = vpop.f32.mrb[0].mxu0
        %v8086 = vadd.f32 %v7700, %v8085
        %v8087 = vpop.f32.mrb[0].mxu0
        %v8088 = vadd.f32 %v7704, %v8087
        %8089 = vmatprep.mubr.bf16.mxu0 %v7580
        %8090 = vmatmul.mubr.bf16.gmra.mrb[0].mxu0 %v7579
        %v8091 = vpop.f32.mrb[0].mxu0
        %v8092 = vadd.f32 %v7700, %v8091
        %v8093 = vpop.f32.mrb[0].mxu0
        %v8094 = vadd.f32 %v7704, %v8093
        %v8095 = vpop.f32.mrb[0].mxu0
        %v8096 = vadd.f32 %v7700, %v8095
        %v8097 = vpop.f32.mrb[0].mxu0
        %v8098 = vadd.f32 %v7704, %v8097
        %8099 = vmatprep.mubr.bf16.mxu0 %v7584
        %8100 = vmatmul.mubr.bf16.gmra.mrb[0].mxu0 %v7583
        %v8101 = vpop.f32.mrb[0].mxu0
        %v8102 = vadd.f32 %v7700, %v8101
        %v8103 = vpop.f32.mrb[0].mxu0
        %v8104 = vadd.f32 %v7704, %v8103
        %v8105 = vpop.f32.mrb[0].mxu0
        %v8106 = vadd.f32 %v7700, %v8105
        %v8107 = vpop.f32.mrb[0].mxu0
        %v8108 = vadd.f32 %v7704, %v8107
        %8109 = vmatprep.mubr.bf16.mxu0 %v7588
        %8110 = vmatmul.mubr.bf16.gmra.mrb[0].mxu0 %v7587
        %v8111 = vpop.f32.mrb[0].mxu0
        %v8112 = vadd.f32 %v7700, %v8111
        %v8113 = vpop.f32.mrb[0].mxu0
        %v8114 = vadd.f32 %v7704, %v8113
        %v8115 = vpop.f32.mrb[0].mxu0
        %v8116 = vadd.f32 %v7700, %v8115
        %v8117 = vpop.f32.mrb[0].mxu0
        %v8118 = vadd.f32 %v7704, %v8117
        %8119 = vmatprep.mubr.bf16.mxu0 %v7592
        %8120 = vmatmul.mubr.bf16.gmra.mrb[0].mxu0 %v7591
        %v8121 = vpop.f32.mrb[0].mxu0
        %v8122 = vadd.f32 %v7700, %v8121
        %v8123 = vpop.f32.mrb[0].mxu0
        %v8124 = vadd.f32 %v7704, %v8123
        %v8125 = vpop.f32.mrb[0].mxu0
        %v8126 = vadd.f32 %v7700, %v8125
        %v8127 = vpop.f32.mrb[0].mxu0
        %v8128 = vadd.f32 %v7704, %v8127
        %8129 = vmatprep.mubr.bf16.mxu0 %v7596
        %8130 = vmatmul.mubr.bf16.gmra.mrb[0].mxu0 %v7595
        %v8131 = vpop.f32.mrb[0].mxu0
        %v8132 = vadd.f32 %v7700, %v8131
        %v8133 = vpop.f32.mrb[0].mxu0
        %v8134 = vadd.f32 %v7704, %v8133
        %v8135 = vpop.f32.mrb[0].mxu0
        %v8136 = vadd.f32 %v7700, %v8135
        %v8137 = vpop.f32.mrb[0].mxu0
        %v8138 = vadd.f32 %v7704, %v8137
        %8139 = vmatprep.mubr.bf16.mxu0 %v7600
        %8140 = vmatmul.mubr.bf16.gmra.mrb[0].mxu0 %v7599
        %v8141 = vpop.f32.mrb[0].mxu0
        %v8142 = vadd.f32 %v7700, %v8141
        %v8143 = vpop.f32.mrb[0].mxu0
        %v8144 = vadd.f32 %v7704, %v8143
        %v8145 = vpop.f32.mrb[0].mxu0
        %v8146 = vadd.f32 %v7700, %v8145
        %v8147 = vpop.f32.mrb[0].mxu0
        %v8148 = vadd.f32 %v7704, %v8147
        %8149 = vmatprep.mubr.bf16.mxu0 %v7604
        %8150 = vmatmul.mubr.bf16.gmra.mrb[0].mxu0 %v7603
        %v8151 = vpop.f32.mrb[0].mxu0
        %v8152 = vadd.f32 %v7700, %v8151
        %v8153 = vpop.f32.mrb[0].mxu0
        %v8154 = vadd.f32 %v7704, %v8153
        %v8155 = vpop.f32.mrb[0].mxu0
        %v8156 = vadd.f32 %v7700, %v8155
        %v8157 = vpop.f32.mrb[0].mxu0
        %v8158 = vadd.f32 %v7704, %v8157
        %8159 = vmatprep.mubr.bf16.mxu0 %v7608
        %8160 = vmatmul.mubr.bf16.gmra.mrb[0].mxu0 %v7607
        %v8161 = vpop.f32.mrb[0].mxu0
        %v8162 = vadd.f32 %v7700, %v8161
        %v8163 = vpop.f32.mrb[0].mxu0
        %v8164 = vadd.f32 %v7704, %v8163
        %v8165 = vpop.f32.mrb[0].mxu0
        %v8166 = vadd.f32 %v7700, %v8165
        %v8167 = vpop.f32.mrb[0].mxu0
        %v8168 = vadd.f32 %v7704, %v8167
        %8169 = vmatprep.mubr.bf16.mxu0 %v7612
        %8170 = vmatmul.mubr.bf16.gmra.mrb[0].mxu0 %v7611
        %v8171 = vpop.f32.mrb[0].mxu0
        %v8172 = vadd.f32 %v7700, %v8171
        %v8173 = vpop.f32.mrb[0].mxu0
        %v8174 = vadd.f32 %v7704, %v8173
        %v8175 = vpop.f32.mrb[0].mxu0
        %v8176 = vadd.f32 %v7700, %v8175
        %v8177 = vpop.f32.mrb[0].mxu0
        %v8178 = vadd.f32 %v7704, %v8177
        %8179 = vmatprep.mubr.bf16.mxu0 %v7616
        %8180 = vmatmul.mubr.bf16.gmra.mrb[0].mxu0 %v7615
        %v8181 = vpop.f32.mrb[0].mxu0
        %v8182 = vadd.f32 %v7700, %v8181
        %v8183 = vpop.f32.mrb[0].mxu0
        %v8184 = vadd.f32 %v7704, %v8183
        %v8185 = vpop.f32.mrb[0].mxu0
        %v8186 = vadd.f32 %v7700, %v8185
        %v8187 = vpop.f32.mrb[0].mxu0
        %v8188 = vadd.f32 %v7704, %v8187
        %8189 = vmatprep.mubr.bf16.mxu0 %v7620
        %8190 = vmatmul.mubr.bf16.gmra.mrb[0].mxu0 %v7619
        %v8191 = vpop.f32.mrb[0].mxu0
        %v8192 = vadd.f32 %v7700, %v8191
        %v8193 = vpop.f32.mrb[0].mxu0
        %v8194 = vadd.f32 %v7704, %v8193
        %v8195 = vpop.f32.mrb[0].mxu0
        %v8196 = vadd.f32 %v7700, %v8195
        %v8197 = vpop.f32.mrb[0].mxu0
        %v8198 = vadd.f32 %v7704, %v8197
        %8199 = vmatprep.mubr.bf16.mxu0 %v7624
        %8200 = vmatmul.mubr.bf16.gmra.mrb[0].mxu0 %v7623
        %v8201 = vpop.f32.mrb[0].mxu0
        %v8202 = vadd.f32 %v7700, %v8201
        %v8203 = vpop.f32.mrb[0].mxu0
        %v8204 = vadd.f32 %v7704, %v8203
        %v8205 = vpop.f32.mrb[0].mxu0
        %v8206 = vadd.f32 %v7700, %v8205
        %v8207 = vpop.f32.mrb[0].mxu0
        %v8208 = vadd.f32 %v7704, %v8207
        %8209 = vmatprep.mubr.bf16.mxu0 %v7628
        %8210 = vmatmul.mubr.bf16.gmra.mrb[0].mxu0 %v7627
        %v8211 = vpop.f32.mrb[0].mxu0
        %v8212 = vadd.f32 %v7700, %v8211
        %v8213 = vpop.f32.mrb[0].mxu0
        %v8214 = vadd.f32 %v7704, %v8213
        %v8215 = vpop.f32.mrb[0].mxu0
        %v8216 = vadd.f32 %v7700, %v8215
        %v8217 = vpop.f32.mrb[0].mxu0
        %v8218 = vadd.f32 %v7704, %v8217
        %8219 = vdwg.mxu0
        %8220 = vmatprep.subr.bf16.mxu0 %v7932
        %8221 = vmatpush1.bf16.msra.mxu0 %v7931
        %8222 = vmatprep.subr.bf16.mxu0 %v7934
        %8223 = vmatpush1.bf16.msra.mxu0 %v7933
        %8224 = vmatprep.subr.bf16.mxu0 %v7936
        %8225 = vmatpush1.bf16.msra.mxu0 %v7935
        %8226 = vmatprep.subr.bf16.mxu0 %v7938
        %8227 = vmatpush1.bf16.msra.mxu0 %v7937
        %8228 = vmatprep.subr.bf16.mxu0 %v7940
        %8229 = vmatpush1.bf16.msra.mxu0 %v7939
        %8230 = vmatprep.subr.bf16.mxu0 %v7942
        %8231 = vmatpush1.bf16.msra.mxu0 %v7941
        %8232 = vmatprep.subr.bf16.mxu0 %v7944
        %8233 = vmatpush1.bf16.msra.mxu0 %v7943
        %8234 = vmatprep.subr.bf16.mxu0 %v7946
        %8235 = vmatpush1.bf16.msra.mxu0 %v7945
        %8236 = vmatprep.subr.bf16.mxu0 %v7948
        %8237 = vmatpush1.bf16.msra.mxu0 %v7947
        %8238 = vmatprep.subr.bf16.mxu0 %v7950
        %8239 = vmatpush1.bf16.msra.mxu0 %v7949
        %8240 = vmatprep.subr.bf16.mxu0 %v7952
        %8241 = vmatpush1.bf16.msra.mxu0 %v7951
        %8242 = vmatprep.subr.bf16.mxu0 %v7954
        %8243 = vmatpush1.bf16.msra.mxu0 %v7953
        %8244 = vmatprep.subr.bf16.mxu0 %v7956
        %8245 = vmatpush1.bf16.msra.mxu0 %v7955
        %8246 = vmatprep.subr.bf16.mxu0 %v7958
        %8247 = vmatpush1.bf16.msra.mxu0 %v7957
        %8248 = vmatprep.subr.bf16.mxu0 %v7960
        %8249 = vmatpush1.bf16.msra.mxu0 %v7959
        %8250 = vmatprep.subr.bf16.mxu0 %v7962
        %8251 = vmatpush1.bf16.msra.mxu0 %v7961
        %8252 = vmatprep.mubr.bf16.mxu0 %v7570
        %8253 = vmatmul.mubr.bf16.gmra.mrb[0].mxu0 %v7569
        %v8254 = vpop.f32.mrb[0].mxu0
        %v8255 = vadd.f32 %v8062, %v8254
        %v8256 = vpop.f32.mrb[0].mxu0
        %v8257 = vadd.f32 %v8064, %v8256
        %v8258 = vpop.f32.mrb[0].mxu0
        %v8259 = vadd.f32 %v8066, %v8258
        %v8260 = vpop.f32.mrb[0].mxu0
        %v8261 = vadd.f32 %v8068, %v8260
        %8262 = vmatprep.mubr.bf16.mxu0 %v7574
        %8263 = vmatmul.mubr.bf16.gmra.mrb[0].mxu0 %v7573
        %v8264 = vpop.f32.mrb[0].mxu0
        %v8265 = vadd.f32 %v8072, %v8264
        %v8266 = vpop.f32.mrb[0].mxu0
        %v8267 = vadd.f32 %v8074, %v8266
        %v8268 = vpop.f32.mrb[0].mxu0
        %v8269 = vadd.f32 %v8076, %v8268
        %v8270 = vpop.f32.mrb[0].mxu0
        %v8271 = vadd.f32 %v8078, %v8270
        %8272 = vmatprep.mubr.bf16.mxu0 %v7578
        %8273 = vmatmul.mubr.bf16.gmra.mrb[0].mxu0 %v7577
        %v8274 = vpop.f32.mrb[0].mxu0
        %v8275 = vadd.f32 %v8082, %v8274
        %v8276 = vpop.f32.mrb[0].mxu0
        %v8277 = vadd.f32 %v8084, %v8276
        %v8278 = vpop.f32.mrb[0].mxu0
        %v8279 = vadd.f32 %v8086, %v8278
        %v8280 = vpop.f32.mrb[0].mxu0
        %v8281 = vadd.f32 %v8088, %v8280
        %8282 = vmatprep.mubr.bf16.mxu0 %v7582
        %8283 = vmatmul.mubr.bf16.gmra.mrb[0].mxu0 %v7581
        %v8284 = vpop.f32.mrb[0].mxu0
        %v8285 = vadd.f32 %v8092, %v8284
        %v8286 = vpop.f32.mrb[0].mxu0
        %v8287 = vadd.f32 %v8094, %v8286
        %v8288 = vpop.f32.mrb[0].mxu0
        %v8289 = vadd.f32 %v8096, %v8288
        %v8290 = vpop.f32.mrb[0].mxu0
        %v8291 = vadd.f32 %v8098, %v8290
        %8292 = vmatprep.mubr.bf16.mxu0 %v7586
        %8293 = vmatmul.mubr.bf16.gmra.mrb[0].mxu0 %v7585
        %v8294 = vpop.f32.mrb[0].mxu0
        %v8295 = vadd.f32 %v8102, %v8294
        %v8296 = vpop.f32.mrb[0].mxu0
        %v8297 = vadd.f32 %v8104, %v8296
        %v8298 = vpop.f32.mrb[0].mxu0
        %v8299 = vadd.f32 %v8106, %v8298
        %v8300 = vpop.f32.mrb[0].mxu0
        %v8301 = vadd.f32 %v8108, %v8300
        %8302 = vmatprep.mubr.bf16.mxu0 %v7590
        %8303 = vmatmul.mubr.bf16.gmra.mrb[0].mxu0 %v7589
        %v8304 = vpop.f32.mrb[0].mxu0
        %v8305 = vadd.f32 %v8112, %v8304
        %v8306 = vpop.f32.mrb[0].mxu0
        %v8307 = vadd.f32 %v8114, %v8306
        %v8308 = vpop.f32.mrb[0].mxu0
        %v8309 = vadd.f32 %v8116, %v8308
        %v8310 = vpop.f32.mrb[0].mxu0
        %v8311 = vadd.f32 %v8118, %v8310
        %8312 = vmatprep.mubr.bf16.mxu0 %v7594
        %8313 = vmatmul.mubr.bf16.gmra.mrb[0].mxu0 %v7593
        %v8314 = vpop.f32.mrb[0].mxu0
        %v8315 = vadd.f32 %v8122, %v8314
        %v8316 = vpop.f32.mrb[0].mxu0
        %v8317 = vadd.f32 %v8124, %v8316
        %v8318 = vpop.f32.mrb[0].mxu0
        %v8319 = vadd.f32 %v8126, %v8318
        %v8320 = vpop.f32.mrb[0].mxu0
        %v8321 = vadd.f32 %v8128, %v8320
        %8322 = vmatprep.mubr.bf16.mxu0 %v7598
        %8323 = vmatmul.mubr.bf16.gmra.mrb[0].mxu0 %v7597
        %v8324 = vpop.f32.mrb[0].mxu0
        %v8325 = vadd.f32 %v8132, %v8324
        %v8326 = vpop.f32.mrb[0].mxu0
        %v8327 = vadd.f32 %v8134, %v8326
        %v8328 = vpop.f32.mrb[0].mxu0
        %v8329 = vadd.f32 %v8136, %v8328
        %v8330 = vpop.f32.mrb[0].mxu0
        %v8331 = vadd.f32 %v8138, %v8330
        %8332 = vmatprep.mubr.bf16.mxu0 %v7602
        %8333 = vmatmul.mubr.bf16.gmra.mrb[0].mxu0 %v7601
        %v8334 = vpop.f32.mrb[0].mxu0
        %v8335 = vadd.f32 %v8142, %v8334
        %v8336 = vpop.f32.mrb[0].mxu0
        %v8337 = vadd.f32 %v8144, %v8336
        %v8338 = vpop.f32.mrb[0].mxu0
        %v8339 = vadd.f32 %v8146, %v8338
        %v8340 = vpop.f32.mrb[0].mxu0
        %v8341 = vadd.f32 %v8148, %v8340
        %8342 = vmatprep.mubr.bf16.mxu0 %v7606
        %8343 = vmatmul.mubr.bf16.gmra.mrb[0].mxu0 %v7605
        %v8344 = vpop.f32.mrb[0].mxu0
        %v8345 = vadd.f32 %v8152, %v8344
        %v8346 = vpop.f32.mrb[0].mxu0
        %v8347 = vadd.f32 %v8154, %v8346
        %v8348 = vpop.f32.mrb[0].mxu0
        %v8349 = vadd.f32 %v8156, %v8348
        %v8350 = vpop.f32.mrb[0].mxu0
        %v8351 = vadd.f32 %v8158, %v8350
        %8352 = vmatprep.mubr.bf16.mxu0 %v7610
        %8353 = vmatmul.mubr.bf16.gmra.mrb[0].mxu0 %v7609
        %v8354 = vpop.f32.mrb[0].mxu0
        %v8355 = vadd.f32 %v8162, %v8354
        %v8356 = vpop.f32.mrb[0].mxu0
        %v8357 = vadd.f32 %v8164, %v8356
        %v8358 = vpop.f32.mrb[0].mxu0
        %v8359 = vadd.f32 %v8166, %v8358
        %v8360 = vpop.f32.mrb[0].mxu0
        %v8361 = vadd.f32 %v8168, %v8360
        %8362 = vmatprep.mubr.bf16.mxu0 %v7614
        %8363 = vmatmul.mubr.bf16.gmra.mrb[0].mxu0 %v7613
        %v8364 = vpop.f32.mrb[0].mxu0
        %v8365 = vadd.f32 %v8172, %v8364
        %v8366 = vpop.f32.mrb[0].mxu0
        %v8367 = vadd.f32 %v8174, %v8366
        %v8368 = vpop.f32.mrb[0].mxu0
        %v8369 = vadd.f32 %v8176, %v8368
        %v8370 = vpop.f32.mrb[0].mxu0
        %v8371 = vadd.f32 %v8178, %v8370
        %8372 = vmatprep.mubr.bf16.mxu0 %v7618
        %8373 = vmatmul.mubr.bf16.gmra.mrb[0].mxu0 %v7617
        %v8374 = vpop.f32.mrb[0].mxu0
        %v8375 = vadd.f32 %v8182, %v8374
        %v8376 = vpop.f32.mrb[0].mxu0
        %v8377 = vadd.f32 %v8184, %v8376
        %v8378 = vpop.f32.mrb[0].mxu0
        %v8379 = vadd.f32 %v8186, %v8378
        %v8380 = vpop.f32.mrb[0].mxu0
        %v8381 = vadd.f32 %v8188, %v8380
        %8382 = vmatprep.mubr.bf16.mxu0 %v7622
        %8383 = vmatmul.mubr.bf16.gmra.mrb[0].mxu0 %v7621
        %v8384 = vpop.f32.mrb[0].mxu0
        %v8385 = vadd.f32 %v8192, %v8384
        %v8386 = vpop.f32.mrb[0].mxu0
        %v8387 = vadd.f32 %v8194, %v8386
        %v8388 = vpop.f32.mrb[0].mxu0
        %v8389 = vadd.f32 %v8196, %v8388
        %v8390 = vpop.f32.mrb[0].mxu0
        %v8391 = vadd.f32 %v8198, %v8390
        %8392 = vmatprep.mubr.bf16.mxu0 %v7626
        %8393 = vmatmul.mubr.bf16.gmra.mrb[0].mxu0 %v7625
        %v8394 = vpop.f32.mrb[0].mxu0
        %v8395 = vadd.f32 %v8202, %v8394
        %v8396 = vpop.f32.mrb[0].mxu0
        %v8397 = vadd.f32 %v8204, %v8396
        %v8398 = vpop.f32.mrb[0].mxu0
        %v8399 = vadd.f32 %v8206, %v8398
        %v8400 = vpop.f32.mrb[0].mxu0
        %v8401 = vadd.f32 %v8208, %v8400
        %8402 = vmatprep.mubr.bf16.mxu0 %v7630
        %8403 = vmatmul.mubr.bf16.gmra.mrb[0].mxu0 %v7629
        %v8404 = vpop.f32.mrb[0].mxu0
        %v8405 = vadd.f32 %v8212, %v8404
        %v8406 = vpop.f32.mrb[0].mxu0
        %v8407 = vadd.f32 %v8214, %v8406
        %v8408 = vpop.f32.mrb[0].mxu0
        %v8409 = vadd.f32 %v8216, %v8408
        %v8410 = vpop.f32.mrb[0].mxu0
        %v8411 = vadd.f32 %v8218, %v8410
        %8412 = vdwg.mxu0
        %v8413 = vadd.f32 %v5527, %v8255
        %v8414 = vadd.f32 %v5528, %v8257
        %v8415 = vadd.f32 %v5529, %v8259
        %v8416 = vadd.f32 %v5530, %v8261
        %v8417 = vadd.f32 %v5531, %v8265
        %v8418 = vadd.f32 %v5532, %v8267
        %v8419 = vadd.f32 %v5533, %v8269
        %v8420 = vadd.f32 %v5534, %v8271
        %v8421 = vadd.f32 %v5535, %v8275
        %v8422 = vadd.f32 %v5536, %v8277
        %v8423 = vadd.f32 %v5537, %v8279
        %v8424 = vadd.f32 %v5538, %v8281
        %v8425 = vadd.f32 %v5539, %v8285
        %v8426 = vadd.f32 %v5540, %v8287
        %v8427 = vadd.f32 %v5541, %v8289
        %v8428 = vadd.f32 %v5542, %v8291
        %v8429 = vadd.f32 %v5543, %v8295
        %v8430 = vadd.f32 %v5544, %v8297
        %v8431 = vadd.f32 %v5545, %v8299
        %v8432 = vadd.f32 %v5546, %v8301
        %v8433 = vadd.f32 %v5547, %v8305
        %v8434 = vadd.f32 %v5548, %v8307
        %v8435 = vadd.f32 %v5549, %v8309
        %v8436 = vadd.f32 %v5550, %v8311
        %v8437 = vadd.f32 %v5551, %v8315
        %v8438 = vadd.f32 %v5552, %v8317
        %v8439 = vadd.f32 %v5553, %v8319
        %v8440 = vadd.f32 %v5554, %v8321
        %v8441 = vadd.f32 %v5555, %v8325
        %v8442 = vadd.f32 %v5556, %v8327
        %v8443 = vadd.f32 %v5557, %v8329
        %v8444 = vadd.f32 %v5558, %v8331
        %v8445 = vadd.f32 %v5559, %v8335
        %v8446 = vadd.f32 %v5560, %v8337
        %v8447 = vadd.f32 %v5561, %v8339
        %v8448 = vadd.f32 %v5562, %v8341
        %v8449 = vadd.f32 %v5563, %v8345
        %v8450 = vadd.f32 %v5564, %v8347
        %v8451 = vadd.f32 %v5565, %v8349
        %v8452 = vadd.f32 %v5566, %v8351
        %v8453 = vadd.f32 %v5567, %v8355
        %v8454 = vadd.f32 %v5568, %v8357
        %v8455 = vadd.f32 %v5569, %v8359
        %v8456 = vadd.f32 %v5570, %v8361
        %v8457 = vadd.f32 %v5571, %v8365
        %v8458 = vadd.f32 %v5572, %v8367
        %v8459 = vadd.f32 %v5573, %v8369
        %v8460 = vadd.f32 %v5574, %v8371
        %v8461 = vadd.f32 %v5575, %v8375
        %v8462 = vadd.f32 %v5576, %v8377
        %v8463 = vadd.f32 %v5577, %v8379
        %v8464 = vadd.f32 %v5578, %v8381
        %v8465 = vadd.f32 %v5579, %v8385
        %v8466 = vadd.f32 %v5580, %v8387
        %v8467 = vadd.f32 %v5581, %v8389
        %v8468 = vadd.f32 %v5582, %v8391
        %v8469 = vadd.f32 %v5583, %v8395
        %v8470 = vadd.f32 %v5584, %v8397
        %v8471 = vadd.f32 %v5585, %v8399
        %v8472 = vadd.f32 %v5586, %v8401
        %v8473 = vadd.f32 %v5587, %v8405
        %v8474 = vadd.f32 %v5588, %v8407
        %v8475 = vadd.f32 %v5589, %v8409
        %v8476 = vadd.f32 %v5590, %v8411
        %v8477 = vld [vmem:[%s791] sm:$0x3]
        %v8478 = vld [vmem:[%s795] sm:$0x3]
        %v8479 = vadd.f32 %v8413, %v8414
        %8480 = vadd.xlane.f32.xlu0 %v8479
        %v8481 = vpop.xlane.xlu0 %8480
        %v8482 = vadd.f32 %v8415, %v8416
        %8483 = vadd.xlane.f32.xlu0 %v8482
        %v8484 = vpop.xlane.xlu0 %8483
        %v8485 = vadd.f32 %v8417, %v8418
        %8486 = vadd.xlane.f32.xlu0 %v8485
        %v8487 = vpop.xlane.xlu0 %8486
        %v8488 = vadd.f32 %v8419, %v8420
        %8489 = vadd.xlane.f32.xlu0 %v8488
        %v8490 = vpop.xlane.xlu0 %8489
        %v8491 = vadd.f32 %v8421, %v8422
        %8492 = vadd.xlane.f32.xlu0 %v8491
        %v8493 = vpop.xlane.xlu0 %8492
        %v8494 = vadd.f32 %v8423, %v8424
        %8495 = vadd.xlane.f32.xlu0 %v8494
        %v8496 = vpop.xlane.xlu0 %8495
        %v8497 = vadd.f32 %v8425, %v8426
        %8498 = vadd.xlane.f32.xlu0 %v8497
        %v8499 = vpop.xlane.xlu0 %8498
        %v8500 = vadd.f32 %v8427, %v8428
        %8501 = vadd.xlane.f32.xlu0 %v8500
        %v8502 = vpop.xlane.xlu0 %8501
        %v8503 = vadd.f32 %v8429, %v8430
        %8504 = vadd.xlane.f32.xlu0 %v8503
        %v8505 = vpop.xlane.xlu0 %8504
        %v8506 = vadd.f32 %v8431, %v8432
        %8507 = vadd.xlane.f32.xlu0 %v8506
        %v8508 = vpop.xlane.xlu0 %8507
        %v8509 = vadd.f32 %v8433, %v8434
        %8510 = vadd.xlane.f32.xlu0 %v8509
        %v8511 = vpop.xlane.xlu0 %8510
        %v8512 = vadd.f32 %v8435, %v8436
        %8513 = vadd.xlane.f32.xlu0 %v8512
        %v8514 = vpop.xlane.xlu0 %8513
        %v8515 = vadd.f32 %v8437, %v8438
        %8516 = vadd.xlane.f32.xlu0 %v8515
        %v8517 = vpop.xlane.xlu0 %8516
        %v8518 = vadd.f32 %v8439, %v8440
        %8519 = vadd.xlane.f32.xlu0 %v8518
        %v8520 = vpop.xlane.xlu0 %8519
        %v8521 = vadd.f32 %v8441, %v8442
        %8522 = vadd.xlane.f32.xlu0 %v8521
        %v8523 = vpop.xlane.xlu0 %8522
        %v8524 = vadd.f32 %v8443, %v8444
        %8525 = vadd.xlane.f32.xlu0 %v8524
        %v8526 = vpop.xlane.xlu0 %8525
        %v8527 = vadd.f32 %v8445, %v8446
        %8528 = vadd.xlane.f32.xlu0 %v8527
        %v8529 = vpop.xlane.xlu0 %8528
        %v8530 = vadd.f32 %v8447, %v8448
        %8531 = vadd.xlane.f32.xlu0 %v8530
        %v8532 = vpop.xlane.xlu0 %8531
        %v8533 = vadd.f32 %v8449, %v8450
        %8534 = vadd.xlane.f32.xlu0 %v8533
        %v8535 = vpop.xlane.xlu0 %8534
        %v8536 = vadd.f32 %v8451, %v8452
        %8537 = vadd.xlane.f32.xlu0 %v8536
        %v8538 = vpop.xlane.xlu0 %8537
        %v8539 = vadd.f32 %v8453, %v8454
        %8540 = vadd.xlane.f32.xlu0 %v8539
        %v8541 = vpop.xlane.xlu0 %8540
        %v8542 = vadd.f32 %v8455, %v8456
        %8543 = vadd.xlane.f32.xlu0 %v8542
        %v8544 = vpop.xlane.xlu0 %8543
        %v8545 = vadd.f32 %v8457, %v8458
        %8546 = vadd.xlane.f32.xlu0 %v8545
        %v8547 = vpop.xlane.xlu0 %8546
        %v8548 = vadd.f32 %v8459, %v8460
        %8549 = vadd.xlane.f32.xlu0 %v8548
        %v8550 = vpop.xlane.xlu0 %8549
        %v8551 = vadd.f32 %v8461, %v8462
        %8552 = vadd.xlane.f32.xlu0 %v8551
        %v8553 = vpop.xlane.xlu0 %8552
        %v8554 = vadd.f32 %v8463, %v8464
        %8555 = vadd.xlane.f32.xlu0 %v8554
        %v8556 = vpop.xlane.xlu0 %8555
        %v8557 = vadd.f32 %v8465, %v8466
        %8558 = vadd.xlane.f32.xlu0 %v8557
        %v8559 = vpop.xlane.xlu0 %8558
        %v8560 = vadd.f32 %v8467, %v8468
        %8561 = vadd.xlane.f32.xlu0 %v8560
        %v8562 = vpop.xlane.xlu0 %8561
        %v8563 = vadd.f32 %v8469, %v8470
        %8564 = vadd.xlane.f32.xlu0 %v8563
        %v8565 = vpop.xlane.xlu0 %8564
        %v8566 = vadd.f32 %v8471, %v8472
        %8567 = vadd.xlane.f32.xlu0 %v8566
        %v8568 = vpop.xlane.xlu0 %8567
        %v8569 = vadd.f32 %v8473, %v8474
        %8570 = vadd.xlane.f32.xlu0 %v8569
        %v8571 = vpop.xlane.xlu0 %8570
        %v8572 = vadd.f32 %v8475, %v8476
        %8573 = vadd.xlane.f32.xlu0 %v8572
        %v8574 = vpop.xlane.xlu0 %8573
        %v8575 = vmul.f32 %v8481, %v5024
        %v8576 = vmul.f32 %v8484, %v5024
        %v8577 = vmul.f32 %v8487, %v5024
        %v8578 = vmul.f32 %v8490, %v5024
        %v8579 = vmul.f32 %v8493, %v5024
        %v8580 = vmul.f32 %v8496, %v5024
        %v8581 = vmul.f32 %v8499, %v5024
        %v8582 = vmul.f32 %v8502, %v5024
        %v8583 = vmul.f32 %v8505, %v5024
        %v8584 = vmul.f32 %v8508, %v5024
        %v8585 = vmul.f32 %v8511, %v5024
        %v8586 = vmul.f32 %v8514, %v5024
        %v8587 = vmul.f32 %v8517, %v5024
        %v8588 = vmul.f32 %v8520, %v5024
        %v8589 = vmul.f32 %v8523, %v5024
        %v8590 = vmul.f32 %v8526, %v5024
        %v8591 = vmul.f32 %v8529, %v5024
        %v8592 = vmul.f32 %v8532, %v5024
        %v8593 = vmul.f32 %v8535, %v5024
        %v8594 = vmul.f32 %v8538, %v5024
        %v8595 = vmul.f32 %v8541, %v5024
        %v8596 = vmul.f32 %v8544, %v5024
        %v8597 = vmul.f32 %v8547, %v5024
        %v8598 = vmul.f32 %v8550, %v5024
        %v8599 = vmul.f32 %v8553, %v5024
        %v8600 = vmul.f32 %v8556, %v5024
        %v8601 = vmul.f32 %v8559, %v5024
        %v8602 = vmul.f32 %v8562, %v5024
        %v8603 = vmul.f32 %v8565, %v5024
        %v8604 = vmul.f32 %v8568, %v5024
        %v8605 = vmul.f32 %v8571, %v5024
        %v8606 = vmul.f32 %v8574, %v5024
        %v8607 = vsub.f32 %v8413, %v8575
        %v8608 = vsub.f32 %v8414, %v8575
        %v8609 = vsub.f32 %v8415, %v8576
        %v8610 = vsub.f32 %v8416, %v8576
        %v8611 = vsub.f32 %v8417, %v8577
        %v8612 = vsub.f32 %v8418, %v8577
        %v8613 = vsub.f32 %v8419, %v8578
        %v8614 = vsub.f32 %v8420, %v8578
        %v8615 = vsub.f32 %v8421, %v8579
        %v8616 = vsub.f32 %v8422, %v8579
        %v8617 = vsub.f32 %v8423, %v8580
        %v8618 = vsub.f32 %v8424, %v8580
        %v8619 = vsub.f32 %v8425, %v8581
        %v8620 = vsub.f32 %v8426, %v8581
        %v8621 = vsub.f32 %v8427, %v8582
        %v8622 = vsub.f32 %v8428, %v8582
        %v8623 = vsub.f32 %v8429, %v8583
        %v8624 = vsub.f32 %v8430, %v8583
        %v8625 = vsub.f32 %v8431, %v8584
        %v8626 = vsub.f32 %v8432, %v8584
        %v8627 = vsub.f32 %v8433, %v8585
        %v8628 = vsub.f32 %v8434, %v8585
        %v8629 = vsub.f32 %v8435, %v8586
        %v8630 = vsub.f32 %v8436, %v8586
        %v8631 = vsub.f32 %v8437, %v8587
        %v8632 = vsub.f32 %v8438, %v8587
        %v8633 = vsub.f32 %v8439, %v8588
        %v8634 = vsub.f32 %v8440, %v8588
        %v8635 = vsub.f32 %v8441, %v8589
        %v8636 = vsub.f32 %v8442, %v8589
        %v8637 = vsub.f32 %v8443, %v8590
        %v8638 = vsub.f32 %v8444, %v8590
        %v8639 = vsub.f32 %v8445, %v8591
        %v8640 = vsub.f32 %v8446, %v8591
        %v8641 = vsub.f32 %v8447, %v8592
        %v8642 = vsub.f32 %v8448, %v8592
        %v8643 = vsub.f32 %v8449, %v8593
        %v8644 = vsub.f32 %v8450, %v8593
        %v8645 = vsub.f32 %v8451, %v8594
        %v8646 = vsub.f32 %v8452, %v8594
        %v8647 = vsub.f32 %v8453, %v8595
        %v8648 = vsub.f32 %v8454, %v8595
        %v8649 = vsub.f32 %v8455, %v8596
        %v8650 = vsub.f32 %v8456, %v8596
        %v8651 = vsub.f32 %v8457, %v8597
        %v8652 = vsub.f32 %v8458, %v8597
        %v8653 = vsub.f32 %v8459, %v8598
        %v8654 = vsub.f32 %v8460, %v8598
        %v8655 = vsub.f32 %v8461, %v8599
        %v8656 = vsub.f32 %v8462, %v8599
        %v8657 = vsub.f32 %v8463, %v8600
        %v8658 = vsub.f32 %v8464, %v8600
        %v8659 = vsub.f32 %v8465, %v8601
        %v8660 = vsub.f32 %v8466, %v8601
        %v8661 = vsub.f32 %v8467, %v8602
        %v8662 = vsub.f32 %v8468, %v8602
        %v8663 = vsub.f32 %v8469, %v8603
        %v8664 = vsub.f32 %v8470, %v8603
        %v8665 = vsub.f32 %v8471, %v8604
        %v8666 = vsub.f32 %v8472, %v8604
        %v8667 = vsub.f32 %v8473, %v8605
        %v8668 = vsub.f32 %v8474, %v8605
        %v8669 = vsub.f32 %v8475, %v8606
        %v8670 = vsub.f32 %v8476, %v8606
        %v8671 = vmul.f32 %v8607, %v8607
        %v8672 = vmul.f32 %v8608, %v8608
        %v8673 = vmul.f32 %v8609, %v8609
        %v8674 = vmul.f32 %v8610, %v8610
        %v8675 = vmul.f32 %v8611, %v8611
        %v8676 = vmul.f32 %v8612, %v8612
        %v8677 = vmul.f32 %v8613, %v8613
        %v8678 = vmul.f32 %v8614, %v8614
        %v8679 = vmul.f32 %v8615, %v8615
        %v8680 = vmul.f32 %v8616, %v8616
        %v8681 = vmul.f32 %v8617, %v8617
        %v8682 = vmul.f32 %v8618, %v8618
        %v8683 = vmul.f32 %v8619, %v8619
        %v8684 = vmul.f32 %v8620, %v8620
        %v8685 = vmul.f32 %v8621, %v8621
        %v8686 = vmul.f32 %v8622, %v8622
        %v8687 = vmul.f32 %v8623, %v8623
        %v8688 = vmul.f32 %v8624, %v8624
        %v8689 = vmul.f32 %v8625, %v8625
        %v8690 = vmul.f32 %v8626, %v8626
        %v8691 = vmul.f32 %v8627, %v8627
        %v8692 = vmul.f32 %v8628, %v8628
        %v8693 = vmul.f32 %v8629, %v8629
        %v8694 = vmul.f32 %v8630, %v8630
        %v8695 = vmul.f32 %v8631, %v8631
        %v8696 = vmul.f32 %v8632, %v8632
        %v8697 = vmul.f32 %v8633, %v8633
        %v8698 = vmul.f32 %v8634, %v8634
        %v8699 = vmul.f32 %v8635, %v8635
        %v8700 = vmul.f32 %v8636, %v8636
        %v8701 = vmul.f32 %v8637, %v8637
        %v8702 = vmul.f32 %v8638, %v8638
        %v8703 = vmul.f32 %v8639, %v8639
        %v8704 = vmul.f32 %v8640, %v8640
        %v8705 = vmul.f32 %v8641, %v8641
        %v8706 = vmul.f32 %v8642, %v8642
        %v8707 = vmul.f32 %v8643, %v8643
        %v8708 = vmul.f32 %v8644, %v8644
        %v8709 = vmul.f32 %v8645, %v8645
        %v8710 = vmul.f32 %v8646, %v8646
        %v8711 = vmul.f32 %v8647, %v8647
        %v8712 = vmul.f32 %v8648, %v8648
        %v8713 = vmul.f32 %v8649, %v8649
        %v8714 = vmul.f32 %v8650, %v8650
        %v8715 = vmul.f32 %v8651, %v8651
        %v8716 = vmul.f32 %v8652, %v8652
        %v8717 = vmul.f32 %v8653, %v8653
        %v8718 = vmul.f32 %v8654, %v8654
        %v8719 = vmul.f32 %v8655, %v8655
        %v8720 = vmul.f32 %v8656, %v8656
        %v8721 = vmul.f32 %v8657, %v8657
        %v8722 = vmul.f32 %v8658, %v8658
        %v8723 = vmul.f32 %v8659, %v8659
        %v8724 = vmul.f32 %v8660, %v8660
        %v8725 = vmul.f32 %v8661, %v8661
        %v8726 = vmul.f32 %v8662, %v8662
        %v8727 = vmul.f32 %v8663, %v8663
        %v8728 = vmul.f32 %v8664, %v8664
        %v8729 = vmul.f32 %v8665, %v8665
        %v8730 = vmul.f32 %v8666, %v8666
        %v8731 = vmul.f32 %v8667, %v8667
        %v8732 = vmul.f32 %v8668, %v8668
        %v8733 = vmul.f32 %v8669, %v8669
        %v8734 = vmul.f32 %v8670, %v8670
        %v8735 = vadd.f32 %v8671, %v8672
        %8736 = vadd.xlane.f32.xlu0 %v8735
        %v8737 = vpop.xlane.xlu0 %8736
        %v8738 = vadd.f32 %v8673, %v8674
        %8739 = vadd.xlane.f32.xlu0 %v8738
        %v8740 = vpop.xlane.xlu0 %8739
        %v8741 = vadd.f32 %v8675, %v8676
        %8742 = vadd.xlane.f32.xlu0 %v8741
        %v8743 = vpop.xlane.xlu0 %8742
        %v8744 = vadd.f32 %v8677, %v8678
        %8745 = vadd.xlane.f32.xlu0 %v8744
        %v8746 = vpop.xlane.xlu0 %8745
        %v8747 = vadd.f32 %v8679, %v8680
        %8748 = vadd.xlane.f32.xlu0 %v8747
        %v8749 = vpop.xlane.xlu0 %8748
        %v8750 = vadd.f32 %v8681, %v8682
        %8751 = vadd.xlane.f32.xlu0 %v8750
        %v8752 = vpop.xlane.xlu0 %8751
        %v8753 = vadd.f32 %v8683, %v8684
        %8754 = vadd.xlane.f32.xlu0 %v8753
        %v8755 = vpop.xlane.xlu0 %8754
        %v8756 = vadd.f32 %v8685, %v8686
        %8757 = vadd.xlane.f32.xlu0 %v8756
        %v8758 = vpop.xlane.xlu0 %8757
        %v8759 = vadd.f32 %v8687, %v8688
        %8760 = vadd.xlane.f32.xlu0 %v8759
        %v8761 = vpop.xlane.xlu0 %8760
        %v8762 = vadd.f32 %v8689, %v8690
        %8763 = vadd.xlane.f32.xlu0 %v8762
        %v8764 = vpop.xlane.xlu0 %8763
        %v8765 = vadd.f32 %v8691, %v8692
        %8766 = vadd.xlane.f32.xlu0 %v8765
        %v8767 = vpop.xlane.xlu0 %8766
        %v8768 = vadd.f32 %v8693, %v8694
        %8769 = vadd.xlane.f32.xlu0 %v8768
        %v8770 = vpop.xlane.xlu0 %8769
        %v8771 = vadd.f32 %v8695, %v8696
        %8772 = vadd.xlane.f32.xlu0 %v8771
        %v8773 = vpop.xlane.xlu0 %8772
        %v8774 = vadd.f32 %v8697, %v8698
        %8775 = vadd.xlane.f32.xlu0 %v8774
        %v8776 = vpop.xlane.xlu0 %8775
        %v8777 = vadd.f32 %v8699, %v8700
        %8778 = vadd.xlane.f32.xlu0 %v8777
        %v8779 = vpop.xlane.xlu0 %8778
        %v8780 = vadd.f32 %v8701, %v8702
        %8781 = vadd.xlane.f32.xlu0 %v8780
        %v8782 = vpop.xlane.xlu0 %8781
        %v8783 = vadd.f32 %v8703, %v8704
        %8784 = vadd.xlane.f32.xlu0 %v8783
        %v8785 = vpop.xlane.xlu0 %8784
        %v8786 = vadd.f32 %v8705, %v8706
        %8787 = vadd.xlane.f32.xlu0 %v8786
        %v8788 = vpop.xlane.xlu0 %8787
        %v8789 = vadd.f32 %v8707, %v8708
        %8790 = vadd.xlane.f32.xlu0 %v8789
        %v8791 = vpop.xlane.xlu0 %8790
        %v8792 = vadd.f32 %v8709, %v8710
        %8793 = vadd.xlane.f32.xlu0 %v8792
        %v8794 = vpop.xlane.xlu0 %8793
        %v8795 = vadd.f32 %v8711, %v8712
        %8796 = vadd.xlane.f32.xlu0 %v8795
        %v8797 = vpop.xlane.xlu0 %8796
        %v8798 = vadd.f32 %v8713, %v8714
        %8799 = vadd.xlane.f32.xlu0 %v8798
        %v8800 = vpop.xlane.xlu0 %8799
        %v8801 = vadd.f32 %v8715, %v8716
        %8802 = vadd.xlane.f32.xlu0 %v8801
        %v8803 = vpop.xlane.xlu0 %8802
        %v8804 = vadd.f32 %v8717, %v8718
        %8805 = vadd.xlane.f32.xlu0 %v8804
        %v8806 = vpop.xlane.xlu0 %8805
        %v8807 = vadd.f32 %v8719, %v8720
        %8808 = vadd.xlane.f32.xlu0 %v8807
        %v8809 = vpop.xlane.xlu0 %8808
        %v8810 = vadd.f32 %v8721, %v8722
        %8811 = vadd.xlane.f32.xlu0 %v8810
        %v8812 = vpop.xlane.xlu0 %8811
        %v8813 = vadd.f32 %v8723, %v8724
        %8814 = vadd.xlane.f32.xlu0 %v8813
        %v8815 = vpop.xlane.xlu0 %8814
        %v8816 = vadd.f32 %v8725, %v8726
        %8817 = vadd.xlane.f32.xlu0 %v8816
        %v8818 = vpop.xlane.xlu0 %8817
        %v8819 = vadd.f32 %v8727, %v8728
        %8820 = vadd.xlane.f32.xlu0 %v8819
        %v8821 = vpop.xlane.xlu0 %8820
        %v8822 = vadd.f32 %v8729, %v8730
        %8823 = vadd.xlane.f32.xlu0 %v8822
        %v8824 = vpop.xlane.xlu0 %8823
        %v8825 = vadd.f32 %v8731, %v8732
        %8826 = vadd.xlane.f32.xlu0 %v8825
        %v8827 = vpop.xlane.xlu0 %8826
        %v8828 = vadd.f32 %v8733, %v8734
        %8829 = vadd.xlane.f32.xlu0 %v8828
        %v8830 = vpop.xlane.xlu0 %8829
        %v8831 = vmul.f32 %v8737, %v5024
        %v8832 = vmul.f32 %v8740, %v5024
        %v8833 = vmul.f32 %v8743, %v5024
        %v8834 = vmul.f32 %v8746, %v5024
        %v8835 = vmul.f32 %v8749, %v5024
        %v8836 = vmul.f32 %v8752, %v5024
        %v8837 = vmul.f32 %v8755, %v5024
        %v8838 = vmul.f32 %v8758, %v5024
        %v8839 = vmul.f32 %v8761, %v5024
        %v8840 = vmul.f32 %v8764, %v5024
        %v8841 = vmul.f32 %v8767, %v5024
        %v8842 = vmul.f32 %v8770, %v5024
        %v8843 = vmul.f32 %v8773, %v5024
        %v8844 = vmul.f32 %v8776, %v5024
        %v8845 = vmul.f32 %v8779, %v5024
        %v8846 = vmul.f32 %v8782, %v5024
        %v8847 = vmul.f32 %v8785, %v5024
        %v8848 = vmul.f32 %v8788, %v5024
        %v8849 = vmul.f32 %v8791, %v5024
        %v8850 = vmul.f32 %v8794, %v5024
        %v8851 = vmul.f32 %v8797, %v5024
        %v8852 = vmul.f32 %v8800, %v5024
        %v8853 = vmul.f32 %v8803, %v5024
        %v8854 = vmul.f32 %v8806, %v5024
        %v8855 = vmul.f32 %v8809, %v5024
        %v8856 = vmul.f32 %v8812, %v5024
        %v8857 = vmul.f32 %v8815, %v5024
        %v8858 = vmul.f32 %v8818, %v5024
        %v8859 = vmul.f32 %v8821, %v5024
        %v8860 = vmul.f32 %v8824, %v5024
        %v8861 = vmul.f32 %v8827, %v5024
        %v8862 = vmul.f32 %v8830, %v5024
        %v8863 = vadd.f32 %v8831, 1e-05
        %v8864 = vadd.f32 %v8832, 1e-05
        %v8865 = vadd.f32 %v8833, 1e-05
        %v8866 = vadd.f32 %v8834, 1e-05
        %v8867 = vadd.f32 %v8835, 1e-05
        %v8868 = vadd.f32 %v8836, 1e-05
        %v8869 = vadd.f32 %v8837, 1e-05
        %v8870 = vadd.f32 %v8838, 1e-05
        %v8871 = vadd.f32 %v8839, 1e-05
        %v8872 = vadd.f32 %v8840, 1e-05
        %v8873 = vadd.f32 %v8841, 1e-05
        %v8874 = vadd.f32 %v8842, 1e-05
        %v8875 = vadd.f32 %v8843, 1e-05
        %v8876 = vadd.f32 %v8844, 1e-05
        %v8877 = vadd.f32 %v8845, 1e-05
        %v8878 = vadd.f32 %v8846, 1e-05
        %v8879 = vadd.f32 %v8847, 1e-05
        %v8880 = vadd.f32 %v8848, 1e-05
        %v8881 = vadd.f32 %v8849, 1e-05
        %v8882 = vadd.f32 %v8850, 1e-05
        %v8883 = vadd.f32 %v8851, 1e-05
        %v8884 = vadd.f32 %v8852, 1e-05
        %v8885 = vadd.f32 %v8853, 1e-05
        %v8886 = vadd.f32 %v8854, 1e-05
        %v8887 = vadd.f32 %v8855, 1e-05
        %v8888 = vadd.f32 %v8856, 1e-05
        %v8889 = vadd.f32 %v8857, 1e-05
        %v8890 = vadd.f32 %v8858, 1e-05
        %v8891 = vadd.f32 %v8859, 1e-05
        %v8892 = vadd.f32 %v8860, 1e-05
        %v8893 = vadd.f32 %v8861, 1e-05
        %v8894 = vadd.f32 %v8862, 1e-05
        %v8895 = vrsqrt.pop %v8863
        %v8896 = vrsqrt.pop %v8864
        %v8897 = vrsqrt.pop %v8865
        %v8898 = vrsqrt.pop %v8866
        %v8899 = vrsqrt.pop %v8867
        %v8900 = vrsqrt.pop %v8868
        %v8901 = vrsqrt.pop %v8869
        %v8902 = vrsqrt.pop %v8870
        %v8903 = vrsqrt.pop %v8871
        %v8904 = vrsqrt.pop %v8872
        %v8905 = vrsqrt.pop %v8873
        %v8906 = vrsqrt.pop %v8874
        %v8907 = vrsqrt.pop %v8875
        %v8908 = vrsqrt.pop %v8876
        %v8909 = vrsqrt.pop %v8877
        %v8910 = vrsqrt.pop %v8878
        %v8911 = vrsqrt.pop %v8879
        %v8912 = vrsqrt.pop %v8880
        %v8913 = vrsqrt.pop %v8881
        %v8914 = vrsqrt.pop %v8882
        %v8915 = vrsqrt.pop %v8883
        %v8916 = vrsqrt.pop %v8884
        %v8917 = vrsqrt.pop %v8885
        %v8918 = vrsqrt.pop %v8886
        %v8919 = vrsqrt.pop %v8887
        %v8920 = vrsqrt.pop %v8888
        %v8921 = vrsqrt.pop %v8889
        %v8922 = vrsqrt.pop %v8890
        %v8923 = vrsqrt.pop %v8891
        %v8924 = vrsqrt.pop %v8892
        %v8925 = vrsqrt.pop %v8893
        %v8926 = vrsqrt.pop %v8894
        %v8927 = vmul.f32 %v8607, %v8895
        %v8928 = vmul.f32 %v8608, %v8895
        %v8929 = vmul.f32 %v8609, %v8896
        %v8930 = vmul.f32 %v8610, %v8896
        %v8931 = vmul.f32 %v8611, %v8897
        %v8932 = vmul.f32 %v8612, %v8897
        %v8933 = vmul.f32 %v8613, %v8898
        %v8934 = vmul.f32 %v8614, %v8898
        %v8935 = vmul.f32 %v8615, %v8899
        %v8936 = vmul.f32 %v8616, %v8899
        %v8937 = vmul.f32 %v8617, %v8900
        %v8938 = vmul.f32 %v8618, %v8900
        %v8939 = vmul.f32 %v8619, %v8901
        %v8940 = vmul.f32 %v8620, %v8901
        %v8941 = vmul.f32 %v8621, %v8902
        %v8942 = vmul.f32 %v8622, %v8902
        %v8943 = vmul.f32 %v8623, %v8903
        %v8944 = vmul.f32 %v8624, %v8903
        %v8945 = vmul.f32 %v8625, %v8904
        %v8946 = vmul.f32 %v8626, %v8904
        %v8947 = vmul.f32 %v8627, %v8905
        %v8948 = vmul.f32 %v8628, %v8905
        %v8949 = vmul.f32 %v8629, %v8906
        %v8950 = vmul.f32 %v8630, %v8906
        %v8951 = vmul.f32 %v8631, %v8907
        %v8952 = vmul.f32 %v8632, %v8907
        %v8953 = vmul.f32 %v8633, %v8908
        %v8954 = vmul.f32 %v8634, %v8908
        %v8955 = vmul.f32 %v8635, %v8909
        %v8956 = vmul.f32 %v8636, %v8909
        %v8957 = vmul.f32 %v8637, %v8910
        %v8958 = vmul.f32 %v8638, %v8910
        %v8959 = vmul.f32 %v8639, %v8911
        %v8960 = vmul.f32 %v8640, %v8911
        %v8961 = vmul.f32 %v8641, %v8912
        %v8962 = vmul.f32 %v8642, %v8912
        %v8963 = vmul.f32 %v8643, %v8913
        %v8964 = vmul.f32 %v8644, %v8913
        %v8965 = vmul.f32 %v8645, %v8914
        %v8966 = vmul.f32 %v8646, %v8914
        %v8967 = vmul.f32 %v8647, %v8915
        %v8968 = vmul.f32 %v8648, %v8915
        %v8969 = vmul.f32 %v8649, %v8916
        %v8970 = vmul.f32 %v8650, %v8916
        %v8971 = vmul.f32 %v8651, %v8917
        %v8972 = vmul.f32 %v8652, %v8917
        %v8973 = vmul.f32 %v8653, %v8918
        %v8974 = vmul.f32 %v8654, %v8918
        %v8975 = vmul.f32 %v8655, %v8919
        %v8976 = vmul.f32 %v8656, %v8919
        %v8977 = vmul.f32 %v8657, %v8920
        %v8978 = vmul.f32 %v8658, %v8920
        %v8979 = vmul.f32 %v8659, %v8921
        %v8980 = vmul.f32 %v8660, %v8921
        %v8981 = vmul.f32 %v8661, %v8922
        %v8982 = vmul.f32 %v8662, %v8922
        %v8983 = vmul.f32 %v8663, %v8923
        %v8984 = vmul.f32 %v8664, %v8923
        %v8985 = vmul.f32 %v8665, %v8924
        %v8986 = vmul.f32 %v8666, %v8924
        %v8987 = vmul.f32 %v8667, %v8925
        %v8988 = vmul.f32 %v8668, %v8925
        %v8989 = vmul.f32 %v8669, %v8926
        %v8990 = vmul.f32 %v8670, %v8926
        %v8992 = vlaneseq
        %v8993 = vshrl.u32 %v8992, 7
        %v8994 = vsub.s32 0, %v8993
        %v8995 = vrot.slane %v8477, %v8994
        %v8996 = vlaneseq
        %v8997 = vshrl.u32 %v8996, 7
        %v8998 = vsub.s32 1, %v8997
        %v8999 = vrot.slane %v8477, %v8998
        %v9002 = vmul.f32 %v8927, %v8995
        %v9003 = vmul.f32 %v8928, %v8999
        %v9004 = vmul.f32 %v8929, %v8995
        %v9005 = vmul.f32 %v8930, %v8999
        %v9006 = vmul.f32 %v8931, %v8995
        %v9007 = vmul.f32 %v8932, %v8999
        %v9008 = vmul.f32 %v8933, %v8995
        %v9009 = vmul.f32 %v8934, %v8999
        %v9010 = vmul.f32 %v8935, %v8995
        %v9011 = vmul.f32 %v8936, %v8999
        %v9012 = vmul.f32 %v8937, %v8995
        %v9013 = vmul.f32 %v8938, %v8999
        %v9014 = vmul.f32 %v8939, %v8995
        %v9015 = vmul.f32 %v8940, %v8999
        %v9016 = vmul.f32 %v8941, %v8995
        %v9017 = vmul.f32 %v8942, %v8999
        %v9018 = vmul.f32 %v8943, %v8995
        %v9019 = vmul.f32 %v8944, %v8999
        %v9020 = vmul.f32 %v8945, %v8995
        %v9021 = vmul.f32 %v8946, %v8999
        %v9022 = vmul.f32 %v8947, %v8995
        %v9023 = vmul.f32 %v8948, %v8999
        %v9024 = vmul.f32 %v8949, %v8995
        %v9025 = vmul.f32 %v8950, %v8999
        %v9026 = vmul.f32 %v8951, %v8995
        %v9027 = vmul.f32 %v8952, %v8999
        %v9028 = vmul.f32 %v8953, %v8995
        %v9029 = vmul.f32 %v8954, %v8999
        %v9030 = vmul.f32 %v8955, %v8995
        %v9031 = vmul.f32 %v8956, %v8999
        %v9032 = vmul.f32 %v8957, %v8995
        %v9033 = vmul.f32 %v8958, %v8999
        %v9034 = vmul.f32 %v8959, %v8995
        %v9035 = vmul.f32 %v8960, %v8999
        %v9036 = vmul.f32 %v8961, %v8995
        %v9037 = vmul.f32 %v8962, %v8999
        %v9038 = vmul.f32 %v8963, %v8995
        %v9039 = vmul.f32 %v8964, %v8999
        %v9040 = vmul.f32 %v8965, %v8995
        %v9041 = vmul.f32 %v8966, %v8999
        %v9042 = vmul.f32 %v8967, %v8995
        %v9043 = vmul.f32 %v8968, %v8999
        %v9044 = vmul.f32 %v8969, %v8995
        %v9045 = vmul.f32 %v8970, %v8999
        %v9046 = vmul.f32 %v8971, %v8995
        %v9047 = vmul.f32 %v8972, %v8999
        %v9048 = vmul.f32 %v8973, %v8995
        %v9049 = vmul.f32 %v8974, %v8999
        %v9050 = vmul.f32 %v8975, %v8995
        %v9051 = vmul.f32 %v8976, %v8999
        %v9052 = vmul.f32 %v8977, %v8995
        %v9053 = vmul.f32 %v8978, %v8999
        %v9054 = vmul.f32 %v8979, %v8995
        %v9055 = vmul.f32 %v8980, %v8999
        %v9056 = vmul.f32 %v8981, %v8995
        %v9057 = vmul.f32 %v8982, %v8999
        %v9058 = vmul.f32 %v8983, %v8995
        %v9059 = vmul.f32 %v8984, %v8999
        %v9060 = vmul.f32 %v8985, %v8995
        %v9061 = vmul.f32 %v8986, %v8999
        %v9062 = vmul.f32 %v8987, %v8995
        %v9063 = vmul.f32 %v8988, %v8999
        %v9064 = vmul.f32 %v8989, %v8995
        %v9065 = vmul.f32 %v8990, %v8999
        %v9067 = vlaneseq
        %v9068 = vshrl.u32 %v9067, 7
        %v9069 = vsub.s32 0, %v9068
        %v9070 = vrot.slane %v8478, %v9069
        %v9071 = vlaneseq
        %v9072 = vshrl.u32 %v9071, 7
        %v9073 = vsub.s32 1, %v9072
        %v9074 = vrot.slane %v8478, %v9073
        %v9077 = vadd.f32 %v9002, %v9070
        %v9078 = vadd.f32 %v9003, %v9074
        %v9079 = vadd.f32 %v9004, %v9070
        %v9080 = vadd.f32 %v9005, %v9074
        %v9081 = vadd.f32 %v9006, %v9070
        %v9082 = vadd.f32 %v9007, %v9074
        %v9083 = vadd.f32 %v9008, %v9070
        %v9084 = vadd.f32 %v9009, %v9074
        %v9085 = vadd.f32 %v9010, %v9070
        %v9086 = vadd.f32 %v9011, %v9074
        %v9087 = vadd.f32 %v9012, %v9070
        %v9088 = vadd.f32 %v9013, %v9074
        %v9089 = vadd.f32 %v9014, %v9070
        %v9090 = vadd.f32 %v9015, %v9074
        %v9091 = vadd.f32 %v9016, %v9070
        %v9092 = vadd.f32 %v9017, %v9074
        %v9093 = vadd.f32 %v9018, %v9070
        %v9094 = vadd.f32 %v9019, %v9074
        %v9095 = vadd.f32 %v9020, %v9070
        %v9096 = vadd.f32 %v9021, %v9074
        %v9097 = vadd.f32 %v9022, %v9070
        %v9098 = vadd.f32 %v9023, %v9074
        %v9099 = vadd.f32 %v9024, %v9070
        %v9100 = vadd.f32 %v9025, %v9074
        %v9101 = vadd.f32 %v9026, %v9070
        %v9102 = vadd.f32 %v9027, %v9074
        %v9103 = vadd.f32 %v9028, %v9070
        %v9104 = vadd.f32 %v9029, %v9074
        %v9105 = vadd.f32 %v9030, %v9070
        %v9106 = vadd.f32 %v9031, %v9074
        %v9107 = vadd.f32 %v9032, %v9070
        %v9108 = vadd.f32 %v9033, %v9074
        %v9109 = vadd.f32 %v9034, %v9070
        %v9110 = vadd.f32 %v9035, %v9074
        %v9111 = vadd.f32 %v9036, %v9070
        %v9112 = vadd.f32 %v9037, %v9074
        %v9113 = vadd.f32 %v9038, %v9070
        %v9114 = vadd.f32 %v9039, %v9074
        %v9115 = vadd.f32 %v9040, %v9070
        %v9116 = vadd.f32 %v9041, %v9074
        %v9117 = vadd.f32 %v9042, %v9070
        %v9118 = vadd.f32 %v9043, %v9074
        %v9119 = vadd.f32 %v9044, %v9070
        %v9120 = vadd.f32 %v9045, %v9074
        %v9121 = vadd.f32 %v9046, %v9070
        %v9122 = vadd.f32 %v9047, %v9074
        %v9123 = vadd.f32 %v9048, %v9070
        %v9124 = vadd.f32 %v9049, %v9074
        %v9125 = vadd.f32 %v9050, %v9070
        %v9126 = vadd.f32 %v9051, %v9074
        %v9127 = vadd.f32 %v9052, %v9070
        %v9128 = vadd.f32 %v9053, %v9074
        %v9129 = vadd.f32 %v9054, %v9070
        %v9130 = vadd.f32 %v9055, %v9074
        %v9131 = vadd.f32 %v9056, %v9070
        %v9132 = vadd.f32 %v9057, %v9074
        %v9133 = vadd.f32 %v9058, %v9070
        %v9134 = vadd.f32 %v9059, %v9074
        %v9135 = vadd.f32 %v9060, %v9070
        %v9136 = vadd.f32 %v9061, %v9074
        %v9137 = vadd.f32 %v9062, %v9070
        %v9138 = vadd.f32 %v9063, %v9074
        %v9139 = vadd.f32 %v9064, %v9070
        %v9140 = vadd.f32 %v9065, %v9074
        %9141 = vst [vmem:[#allocation2] sm:$0xff] %v9077
        %9142 = vst [vmem:[#allocation2 + $0x8] sm:$0xff] %v9078
        %9143 = vst [vmem:[#allocation2 + $0x10] sm:$0xff] %v9079
        %9144 = vst [vmem:[#allocation2 + $0x18] sm:$0xff] %v9080
        %9145 = vst [vmem:[#allocation2 + $0x20] sm:$0xff] %v9081
        %9146 = vst [vmem:[#allocation2 + $0x28] sm:$0xff] %v9082
        %9147 = vst [vmem:[#allocation2 + $0x30] sm:$0xff] %v9083
        %9148 = vst [vmem:[#allocation2 + $0x38] sm:$0xff] %v9084
        %9149 = vst [vmem:[#allocation2 + $0x40] sm:$0xff] %v9085
        %9150 = vst [vmem:[#allocation2 + $0x48] sm:$0xff] %v9086
        %9151 = vst [vmem:[#allocation2 + $0x50] sm:$0xff] %v9087
        %9152 = vst [vmem:[#allocation2 + $0x58] sm:$0xff] %v9088
        %9153 = vst [vmem:[#allocation2 + $0x60] sm:$0xff] %v9089
        %9154 = vst [vmem:[#allocation2 + $0x68] sm:$0xff] %v9090
        %9155 = vst [vmem:[#allocation2 + $0x70] sm:$0xff] %v9091
        %9156 = vst [vmem:[#allocation2 + $0x78] sm:$0xff] %v9092
        %9157 = vst [vmem:[#allocation2 + $0x80] sm:$0xff] %v9093
        %9158 = vst [vmem:[#allocation2 + $0x88] sm:$0xff] %v9094
        %9159 = vst [vmem:[#allocation2 + $0x90] sm:$0xff] %v9095
        %9160 = vst [vmem:[#allocation2 + $0x98] sm:$0xff] %v9096
        %9161 = vst [vmem:[#allocation2 + $0xa0] sm:$0xff] %v9097
        %9162 = vst [vmem:[#allocation2 + $0xa8] sm:$0xff] %v9098
        %9163 = vst [vmem:[#allocation2 + $0xb0] sm:$0xff] %v9099
        %9164 = vst [vmem:[#allocation2 + $0xb8] sm:$0xff] %v9100
        %9165 = vst [vmem:[#allocation2 + $0xc0] sm:$0xff] %v9101
        %9166 = vst [vmem:[#allocation2 + $0xc8] sm:$0xff] %v9102
        %9167 = vst [vmem:[#allocation2 + $0xd0] sm:$0xff] %v9103
        %9168 = vst [vmem:[#allocation2 + $0xd8] sm:$0xff] %v9104
        %9169 = vst [vmem:[#allocation2 + $0xe0] sm:$0xff] %v9105
        %9170 = vst [vmem:[#allocation2 + $0xe8] sm:$0xff] %v9106
        %9171 = vst [vmem:[#allocation2 + $0xf0] sm:$0xff] %v9107
        %9172 = vst [vmem:[#allocation2 + $0xf8] sm:$0xff] %v9108
        %9173 = vst [vmem:[#allocation2 + $0x100] sm:$0xff] %v9109
        %9174 = vst [vmem:[#allocation2 + $0x108] sm:$0xff] %v9110
        %9175 = vst [vmem:[#allocation2 + $0x110] sm:$0xff] %v9111
        %9176 = vst [vmem:[#allocation2 + $0x118] sm:$0xff] %v9112
        %9177 = vst [vmem:[#allocation2 + $0x120] sm:$0xff] %v9113
        %9178 = vst [vmem:[#allocation2 + $0x128] sm:$0xff] %v9114
        %9179 = vst [vmem:[#allocation2 + $0x130] sm:$0xff] %v9115
        %9180 = vst [vmem:[#allocation2 + $0x138] sm:$0xff] %v9116
        %9181 = vst [vmem:[#allocation2 + $0x140] sm:$0xff] %v9117
        %9182 = vst [vmem:[#allocation2 + $0x148] sm:$0xff] %v9118
        %9183 = vst [vmem:[#allocation2 + $0x150] sm:$0xff] %v9119
        %9184 = vst [vmem:[#allocation2 + $0x158] sm:$0xff] %v9120
        %9185 = vst [vmem:[#allocation2 + $0x160] sm:$0xff] %v9121
        %9186 = vst [vmem:[#allocation2 + $0x168] sm:$0xff] %v9122
        %9187 = vst [vmem:[#allocation2 + $0x170] sm:$0xff] %v9123
        %9188 = vst [vmem:[#allocation2 + $0x178] sm:$0xff] %v9124
        %9189 = vst [vmem:[#allocation2 + $0x180] sm:$0xff] %v9125
        %9190 = vst [vmem:[#allocation2 + $0x188] sm:$0xff] %v9126
        %9191 = vst [vmem:[#allocation2 + $0x190] sm:$0xff] %v9127
        %9192 = vst [vmem:[#allocation2 + $0x198] sm:$0xff] %v9128
        %9193 = vst [vmem:[#allocation2 + $0x1a0] sm:$0xff] %v9129
        %9194 = vst [vmem:[#allocation2 + $0x1a8] sm:$0xff] %v9130
        %9195 = vst [vmem:[#allocation2 + $0x1b0] sm:$0xff] %v9131
        %9196 = vst [vmem:[#allocation2 + $0x1b8] sm:$0xff] %v9132
        %9197 = vst [vmem:[#allocation2 + $0x1c0] sm:$0xff] %v9133
        %9198 = vst [vmem:[#allocation2 + $0x1c8] sm:$0xff] %v9134
        %9199 = vst [vmem:[#allocation2 + $0x1d0] sm:$0xff] %v9135
        %9200 = vst [vmem:[#allocation2 + $0x1d8] sm:$0xff] %v9136
        %9201 = vst [vmem:[#allocation2 + $0x1e0] sm:$0xff] %v9137
        %9202 = vst [vmem:[#allocation2 + $0x1e8] sm:$0xff] %v9138
        %9203 = vst [vmem:[#allocation2 + $0x1f0] sm:$0xff] %v9139
        %9204 = vst [vmem:[#allocation2 + $0x1f8] sm:$0xff] %v9140
        %p9205 = scmp.eq.s32.totalorder %s40, 1
        // Predicated region
        $region113: #{tpu_custom_call.1} parent=79 // pred_check
          %p9206 = pneg %p9205
        $region114: #{tpu_custom_call.1} parent=79 // pred_check_branch
          %9208 = sbr.rel (%p9206) target = $region116
        $region115: #{tpu_custom_call.1} parent=79 // pred_region
          %v9209 = vlaneseq
          %v9210 = vshrl.u32 %v9209, 7
          %v9211 = vadd.s32 %v9210, 8
          %v9212 = vadd.s32 %v9210, 16
          %v9213 = vadd.s32 %v9210, 24
          %v9214 = vadd.s32 %v9210, 32
          %v9215 = vadd.s32 %v9210, 40
          %v9216 = vadd.s32 %v9210, 48
          %v9217 = vadd.s32 %v9210, 56
          %v9218 = vadd.s32 %v9210, 64
          %v9219 = vadd.s32 %v9210, 72
          %v9220 = vadd.s32 %v9210, 80
          %v9221 = vadd.s32 %v9210, 88
          %v9222 = vadd.s32 %v9210, 96
          %v9223 = vadd.s32 %v9210, 104
          %v9224 = vadd.s32 %v9210, 112
          %v9225 = vadd.s32 %v9210, 120
          %s9226 = sld [smem:[#allocation4]]
          %v9227 = vstv %s9226
          %vm9228 = vcmp.lt.s32.totalorder %v9210, %v9227
          %vm9229 = vcmp.lt.s32.totalorder %v9211, %v9227
          %vm9230 = vcmp.lt.s32.totalorder %v9212, %v9227
          %vm9231 = vcmp.lt.s32.totalorder %v9213, %v9227
          %vm9232 = vcmp.lt.s32.totalorder %v9214, %v9227
          %vm9233 = vcmp.lt.s32.totalorder %v9215, %v9227
          %vm9234 = vcmp.lt.s32.totalorder %v9216, %v9227
          %vm9235 = vcmp.lt.s32.totalorder %v9217, %v9227
          %vm9236 = vcmp.lt.s32.totalorder %v9218, %v9227
          %vm9237 = vcmp.lt.s32.totalorder %v9219, %v9227
          %vm9238 = vcmp.lt.s32.totalorder %v9220, %v9227
          %vm9239 = vcmp.lt.s32.totalorder %v9221, %v9227
          %vm9240 = vcmp.lt.s32.totalorder %v9222, %v9227
          %vm9241 = vcmp.lt.s32.totalorder %v9223, %v9227
          %vm9242 = vcmp.lt.s32.totalorder %v9224, %v9227
          %vm9243 = vcmp.lt.s32.totalorder %v9225, %v9227
          %v9244 = vsel %vm9228, 1, 0
          %v9245 = vsel %vm9229, 1, 0
          %v9246 = vsel %vm9230, 1, 0
          %v9247 = vsel %vm9231, 1, 0
          %v9248 = vsel %vm9232, 1, 0
          %v9249 = vsel %vm9233, 1, 0
          %v9250 = vsel %vm9234, 1, 0
          %v9251 = vsel %vm9235, 1, 0
          %v9252 = vsel %vm9236, 1, 0
          %v9253 = vsel %vm9237, 1, 0
          %v9254 = vsel %vm9238, 1, 0
          %v9255 = vsel %vm9239, 1, 0
          %v9256 = vsel %vm9240, 1, 0
          %v9257 = vsel %vm9241, 1, 0
          %v9258 = vsel %vm9242, 1, 0
          %v9259 = vsel %vm9243, 1, 0
          %vm9260 = vcmp.eq.s32.totalorder %v9244, 1
          %vm9261 = vcmp.eq.s32.totalorder %v9245, 1
          %vm9262 = vcmp.eq.s32.totalorder %v9246, 1
          %vm9263 = vcmp.eq.s32.totalorder %v9247, 1
          %vm9264 = vcmp.eq.s32.totalorder %v9248, 1
          %vm9265 = vcmp.eq.s32.totalorder %v9249, 1
          %vm9266 = vcmp.eq.s32.totalorder %v9250, 1
          %vm9267 = vcmp.eq.s32.totalorder %v9251, 1
          %vm9268 = vcmp.eq.s32.totalorder %v9252, 1
          %vm9269 = vcmp.eq.s32.totalorder %v9253, 1
          %vm9270 = vcmp.eq.s32.totalorder %v9254, 1
          %vm9271 = vcmp.eq.s32.totalorder %v9255, 1
          %vm9272 = vcmp.eq.s32.totalorder %v9256, 1
          %vm9273 = vcmp.eq.s32.totalorder %v9257, 1
          %vm9274 = vcmp.eq.s32.totalorder %v9258, 1
          %vm9275 = vcmp.eq.s32.totalorder %v9259, 1
          %v9276 = vsel %vm9260, %v9077, 0.0
          %v9277 = vsel %vm9260, %v9078, 0.0
          %v9278 = vsel %vm9261, %v9079, 0.0
          %v9279 = vsel %vm9261, %v9080, 0.0
          %v9280 = vsel %vm9262, %v9081, 0.0
          %v9281 = vsel %vm9262, %v9082, 0.0
          %v9282 = vsel %vm9263, %v9083, 0.0
          %v9283 = vsel %vm9263, %v9084, 0.0
          %v9284 = vsel %vm9264, %v9085, 0.0
          %v9285 = vsel %vm9264, %v9086, 0.0
          %v9286 = vsel %vm9265, %v9087, 0.0
          %v9287 = vsel %vm9265, %v9088, 0.0
          %v9288 = vsel %vm9266, %v9089, 0.0
          %v9289 = vsel %vm9266, %v9090, 0.0
          %v9290 = vsel %vm9267, %v9091, 0.0
          %v9291 = vsel %vm9267, %v9092, 0.0
          %v9292 = vsel %vm9268, %v9093, 0.0
          %v9293 = vsel %vm9268, %v9094, 0.0
          %v9294 = vsel %vm9269, %v9095, 0.0
          %v9295 = vsel %vm9269, %v9096, 0.0
          %v9296 = vsel %vm9270, %v9097, 0.0
          %v9297 = vsel %vm9270, %v9098, 0.0
          %v9298 = vsel %vm9271, %v9099, 0.0
          %v9299 = vsel %vm9271, %v9100, 0.0
          %v9300 = vsel %vm9272, %v9101, 0.0
          %v9301 = vsel %vm9272, %v9102, 0.0
          %v9302 = vsel %vm9273, %v9103, 0.0
          %v9303 = vsel %vm9273, %v9104, 0.0
          %v9304 = vsel %vm9274, %v9105, 0.0
          %v9305 = vsel %vm9274, %v9106, 0.0
          %v9306 = vsel %vm9275, %v9107, 0.0
          %v9307 = vsel %vm9275, %v9108, 0.0
          %9308 = vst [vmem:[#allocation17] sm:$0xff] %v9276
          %9309 = vst [vmem:[#allocation17 + $0x8] sm:$0xff] %v9277
          %9310 = vst [vmem:[#allocation17 + $0x10] sm:$0xff] %v9278
          %9311 = vst [vmem:[#allocation17 + $0x18] sm:$0xff] %v9279
          %9312 = vst [vmem:[#allocation17 + $0x20] sm:$0xff] %v9280
          %9313 = vst [vmem:[#allocation17 + $0x28] sm:$0xff] %v9281
          %9314 = vst [vmem:[#allocation17 + $0x30] sm:$0xff] %v9282
          %9315 = vst [vmem:[#allocation17 + $0x38] sm:$0xff] %v9283
          %9316 = vst [vmem:[#allocation17 + $0x40] sm:$0xff] %v9284
          %9317 = vst [vmem:[#allocation17 + $0x48] sm:$0xff] %v9285
          %9318 = vst [vmem:[#allocation17 + $0x50] sm:$0xff] %v9286
          %9319 = vst [vmem:[#allocation17 + $0x58] sm:$0xff] %v9287
          %9320 = vst [vmem:[#allocation17 + $0x60] sm:$0xff] %v9288
          %9321 = vst [vmem:[#allocation17 + $0x68] sm:$0xff] %v9289
          %9322 = vst [vmem:[#allocation17 + $0x70] sm:$0xff] %v9290
          %9323 = vst [vmem:[#allocation17 + $0x78] sm:$0xff] %v9291
          %9324 = vst [vmem:[#allocation17 + $0x80] sm:$0xff] %v9292
          %9325 = vst [vmem:[#allocation17 + $0x88] sm:$0xff] %v9293
          %9326 = vst [vmem:[#allocation17 + $0x90] sm:$0xff] %v9294
          %9327 = vst [vmem:[#allocation17 + $0x98] sm:$0xff] %v9295
          %9328 = vst [vmem:[#allocation17 + $0xa0] sm:$0xff] %v9296
          %9329 = vst [vmem:[#allocation17 + $0xa8] sm:$0xff] %v9297
          %9330 = vst [vmem:[#allocation17 + $0xb0] sm:$0xff] %v9298
          %9331 = vst [vmem:[#allocation17 + $0xb8] sm:$0xff] %v9299
          %9332 = vst [vmem:[#allocation17 + $0xc0] sm:$0xff] %v9300
          %9333 = vst [vmem:[#allocation17 + $0xc8] sm:$0xff] %v9301
          %9334 = vst [vmem:[#allocation17 + $0xd0] sm:$0xff] %v9302
          %9335 = vst [vmem:[#allocation17 + $0xd8] sm:$0xff] %v9303
          %9336 = vst [vmem:[#allocation17 + $0xe0] sm:$0xff] %v9304
          %9337 = vst [vmem:[#allocation17 + $0xe8] sm:$0xff] %v9305
          %9338 = vst [vmem:[#allocation17 + $0xf0] sm:$0xff] %v9306
          %9339 = vst [vmem:[#allocation17 + $0xf8] sm:$0xff] %v9307
          %s9340 = sld [smem:[#allocation4 + $0x1]]
          %v9341 = vstv %s9340
          %vm9342 = vcmp.lt.s32.totalorder %v9210, %v9341
          %vm9343 = vcmp.lt.s32.totalorder %v9211, %v9341
          %vm9344 = vcmp.lt.s32.totalorder %v9212, %v9341
          %vm9345 = vcmp.lt.s32.totalorder %v9213, %v9341
          %vm9346 = vcmp.lt.s32.totalorder %v9214, %v9341
          %vm9347 = vcmp.lt.s32.totalorder %v9215, %v9341
          %vm9348 = vcmp.lt.s32.totalorder %v9216, %v9341
          %vm9349 = vcmp.lt.s32.totalorder %v9217, %v9341
          %vm9350 = vcmp.lt.s32.totalorder %v9218, %v9341
          %vm9351 = vcmp.lt.s32.totalorder %v9219, %v9341
          %vm9352 = vcmp.lt.s32.totalorder %v9220, %v9341
          %vm9353 = vcmp.lt.s32.totalorder %v9221, %v9341
          %vm9354 = vcmp.lt.s32.totalorder %v9222, %v9341
          %vm9355 = vcmp.lt.s32.totalorder %v9223, %v9341
          %vm9356 = vcmp.lt.s32.totalorder %v9224, %v9341
          %vm9357 = vcmp.lt.s32.totalorder %v9225, %v9341
          %v9358 = vsel %vm9342, 1, 0
          %v9359 = vsel %vm9343, 1, 0
          %v9360 = vsel %vm9344, 1, 0
          %v9361 = vsel %vm9345, 1, 0
          %v9362 = vsel %vm9346, 1, 0
          %v9363 = vsel %vm9347, 1, 0
          %v9364 = vsel %vm9348, 1, 0
          %v9365 = vsel %vm9349, 1, 0
          %v9366 = vsel %vm9350, 1, 0
          %v9367 = vsel %vm9351, 1, 0
          %v9368 = vsel %vm9352, 1, 0
          %v9369 = vsel %vm9353, 1, 0
          %v9370 = vsel %vm9354, 1, 0
          %v9371 = vsel %vm9355, 1, 0
          %v9372 = vsel %vm9356, 1, 0
          %v9373 = vsel %vm9357, 1, 0
          %vm9374 = vcmp.eq.s32.totalorder %v9358, 1
          %vm9375 = vcmp.eq.s32.totalorder %v9359, 1
          %vm9376 = vcmp.eq.s32.totalorder %v9360, 1
          %vm9377 = vcmp.eq.s32.totalorder %v9361, 1
          %vm9378 = vcmp.eq.s32.totalorder %v9362, 1
          %vm9379 = vcmp.eq.s32.totalorder %v9363, 1
          %vm9380 = vcmp.eq.s32.totalorder %v9364, 1
          %vm9381 = vcmp.eq.s32.totalorder %v9365, 1
          %vm9382 = vcmp.eq.s32.totalorder %v9366, 1
          %vm9383 = vcmp.eq.s32.totalorder %v9367, 1
          %vm9384 = vcmp.eq.s32.totalorder %v9368, 1
          %vm9385 = vcmp.eq.s32.totalorder %v9369, 1
          %vm9386 = vcmp.eq.s32.totalorder %v9370, 1
          %vm9387 = vcmp.eq.s32.totalorder %v9371, 1
          %vm9388 = vcmp.eq.s32.totalorder %v9372, 1
          %vm9389 = vcmp.eq.s32.totalorder %v9373, 1
          %v9390 = vsel %vm9374, %v9109, 0.0
          %v9391 = vsel %vm9374, %v9110, 0.0
          %v9392 = vsel %vm9375, %v9111, 0.0
          %v9393 = vsel %vm9375, %v9112, 0.0
          %v9394 = vsel %vm9376, %v9113, 0.0
          %v9395 = vsel %vm9376, %v9114, 0.0
          %v9396 = vsel %vm9377, %v9115, 0.0
          %v9397 = vsel %vm9377, %v9116, 0.0
          %v9398 = vsel %vm9378, %v9117, 0.0
          %v9399 = vsel %vm9378, %v9118, 0.0
          %v9400 = vsel %vm9379, %v9119, 0.0
          %v9401 = vsel %vm9379, %v9120, 0.0
          %v9402 = vsel %vm9380, %v9121, 0.0
          %v9403 = vsel %vm9380, %v9122, 0.0
          %v9404 = vsel %vm9381, %v9123, 0.0
          %v9405 = vsel %vm9381, %v9124, 0.0
          %v9406 = vsel %vm9382, %v9125, 0.0
          %v9407 = vsel %vm9382, %v9126, 0.0
          %v9408 = vsel %vm9383, %v9127, 0.0
          %v9409 = vsel %vm9383, %v9128, 0.0
          %v9410 = vsel %vm9384, %v9129, 0.0
          %v9411 = vsel %vm9384, %v9130, 0.0
          %v9412 = vsel %vm9385, %v9131, 0.0
          %v9413 = vsel %vm9385, %v9132, 0.0
          %v9414 = vsel %vm9386, %v9133, 0.0
          %v9415 = vsel %vm9386, %v9134, 0.0
          %v9416 = vsel %vm9387, %v9135, 0.0
          %v9417 = vsel %vm9387, %v9136, 0.0
          %v9418 = vsel %vm9388, %v9137, 0.0
          %v9419 = vsel %vm9388, %v9138, 0.0
          %v9420 = vsel %vm9389, %v9139, 0.0
          %v9421 = vsel %vm9389, %v9140, 0.0
          %s9422 = scalar_lea.vmem [#allocation17], 256
          %9423 = vst [vmem:[%s9422] sm:$0xff] %v9390
          %9424 = vst [vmem:[%s9422 + $0x8] sm:$0xff] %v9391
          %9425 = vst [vmem:[%s9422 + $0x10] sm:$0xff] %v9392
          %9426 = vst [vmem:[%s9422 + $0x18] sm:$0xff] %v9393
          %9427 = vst [vmem:[%s9422 + $0x20] sm:$0xff] %v9394
          %9428 = vst [vmem:[%s9422 + $0x28] sm:$0xff] %v9395
          %9429 = vst [vmem:[%s9422 + $0x30] sm:$0xff] %v9396
          %9430 = vst [vmem:[%s9422 + $0x38] sm:$0xff] %v9397
          %9431 = vst [vmem:[%s9422 + $0x40] sm:$0xff] %v9398
          %9432 = vst [vmem:[%s9422 + $0x48] sm:$0xff] %v9399
          %9433 = vst [vmem:[%s9422 + $0x50] sm:$0xff] %v9400
          %9434 = vst [vmem:[%s9422 + $0x58] sm:$0xff] %v9401
          %9435 = vst [vmem:[%s9422 + $0x60] sm:$0xff] %v9402
          %9436 = vst [vmem:[%s9422 + $0x68] sm:$0xff] %v9403
          %9437 = vst [vmem:[%s9422 + $0x70] sm:$0xff] %v9404
          %9438 = vst [vmem:[%s9422 + $0x78] sm:$0xff] %v9405
          %9439 = vst [vmem:[%s9422 + $0x80] sm:$0xff] %v9406
          %9440 = vst [vmem:[%s9422 + $0x88] sm:$0xff] %v9407
          %9441 = vst [vmem:[%s9422 + $0x90] sm:$0xff] %v9408
          %9442 = vst [vmem:[%s9422 + $0x98] sm:$0xff] %v9409
          %9443 = vst [vmem:[%s9422 + $0xa0] sm:$0xff] %v9410
          %9444 = vst [vmem:[%s9422 + $0xa8] sm:$0xff] %v9411
          %9445 = vst [vmem:[%s9422 + $0xb0] sm:$0xff] %v9412
          %9446 = vst [vmem:[%s9422 + $0xb8] sm:$0xff] %v9413
          %9447 = vst [vmem:[%s9422 + $0xc0] sm:$0xff] %v9414
          %9448 = vst [vmem:[%s9422 + $0xc8] sm:$0xff] %v9415
          %9449 = vst [vmem:[%s9422 + $0xd0] sm:$0xff] %v9416
          %9450 = vst [vmem:[%s9422 + $0xd8] sm:$0xff] %v9417
          %9451 = vst [vmem:[%s9422 + $0xe0] sm:$0xff] %v9418
          %9452 = vst [vmem:[%s9422 + $0xe8] sm:$0xff] %v9419
          %9453 = vst [vmem:[%s9422 + $0xf0] sm:$0xff] %v9420
          %9454 = vst [vmem:[%s9422 + $0xf8] sm:$0xff] %v9421
        $region116: #{tpu_custom_call.1} parent=79 // pred_fallthru
          _
        // Predicated region
        $region117: #{tpu_custom_call.1} parent=79 // pred_check
          %p9455 = pneg %p428
        $region118: #{tpu_custom_call.1} parent=79 // pred_check_branch
          %9457 = sbr.rel (%p9455) target = $region120
        $region119: #{tpu_custom_call.1} parent=79 // pred_region
          %s9459 = ssub.s32 8192, 8192
          %9460 = vsyncadd [#allocation7], %s9459
          %s9461 = sshll.u32 [#allocation17], 4
          %s9462 = int_to_ptr.vmem [resolvable:$true] %s9461
          %9467 = dma.vmem_to_hbm [thread:$0]  %s9462, 8192, %s16, [#allocation7], 256, 256, 16
        $region120: #{tpu_custom_call.1} parent=79 // pred_fallthru
          _
        // Predicated region
        $region121: #{tpu_custom_call.1} parent=79 // pred_check
          %p9468 = pneg %p428
        $region122: #{tpu_custom_call.1} parent=79 // pred_check_branch
          %9470 = sbr.rel (%p9468) target = $region124
        $region123: #{tpu_custom_call.1} parent=79 // pred_region
          %9471 = dma.done [#allocation7], 8192
        $region124: #{tpu_custom_call.1} parent=79 // pred_fallthru
          _
      $region80: #{tpu_custom_call.1} parent=5 // pred_fallthru
        _
      %p9472 = scmp.le.s32.totalorder 2, %s35
      // Predicated region
      $region125: #{tpu_custom_call.1} parent=5 // pred_check
        %p9473 = pneg %p9472
      $region126: #{tpu_custom_call.1} parent=5 // pred_check_branch
        %9475 = sbr.rel (%p9473) target = $region128
      $region127: #{tpu_custom_call.1} parent=5 // pred_region
        %s9476 = ssub.s32 %s35, 2
      $region128: #{tpu_custom_call.1} parent=5 // pred_fallthru
        _
    $region6: #{tpu_custom_call.1} parent=1 // loop_footer
      %s39 = sadd.s32 1, %s35
    $region7: #{tpu_custom_call.1} parent=1 // loop_footer_branch
      %34 = sbr.rel target = $region3
    $region8: #{tpu_custom_call.1} parent=1 // loop_exit
      _
    %9477 = vsyncpa [#allocation6], 1
    %s9478 = scalar_lea.sflag [#allocation6], 1
    %9479 = vsyncpa %s9478, 1
    %9480 = vsyncpa [#allocation9], 1
    %9481 = vsyncpa [#allocation12], 1
    %s9482 = scalar_lea.sflag [#allocation12], 1
    %9483 = vsyncpa %s9482, 1
    %9484 = vsyncpa [#allocation15], 1
    %s9485 = scalar_lea.sflag [#allocation15], 1
    %9486 = vsyncpa %s9485, 1
    %9487 = vsyncpa [#allocation7], 1
    %s9488 = scalar_lea.sflag [#allocation7], 1
    %9489 = vsyncpa %s9488, 1

</llo_original>
